<compile_context>
chip_gen: v6e
topology: v6e:2x2x1
jax: 0.10.0
libtpu: 0.0.40
codegen_flags: <defaults>
</compile_context>

<pallas_src>
import functools
import numpy as np
import jax
import jax.numpy as jnp
from jax.experimental import pallas as pl
from jax.experimental.pallas import tpu as pltpu


def get_frequency_modes(seq_len, modes=64, mode_select_method="random"):
    """Mirror of FEDformer's get_frequency_modes (seeded here for determinism)."""
    modes = min(modes, seq_len // 2)
    if mode_select_method == "random":
        index = list(range(0, seq_len // 2))
        rng = np.random.RandomState(0)  # original uses an unseeded np.random.shuffle
        rng.shuffle(index)
        index = index[:modes]
    else:
        index = list(range(0, modes))
    index.sort()
    return index


def _fedformer_encoder_kernel(
        x_ref, wq_ref, wfc_ref, w1_ref, w2_ref, wr_ref, wi_ref,
        fdft_ref, idft_ref, ma_ref, gamma_ref, beta_ref,
        out_ref, x_sc,
        *, b_tile, n_heads, n_modes, e_chunk, activation, dense_mix_lanes):
    f32 = jnp.float32
    bL, D = x_sc.shape
    L = bL // b_tile
    H = n_heads
    E = D // H                       # in-features per head
    Fh = wr_ref.shape[1]             # out-features per head (= E)
    M = n_modes
    HM = H * M

    layer = pl.program_id(1)

    @pl.when(layer == 0)
    def _():
        x_sc[...] = x_ref[...].reshape(bL, D).astype(f32)

    def mxu(a, b):                    # bf16 MXU operands, f32 accumulation
        return jnp.dot(a.astype(jnp.bfloat16), b.astype(jnp.bfloat16),
                       preferred_element_type=f32)

    x2d = x_sc[...]                   # [bL, D] f32 — batch folded into rows

    # ------------------- FourierBlock "attention" (query path) -------------------
    q2d = mxu(x2d, wq_ref[...])                                    # [bL, D]
    # time-minor view: rows = (b, h, e) so both DFT matmuls have b_tile*D rows
    qT = q2d.reshape(b_tile, L, D).transpose(0, 2, 1).reshape(b_tile * D, L)
    Xri = mxu(qT, fdft_ref[...])                                   # [bD, 2M] (real | imag)

    if dense_mix_lanes:
        # lanes = flattened (h, m): full 128-lane vregs in the hot VPU region
        def to_mix(x_bd_m):           # [bD, M] -> [E, b, H*M]
            t = x_bd_m.reshape(b_tile, H, E, M).transpose(2, 0, 1, 3)
            return t.reshape(E, b_tile, HM)

        def from_mix(y):              # [b, Fh, H*M] -> [bD, M], rows = (b, h, f)
            t = y.reshape(b_tile, Fh, H, M).transpose(0, 2, 1, 3)
            return t.reshape(b_tile * H * Fh, M)

        acc_shape = (b_tile, Fh, HM)
    else:
        # conservative layout (minor stays M): avoids lane-merging reshapes entirely
        def to_mix(x_bd_m):           # [bD, M] -> [E, b, H, M]
            return x_bd_m.reshape(b_tile, H, E, M).transpose(2, 0, 1, 3)

        def from_mix(y):              # [b, Fh, H, M] -> [bD, M]
            return y.transpose(0, 2, 1, 3).reshape(b_tile * H * Fh, M)

        acc_shape = (b_tile, Fh, H, M)

    Xr = to_mix(Xri[:, :M])
    Xi = to_mix(Xri[:, M:])

    # complex per-head mode mixing  Y[b,h,f,m] = sum_e X[b,h,e,m] * W[h,e,f,m]
    # vectorized over (b, f, h, m); the e-reduction is an outer-axis accumulation,
    # chunked so the broadcast [ec, b, Fh, ...] transient stays ~1 MiB.
    Yr = jnp.zeros(acc_shape, f32)
    Yi = jnp.zeros(acc_shape, f32)
    for e0 in range(0, E, e_chunk):
        ec = min(e_chunk, E - e0)
        xr = jnp.expand_dims(Xr[e0:e0 + ec], 2)                    # [ec, b, 1, ...]
        xi = jnp.expand_dims(Xi[e0:e0 + ec], 2)
        wr = jnp.expand_dims(wr_ref[pl.ds(e0, ec)], 1).astype(f32)  # [ec, 1, Fh, ...]
        wi = jnp.expand_dims(wi_ref[pl.ds(e0, ec)], 1).astype(f32)
        Yr = Yr + jnp.sum(xr * wr - xi * wi, axis=0)
        Yi = Yi + jnp.sum(xr * wi + xi * wr, axis=0)

    Yri = jnp.concatenate([from_mix(Yr), from_mix(Yi)], axis=-1)   # [bD, 2M]
    attnT = mxu(Yri, idft_ref[...])                                # [bD, L] inverse DFT
    attn = attnT.reshape(b_tile, D, L).transpose(0, 2, 1).reshape(bL, D)
    new_x = mxu(attn, wfc_ref[...])                                # out projection

    # -------------- residual + series decomposition 1 (dropout = identity) --------------
    ma = ma_ref[...]                  # [bL, bL] block-diag replicate-pad averaging operator
    xres = x2d + new_x
    seas = xres - mxu(ma, xres)

    # ----------------------- position-wise FFN (two 1x1 convs) -----------------------
    y = mxu(seas, w1_ref[...])
    if activation == "relu":
        y = jnp.maximum(y, 0.0)
    else:
        y = jax.nn.gelu(y, approximate=True)
    y = mxu(y, w2_ref[...])

    # -------------------- residual + series decomposition 2 --------------------
    s = seas + y
    x_sc[...] = s - mxu(ma, s)

    # --------------- final SeasonalLayerNorm (only after the last layer) ---------------
    @pl.when(layer == pl.num_programs(1) - 1)
    def _():
        xn = x_sc[...]                # re-read from scratch: keeps live ranges short
        mean = jnp.mean(xn, axis=-1, keepdims=True)
        var = jnp.mean((xn - mean) ** 2, axis=-1, keepdims=True)
        xh = (xn - mean) * jax.lax.rsqrt(var + 1e-5)
        xh = xh * gamma_ref[...] + beta_ref[...]
        x3 = xh.reshape(b_tile, L, D)
        bias = jnp.mean(x3, axis=1, keepdims=True)      # per-sample mean over time
        out_ref[...] = (x3 - bias).astype(out_ref.dtype)


class FEDformerEncoderPallas:
    def __init__(self, n_steps, n_layers, d_model, n_heads, d_ffn,
                 moving_avg_window_size, dropout, version="Fourier", modes=32,
                 mode_select="random", activation="relu", seed=0):
        assert version == "Fourier", "Only the Fourier version is implemented."
        # FourierBlock's weight tensor hard-codes 8 heads (torch.rand(8, D//8, D//8, M)).
        assert n_heads == 8 and d_model % 8 == 0
        assert moving_avg_window_size % 2 == 1, "odd window keeps sequence length fixed"

        self.n_steps, self.n_layers, self.d_model = n_steps, n_layers, d_model
        self.n_heads, self.d_ffn, self.activation = n_heads, d_ffn, activation
        self.k_window = moving_avg_window_size
        L, D, F, H = n_steps, d_model, d_ffn, n_heads
        E = D // H

        index = get_frequency_modes(L, modes=modes, mode_select_method=mode_select)
        M = len(index)
        self.M = M

        # ---------------- deterministic synthetic parameters ----------------
        key = jax.random.PRNGKey(seed)
        keys = jax.random.split(key, 4 * n_layers + 2)

        def uni(k, shape, bound):
            return jax.random.uniform(k, shape, jnp.float32, -bound, bound)

        wq, wfc, w1, w2 = [], [], [], []
        for l in range(n_layers):
            k0, k1, k2, k3 = keys[4 * l:4 * l + 4]
            wq.append(uni(k0, (D, D), 1.0 / np.sqrt(D)))    # query projection (bias-free)
            wfc.append(uni(k1, (D, D), 1.0 / np.sqrt(D)))   # out projection
            w1.append(uni(k2, (D, F), 1.0 / np.sqrt(D)))    # Conv1d(D, F, 1, bias=False)
            w2.append(uni(k3, (F, D), 1.0 / np.sqrt(F)))    # Conv1d(F, D, 1, bias=False)
        self.wq_all = jnp.stack(wq).astype(jnp.bfloat16)
        self.wfc_all = jnp.stack(wfc).astype(jnp.bfloat16)
        self.w1_all = jnp.stack(w1).astype(jnp.bfloat16)
        self.w2_all = jnp.stack(w2).astype(jnp.bfloat16)

        # FourierBlock weights (single shared instance): scale*rand(8, E, E, M), complex.
        # Stored pre-permuted to the kernel's mixing layout [E_in, F_head, H, M]
        # (flattened to [E_in, F_head, H*M] for the lane-dense path at call time).
        scale = 1.0 / (D * D)
        kf1, kf2 = keys[-2], keys[-1]
        w_real = np.asarray(scale * jax.random.uniform(kf1, (H, E, E, M), jnp.float32))
        w_imag = np.asarray(scale * jax.random.uniform(kf2, (H, E, E, M), jnp.float32))
        self.wr4 = jnp.asarray(np.transpose(w_real, (1, 2, 0, 3)), jnp.bfloat16)  # [E,F,H,M]
        self.wi4 = jnp.asarray(np.transpose(w_imag, (1, 2, 0, 3)), jnp.bfloat16)

        # real-DFT matrices (rfft/irfft -> exact DFT matmuls), bf16 for the MXU fast path
        t = np.arange(L, dtype=np.float64)
        ang_f = 2.0 * np.pi * np.outer(t, np.asarray(index, np.float64)) / L       # [L, M]
        self.fdft = jnp.asarray(
            np.concatenate([np.cos(ang_f), -np.sin(ang_f)], axis=1), jnp.bfloat16)  # [L, 2M]
        bins = np.arange(M, dtype=np.float64)
        ck = np.where(bins == 0, 1.0, 2.0)[:, None]   # M <= L//2 -> Nyquist bin never used
        ang_i = 2.0 * np.pi * np.outer(bins, t) / L                                 # [M, L]
        self.idft = jnp.asarray(
            np.concatenate([ck * np.cos(ang_i) / L, -ck * np.sin(ang_i) / L], axis=0),
            jnp.bfloat16)                                                           # [2M, L]

        # SeasonalLayerNorm affine params (LayerNorm defaults)
        self.gamma = jnp.ones((1, D), jnp.float32)
        self.beta = jnp.zeros((1, D), jnp.float32)

        # replicate-padded moving-average operator (banded [L, L]); block-diagonalised
        # over the batch tile at call time so series_decomp is one MXU matmul.
        pad = (self.k_window - 1) // 2
        A = np.zeros((L, L), np.float64)
        for i in range(L):
            for j in range(i - pad, i + pad + 1):
                A[i, min(max(j, 0), L - 1)] += 1.0 / self.k_window
        self._ma_single = A
        self._ma_cache = {}

    def _ma_for(self, b_tile):
        if b_tile not in self._ma_cache:
            blk = np.kron(np.eye(b_tile), self._ma_single)
            self._ma_cache[b_tile] = jnp.asarray(blk, jnp.bfloat16)
        return self._ma_cache[b_tile]

    @staticmethod
    def _vmem_limit_bytes():
        # 3/4 of physical VMEM, capped at 100 MiB (v5e/v6e: 128 MiB, v7x: 64 MiB).
        try:
            cap = int(pltpu.get_tpu_info().vmem_capacity_bytes)
        except Exception:
            cap = 64 * 1024 * 1024
        return int(min(cap * 3 // 4, 100 * 1024 * 1024))

    def _run(self, X, b_tile, dense_mix_lanes, single_buffer_consts):
        B, L, D = X.shape
        F, H, M = self.d_ffn, self.n_heads, self.M
        E = D // H
        n_layers = self.n_layers
        bL = b_tile * L

        # bound the [ec, b_tile, E, H*M] mixing transient to ~1 MiB f32 per chunk
        e_chunk = max(1, min(E, (1 << 20) // max(1, 4 * b_tile * E * H * M)))

        wr = self.wr4.reshape(E, E, H * M) if dense_mix_lanes else self.wr4
        wi = self.wi4.reshape(E, E, H * M) if dense_mix_lanes else self.wi4

        kernel = functools.partial(
            _fedformer_encoder_kernel,
            b_tile=b_tile, n_heads=H, n_modes=M, e_chunk=e_chunk,
            activation=self.activation, dense_mix_lanes=dense_mix_lanes)

        def const_spec(shape):
            imap = lambda b, l: tuple(0 for _ in shape)
            if single_buffer_consts:
                # grid-invariant blocks: one VMEM buffer is enough (frees the dead
                # second buffer Pallas would otherwise allocate for double-buffering).
                return pl.BlockSpec(shape, imap, pipeline_mode=pl.Buffered(1))
            return pl.BlockSpec(shape, imap)

        in_specs = [
            pl.BlockSpec((b_tile, L, D), lambda b, l: (b, 0, 0)),       # X
            pl.BlockSpec((None, D, D), lambda b, l: (l, 0, 0)),         # wq  (per layer)
            pl.BlockSpec((None, D, D), lambda b, l: (l, 0, 0)),         # wfc (per layer)
            pl.BlockSpec((None, D, F), lambda b, l: (l, 0, 0)),         # w1  (per layer)
            pl.BlockSpec((None, F, D), lambda b, l: (l, 0, 0)),         # w2  (per layer)
            const_spec(tuple(wr.shape)),                                # wr  (shared)
            const_spec(tuple(wi.shape)),                                # wi
            const_spec((L, 2 * M)),                                     # forward DFT
            const_spec((2 * M, L)),                                     # inverse DFT
            const_spec((bL, bL)),                                       # moving-average op
            const_spec((1, D)),                                         # gamma
            const_spec((1, D)),                                         # beta
        ]

        return pl.pallas_call(
            kernel,
            out_shape=jax.ShapeDtypeStruct((B, L, D), jnp.float32),
            grid=(B // b_tile, n_layers),
            in_specs=in_specs,
            out_specs=pl.BlockSpec((b_tile, L, D), lambda b, l: (b, 0, 0)),
            scratch_shapes=[pltpu.VMEM((bL, D), jnp.float32)],
            compiler_params=pltpu.CompilerParams(
                dimension_semantics=("parallel", "arbitrary"),
                vmem_limit_bytes=self._vmem_limit_bytes()),
        )(X.astype(jnp.float32),
          self.wq_all, self.wfc_all, self.w1_all, self.w2_all,
          wr, wi, self.fdft, self.idft,
          self._ma_for(b_tile), self.gamma, self.beta)

    def __call__(self, X, attn_mask=None):
        # attn_mask accepted for API parity; FourierBlock ignores it.
        B, L, D = X.shape
        assert L == self.n_steps and D == self.d_model

        # batch tile: large enough to amortise per-layer weight streaming, but keep
        # >= 2 batch blocks so v7x's two TensorCores both get work ("parallel" axis
        # is sharded across cores).  b_tile is capped at 8 because the block-diag
        # moving-average operator grows as (b_tile*L)^2; b_tile*L near a multiple of
        # 256 is preferred for MXU row utilisation.
        cands = [t for t in (8, 4, 2, 1) if B % t == 0]
        good = [t for t in cands if B // t >= 2]
        b_tile = max(good) if good else max(cands)

        try:
            enc_out = self._run(X, b_tile, dense_mix_lanes=True, single_buffer_consts=True)
        except Exception:
            # conservative retry: plain double-buffered constant specs and the
            # non-lane-merged mixing layout (maximally portable lowering).
            enc_out = self._run(X, b_tile, dense_mix_lanes=False, single_buffer_consts=False)

        attns = [None] * self.n_layers   # FourierBlock returns None attention weights
        return enc_out, attns


if __name__ == "__main__":
    B, L, D, H, F = 2, 16, 64, 8, 64
    enc = FEDformerEncoderPallas(
        n_steps=L, n_layers=2, d_model=D, n_heads=H, d_ffn=F,
        moving_avg_window_size=5, dropout=0.1, version="Fourier",
        modes=4, mode_select="random", activation="relu", seed=0)

    X = jax.random.normal(jax.random.PRNGKey(0), (B, L, D), jnp.float32)
    enc_out, attns = enc(X)
    jax.block_until_ready(enc_out)
    assert enc_out.shape == (B, L, D)
    assert len(attns) == 2 and all(a is None for a in attns)
    assert bool(jnp.all(jnp.isfinite(enc_out)))
    print("KERNEL_OK")
</pallas_src>

<mosaic_0001>
module attributes {stable_mosaic.version = 11 : i64} {
  func.func @_fedformer_encoder_kernel(%arg0: i32, %arg1: i32, %arg2: memref<1x16x64xf32, #tpu.memory_space<vmem>>, %arg3: memref<1x64x64xbf16, #tpu.memory_space<vmem>>, %arg4: memref<1x64x64xbf16, #tpu.memory_space<vmem>>, %arg5: memref<1x64x64xbf16, #tpu.memory_space<vmem>>, %arg6: memref<1x64x64xbf16, #tpu.memory_space<vmem>>, %arg7: memref<8x8x32xbf16, #tpu.memory_space<vmem>>, %arg8: memref<8x8x32xbf16, #tpu.memory_space<vmem>>, %arg9: memref<16x8xbf16, #tpu.memory_space<vmem>>, %arg10: memref<8x16xbf16, #tpu.memory_space<vmem>>, %arg11: memref<16x16xbf16, #tpu.memory_space<vmem>>, %arg12: memref<1x64xf32, #tpu.memory_space<vmem>>, %arg13: memref<1x64xf32, #tpu.memory_space<vmem>>, %arg14: memref<1x16x64xf32, #tpu.memory_space<vmem>>, %arg15: memref<16x64xf32, #tpu.memory_space<vmem>>) attributes {dimension_semantics = [#tpu.dimension_semantics<parallel>, #tpu.dimension_semantics<arbitrary>], iteration_bounds = array<i64: 2, 2>, scalar_prefetch = 0 : i64, scratch_operands = 1 : i64, tpu.core_type = #tpu.core_type<tc>, window_params = [{transform_indices = @transform_0, window_bounds = array<i64: 1, 16, 64>}, {transform_indices = @transform_1, window_bounds = array<i64: 1, 64, 64>}, {transform_indices = @transform_2, window_bounds = array<i64: 1, 64, 64>}, {transform_indices = @transform_3, window_bounds = array<i64: 1, 64, 64>}, {transform_indices = @transform_4, window_bounds = array<i64: 1, 64, 64>}, {pipeline_mode = #tpu.pipeline_mode<synchronous>, transform_indices = @transform_5, window_bounds = array<i64: 8, 8, 32>}, {pipeline_mode = #tpu.pipeline_mode<synchronous>, transform_indices = @transform_6, window_bounds = array<i64: 8, 8, 32>}, {pipeline_mode = #tpu.pipeline_mode<synchronous>, transform_indices = @transform_7, window_bounds = array<i64: 16, 8>}, {pipeline_mode = #tpu.pipeline_mode<synchronous>, transform_indices = @transform_8, window_bounds = array<i64: 8, 16>}, {pipeline_mode = #tpu.pipeline_mode<synchronous>, transform_indices = @transform_9, window_bounds = array<i64: 16, 16>}, {pipeline_mode = #tpu.pipeline_mode<synchronous>, transform_indices = @transform_10, window_bounds = array<i64: 1, 64>}, {pipeline_mode = #tpu.pipeline_mode<synchronous>, transform_indices = @transform_11, window_bounds = array<i64: 1, 64>}, {transform_indices = @transform_12, window_bounds = array<i64: 1, 16, 64>}]} {
    %c0_i32 = arith.constant 0 : i32
    %0 = arith.cmpi eq, %arg1, %c0_i32 : i32
    %1 = arith.extui %0 : i1 to i32
    %c0_i32_0 = arith.constant 0 : i32
    %2 = arith.cmpi ne, %1, %c0_i32_0 : i32
    scf.if %2 {
      %c0_41 = arith.constant 0 : index
      %c0_42 = arith.constant 0 : index
      %c0_43 = arith.constant 0 : index
      %86 = vector.load %arg2[%c0_41, %c0_42, %c0_43] : memref<1x16x64xf32, #tpu.memory_space<vmem>>, vector<1x16x64xf32>
      %87 = vector.shape_cast %86 : vector<1x16x64xf32> to vector<16x64xf32>
      %c0_44 = arith.constant 0 : index
      %c0_45 = arith.constant 0 : index
      %88 = vector.load %arg15[%c0_44, %c0_45] : memref<16x64xf32, #tpu.memory_space<vmem>>, vector<16x64xf32>
      tpu.vector_store %arg15[%c0_44, %c0_45], %87 {strides = array<i32>} : memref<16x64xf32, #tpu.memory_space<vmem>>, vector<16x64xf32>,
    } else {
    }
    %c0 = arith.constant 0 : index
    %c0_1 = arith.constant 0 : index
    %3 = vector.load %arg15[%c0, %c0_1] : memref<16x64xf32, #tpu.memory_space<vmem>>, vector<16x64xf32>
    %c0_2 = arith.constant 0 : index
    %c0_3 = arith.constant 0 : index
    %c0_4 = arith.constant 0 : index
    %4 = vector.load %arg3[%c0_2, %c0_3, %c0_4] : memref<1x64x64xbf16, #tpu.memory_space<vmem>>, vector<1x64x64xbf16>
    %5 = vector.shape_cast %4 : vector<1x64x64xbf16> to vector<64x64xbf16>
    %6 = arith.truncf %3 : vector<16x64xf32> to vector<16x64xbf16>
    %cst = arith.constant dense<0.000000e+00> : vector<16x64xf32>
    %7 = tpu.matmul %6, %5, %cst {dimension_numbers = #tpu.dot_dimension_numbers<[1], [0], [0], [1], [0, 0, 1, 1], [], []>} : vector<16x64xbf16>, vector<64x64xbf16>, vector<16x64xf32> -> vector<16x64xf32>
    %8 = vector.shape_cast %7 : vector<16x64xf32> to vector<1x16x64xf32>
    %9 = tpu.transpose %8, [0, 2, 1] : vector<1x16x64xf32> -> vector<1x64x16xf32>
    %10 = vector.shape_cast %9 : vector<1x64x16xf32> to vector<64x16xf32>
    %c0_5 = arith.constant 0 : index
    %c0_6 = arith.constant 0 : index
    %11 = vector.load %arg9[%c0_5, %c0_6] : memref<16x8xbf16, #tpu.memory_space<vmem>>, vector<16x8xbf16>
    %12 = arith.truncf %10 : vector<64x16xf32> to vector<64x16xbf16>
    %cst_7 = arith.constant dense<0.000000e+00> : vector<64x8xf32>
    %13 = tpu.matmul %12, %11, %cst_7 {dimension_numbers = #tpu.dot_dimension_numbers<[1], [0], [0], [1], [0, 0, 1, 1], [], []>} : vector<64x16xbf16>, vector<16x8xbf16>, vector<64x8xf32> -> vector<64x8xf32>
    %14 = vector.extract_strided_slice %13 {offsets = [0, 0], sizes = [64, 4], strides = [1, 1]} : vector<64x8xf32> to vector<64x4xf32>
    %15 = vector.shape_cast %14 : vector<64x4xf32> to vector<1x8x8x4xf32>
    %16 = tpu.transpose %15, [2, 0, 1, 3] : vector<1x8x8x4xf32> -> vector<8x1x8x4xf32>
    %17 = vector.shape_cast %16 : vector<8x1x8x4xf32> to vector<8x1x32xf32>
    %18 = vector.extract_strided_slice %13 {offsets = [0, 4], sizes = [64, 4], strides = [1, 1]} : vector<64x8xf32> to vector<64x4xf32>
    %19 = vector.shape_cast %18 : vector<64x4xf32> to vector<1x8x8x4xf32>
    %20 = tpu.transpose %19, [2, 0, 1, 3] : vector<1x8x8x4xf32> -> vector<8x1x8x4xf32>
    %21 = vector.shape_cast %20 : vector<8x1x8x4xf32> to vector<8x1x32xf32>
    %cst_8 = arith.constant 0.000000e+00 : f32
    %22 = vector.broadcast %cst_8 : f32 to vector<1x8x32xf32>
    %cst_9 = arith.constant 0.000000e+00 : f32
    %23 = vector.broadcast %cst_9 : f32 to vector<1x8x32xf32>
    %24 = vector.shape_cast %17 : vector<8x1x32xf32> to vector<8x1x1x32xf32>
    %25 = vector.shape_cast %21 : vector<8x1x32xf32> to vector<8x1x1x32xf32>
    %c0_10 = arith.constant 0 : index
    %c0_11 = arith.constant 0 : index
    %c0_12 = arith.constant 0 : index
    %26 = vector.load %arg7[%c0_10, %c0_11, %c0_12] : memref<8x8x32xbf16, #tpu.memory_space<vmem>>, vector<8x8x32xbf16>
    %27 = vector.shape_cast %26 : vector<8x8x32xbf16> to vector<8x1x8x32xbf16>
    %28 = arith.extf %27 : vector<8x1x8x32xbf16> to vector<8x1x8x32xf32>
    %c0_13 = arith.constant 0 : index
    %c0_14 = arith.constant 0 : index
    %c0_15 = arith.constant 0 : index
    %29 = vector.load %arg8[%c0_13, %c0_14, %c0_15] : memref<8x8x32xbf16, #tpu.memory_space<vmem>>, vector<8x8x32xbf16>
    %30 = vector.shape_cast %29 : vector<8x8x32xbf16> to vector<8x1x8x32xbf16>
    %31 = arith.extf %30 : vector<8x1x8x32xbf16> to vector<8x1x8x32xf32>
    %32 = vector.broadcast %24 : vector<8x1x1x32xf32> to vector<8x1x8x32xf32>
    %33 = arith.mulf %32, %28 : vector<8x1x8x32xf32>
    %34 = vector.broadcast %25 : vector<8x1x1x32xf32> to vector<8x1x8x32xf32>
    %35 = arith.mulf %34, %31 : vector<8x1x8x32xf32>
    %36 = arith.subf %33, %35 : vector<8x1x8x32xf32>
    %cst_16 = arith.constant dense<0.000000e+00> : vector<1x8x32xf32>
    %37 = vector.multi_reduction <add>, %36, %cst_16 [0] : vector<8x1x8x32xf32> to vector<1x8x32xf32>
    %38 = arith.addf %22, %37 : vector<1x8x32xf32>
    %39 = vector.broadcast %24 : vector<8x1x1x32xf32> to vector<8x1x8x32xf32>
    %40 = arith.mulf %39, %31 : vector<8x1x8x32xf32>
    %41 = vector.broadcast %25 : vector<8x1x1x32xf32> to vector<8x1x8x32xf32>
    %42 = arith.mulf %41, %28 : vector<8x1x8x32xf32>
    %43 = arith.addf %40, %42 : vector<8x1x8x32xf32>
    %cst_17 = arith.constant dense<0.000000e+00> : vector<1x8x32xf32>
    %44 = vector.multi_reduction <add>, %43, %cst_17 [0] : vector<8x1x8x32xf32> to vector<1x8x32xf32>
    %45 = arith.addf %23, %44 : vector<1x8x32xf32>
    %46 = vector.shape_cast %38 : vector<1x8x32xf32> to vector<1x8x8x4xf32>
    %47 = tpu.transpose %46, [0, 2, 1, 3] : vector<1x8x8x4xf32> -> vector<1x8x8x4xf32>
    %48 = vector.shape_cast %47 : vector<1x8x8x4xf32> to vector<64x4xf32>
    %49 = vector.shape_cast %45 : vector<1x8x32xf32> to vector<1x8x8x4xf32>
    %50 = tpu.transpose %49, [0, 2, 1, 3] : vector<1x8x8x4xf32> -> vector<1x8x8x4xf32>
    %51 = vector.shape_cast %50 : vector<1x8x8x4xf32> to vector<64x4xf32>
    %52 = tpu.concatenate %48, %51 in 1 : vector<64x4xf32>, vector<64x4xf32> -> vector<64x8xf32>
    %c0_18 = arith.constant 0 : index
    %c0_19 = arith.constant 0 : index
    %53 = vector.load %arg10[%c0_18, %c0_19] : memref<8x16xbf16, #tpu.memory_space<vmem>>, vector<8x16xbf16>
    %54 = arith.truncf %52 : vector<64x8xf32> to vector<64x8xbf16>
    %cst_20 = arith.constant dense<0.000000e+00> : vector<64x16xf32>
    %55 = tpu.matmul %54, %53, %cst_20 {dimension_numbers = #tpu.dot_dimension_numbers<[1], [0], [0], [1], [0, 0, 1, 1], [], []>} : vector<64x8xbf16>, vector<8x16xbf16>, vector<64x16xf32> -> vector<64x16xf32>
    %56 = vector.shape_cast %55 : vector<64x16xf32> to vector<1x64x16xf32>
    %57 = tpu.transpose %56, [0, 2, 1] : vector<1x64x16xf32> -> vector<1x16x64xf32>
    %58 = vector.shape_cast %57 : vector<1x16x64xf32> to vector<16x64xf32>
    %c0_21 = arith.constant 0 : index
    %c0_22 = arith.constant 0 : index
    %c0_23 = arith.constant 0 : index
    %59 = vector.load %arg4[%c0_21, %c0_22, %c0_23] : memref<1x64x64xbf16, #tpu.memory_space<vmem>>, vector<1x64x64xbf16>
    %60 = vector.shape_cast %59 : vector<1x64x64xbf16> to vector<64x64xbf16>
    %61 = arith.truncf %58 : vector<16x64xf32> to vector<16x64xbf16>
    %cst_24 = arith.constant dense<0.000000e+00> : vector<16x64xf32>
    %62 = tpu.matmul %61, %60, %cst_24 {dimension_numbers = #tpu.dot_dimension_numbers<[1], [0], [0], [1], [0, 0, 1, 1], [], []>} : vector<16x64xbf16>, vector<64x64xbf16>, vector<16x64xf32> -> vector<16x64xf32>
    %c0_25 = arith.constant 0 : index
    %c0_26 = arith.constant 0 : index
    %63 = vector.load %arg11[%c0_25, %c0_26] : memref<16x16xbf16, #tpu.memory_space<vmem>>, vector<16x16xbf16>
    %64 = arith.addf %3, %62 : vector<16x64xf32>
    %65 = arith.truncf %64 : vector<16x64xf32> to vector<16x64xbf16>
    %cst_27 = arith.constant dense<0.000000e+00> : vector<16x64xf32>
    %66 = tpu.matmul %63, %65, %cst_27 {dimension_numbers = #tpu.dot_dimension_numbers<[1], [0], [0], [1], [0, 0, 1, 1], [], []>} : vector<16x16xbf16>, vector<16x64xbf16>, vector<16x64xf32> -> vector<16x64xf32>
    %67 = arith.subf %64, %66 : vector<16x64xf32>
    %c0_28 = arith.constant 0 : index
    %c0_29 = arith.constant 0 : index
    %c0_30 = arith.constant 0 : index
    %68 = vector.load %arg5[%c0_28, %c0_29, %c0_30] : memref<1x64x64xbf16, #tpu.memory_space<vmem>>, vector<1x64x64xbf16>
    %69 = vector.shape_cast %68 : vector<1x64x64xbf16> to vector<64x64xbf16>
    %70 = arith.truncf %67 : vector<16x64xf32> to vector<16x64xbf16>
    %cst_31 = arith.constant dense<0.000000e+00> : vector<16x64xf32>
    %71 = tpu.matmul %70, %69, %cst_31 {dimension_numbers = #tpu.dot_dimension_numbers<[1], [0], [0], [1], [0, 0, 1, 1], [], []>} : vector<16x64xbf16>, vector<64x64xbf16>, vector<16x64xf32> -> vector<16x64xf32>
    %cst_32 = arith.constant 0.000000e+00 : f32
    %72 = vector.broadcast %cst_32 : f32 to vector<16x64xf32>
    %73 = arith.maximumf %71, %72 : vector<16x64xf32>
    %c0_33 = arith.constant 0 : index
    %c0_34 = arith.constant 0 : index
    %c0_35 = arith.constant 0 : index
    %74 = vector.load %arg6[%c0_33, %c0_34, %c0_35] : memref<1x64x64xbf16, #tpu.memory_space<vmem>>, vector<1x64x64xbf16>
    %75 = vector.shape_cast %74 : vector<1x64x64xbf16> to vector<64x64xbf16>
    %76 = arith.truncf %73 : vector<16x64xf32> to vector<16x64xbf16>
    %cst_36 = arith.constant dense<0.000000e+00> : vector<16x64xf32>
    %77 = tpu.matmul %76, %75, %cst_36 {dimension_numbers = #tpu.dot_dimension_numbers<[1], [0], [0], [1], [0, 0, 1, 1], [], []>} : vector<16x64xbf16>, vector<64x64xbf16>, vector<16x64xf32> -> vector<16x64xf32>
    %78 = arith.addf %67, %77 : vector<16x64xf32>
    %79 = arith.truncf %78 : vector<16x64xf32> to vector<16x64xbf16>
    %cst_37 = arith.constant dense<0.000000e+00> : vector<16x64xf32>
    %80 = tpu.matmul %63, %79, %cst_37 {dimension_numbers = #tpu.dot_dimension_numbers<[1], [0], [0], [1], [0, 0, 1, 1], [], []>} : vector<16x16xbf16>, vector<16x64xbf16>, vector<16x64xf32> -> vector<16x64xf32>
    %81 = arith.subf %78, %80 : vector<16x64xf32>
    %c0_38 = arith.constant 0 : index
    %c0_39 = arith.constant 0 : index
    %82 = vector.load %arg15[%c0_38, %c0_39] : memref<16x64xf32, #tpu.memory_space<vmem>>, vector<16x64xf32>
    tpu.vector_store %arg15[%c0_38, %c0_39], %81 {strides = array<i32>} : memref<16x64xf32, #tpu.memory_space<vmem>>, vector<16x64xf32>,
    %c1_i32 = arith.constant 1 : i32
    %83 = arith.cmpi eq, %arg1, %c1_i32 : i32
    %84 = arith.extui %83 : i1 to i32
    %c0_i32_40 = arith.constant 0 : i32
    %85 = arith.cmpi ne, %84, %c0_i32_40 : i32
    scf.if %85 {
      %c0_41 = arith.constant 0 : index
      %c0_42 = arith.constant 0 : index
      %86 = vector.load %arg15[%c0_41, %c0_42] : memref<16x64xf32, #tpu.memory_space<vmem>>, vector<16x64xf32>
      %cst_43 = arith.constant dense<0.000000e+00> : vector<16xf32>
      %87 = vector.multi_reduction <add>, %86, %cst_43 [1] : vector<16x64xf32> to vector<16xf32>
      %88 = vector.shape_cast %87 : vector<16xf32> to vector<16x1xf32>
      %cst_44 = arith.constant 6.400000e+01 : f32
      %89 = vector.broadcast %cst_44 : f32 to vector<16x1xf32>
      %90 = arith.divf %88, %89 : vector<16x1xf32>
      %91 = vector.broadcast %90 : vector<16x1xf32> to vector<16x64xf32>
      %92 = arith.subf %86, %91 : vector<16x64xf32>
      %93 = arith.mulf %92, %92 : vector<16x64xf32>
      %cst_45 = arith.constant dense<0.000000e+00> : vector<16xf32>
      %94 = vector.multi_reduction <add>, %93, %cst_45 [1] : vector<16x64xf32> to vector<16xf32>
      %95 = vector.shape_cast %94 : vector<16xf32> to vector<16x1xf32>
      %cst_46 = arith.constant 6.400000e+01 : f32
      %96 = vector.broadcast %cst_46 : f32 to vector<16x1xf32>
      %97 = arith.divf %95, %96 : vector<16x1xf32>
      %98 = vector.broadcast %90 : vector<16x1xf32> to vector<16x64xf32>
      %99 = arith.subf %86, %98 : vector<16x64xf32>
      %cst_47 = arith.constant 9.99999974E-6 : f32
      %100 = vector.broadcast %cst_47 : f32 to vector<16x1xf32>
      %101 = arith.addf %97, %100 : vector<16x1xf32>
      %102 = math.rsqrt %101 : vector<16x1xf32>
      %103 = vector.broadcast %102 : vector<16x1xf32> to vector<16x64xf32>
      %104 = arith.mulf %99, %103 : vector<16x64xf32>
      %c0_48 = arith.constant 0 : index
      %c0_49 = arith.constant 0 : index
      %105 = vector.load %arg12[%c0_48, %c0_49] : memref<1x64xf32, #tpu.memory_space<vmem>>, vector<1x64xf32>
      %106 = vector.broadcast %105 : vector<1x64xf32> to vector<16x64xf32>
      %107 = arith.mulf %104, %106 : vector<16x64xf32>
      %c0_50 = arith.constant 0 : index
      %c0_51 = arith.constant 0 : index
      %108 = vector.load %arg13[%c0_50, %c0_51] : memref<1x64xf32, #tpu.memory_space<vmem>>, vector<1x64xf32>
      %109 = vector.broadcast %108 : vector<1x64xf32> to vector<16x64xf32>
      %110 = arith.addf %107, %109 : vector<16x64xf32>
      %111 = vector.shape_cast %110 : vector<16x64xf32> to vector<1x16x64xf32>
      %cst_52 = arith.constant dense<0.000000e+00> : vector<1x64xf32>
      %112 = vector.multi_reduction <add>, %111, %cst_52 [1] : vector<1x16x64xf32> to vector<1x64xf32>
      %113 = vector.shape_cast %112 : vector<1x64xf32> to vector<1x1x64xf32>
      %cst_53 = arith.constant 1.600000e+01 : f32
      %114 = vector.broadcast %cst_53 : f32 to vector<1x1x64xf32>
      %115 = arith.divf %113, %114 : vector<1x1x64xf32>
      %116 = vector.broadcast %115 : vector<1x1x64xf32> to vector<1x16x64xf32>
      %117 = arith.subf %111, %116 : vector<1x16x64xf32>
      %c0_54 = arith.constant 0 : index
      %c0_55 = arith.constant 0 : index
      %c0_56 = arith.constant 0 : index
      %118 = vector.load %arg14[%c0_54, %c0_55, %c0_56] : memref<1x16x64xf32, #tpu.memory_space<vmem>>, vector<1x16x64xf32>
      tpu.vector_store %arg14[%c0_54, %c0_55, %c0_56], %117 {strides = array<i32>} : memref<1x16x64xf32, #tpu.memory_space<vmem>>, vector<1x16x64xf32>,
    } else {
    }
    return
  }
  func.func @transform_0(%arg0: i32, %arg1: i32) -> (i32, i32, i32) {
    %c0_i32 = arith.constant 0 : i32
    %c0_i32_0 = arith.constant 0 : i32
    %c0_i32_1 = arith.constant 0 : i32
    return %arg0, %c0_i32, %c0_i32_0 : i32, i32, i32
  }
  func.func @transform_1(%arg0: i32, %arg1: i32) -> (i32, i32, i32) {
    %c0_i32 = arith.constant 0 : i32
    %c0_i32_0 = arith.constant 0 : i32
    %c0_i32_1 = arith.constant 0 : i32
    return %arg1, %c0_i32, %c0_i32_0 : i32, i32, i32
  }
  func.func @transform_2(%arg0: i32, %arg1: i32) -> (i32, i32, i32) {
    %c0_i32 = arith.constant 0 : i32
    %c0_i32_0 = arith.constant 0 : i32
    %c0_i32_1 = arith.constant 0 : i32
    return %arg1, %c0_i32, %c0_i32_0 : i32, i32, i32
  }
  func.func @transform_3(%arg0: i32, %arg1: i32) -> (i32, i32, i32) {
    %c0_i32 = arith.constant 0 : i32
    %c0_i32_0 = arith.constant 0 : i32
    %c0_i32_1 = arith.constant 0 : i32
    return %arg1, %c0_i32, %c0_i32_0 : i32, i32, i32
  }
  func.func @transform_4(%arg0: i32, %arg1: i32) -> (i32, i32, i32) {
    %c0_i32 = arith.constant 0 : i32
    %c0_i32_0 = arith.constant 0 : i32
    %c0_i32_1 = arith.constant 0 : i32
    return %arg1, %c0_i32, %c0_i32_0 : i32, i32, i32
  }
  func.func @transform_5(%arg0: i32, %arg1: i32) -> (i32, i32, i32) {
    %c0_i32 = arith.constant 0 : i32
    %c0_i32_0 = arith.constant 0 : i32
    %c0_i32_1 = arith.constant 0 : i32
    %c0_i32_2 = arith.constant 0 : i32
    return %c0_i32, %c0_i32_0, %c0_i32_1 : i32, i32, i32
  }
  func.func @transform_6(%arg0: i32, %arg1: i32) -> (i32, i32, i32) {
    %c0_i32 = arith.constant 0 : i32
    %c0_i32_0 = arith.constant 0 : i32
    %c0_i32_1 = arith.constant 0 : i32
    %c0_i32_2 = arith.constant 0 : i32
    return %c0_i32, %c0_i32_0, %c0_i32_1 : i32, i32, i32
  }
  func.func @transform_7(%arg0: i32, %arg1: i32) -> (i32, i32) {
    %c0_i32 = arith.constant 0 : i32
    %c0_i32_0 = arith.constant 0 : i32
    %c0_i32_1 = arith.constant 0 : i32
    return %c0_i32, %c0_i32_0 : i32, i32
  }
  func.func @transform_8(%arg0: i32, %arg1: i32) -> (i32, i32) {
    %c0_i32 = arith.constant 0 : i32
    %c0_i32_0 = arith.constant 0 : i32
    %c0_i32_1 = arith.constant 0 : i32
    return %c0_i32, %c0_i32_0 : i32, i32
  }
  func.func @transform_9(%arg0: i32, %arg1: i32) -> (i32, i32) {
    %c0_i32 = arith.constant 0 : i32
    %c0_i32_0 = arith.constant 0 : i32
    %c0_i32_1 = arith.constant 0 : i32
    return %c0_i32, %c0_i32_0 : i32, i32
  }
  func.func @transform_10(%arg0: i32, %arg1: i32) -> (i32, i32) {
    %c0_i32 = arith.constant 0 : i32
    %c0_i32_0 = arith.constant 0 : i32
    %c0_i32_1 = arith.constant 0 : i32
    return %c0_i32, %c0_i32_0 : i32, i32
  }
  func.func @transform_11(%arg0: i32, %arg1: i32) -> (i32, i32) {
    %c0_i32 = arith.constant 0 : i32
    %c0_i32_0 = arith.constant 0 : i32
    %c0_i32_1 = arith.constant 0 : i32
    return %c0_i32, %c0_i32_0 : i32, i32
  }
  func.func @transform_12(%arg0: i32, %arg1: i32) -> (i32, i32, i32) {
    %c0_i32 = arith.constant 0 : i32
    %c0_i32_0 = arith.constant 0 : i32
    %c0_i32_1 = arith.constant 0 : i32
    return %arg0, %c0_i32, %c0_i32_0 : i32, i32, i32
  }
}

module attributes {stable_mosaic.version = 11 : i64} {
  func.func @_fedformer_encoder_kernel(%arg0: i32, %arg1: i32, %arg2: memref<1x16x64xf32, #tpu.memory_space<vmem>>, %arg3: memref<1x64x64xbf16, #tpu.memory_space<vmem>>, %arg4: memref<1x64x64xbf16, #tpu.memory_space<vmem>>, %arg5: memref<1x64x64xbf16, #tpu.memory_space<vmem>>, %arg6: memref<1x64x64xbf16, #tpu.memory_space<vmem>>, %arg7: memref<8x8x8x4xbf16, #tpu.memory_space<vmem>>, %arg8: memref<8x8x8x4xbf16, #tpu.memory_space<vmem>>, %arg9: memref<16x8xbf16, #tpu.memory_space<vmem>>, %arg10: memref<8x16xbf16, #tpu.memory_space<vmem>>, %arg11: memref<16x16xbf16, #tpu.memory_space<vmem>>, %arg12: memref<1x64xf32, #tpu.memory_space<vmem>>, %arg13: memref<1x64xf32, #tpu.memory_space<vmem>>, %arg14: memref<1x16x64xf32, #tpu.memory_space<vmem>>, %arg15: memref<16x64xf32, #tpu.memory_space<vmem>>) attributes {dimension_semantics = [#tpu.dimension_semantics<parallel>, #tpu.dimension_semantics<arbitrary>], iteration_bounds = array<i64: 2, 2>, scalar_prefetch = 0 : i64, scratch_operands = 1 : i64, tpu.core_type = #tpu.core_type<tc>, window_params = [{transform_indices = @transform_0, window_bounds = array<i64: 1, 16, 64>}, {transform_indices = @transform_1, window_bounds = array<i64: 1, 64, 64>}, {transform_indices = @transform_2, window_bounds = array<i64: 1, 64, 64>}, {transform_indices = @transform_3, window_bounds = array<i64: 1, 64, 64>}, {transform_indices = @transform_4, window_bounds = array<i64: 1, 64, 64>}, {pipeline_mode = #tpu.pipeline_mode<synchronous>, transform_indices = @transform_5, window_bounds = array<i64: 8, 8, 8, 4>}, {pipeline_mode = #tpu.pipeline_mode<synchronous>, transform_indices = @transform_6, window_bounds = array<i64: 8, 8, 8, 4>}, {pipeline_mode = #tpu.pipeline_mode<synchronous>, transform_indices = @transform_7, window_bounds = array<i64: 16, 8>}, {pipeline_mode = #tpu.pipeline_mode<synchronous>, transform_indices = @transform_8, window_bounds = array<i64: 8, 16>}, {pipeline_mode = #tpu.pipeline_mode<synchronous>, transform_indices = @transform_9, window_bounds = array<i64: 16, 16>}, {pipeline_mode = #tpu.pipeline_mode<synchronous>, transform_indices = @transform_10, window_bounds = array<i64: 1, 64>}, {pipeline_mode = #tpu.pipeline_mode<synchronous>, transform_indices = @transform_11, window_bounds = array<i64: 1, 64>}, {transform_indices = @transform_12, window_bounds = array<i64: 1, 16, 64>}]} {
    %c0_i32 = arith.constant 0 : i32
    %0 = arith.cmpi eq, %arg1, %c0_i32 : i32
    %1 = arith.extui %0 : i1 to i32
    %c0_i32_0 = arith.constant 0 : i32
    %2 = arith.cmpi ne, %1, %c0_i32_0 : i32
    scf.if %2 {
      %c0_43 = arith.constant 0 : index
      %c0_44 = arith.constant 0 : index
      %c0_45 = arith.constant 0 : index
      %82 = vector.load %arg2[%c0_43, %c0_44, %c0_45] : memref<1x16x64xf32, #tpu.memory_space<vmem>>, vector<1x16x64xf32>
      %83 = vector.shape_cast %82 : vector<1x16x64xf32> to vector<16x64xf32>
      %c0_46 = arith.constant 0 : index
      %c0_47 = arith.constant 0 : index
      %84 = vector.load %arg15[%c0_46, %c0_47] : memref<16x64xf32, #tpu.memory_space<vmem>>, vector<16x64xf32>
      tpu.vector_store %arg15[%c0_46, %c0_47], %83 {strides = array<i32>} : memref<16x64xf32, #tpu.memory_space<vmem>>, vector<16x64xf32>,
    } else {
    }
    %c0 = arith.constant 0 : index
    %c0_1 = arith.constant 0 : index
    %3 = vector.load %arg15[%c0, %c0_1] : memref<16x64xf32, #tpu.memory_space<vmem>>, vector<16x64xf32>
    %c0_2 = arith.constant 0 : index
    %c0_3 = arith.constant 0 : index
    %c0_4 = arith.constant 0 : index
    %4 = vector.load %arg3[%c0_2, %c0_3, %c0_4] : memref<1x64x64xbf16, #tpu.memory_space<vmem>>, vector<1x64x64xbf16>
    %5 = vector.shape_cast %4 : vector<1x64x64xbf16> to vector<64x64xbf16>
    %6 = arith.truncf %3 : vector<16x64xf32> to vector<16x64xbf16>
    %cst = arith.constant dense<0.000000e+00> : vector<16x64xf32>
    %7 = tpu.matmul %6, %5, %cst {dimension_numbers = #tpu.dot_dimension_numbers<[1], [0], [0], [1], [0, 0, 1, 1], [], []>} : vector<16x64xbf16>, vector<64x64xbf16>, vector<16x64xf32> -> vector<16x64xf32>
    %8 = vector.shape_cast %7 : vector<16x64xf32> to vector<1x16x64xf32>
    %9 = tpu.transpose %8, [0, 2, 1] : vector<1x16x64xf32> -> vector<1x64x16xf32>
    %10 = vector.shape_cast %9 : vector<1x64x16xf32> to vector<64x16xf32>
    %c0_5 = arith.constant 0 : index
    %c0_6 = arith.constant 0 : index
    %11 = vector.load %arg9[%c0_5, %c0_6] : memref<16x8xbf16, #tpu.memory_space<vmem>>, vector<16x8xbf16>
    %12 = arith.truncf %10 : vector<64x16xf32> to vector<64x16xbf16>
    %cst_7 = arith.constant dense<0.000000e+00> : vector<64x8xf32>
    %13 = tpu.matmul %12, %11, %cst_7 {dimension_numbers = #tpu.dot_dimension_numbers<[1], [0], [0], [1], [0, 0, 1, 1], [], []>} : vector<64x16xbf16>, vector<16x8xbf16>, vector<64x8xf32> -> vector<64x8xf32>
    %14 = vector.extract_strided_slice %13 {offsets = [0, 0], sizes = [64, 4], strides = [1, 1]} : vector<64x8xf32> to vector<64x4xf32>
    %15 = vector.shape_cast %14 : vector<64x4xf32> to vector<1x8x8x4xf32>
    %16 = tpu.transpose %15, [2, 0, 1, 3] : vector<1x8x8x4xf32> -> vector<8x1x8x4xf32>
    %17 = vector.extract_strided_slice %13 {offsets = [0, 4], sizes = [64, 4], strides = [1, 1]} : vector<64x8xf32> to vector<64x4xf32>
    %18 = vector.shape_cast %17 : vector<64x4xf32> to vector<1x8x8x4xf32>
    %19 = tpu.transpose %18, [2, 0, 1, 3] : vector<1x8x8x4xf32> -> vector<8x1x8x4xf32>
    %cst_8 = arith.constant 0.000000e+00 : f32
    %20 = vector.broadcast %cst_8 : f32 to vector<1x8x8x4xf32>
    %cst_9 = arith.constant 0.000000e+00 : f32
    %21 = vector.broadcast %cst_9 : f32 to vector<1x8x8x4xf32>
    %22 = vector.shape_cast %16 : vector<8x1x8x4xf32> to vector<8x1x1x8x4xf32>
    %23 = vector.shape_cast %19 : vector<8x1x8x4xf32> to vector<8x1x1x8x4xf32>
    %c0_10 = arith.constant 0 : index
    %c0_11 = arith.constant 0 : index
    %c0_12 = arith.constant 0 : index
    %c0_13 = arith.constant 0 : index
    %24 = vector.load %arg7[%c0_10, %c0_11, %c0_12, %c0_13] : memref<8x8x8x4xbf16, #tpu.memory_space<vmem>>, vector<8x8x8x4xbf16>
    %25 = vector.shape_cast %24 : vector<8x8x8x4xbf16> to vector<8x1x8x8x4xbf16>
    %26 = arith.extf %25 : vector<8x1x8x8x4xbf16> to vector<8x1x8x8x4xf32>
    %c0_14 = arith.constant 0 : index
    %c0_15 = arith.constant 0 : index
    %c0_16 = arith.constant 0 : index
    %c0_17 = arith.constant 0 : index
    %27 = vector.load %arg8[%c0_14, %c0_15, %c0_16, %c0_17] : memref<8x8x8x4xbf16, #tpu.memory_space<vmem>>, vector<8x8x8x4xbf16>
    %28 = vector.shape_cast %27 : vector<8x8x8x4xbf16> to vector<8x1x8x8x4xbf16>
    %29 = arith.extf %28 : vector<8x1x8x8x4xbf16> to vector<8x1x8x8x4xf32>
    %30 = vector.broadcast %22 : vector<8x1x1x8x4xf32> to vector<8x1x8x8x4xf32>
    %31 = arith.mulf %30, %26 : vector<8x1x8x8x4xf32>
    %32 = vector.broadcast %23 : vector<8x1x1x8x4xf32> to vector<8x1x8x8x4xf32>
    %33 = arith.mulf %32, %29 : vector<8x1x8x8x4xf32>
    %34 = arith.subf %31, %33 : vector<8x1x8x8x4xf32>
    %cst_18 = arith.constant dense<0.000000e+00> : vector<1x8x8x4xf32>
    %35 = vector.multi_reduction <add>, %34, %cst_18 [0] : vector<8x1x8x8x4xf32> to vector<1x8x8x4xf32>
    %36 = arith.addf %20, %35 : vector<1x8x8x4xf32>
    %37 = vector.broadcast %22 : vector<8x1x1x8x4xf32> to vector<8x1x8x8x4xf32>
    %38 = arith.mulf %37, %29 : vector<8x1x8x8x4xf32>
    %39 = vector.broadcast %23 : vector<8x1x1x8x4xf32> to vector<8x1x8x8x4xf32>
    %40 = arith.mulf %39, %26 : vector<8x1x8x8x4xf32>
    %41 = arith.addf %38, %40 : vector<8x1x8x8x4xf32>
    %cst_19 = arith.constant dense<0.000000e+00> : vector<1x8x8x4xf32>
    %42 = vector.multi_reduction <add>, %41, %cst_19 [0] : vector<8x1x8x8x4xf32> to vector<1x8x8x4xf32>
    %43 = arith.addf %21, %42 : vector<1x8x8x4xf32>
    %44 = tpu.transpose %36, [0, 2, 1, 3] : vector<1x8x8x4xf32> -> vector<1x8x8x4xf32>
    %45 = vector.shape_cast %44 : vector<1x8x8x4xf32> to vector<64x4xf32>
    %46 = tpu.transpose %43, [0, 2, 1, 3] : vector<1x8x8x4xf32> -> vector<1x8x8x4xf32>
    %47 = vector.shape_cast %46 : vector<1x8x8x4xf32> to vector<64x4xf32>
    %48 = tpu.concatenate %45, %47 in 1 : vector<64x4xf32>, vector<64x4xf32> -> vector<64x8xf32>
    %c0_20 = arith.constant 0 : index
    %c0_21 = arith.constant 0 : index
    %49 = vector.load %arg10[%c0_20, %c0_21] : memref<8x16xbf16, #tpu.memory_space<vmem>>, vector<8x16xbf16>
    %50 = arith.truncf %48 : vector<64x8xf32> to vector<64x8xbf16>
    %cst_22 = arith.constant dense<0.000000e+00> : vector<64x16xf32>
    %51 = tpu.matmul %50, %49, %cst_22 {dimension_numbers = #tpu.dot_dimension_numbers<[1], [0], [0], [1], [0, 0, 1, 1], [], []>} : vector<64x8xbf16>, vector<8x16xbf16>, vector<64x16xf32> -> vector<64x16xf32>
    %52 = vector.shape_cast %51 : vector<64x16xf32> to vector<1x64x16xf32>
    %53 = tpu.transpose %52, [0, 2, 1] : vector<1x64x16xf32> -> vector<1x16x64xf32>
    %54 = vector.shape_cast %53 : vector<1x16x64xf32> to vector<16x64xf32>
    %c0_23 = arith.constant 0 : index
    %c0_24 = arith.constant 0 : index
    %c0_25 = arith.constant 0 : index
    %55 = vector.load %arg4[%c0_23, %c0_24, %c0_25] : memref<1x64x64xbf16, #tpu.memory_space<vmem>>, vector<1x64x64xbf16>
    %56 = vector.shape_cast %55 : vector<1x64x64xbf16> to vector<64x64xbf16>
    %57 = arith.truncf %54 : vector<16x64xf32> to vector<16x64xbf16>
    %cst_26 = arith.constant dense<0.000000e+00> : vector<16x64xf32>
    %58 = tpu.matmul %57, %56, %cst_26 {dimension_numbers = #tpu.dot_dimension_numbers<[1], [0], [0], [1], [0, 0, 1, 1], [], []>} : vector<16x64xbf16>, vector<64x64xbf16>, vector<16x64xf32> -> vector<16x64xf32>
    %c0_27 = arith.constant 0 : index
    %c0_28 = arith.constant 0 : index
    %59 = vector.load %arg11[%c0_27, %c0_28] : memref<16x16xbf16, #tpu.memory_space<vmem>>, vector<16x16xbf16>
    %60 = arith.addf %3, %58 : vector<16x64xf32>
    %61 = arith.truncf %60 : vector<16x64xf32> to vector<16x64xbf16>
    %cst_29 = arith.constant dense<0.000000e+00> : vector<16x64xf32>
    %62 = tpu.matmul %59, %61, %cst_29 {dimension_numbers = #tpu.dot_dimension_numbers<[1], [0], [0], [1], [0, 0, 1, 1], [], []>} : vector<16x16xbf16>, vector<16x64xbf16>, vector<16x64xf32> -> vector<16x64xf32>
    %63 = arith.subf %60, %62 : vector<16x64xf32>
    %c0_30 = arith.constant 0 : index
    %c0_31 = arith.constant 0 : index
    %c0_32 = arith.constant 0 : index
    %64 = vector.load %arg5[%c0_30, %c0_31, %c0_32] : memref<1x64x64xbf16, #tpu.memory_space<vmem>>, vector<1x64x64xbf16>
    %65 = vector.shape_cast %64 : vector<1x64x64xbf16> to vector<64x64xbf16>
    %66 = arith.truncf %63 : vector<16x64xf32> to vector<16x64xbf16>
    %cst_33 = arith.constant dense<0.000000e+00> : vector<16x64xf32>
    %67 = tpu.matmul %66, %65, %cst_33 {dimension_numbers = #tpu.dot_dimension_numbers<[1], [0], [0], [1], [0, 0, 1, 1], [], []>} : vector<16x64xbf16>, vector<64x64xbf16>, vector<16x64xf32> -> vector<16x64xf32>
    %cst_34 = arith.constant 0.000000e+00 : f32
    %68 = vector.broadcast %cst_34 : f32 to vector<16x64xf32>
    %69 = arith.maximumf %67, %68 : vector<16x64xf32>
    %c0_35 = arith.constant 0 : index
    %c0_36 = arith.constant 0 : index
    %c0_37 = arith.constant 0 : index
    %70 = vector.load %arg6[%c0_35, %c0_36, %c0_37] : memref<1x64x64xbf16, #tpu.memory_space<vmem>>, vector<1x64x64xbf16>
    %71 = vector.shape_cast %70 : vector<1x64x64xbf16> to vector<64x64xbf16>
    %72 = arith.truncf %69 : vector<16x64xf32> to vector<16x64xbf16>
    %cst_38 = arith.constant dense<0.000000e+00> : vector<16x64xf32>
    %73 = tpu.matmul %72, %71, %cst_38 {dimension_numbers = #tpu.dot_dimension_numbers<[1], [0], [0], [1], [0, 0, 1, 1], [], []>} : vector<16x64xbf16>, vector<64x64xbf16>, vector<16x64xf32> -> vector<16x64xf32>
    %74 = arith.addf %63, %73 : vector<16x64xf32>
    %75 = arith.truncf %74 : vector<16x64xf32> to vector<16x64xbf16>
    %cst_39 = arith.constant dense<0.000000e+00> : vector<16x64xf32>
    %76 = tpu.matmul %59, %75, %cst_39 {dimension_numbers = #tpu.dot_dimension_numbers<[1], [0], [0], [1], [0, 0, 1, 1], [], []>} : vector<16x16xbf16>, vector<16x64xbf16>, vector<16x64xf32> -> vector<16x64xf32>
    %77 = arith.subf %74, %76 : vector<16x64xf32>
    %c0_40 = arith.constant 0 : index
    %c0_41 = arith.constant 0 : index
    %78 = vector.load %arg15[%c0_40, %c0_41] : memref<16x64xf32, #tpu.memory_space<vmem>>, vector<16x64xf32>
    tpu.vector_store %arg15[%c0_40, %c0_41], %77 {strides = array<i32>} : memref<16x64xf32, #tpu.memory_space<vmem>>, vector<16x64xf32>,
    %c1_i32 = arith.constant 1 : i32
    %79 = arith.cmpi eq, %arg1, %c1_i32 : i32
    %80 = arith.extui %79 : i1 to i32
    %c0_i32_42 = arith.constant 0 : i32
    %81 = arith.cmpi ne, %80, %c0_i32_42 : i32
    scf.if %81 {
      %c0_43 = arith.constant 0 : index
      %c0_44 = arith.constant 0 : index
      %82 = vector.load %arg15[%c0_43, %c0_44] : memref<16x64xf32, #tpu.memory_space<vmem>>, vector<16x64xf32>
      %cst_45 = arith.constant dense<0.000000e+00> : vector<16xf32>
      %83 = vector.multi_reduction <add>, %82, %cst_45 [1] : vector<16x64xf32> to vector<16xf32>
      %84 = vector.shape_cast %83 : vector<16xf32> to vector<16x1xf32>
      %cst_46 = arith.constant 6.400000e+01 : f32
      %85 = vector.broadcast %cst_46 : f32 to vector<16x1xf32>
      %86 = arith.divf %84, %85 : vector<16x1xf32>
      %87 = vector.broadcast %86 : vector<16x1xf32> to vector<16x64xf32>
      %88 = arith.subf %82, %87 : vector<16x64xf32>
      %89 = arith.mulf %88, %88 : vector<16x64xf32>
      %cst_47 = arith.constant dense<0.000000e+00> : vector<16xf32>
      %90 = vector.multi_reduction <add>, %89, %cst_47 [1] : vector<16x64xf32> to vector<16xf32>
      %91 = vector.shape_cast %90 : vector<16xf32> to vector<16x1xf32>
      %cst_48 = arith.constant 6.400000e+01 : f32
      %92 = vector.broadcast %cst_48 : f32 to vector<16x1xf32>
      %93 = arith.divf %91, %92 : vector<16x1xf32>
      %94 = vector.broadcast %86 : vector<16x1xf32> to vector<16x64xf32>
      %95 = arith.subf %82, %94 : vector<16x64xf32>
      %cst_49 = arith.constant 9.99999974E-6 : f32
      %96 = vector.broadcast %cst_49 : f32 to vector<16x1xf32>
      %97 = arith.addf %93, %96 : vector<16x1xf32>
      %98 = math.rsqrt %97 : vector<16x1xf32>
      %99 = vector.broadcast %98 : vector<16x1xf32> to vector<16x64xf32>
      %100 = arith.mulf %95, %99 : vector<16x64xf32>
      %c0_50 = arith.constant 0 : index
      %c0_51 = arith.constant 0 : index
      %101 = vector.load %arg12[%c0_50, %c0_51] : memref<1x64xf32, #tpu.memory_space<vmem>>, vector<1x64xf32>
      %102 = vector.broadcast %101 : vector<1x64xf32> to vector<16x64xf32>
      %103 = arith.mulf %100, %102 : vector<16x64xf32>
      %c0_52 = arith.constant 0 : index
      %c0_53 = arith.constant 0 : index
      %104 = vector.load %arg13[%c0_52, %c0_53] : memref<1x64xf32, #tpu.memory_space<vmem>>, vector<1x64xf32>
      %105 = vector.broadcast %104 : vector<1x64xf32> to vector<16x64xf32>
      %106 = arith.addf %103, %105 : vector<16x64xf32>
      %107 = vector.shape_cast %106 : vector<16x64xf32> to vector<1x16x64xf32>
      %cst_54 = arith.constant dense<0.000000e+00> : vector<1x64xf32>
      %108 = vector.multi_reduction <add>, %107, %cst_54 [1] : vector<1x16x64xf32> to vector<1x64xf32>
      %109 = vector.shape_cast %108 : vector<1x64xf32> to vector<1x1x64xf32>
      %cst_55 = arith.constant 1.600000e+01 : f32
      %110 = vector.broadcast %cst_55 : f32 to vector<1x1x64xf32>
      %111 = arith.divf %109, %110 : vector<1x1x64xf32>
      %112 = vector.broadcast %111 : vector<1x1x64xf32> to vector<1x16x64xf32>
      %113 = arith.subf %107, %112 : vector<1x16x64xf32>
      %c0_56 = arith.constant 0 : index
      %c0_57 = arith.constant 0 : index
      %c0_58 = arith.constant 0 : index
      %114 = vector.load %arg14[%c0_56, %c0_57, %c0_58] : memref<1x16x64xf32, #tpu.memory_space<vmem>>, vector<1x16x64xf32>
      tpu.vector_store %arg14[%c0_56, %c0_57, %c0_58], %113 {strides = array<i32>} : memref<1x16x64xf32, #tpu.memory_space<vmem>>, vector<1x16x64xf32>,
    } else {
    }
    return
  }
  func.func @transform_0(%arg0: i32, %arg1: i32) -> (i32, i32, i32) {
    %c0_i32 = arith.constant 0 : i32
    %c0_i32_0 = arith.constant 0 : i32
    %c0_i32_1 = arith.constant 0 : i32
    return %arg0, %c0_i32, %c0_i32_0 : i32, i32, i32
  }
  func.func @transform_1(%arg0: i32, %arg1: i32) -> (i32, i32, i32) {
    %c0_i32 = arith.constant 0 : i32
    %c0_i32_0 = arith.constant 0 : i32
    %c0_i32_1 = arith.constant 0 : i32
    return %arg1, %c0_i32, %c0_i32_0 : i32, i32, i32
  }
  func.func @transform_2(%arg0: i32, %arg1: i32) -> (i32, i32, i32) {
    %c0_i32 = arith.constant 0 : i32
    %c0_i32_0 = arith.constant 0 : i32
    %c0_i32_1 = arith.constant 0 : i32
    return %arg1, %c0_i32, %c0_i32_0 : i32, i32, i32
  }
  func.func @transform_3(%arg0: i32, %arg1: i32) -> (i32, i32, i32) {
    %c0_i32 = arith.constant 0 : i32
    %c0_i32_0 = arith.constant 0 : i32
    %c0_i32_1 = arith.constant 0 : i32
    return %arg1, %c0_i32, %c0_i32_0 : i32, i32, i32
  }
  func.func @transform_4(%arg0: i32, %arg1: i32) -> (i32, i32, i32) {
    %c0_i32 = arith.constant 0 : i32
    %c0_i32_0 = arith.constant 0 : i32
    %c0_i32_1 = arith.constant 0 : i32
    return %arg1, %c0_i32, %c0_i32_0 : i32, i32, i32
  }
  func.func @transform_5(%arg0: i32, %arg1: i32) -> (i32, i32, i32, i32) {
    %c0_i32 = arith.constant 0 : i32
    %c0_i32_0 = arith.constant 0 : i32
    %c0_i32_1 = arith.constant 0 : i32
    %c0_i32_2 = arith.constant 0 : i32
    %c0_i32_3 = arith.constant 0 : i32
    return %c0_i32, %c0_i32_0, %c0_i32_1, %c0_i32_2 : i32, i32, i32, i32
  }
  func.func @transform_6(%arg0: i32, %arg1: i32) -> (i32, i32, i32, i32) {
    %c0_i32 = arith.constant 0 : i32
    %c0_i32_0 = arith.constant 0 : i32
    %c0_i32_1 = arith.constant 0 : i32
    %c0_i32_2 = arith.constant 0 : i32
    %c0_i32_3 = arith.constant 0 : i32
    return %c0_i32, %c0_i32_0, %c0_i32_1, %c0_i32_2 : i32, i32, i32, i32
  }
  func.func @transform_7(%arg0: i32, %arg1: i32) -> (i32, i32) {
    %c0_i32 = arith.constant 0 : i32
    %c0_i32_0 = arith.constant 0 : i32
    %c0_i32_1 = arith.constant 0 : i32
    return %c0_i32, %c0_i32_0 : i32, i32
  }
  func.func @transform_8(%arg0: i32, %arg1: i32) -> (i32, i32) {
    %c0_i32 = arith.constant 0 : i32
    %c0_i32_0 = arith.constant 0 : i32
    %c0_i32_1 = arith.constant 0 : i32
    return %c0_i32, %c0_i32_0 : i32, i32
  }
  func.func @transform_9(%arg0: i32, %arg1: i32) -> (i32, i32) {
    %c0_i32 = arith.constant 0 : i32
    %c0_i32_0 = arith.constant 0 : i32
    %c0_i32_1 = arith.constant 0 : i32
    return %c0_i32, %c0_i32_0 : i32, i32
  }
  func.func @transform_10(%arg0: i32, %arg1: i32) -> (i32, i32) {
    %c0_i32 = arith.constant 0 : i32
    %c0_i32_0 = arith.constant 0 : i32
    %c0_i32_1 = arith.constant 0 : i32
    return %c0_i32, %c0_i32_0 : i32, i32
  }
  func.func @transform_11(%arg0: i32, %arg1: i32) -> (i32, i32) {
    %c0_i32 = arith.constant 0 : i32
    %c0_i32_0 = arith.constant 0 : i32
    %c0_i32_1 = arith.constant 0 : i32
    return %c0_i32, %c0_i32_0 : i32, i32
  }
  func.func @transform_12(%arg0: i32, %arg1: i32) -> (i32, i32, i32) {
    %c0_i32 = arith.constant 0 : i32
    %c0_i32_0 = arith.constant 0 : i32
    %c0_i32_1 = arith.constant 0 : i32
    return %arg0, %c0_i32, %c0_i32_0 : i32, i32, i32
  }
}

</mosaic_0001>

<llo_original>
// kernel: tpu_custom_call.1
$region0: #{tpu_custom_call.1}
  #allocation0 [shape = 'u32[]', space=smem, size = 0x4, offset = 0x4, fixed_abs, tag = 'smem constant byte address 0x4 - core index']
  #allocation1 [shape = 'u32[144,128]{1,0:T(1,128)}', space=vmem, size = 0x12000, scoped, tag = 'internal scratch']
  #allocation2 [shape = 'f32[16,64]{1,0:T(8,128)}', space=vmem, size = 0x2000, scoped, tag = 'scratch operand']
  %s0 = inlined_call_operand.hbm [shape: f32[2,16,64], index: 0, kind: input, shape index: {}]
  %s1 = inlined_call_operand.hbm [shape: bf16[2,64,64], index: 1, kind: input, shape index: {}]
  %s2 = inlined_call_operand.hbm [shape: bf16[2,64,64], index: 2, kind: input, shape index: {}]
  %s3 = inlined_call_operand.hbm [shape: bf16[2,64,64], index: 3, kind: input, shape index: {}]
  %s4 = inlined_call_operand.hbm [shape: bf16[2,64,64], index: 4, kind: input, shape index: {}]
  %s5 = inlined_call_operand.hbm [shape: bf16[8,8,32], index: 5, kind: input, shape index: {}]
  %s6 = inlined_call_operand.hbm [shape: bf16[8,8,32], index: 6, kind: input, shape index: {}]
  %s7 = inlined_call_operand.vmem [shape: bf16[16,8], index: 7, kind: input, shape index: {}]
  %s8 = inlined_call_operand.vmem [shape: bf16[8,16], index: 8, kind: input, shape index: {}]
  %s9 = inlined_call_operand.vmem [shape: bf16[16,16], index: 9, kind: input, shape index: {}]
  %s10 = inlined_call_operand.vmem [shape: f32[1,64], index: 10, kind: input, shape index: {}]
  %s11 = inlined_call_operand.vmem [shape: f32[1,64], index: 11, kind: input, shape index: {}]
  %s12 = inlined_call_operand.hbm [shape: f32[2,16,64], index: 12, kind: output, shape index: {}]
  %s13 = sld [smem:[#allocation0]]
  $region117: #{tpu_custom_call.1} parent=0
    _
  %s15 = ssub.s32 1, %s13
  %s16 = scalar_select 0, %s15, %s13
  $region1: #{tpu_custom_call.1} parent=0
    #allocation3 [shape = 'u8[16384]{0}', space=vmem, size = 0x4000, scoped, tag = 'input window, operand 0']
    #allocation4 [shape = 's32[2]{0}', space=sflag, size = 0x8, scoped, tag = 'scoped memory for tpu_custom_call.1']
    #allocation5 [shape = 's32[2]{0}', space=sflag, size = 0x8, scoped, tag = 'scoped memory for tpu_custom_call.1']
    #allocation6 [shape = 'u8[32768]{0}', space=vmem, size = 0x8000, scoped, tag = 'input window, operand 1']
    #allocation7 [shape = 's32[2]{0}', space=sflag, size = 0x8, scoped, tag = 'scoped memory for tpu_custom_call.1']
    #allocation8 [shape = 'u8[32768]{0}', space=vmem, size = 0x8000, scoped, tag = 'input window, operand 2']
    #allocation9 [shape = 'u8[32768]{0}', space=vmem, size = 0x8000, scoped, tag = 'input window, operand 3']
    #allocation10 [shape = 's32[2]{0}', space=sflag, size = 0x8, scoped, tag = 'scoped memory for tpu_custom_call.1']
    #allocation11 [shape = 'u8[32768]{0}', space=vmem, size = 0x8000, scoped, tag = 'input window, operand 4']
    #allocation12 [shape = 'u8[16384]{0}', space=vmem, size = 0x4000, scoped, tag = 'input window, operand 5, single buffered']
    #allocation13 [shape = 's32[1]{0}', space=sflag, size = 0x4, scoped, tag = 'scoped memory for tpu_custom_call.1']
    #allocation14 [shape = 'u8[16384]{0}', space=vmem, size = 0x4000, scoped, tag = 'input window, operand 6, single buffered']
    #allocation15 [shape = 'u8[16384]{0}', space=vmem, size = 0x4000, scoped, tag = 'output window, operand 0']
    %17 = vsyncpa [#allocation4], 0
    %s18 = scalar_lea.sflag [#allocation4], 1
    %19 = vsyncpa %s18, 0
    %20 = vsyncpa [#allocation7], 0
    %s21 = scalar_lea.sflag [#allocation7], 1
    %22 = vsyncpa %s21, 0
    %23 = vsyncpa [#allocation10], 0
    %s24 = scalar_lea.sflag [#allocation10], 1
    %25 = vsyncpa %s24, 0
    %26 = vsyncpa [#allocation13], 0
    %27 = vsyncpa [#allocation5], 0
    %s28 = scalar_lea.sflag [#allocation5], 1
    %29 = vsyncpa %s28, 0
    loop: start=0, step=1, limit=6
    $region2: #{tpu_custom_call.1} parent=1 // loop_pre_header
      _
    $region3: #{tpu_custom_call.1} parent=1 // loop_header
      %s31 = sphi 0, %s35
      %p32 = scmp.ge.s32.totalorder %s31, 6
      %s38 = sphi 0, %s50
      %s39 = sphi 0, %s46
      %s40 = sphi 0, %s38
      %s41 = sphi 0, %s39
      %s42 = sphi 0, %s40
      %s43 = sphi 0, %s41
      %s53 = sphi 0, %s55
      %s56 = sphi 0, %s53
      %s57 = sphi 0, %s56
      %s73 = sphi 0, %s57
      %s79 = sphi 0, %s81
      %s82 = sphi 0, %s79
      %s83 = sphi 0, %s82
      %s99 = sphi 0, %s83
      %s105 = sphi 0, %s107
      %s108 = sphi 0, %s105
      %s109 = sphi 0, %s108
      %s125 = sphi 0, %s109
      %s131 = sphi 0, %s133
      %s134 = sphi 0, %s131
      %s135 = sphi 0, %s134
      %s151 = sphi 0, %s135
      %s157 = sphi 0, %s159
      %s160 = sphi 0, %s157
      %s161 = sphi 0, %s160
      %s177 = sphi 0, %s161
      %s181 = sphi 0, %s181
      %s183 = sphi 0, %s181
      %s184 = sphi 0, %s183
      %s198 = sphi 0, %s184
      %s202 = sphi 0, %s202
      %s204 = sphi 0, %s202
      %s205 = sphi 0, %s204
      %s219 = sphi 0, %s205
      %s223 = sphi 0, %s223
      %s225 = sphi 0, %s223
      %s226 = sphi 0, %s225
      %s240 = sphi 0, %s226
      %s244 = sphi 0, %s244
      %s246 = sphi 0, %s244
      %s247 = sphi 0, %s246
      %s261 = sphi 0, %s247
      %s265 = sphi 0, %s265
      %s267 = sphi 0, %s265
      %s268 = sphi 0, %s267
      %s282 = sphi 0, %s268
      %s286 = sphi 0, %s286
      %s288 = sphi 0, %s286
      %s289 = sphi 0, %s288
      %s303 = sphi 0, %s289
      %s307 = sphi 0, %s307
      %s309 = sphi 0, %s307
      %s310 = sphi 0, %s309
      %s324 = sphi 0, %s310
      %s330 = sphi 0, %s332
      %s333 = sphi 0, %s330
      %s334 = sphi 0, %s333
      %s350 = sphi 0, %s334
    $region4: #{tpu_custom_call.1} parent=1 // loop_header_branch
      %34 = sbr.rel (%p32) target = $region8
    $region5: #{tpu_custom_call.1} parent=1 // loop_body
      %s36 = ssub.s32 %s31, 1
      %s37 = ssub.s32 %s31, 2
      %s44 = sadd.s32 1, %s39
      %p45 = scmp.ge.s32.totalorder %s44, 2
      %s46 = scalar_select %p45, 0, %s44
      %s47 = sadd.s32 1, %s38
      %s48 = scalar_select %p45, %s47, %s38
      %p49 = scmp.ge.s32.totalorder %s48, 2
      %s50 = scalar_select %p49, 0, %s48
      %s51 = ssub.s32 %s38, %s50
      %p52 = scmp.eq.s32.totalorder %s51, 0
      %s54 = sadd.s32 %s53, 1
      %s55 = scalar_select %p52, %s53, %s54
      %p58 = pneg %p52
      %p59 = scmp.eq.s32.totalorder %s31, 3
      %p60 = por %p58, %p59
      %p61 = scmp.ne.s32.totalorder %s53, %s56
      %p62 = scmp.eq.s32.totalorder %s31, 0
      %p63 = por %p61, %p62
      %p64 = scmp.ne.s32.totalorder %s53, %s56
      %p65 = scmp.eq.s32.totalorder %s36, 3
      %p66 = por %p64, %p65
      %p67 = scmp.ne.s32.totalorder %s56, %s57
      %p68 = scmp.eq.s32.totalorder %s36, 0
      %p69 = por %p67, %p68
      %p70 = scmp.ne.s32.totalorder %s56, %s57
      %p71 = scmp.eq.s32.totalorder %s37, 3
      %p72 = por %p70, %p71
      %p74 = scmp.ne.s32.totalorder %s57, %s73
      %p75 = scmp.eq.s32.totalorder %s37, 0
      %p76 = por %p74, %p75
      %s77 = ssub.s32 %s39, %s46
      %p78 = scmp.eq.s32.totalorder %s77, 0
      %s80 = sadd.s32 %s79, 1
      %s81 = scalar_select %p78, %s79, %s80
      %p84 = pneg %p78
      %p85 = scmp.eq.s32.totalorder %s31, 3
      %p86 = por %p84, %p85
      %p87 = scmp.ne.s32.totalorder %s79, %s82
      %p88 = scmp.eq.s32.totalorder %s31, 0
      %p89 = por %p87, %p88
      %p90 = scmp.ne.s32.totalorder %s79, %s82
      %p91 = scmp.eq.s32.totalorder %s36, 3
      %p92 = por %p90, %p91
      %p93 = scmp.ne.s32.totalorder %s82, %s83
      %p94 = scmp.eq.s32.totalorder %s36, 0
      %p95 = por %p93, %p94
      %p96 = scmp.ne.s32.totalorder %s82, %s83
      %p97 = scmp.eq.s32.totalorder %s37, 3
      %p98 = por %p96, %p97
      %p100 = scmp.ne.s32.totalorder %s83, %s99
      %p101 = scmp.eq.s32.totalorder %s37, 0
      %p102 = por %p100, %p101
      %s103 = ssub.s32 %s39, %s46
      %p104 = scmp.eq.s32.totalorder %s103, 0
      %s106 = sadd.s32 %s105, 1
      %s107 = scalar_select %p104, %s105, %s106
      %p110 = pneg %p104
      %p111 = scmp.eq.s32.totalorder %s31, 3
      %p112 = por %p110, %p111
      %p113 = scmp.ne.s32.totalorder %s105, %s108
      %p114 = scmp.eq.s32.totalorder %s31, 0
      %p115 = por %p113, %p114
      %p116 = scmp.ne.s32.totalorder %s105, %s108
      %p117 = scmp.eq.s32.totalorder %s36, 3
      %p118 = por %p116, %p117
      %p119 = scmp.ne.s32.totalorder %s108, %s109
      %p120 = scmp.eq.s32.totalorder %s36, 0
      %p121 = por %p119, %p120
      %p122 = scmp.ne.s32.totalorder %s108, %s109
      %p123 = scmp.eq.s32.totalorder %s37, 3
      %p124 = por %p122, %p123
      %p126 = scmp.ne.s32.totalorder %s109, %s125
      %p127 = scmp.eq.s32.totalorder %s37, 0
      %p128 = por %p126, %p127
      %s129 = ssub.s32 %s39, %s46
      %p130 = scmp.eq.s32.totalorder %s129, 0
      %s132 = sadd.s32 %s131, 1
      %s133 = scalar_select %p130, %s131, %s132
      %p136 = pneg %p130
      %p137 = scmp.eq.s32.totalorder %s31, 3
      %p138 = por %p136, %p137
      %p139 = scmp.ne.s32.totalorder %s131, %s134
      %p140 = scmp.eq.s32.totalorder %s31, 0
      %p141 = por %p139, %p140
      %p142 = scmp.ne.s32.totalorder %s131, %s134
      %p143 = scmp.eq.s32.totalorder %s36, 3
      %p144 = por %p142, %p143
      %p145 = scmp.ne.s32.totalorder %s134, %s135
      %p146 = scmp.eq.s32.totalorder %s36, 0
      %p147 = por %p145, %p146
      %p148 = scmp.ne.s32.totalorder %s134, %s135
      %p149 = scmp.eq.s32.totalorder %s37, 3
      %p150 = por %p148, %p149
      %p152 = scmp.ne.s32.totalorder %s135, %s151
      %p153 = scmp.eq.s32.totalorder %s37, 0
      %p154 = por %p152, %p153
      %s155 = ssub.s32 %s39, %s46
      %p156 = scmp.eq.s32.totalorder %s155, 0
      %s158 = sadd.s32 %s157, 1
      %s159 = scalar_select %p156, %s157, %s158
      %p162 = pneg %p156
      %p163 = scmp.eq.s32.totalorder %s31, 3
      %p164 = por %p162, %p163
      %p165 = scmp.ne.s32.totalorder %s157, %s160
      %p166 = scmp.eq.s32.totalorder %s31, 0
      %p167 = por %p165, %p166
      %p168 = scmp.ne.s32.totalorder %s157, %s160
      %p169 = scmp.eq.s32.totalorder %s36, 3
      %p170 = por %p168, %p169
      %p171 = scmp.ne.s32.totalorder %s160, %s161
      %p172 = scmp.eq.s32.totalorder %s36, 0
      %p173 = por %p171, %p172
      %p174 = scmp.ne.s32.totalorder %s160, %s161
      %p175 = scmp.eq.s32.totalorder %s37, 3
      %p176 = por %p174, %p175
      %p178 = scmp.ne.s32.totalorder %s161, %s177
      %p179 = scmp.eq.s32.totalorder %s37, 0
      %p180 = por %p178, %p179
      %s182 = sadd.s32 %s181, 1
      %p185 = scmp.eq.s32.totalorder %s31, 3
      %p186 = scmp.ne.s32.totalorder %s181, %s183
      %p187 = scmp.eq.s32.totalorder %s31, 0
      %p188 = por %p186, %p187
      %p189 = scmp.ne.s32.totalorder %s181, %s183
      %p190 = scmp.eq.s32.totalorder %s36, 3
      %p191 = por %p189, %p190
      %p192 = scmp.ne.s32.totalorder %s183, %s184
      %p193 = scmp.eq.s32.totalorder %s36, 0
      %p194 = por %p192, %p193
      %p195 = scmp.ne.s32.totalorder %s183, %s184
      %p196 = scmp.eq.s32.totalorder %s37, 3
      %p197 = por %p195, %p196
      %p199 = scmp.ne.s32.totalorder %s184, %s198
      %p200 = scmp.eq.s32.totalorder %s37, 0
      %p201 = por %p199, %p200
      %s203 = sadd.s32 %s202, 1
      %p206 = scmp.eq.s32.totalorder %s31, 3
      %p207 = scmp.ne.s32.totalorder %s202, %s204
      %p208 = scmp.eq.s32.totalorder %s31, 0
      %p209 = por %p207, %p208
      %p210 = scmp.ne.s32.totalorder %s202, %s204
      %p211 = scmp.eq.s32.totalorder %s36, 3
      %p212 = por %p210, %p211
      %p213 = scmp.ne.s32.totalorder %s204, %s205
      %p214 = scmp.eq.s32.totalorder %s36, 0
      %p215 = por %p213, %p214
      %p216 = scmp.ne.s32.totalorder %s204, %s205
      %p217 = scmp.eq.s32.totalorder %s37, 3
      %p218 = por %p216, %p217
      %p220 = scmp.ne.s32.totalorder %s205, %s219
      %p221 = scmp.eq.s32.totalorder %s37, 0
      %p222 = por %p220, %p221
      %s224 = sadd.s32 %s223, 1
      %p227 = scmp.eq.s32.totalorder %s31, 3
      %p228 = scmp.ne.s32.totalorder %s223, %s225
      %p229 = scmp.eq.s32.totalorder %s31, 0
      %p230 = por %p228, %p229
      %p231 = scmp.ne.s32.totalorder %s223, %s225
      %p232 = scmp.eq.s32.totalorder %s36, 3
      %p233 = por %p231, %p232
      %p234 = scmp.ne.s32.totalorder %s225, %s226
      %p235 = scmp.eq.s32.totalorder %s36, 0
      %p236 = por %p234, %p235
      %p237 = scmp.ne.s32.totalorder %s225, %s226
      %p238 = scmp.eq.s32.totalorder %s37, 3
      %p239 = por %p237, %p238
      %p241 = scmp.ne.s32.totalorder %s226, %s240
      %p242 = scmp.eq.s32.totalorder %s37, 0
      %p243 = por %p241, %p242
      %s245 = sadd.s32 %s244, 1
      %p248 = scmp.eq.s32.totalorder %s31, 3
      %p249 = scmp.ne.s32.totalorder %s244, %s246
      %p250 = scmp.eq.s32.totalorder %s31, 0
      %p251 = por %p249, %p250
      %p252 = scmp.ne.s32.totalorder %s244, %s246
      %p253 = scmp.eq.s32.totalorder %s36, 3
      %p254 = por %p252, %p253
      %p255 = scmp.ne.s32.totalorder %s246, %s247
      %p256 = scmp.eq.s32.totalorder %s36, 0
      %p257 = por %p255, %p256
      %p258 = scmp.ne.s32.totalorder %s246, %s247
      %p259 = scmp.eq.s32.totalorder %s37, 3
      %p260 = por %p258, %p259
      %p262 = scmp.ne.s32.totalorder %s247, %s261
      %p263 = scmp.eq.s32.totalorder %s37, 0
      %p264 = por %p262, %p263
      %s266 = sadd.s32 %s265, 1
      %p269 = scmp.eq.s32.totalorder %s31, 3
      %p270 = scmp.ne.s32.totalorder %s265, %s267
      %p271 = scmp.eq.s32.totalorder %s31, 0
      %p272 = por %p270, %p271
      %p273 = scmp.ne.s32.totalorder %s265, %s267
      %p274 = scmp.eq.s32.totalorder %s36, 3
      %p275 = por %p273, %p274
      %p276 = scmp.ne.s32.totalorder %s267, %s268
      %p277 = scmp.eq.s32.totalorder %s36, 0
      %p278 = por %p276, %p277
      %p279 = scmp.ne.s32.totalorder %s267, %s268
      %p280 = scmp.eq.s32.totalorder %s37, 3
      %p281 = por %p279, %p280
      %p283 = scmp.ne.s32.totalorder %s268, %s282
      %p284 = scmp.eq.s32.totalorder %s37, 0
      %p285 = por %p283, %p284
      %s287 = sadd.s32 %s286, 1
      %p290 = scmp.eq.s32.totalorder %s31, 3
      %p291 = scmp.ne.s32.totalorder %s286, %s288
      %p292 = scmp.eq.s32.totalorder %s31, 0
      %p293 = por %p291, %p292
      %p294 = scmp.ne.s32.totalorder %s286, %s288
      %p295 = scmp.eq.s32.totalorder %s36, 3
      %p296 = por %p294, %p295
      %p297 = scmp.ne.s32.totalorder %s288, %s289
      %p298 = scmp.eq.s32.totalorder %s36, 0
      %p299 = por %p297, %p298
      %p300 = scmp.ne.s32.totalorder %s288, %s289
      %p301 = scmp.eq.s32.totalorder %s37, 3
      %p302 = por %p300, %p301
      %p304 = scmp.ne.s32.totalorder %s289, %s303
      %p305 = scmp.eq.s32.totalorder %s37, 0
      %p306 = por %p304, %p305
      %s308 = sadd.s32 %s307, 1
      %p311 = scmp.eq.s32.totalorder %s31, 3
      %p312 = scmp.ne.s32.totalorder %s307, %s309
      %p313 = scmp.eq.s32.totalorder %s31, 0
      %p314 = por %p312, %p313
      %p315 = scmp.ne.s32.totalorder %s307, %s309
      %p316 = scmp.eq.s32.totalorder %s36, 3
      %p317 = por %p315, %p316
      %p318 = scmp.ne.s32.totalorder %s309, %s310
      %p319 = scmp.eq.s32.totalorder %s36, 0
      %p320 = por %p318, %p319
      %p321 = scmp.ne.s32.totalorder %s309, %s310
      %p322 = scmp.eq.s32.totalorder %s37, 3
      %p323 = por %p321, %p322
      %p325 = scmp.ne.s32.totalorder %s310, %s324
      %p326 = scmp.eq.s32.totalorder %s37, 0
      %p327 = por %p325, %p326
      %s328 = ssub.s32 %s38, %s50
      %p329 = scmp.eq.s32.totalorder %s328, 0
      %s331 = sadd.s32 %s330, 1
      %s332 = scalar_select %p329, %s330, %s331
      %p335 = pneg %p329
      %p336 = scmp.eq.s32.totalorder %s31, 3
      %p337 = por %p335, %p336
      %p338 = scmp.ne.s32.totalorder %s330, %s333
      %p339 = scmp.eq.s32.totalorder %s31, 0
      %p340 = por %p338, %p339
      %p341 = scmp.ne.s32.totalorder %s330, %s333
      %p342 = scmp.eq.s32.totalorder %s36, 3
      %p343 = por %p341, %p342
      %p344 = scmp.ne.s32.totalorder %s333, %s334
      %p345 = scmp.eq.s32.totalorder %s36, 0
      %p346 = por %p344, %p345
      %p347 = scmp.ne.s32.totalorder %s333, %s334
      %p348 = scmp.eq.s32.totalorder %s37, 3
      %p349 = por %p347, %p348
      %p351 = scmp.ne.s32.totalorder %s334, %s350
      %p352 = scmp.eq.s32.totalorder %s37, 0
      %p353 = por %p351, %p352
      %p354 = scmp.le.s32.totalorder 1, %s31
      %p355 = scmp.lt.s32.totalorder %s31, 5
      %p356 = pnand %p354, %p355
      %p357 = pneg %p356
      // Predicated region
      $region9: #{tpu_custom_call.1} parent=5 // pred_check
        _
      $region10: #{tpu_custom_call.1} parent=5 // pred_check_branch
        %359 = sbr.rel (%p356) target = $region12
      $region11: #{tpu_custom_call.1} parent=5 // pred_region
        %s360 = ssub.s32 %s31, 1
        // Predicated region
        $region13: #{tpu_custom_call.1} parent=11 // pred_check
          %p361 = pneg %p194
        $region14: #{tpu_custom_call.1} parent=11 // pred_check_branch
          %363 = sbr.rel (%p361) target = $region16
        $region15: #{tpu_custom_call.1} parent=11 // pred_region
          %s365 = ssub.s32 512, 512
          %366 = vsyncadd [#allocation13], %s365
          %s367 = sshll.u32 [#allocation12], 4
          %s368 = int_to_ptr.vmem [resolvable:$true] %s367
          %373 = dma.hbm_to_vmem [thread:$0]  %s5, 512, %s368, [#allocation13], 64, 64, 4
        $region16: #{tpu_custom_call.1} parent=11 // pred_fallthru
          _
        // Predicated region
        $region17: #{tpu_custom_call.1} parent=11 // pred_check
          %p374 = pneg %p215
        $region18: #{tpu_custom_call.1} parent=11 // pred_check_branch
          %376 = sbr.rel (%p374) target = $region20
        $region19: #{tpu_custom_call.1} parent=11 // pred_region
          %s378 = ssub.s32 512, 512
          %379 = vsyncadd [#allocation13], %s378
          %s380 = sshll.u32 [#allocation14], 4
          %s381 = int_to_ptr.vmem [resolvable:$true] %s380
          %386 = dma.hbm_to_vmem [thread:$0]  %s6, 512, %s381, [#allocation13], 64, 64, 4
        $region20: #{tpu_custom_call.1} parent=11 // pred_fallthru
          _
        // Predicated region
        $region21: #{tpu_custom_call.1} parent=11 // pred_check
          %p387 = pneg %p236
        $region22: #{tpu_custom_call.1} parent=11 // pred_check_branch
          %389 = sbr.rel (%p387) target = $region24
        $region23: #{tpu_custom_call.1} parent=11 // pred_region
          _
        $region24: #{tpu_custom_call.1} parent=11 // pred_fallthru
          _
        // Predicated region
        $region25: #{tpu_custom_call.1} parent=11 // pred_check
          %p390 = pneg %p257
        $region26: #{tpu_custom_call.1} parent=11 // pred_check_branch
          %392 = sbr.rel (%p390) target = $region28
        $region27: #{tpu_custom_call.1} parent=11 // pred_region
          _
        $region28: #{tpu_custom_call.1} parent=11 // pred_fallthru
          _
        // Predicated region
        $region29: #{tpu_custom_call.1} parent=11 // pred_check
          %p393 = pneg %p278
        $region30: #{tpu_custom_call.1} parent=11 // pred_check_branch
          %395 = sbr.rel (%p393) target = $region32
        $region31: #{tpu_custom_call.1} parent=11 // pred_region
          _
        $region32: #{tpu_custom_call.1} parent=11 // pred_fallthru
          _
        // Predicated region
        $region33: #{tpu_custom_call.1} parent=11 // pred_check
          %p396 = pneg %p299
        $region34: #{tpu_custom_call.1} parent=11 // pred_check_branch
          %398 = sbr.rel (%p396) target = $region36
        $region35: #{tpu_custom_call.1} parent=11 // pred_region
          _
        $region36: #{tpu_custom_call.1} parent=11 // pred_fallthru
          _
        // Predicated region
        $region37: #{tpu_custom_call.1} parent=11 // pred_check
          %p399 = pneg %p320
        $region38: #{tpu_custom_call.1} parent=11 // pred_check_branch
          %401 = sbr.rel (%p399) target = $region40
        $region39: #{tpu_custom_call.1} parent=11 // pred_region
          _
        $region40: #{tpu_custom_call.1} parent=11 // pred_fallthru
          _
      $region12: #{tpu_custom_call.1} parent=5 // pred_fallthru
        _
      %p402 = scmp.lt.s32.totalorder %s31, 4
      // Predicated region
      $region41: #{tpu_custom_call.1} parent=5 // pred_check
        %p403 = pneg %p402
      $region42: #{tpu_custom_call.1} parent=5 // pred_check_branch
        %405 = sbr.rel (%p403) target = $region44
      $region43: #{tpu_custom_call.1} parent=5 // pred_region
        // Predicated region
        $region45: #{tpu_custom_call.1} parent=43 // pred_check
          %p406 = pneg %p63
        $region46: #{tpu_custom_call.1} parent=43 // pred_check_branch
          %408 = sbr.rel (%p406) target = $region48
        $region47: #{tpu_custom_call.1} parent=43 // pred_region
          %s409 = sand.u32 %s53, 1
          %s410 = scalar_lea.sflag [#allocation4], %s409
          %s411 = sand.u32 %s53, 1
          %s412 = smul.addr %s411, 16
          %s413 = scalar_lea.vmem [#allocation3], %s412
          %s415 = ssub.s32 256, 256
          %416 = vsyncadd %s410, %s415
          %s417 = smul.addr %s38, 2
          %s418 = smul.addr %s417, 128
          %s419 = scalar_lea.hbm %s0, %s418
          %s420 = sshll.u32 %s413, 4
          %s421 = int_to_ptr.vmem [resolvable:$true] %s420
          %426 = dma.hbm_to_vmem [thread:$0]  %s419, 256, %s421, %s410, 128, 128, 8
        $region48: #{tpu_custom_call.1} parent=43 // pred_fallthru
          _
        // Predicated region
        $region49: #{tpu_custom_call.1} parent=43 // pred_check
          %p427 = pneg %p89
        $region50: #{tpu_custom_call.1} parent=43 // pred_check_branch
          %429 = sbr.rel (%p427) target = $region52
        $region51: #{tpu_custom_call.1} parent=43 // pred_region
          %s430 = sand.u32 %s31, 1
          %s431 = scalar_lea.sflag [#allocation7], %s430
          %s432 = sand.u32 %s79, 1
          %s433 = smul.addr %s432, 32
          %s434 = scalar_lea.vmem [#allocation6], %s433
          %s436 = ssub.s32 512, 512
          %437 = vsyncadd %s431, %s436
          %s438 = smul.addr %s39, 8
          %s439 = smul.addr %s438, 64
          %s440 = scalar_lea.hbm %s1, %s439
          %s441 = sshll.u32 %s434, 4
          %s442 = int_to_ptr.vmem [resolvable:$true] %s441
          %447 = dma.hbm_to_vmem [thread:$0]  %s440, 512, %s442, %s431, 64, 64, 4
        $region52: #{tpu_custom_call.1} parent=43 // pred_fallthru
          _
        // Predicated region
        $region53: #{tpu_custom_call.1} parent=43 // pred_check
          %p448 = pneg %p115
        $region54: #{tpu_custom_call.1} parent=43 // pred_check_branch
          %450 = sbr.rel (%p448) target = $region56
        $region55: #{tpu_custom_call.1} parent=43 // pred_region
          %s451 = sand.u32 %s31, 1
          %s452 = scalar_lea.sflag [#allocation7], %s451
          %s453 = sand.u32 %s105, 1
          %s454 = smul.addr %s453, 32
          %s455 = scalar_lea.vmem [#allocation8], %s454
          %s457 = ssub.s32 512, 512
          %458 = vsyncadd %s452, %s457
          %s459 = smul.addr %s39, 8
          %s460 = smul.addr %s459, 64
          %s461 = scalar_lea.hbm %s2, %s460
          %s462 = sshll.u32 %s455, 4
          %s463 = int_to_ptr.vmem [resolvable:$true] %s462
          %468 = dma.hbm_to_vmem [thread:$0]  %s461, 512, %s463, %s452, 64, 64, 4
        $region56: #{tpu_custom_call.1} parent=43 // pred_fallthru
          _
        // Predicated region
        $region57: #{tpu_custom_call.1} parent=43 // pred_check
          %p469 = pneg %p141
        $region58: #{tpu_custom_call.1} parent=43 // pred_check_branch
          %471 = sbr.rel (%p469) target = $region60
        $region59: #{tpu_custom_call.1} parent=43 // pred_region
          %s472 = sand.u32 %s31, 1
          %s473 = scalar_lea.sflag [#allocation10], %s472
          %s474 = sand.u32 %s131, 1
          %s475 = smul.addr %s474, 32
          %s476 = scalar_lea.vmem [#allocation9], %s475
          %s478 = ssub.s32 512, 512
          %479 = vsyncadd %s473, %s478
          %s480 = smul.addr %s39, 8
          %s481 = smul.addr %s480, 64
          %s482 = scalar_lea.hbm %s3, %s481
          %s483 = sshll.u32 %s476, 4
          %s484 = int_to_ptr.vmem [resolvable:$true] %s483
          %489 = dma.hbm_to_vmem [thread:$0]  %s482, 512, %s484, %s473, 64, 64, 4
        $region60: #{tpu_custom_call.1} parent=43 // pred_fallthru
          _
        // Predicated region
        $region61: #{tpu_custom_call.1} parent=43 // pred_check
          %p490 = pneg %p167
        $region62: #{tpu_custom_call.1} parent=43 // pred_check_branch
          %492 = sbr.rel (%p490) target = $region64
        $region63: #{tpu_custom_call.1} parent=43 // pred_region
          %s493 = sand.u32 %s31, 1
          %s494 = scalar_lea.sflag [#allocation10], %s493
          %s495 = sand.u32 %s157, 1
          %s496 = smul.addr %s495, 32
          %s497 = scalar_lea.vmem [#allocation11], %s496
          %s499 = ssub.s32 512, 512
          %500 = vsyncadd %s494, %s499
          %s501 = smul.addr %s39, 8
          %s502 = smul.addr %s501, 64
          %s503 = scalar_lea.hbm %s4, %s502
          %s504 = sshll.u32 %s497, 4
          %s505 = int_to_ptr.vmem [resolvable:$true] %s504
          %510 = dma.hbm_to_vmem [thread:$0]  %s503, 512, %s505, %s494, 64, 64, 4
        $region64: #{tpu_custom_call.1} parent=43 // pred_fallthru
          _
      $region44: #{tpu_custom_call.1} parent=5 // pred_fallthru
        _
      %p511 = scmp.le.s32.totalorder 1, %s31
      %p512 = scmp.lt.s32.totalorder %s31, 5
      %p513 = pnand %p511, %p512
      %p514 = pneg %p513
      // Predicated region
      $region65: #{tpu_custom_call.1} parent=5 // pred_check
        _
      $region66: #{tpu_custom_call.1} parent=5 // pred_check_branch
        %516 = sbr.rel (%p513) target = $region68
      $region67: #{tpu_custom_call.1} parent=5 // pred_region
        %s517 = ssub.s32 %s31, 1
        %s518 = sand.u32 %s56, 1
        %s519 = scalar_lea.sflag [#allocation4], %s518
        %s520 = sand.u32 %s56, 1
        %s521 = smul.addr %s520, 16
        %s522 = scalar_lea.vmem [#allocation3], %s521
        // Predicated region
        $region69: #{tpu_custom_call.1} parent=67 // pred_check
          %p523 = pneg %p69
        $region70: #{tpu_custom_call.1} parent=67 // pred_check_branch
          %525 = sbr.rel (%p523) target = $region72
        $region71: #{tpu_custom_call.1} parent=67 // pred_region
          %526 = dma.done %s519, 256
        $region72: #{tpu_custom_call.1} parent=67 // pred_fallthru
          _
        %s527 = sand.u32 %s36, 1
        %s528 = scalar_lea.sflag [#allocation7], %s527
        %s529 = sand.u32 %s82, 1
        %s530 = smul.addr %s529, 32
        %s531 = scalar_lea.vmem [#allocation6], %s530
        // Predicated region
        $region73: #{tpu_custom_call.1} parent=67 // pred_check
          %p532 = pneg %p95
        $region74: #{tpu_custom_call.1} parent=67 // pred_check_branch
          %534 = sbr.rel (%p532) target = $region76
        $region75: #{tpu_custom_call.1} parent=67 // pred_region
          %535 = dma.done %s528, 512
        $region76: #{tpu_custom_call.1} parent=67 // pred_fallthru
          _
        %s536 = sand.u32 %s36, 1
        %s537 = scalar_lea.sflag [#allocation7], %s536
        %s538 = sand.u32 %s108, 1
        %s539 = smul.addr %s538, 32
        %s540 = scalar_lea.vmem [#allocation8], %s539
        // Predicated region
        $region77: #{tpu_custom_call.1} parent=67 // pred_check
          %p541 = pneg %p121
        $region78: #{tpu_custom_call.1} parent=67 // pred_check_branch
          %543 = sbr.rel (%p541) target = $region80
        $region79: #{tpu_custom_call.1} parent=67 // pred_region
          %544 = dma.done %s537, 512
        $region80: #{tpu_custom_call.1} parent=67 // pred_fallthru
          _
        %s545 = sand.u32 %s36, 1
        %s546 = scalar_lea.sflag [#allocation10], %s545
        %s547 = sand.u32 %s134, 1
        %s548 = smul.addr %s547, 32
        %s549 = scalar_lea.vmem [#allocation9], %s548
        // Predicated region
        $region81: #{tpu_custom_call.1} parent=67 // pred_check
          %p550 = pneg %p147
        $region82: #{tpu_custom_call.1} parent=67 // pred_check_branch
          %552 = sbr.rel (%p550) target = $region84
        $region83: #{tpu_custom_call.1} parent=67 // pred_region
          %553 = dma.done %s546, 512
        $region84: #{tpu_custom_call.1} parent=67 // pred_fallthru
          _
        %s554 = sand.u32 %s36, 1
        %s555 = scalar_lea.sflag [#allocation10], %s554
        %s556 = sand.u32 %s160, 1
        %s557 = smul.addr %s556, 32
        %s558 = scalar_lea.vmem [#allocation11], %s557
        // Predicated region
        $region85: #{tpu_custom_call.1} parent=67 // pred_check
          %p559 = pneg %p173
        $region86: #{tpu_custom_call.1} parent=67 // pred_check_branch
          %561 = sbr.rel (%p559) target = $region88
        $region87: #{tpu_custom_call.1} parent=67 // pred_region
          %562 = dma.done %s555, 512
        $region88: #{tpu_custom_call.1} parent=67 // pred_fallthru
          _
        // Predicated region
        $region89: #{tpu_custom_call.1} parent=67 // pred_check
          %p563 = pneg %p194
        $region90: #{tpu_custom_call.1} parent=67 // pred_check_branch
          %565 = sbr.rel (%p563) target = $region92
        $region91: #{tpu_custom_call.1} parent=67 // pred_region
          %566 = dma.done [#allocation13], 512
        $region92: #{tpu_custom_call.1} parent=67 // pred_fallthru
          _
        // Predicated region
        $region93: #{tpu_custom_call.1} parent=67 // pred_check
          %p567 = pneg %p215
        $region94: #{tpu_custom_call.1} parent=67 // pred_check_branch
          %569 = sbr.rel (%p567) target = $region96
        $region95: #{tpu_custom_call.1} parent=67 // pred_region
          %570 = dma.done [#allocation13], 512
        $region96: #{tpu_custom_call.1} parent=67 // pred_fallthru
          _
        %s571 = sand.u32 %s56, 1
        %s572 = scalar_lea.sflag [#allocation4], %s571
        %s573 = sand.u32 %s56, 1
        %s574 = smul.addr %s573, 16
        %s575 = scalar_lea.vmem [#allocation3], %s574
        %p576 = pneg %p69
        %p577 = pneg %p66
        %s578 = sand.u32 %s36, 1
        %s579 = scalar_lea.sflag [#allocation7], %s578
        %s580 = sand.u32 %s82, 1
        %s581 = smul.addr %s580, 32
        %s582 = scalar_lea.vmem [#allocation6], %s581
        %p583 = pneg %p95
        %p584 = pneg %p92
        %s585 = sand.u32 %s36, 1
        %s586 = scalar_lea.sflag [#allocation7], %s585
        %s587 = sand.u32 %s108, 1
        %s588 = smul.addr %s587, 32
        %s589 = scalar_lea.vmem [#allocation8], %s588
        %p590 = pneg %p121
        %p591 = pneg %p118
        %s592 = sand.u32 %s36, 1
        %s593 = scalar_lea.sflag [#allocation10], %s592
        %s594 = sand.u32 %s134, 1
        %s595 = smul.addr %s594, 32
        %s596 = scalar_lea.vmem [#allocation9], %s595
        %p597 = pneg %p147
        %p598 = pneg %p144
        %s599 = sand.u32 %s36, 1
        %s600 = scalar_lea.sflag [#allocation10], %s599
        %s601 = sand.u32 %s160, 1
        %s602 = smul.addr %s601, 32
        %s603 = scalar_lea.vmem [#allocation11], %s602
        %p604 = pneg %p173
        %p605 = pneg %p170
        %p606 = pneg %p194
        %p607 = pneg %p191
        %p608 = pneg %p215
        %p609 = pneg %p212
        %p610 = pneg %p236
        %p611 = pneg %p233
        %p612 = pneg %p257
        %p613 = pneg %p254
        %p614 = pneg %p278
        %p615 = pneg %p275
        %p616 = pneg %p299
        %p617 = pneg %p296
        %p618 = pneg %p320
        %p619 = pneg %p317
        %p620 = pneg %p346
        %p621 = pneg %p343
        %s622 = sand.u32 %s333, 1
        %s623 = scalar_lea.sflag [#allocation5], %s622
        %s624 = sand.u32 %s333, 1
        %s625 = smul.addr %s624, 16
        %s626 = scalar_lea.vmem [#allocation15], %s625
        %p628 = scmp.eq.s32.totalorder %s41, 0
        // Predicated region
        $region97: #{tpu_custom_call.1} parent=67 // pred_check
          %p629 = pneg %p628
        $region98: #{tpu_custom_call.1} parent=67 // pred_check_branch
          %631 = sbr.rel (%p629) target = $region100
        $region99: #{tpu_custom_call.1} parent=67 // pred_region
          %v632 = vld [vmem:[%s522] sm:$0xff]
          %v633 = vld [vmem:[%s522 + $0x8] sm:$0xff]
          %vm634 = vcmask 523264
          %635 = vst.msk [vmem:[#allocation2] sm:$0xff] %vm634, %v632
          %636 = vst.msk [vmem:[#allocation2 + $0x8] sm:$0xff] %vm634, %v633
        $region100: #{tpu_custom_call.1} parent=67 // pred_fallthru
          _
        %v637 = vld [vmem:[#allocation2] sm:$0xff]
        %v638 = vld [vmem:[#allocation2 + $0x8] sm:$0xff]
        %v639 = vld [vmem:[%s531] sm:$0xf]
        %v640 = vld [vmem:[%s531 + $0x4] sm:$0xf]
        %v641 = vld [vmem:[%s531 + $0x8] sm:$0xf]
        %v642 = vld [vmem:[%s531 + $0xc] sm:$0xf]
        %v643 = vld [vmem:[%s531 + $0x10] sm:$0xf]
        %v644 = vld [vmem:[%s531 + $0x14] sm:$0xf]
        %v645 = vld [vmem:[%s531 + $0x18] sm:$0xf]
        %v646 = vld [vmem:[%s531 + $0x1c] sm:$0xf]
        %v647 = vpack.c.bf16 %v638, %v637
        %v656 = vunpack.c.l.b16 %v639
        %v657 = vunpack.c.l.b16 %v640
        %v658 = vunpack.c.l.b16 %v641
        %v659 = vunpack.c.l.b16 %v642
        %v660 = vunpack.c.l.b16 %v643
        %v661 = vunpack.c.l.b16 %v644
        %v662 = vunpack.c.l.b16 %v645
        %v663 = vunpack.c.l.b16 %v646
        %v664 = vpack.c.b16 %v657, %v656
        %v665 = vpack.c.b16 %v659, %v658
        %v666 = vpack.c.b16 %v661, %v660
        %v667 = vpack.c.b16 %v663, %v662
        %vm672 = vcmask 523264
        %v674 = vsel %vm672, %v647, 0
        %676 = vmatprep.subr.bf16.mxu0 0
        %677 = vmatpush1.bf16.msra.mxu0 0
        %678 = vmatprep.subr.bf16.mxu0 0
        %679 = vmatpush1.bf16.msra.mxu0 0
        %680 = vmatprep.subr.bf16.mxu0 0
        %681 = vmatpush1.bf16.msra.mxu0 0
        %682 = vmatprep.subr.bf16.mxu0 0
        %683 = vmatpush1.bf16.msra.mxu0 0
        %684 = vmatprep.subr.bf16.mxu0 0
        %685 = vmatpush1.bf16.msra.mxu0 %v667
        %686 = vmatprep.subr.bf16.mxu0 0
        %687 = vmatpush1.bf16.msra.mxu0 %v666
        %688 = vmatprep.subr.bf16.mxu0 0
        %689 = vmatpush1.bf16.msra.mxu0 %v665
        %690 = vmatprep.subr.bf16.mxu0 0
        %691 = vmatpush1.bf16.msra.mxu0 %v664
        %692 = vmatprep.subr.bf16.mxu0 0
        %693 = vmatpush2.bf16.msra.mxu0 0
        %694 = vmatprep.subr.bf16.mxu0 0
        %695 = vmatpush2.bf16.msra.mxu0 0
        %696 = vmatprep.subr.bf16.mxu0 0
        %697 = vmatpush2.bf16.msra.mxu0 0
        %698 = vmatprep.subr.bf16.mxu0 0
        %699 = vmatpush2.bf16.msra.mxu0 0
        %700 = vmatprep.subr.bf16.mxu0 0
        %701 = vmatpush2.bf16.msra.mxu0 0
        %702 = vmatprep.subr.bf16.mxu0 0
        %703 = vmatpush2.bf16.msra.mxu0 0
        %704 = vmatprep.subr.bf16.mxu0 0
        %705 = vmatpush2.bf16.msra.mxu0 0
        %706 = vmatprep.subr.bf16.mxu0 0
        %707 = vmatpush2.bf16.msra.mxu0 0
        %708 = vmatprep.mubr.bf16.mxu0 0
        %709 = vmatmul.mubr.bf16.gmra.mxu0 %v674
        %v710 = vpop.f32.mrf.mxu0
        %v711 = vadd.f32 0.0, %v710
        %v712 = vpop.f32.mrf.mxu0
        %v713 = vpop.f32.mrf.mxu0
        %v714 = vadd.f32 0.0, %v713
        %v715 = vpop.f32.mrf.mxu0
        %716 = vdwg.mxu0
        %717 = vxpose.xlu0.b32.start [1/16] %v711, 128
        %718 = vxpose.xlu0.b32.cont [2/16] %v714, 128
        %719 = vxpose.xlu0.b32.cont [3/16] 0.0, 128
        %720 = vxpose.xlu0.b32.cont [4/16] 0.0, 128
        %721 = vxpose.xlu0.b32.cont [5/16] 0.0, 128
        %722 = vxpose.xlu0.b32.cont [6/16] 0.0, 128
        %723 = vxpose.xlu0.b32.cont [7/16] 0.0, 128
        %724 = vxpose.xlu0.b32.cont [8/16] 0.0, 128
        %725 = vxpose.xlu0.b32.cont [9/16] 0.0, 128
        %726 = vxpose.xlu0.b32.cont [10/16] 0.0, 128
        %727 = vxpose.xlu0.b32.cont [11/16] 0.0, 128
        %728 = vxpose.xlu0.b32.cont [12/16] 0.0, 128
        %729 = vxpose.xlu0.b32.cont [13/16] 0.0, 128
        %730 = vxpose.xlu0.b32.cont [14/16] 0.0, 128
        %731 = vxpose.xlu0.b32.cont [15/16] 0.0, 128
        %732 = vxpose.xlu0.b32.end [16/16] 0.0, 128
        %v733 = vpop.trf.xlu0
        %v734 = vpop.trf.xlu0
        %v735 = vpop.trf.xlu0
        %v736 = vpop.trf.xlu0
        %v737 = vpop.trf.xlu0
        %v738 = vpop.trf.xlu0
        %v739 = vpop.trf.xlu0
        %v740 = vpop.trf.xlu0
        %v741 = vpop.trf.xlu0
        %v742 = vpop.trf.xlu0
        %v743 = vpop.trf.xlu0
        %v744 = vpop.trf.xlu0
        %v745 = vpop.trf.xlu0
        %v746 = vpop.trf.xlu0
        %v747 = vpop.trf.xlu0
        %v748 = vpop.trf.xlu0
        %v749 = vld [vmem:[%s7] sm:$0xf]
        %v750 = vld [vmem:[%s7 + $0x4] sm:$0xf]
        %v751 = vpack.c.bf16 %v734, %v733
        %v752 = vpack.c.bf16 %v736, %v735
        %v753 = vpack.c.bf16 %v738, %v737
        %v754 = vpack.c.bf16 %v740, %v739
        %v757 = vunpack.c.l.b16 %v749
        %v758 = vunpack.c.l.b16 %v750
        %v759 = vpack.c.b16 %v758, %v757
        %vm761 = vcmask 130048
        %v763 = vsel %vm761, %v751, 0
        %v766 = vsel %vm761, %v752, 0
        %v769 = vsel %vm761, %v753, 0
        %v772 = vsel %vm761, %v754, 0
        %774 = vmatprep.subr.bf16.mxu0 0
        %775 = vmatpush1.bf16.msra.mxu0 0
        %776 = vmatprep.subr.bf16.mxu0 0
        %777 = vmatpush1.bf16.msra.mxu0 0
        %778 = vmatprep.subr.bf16.mxu0 0
        %779 = vmatpush1.bf16.msra.mxu0 0
        %780 = vmatprep.subr.bf16.mxu0 0
        %781 = vmatpush1.bf16.msra.mxu0 0
        %782 = vmatprep.subr.bf16.mxu0 0
        %783 = vmatpush1.bf16.msra.mxu0 0
        %784 = vmatprep.subr.bf16.mxu0 0
        %785 = vmatpush1.bf16.msra.mxu0 0
        %786 = vmatprep.subr.bf16.mxu0 0
        %787 = vmatpush1.bf16.msra.mxu0 0
        %788 = vmatprep.subr.bf16.mxu0 0
        %789 = vmatpush1.bf16.msra.mxu0 %v759
        %790 = vmatprep.subr.bf16.mxu0 0
        %791 = vmatpush2.bf16.msra.mxu0 0
        %792 = vmatprep.subr.bf16.mxu0 0
        %793 = vmatpush2.bf16.msra.mxu0 0
        %794 = vmatprep.subr.bf16.mxu0 0
        %795 = vmatpush2.bf16.msra.mxu0 0
        %796 = vmatprep.subr.bf16.mxu0 0
        %797 = vmatpush2.bf16.msra.mxu0 0
        %798 = vmatprep.subr.bf16.mxu0 0
        %799 = vmatpush2.bf16.msra.mxu0 0
        %800 = vmatprep.subr.bf16.mxu0 0
        %801 = vmatpush2.bf16.msra.mxu0 0
        %802 = vmatprep.subr.bf16.mxu0 0
        %803 = vmatpush2.bf16.msra.mxu0 0
        %804 = vmatprep.subr.bf16.mxu0 0
        %805 = vmatpush2.bf16.msra.mxu0 0
        %806 = vmatprep.mubr.bf16.mxu0 0
        %807 = vmatmul.mubr.bf16.gmra.mxu0 %v763
        %v808 = vpop.f32.mrf.mxu0
        %v809 = vadd.f32 0.0, %v808
        %v810 = vpop.f32.mrf.mxu0
        %v811 = vpop.f32.mrf.mxu0
        %v812 = vadd.f32 0.0, %v811
        %v813 = vpop.f32.mrf.mxu0
        %814 = vmatprep.mubr.bf16.mxu0 0
        %815 = vmatmul.mubr.bf16.gmra.mxu0 %v766
        %v816 = vpop.f32.mrf.mxu0
        %v817 = vadd.f32 0.0, %v816
        %v818 = vpop.f32.mrf.mxu0
        %v819 = vpop.f32.mrf.mxu0
        %v820 = vadd.f32 0.0, %v819
        %v821 = vpop.f32.mrf.mxu0
        %822 = vmatprep.mubr.bf16.mxu0 0
        %823 = vmatmul.mubr.bf16.gmra.mxu0 %v769
        %v824 = vpop.f32.mrf.mxu0
        %v825 = vadd.f32 0.0, %v824
        %v826 = vpop.f32.mrf.mxu0
        %v827 = vpop.f32.mrf.mxu0
        %v828 = vadd.f32 0.0, %v827
        %v829 = vpop.f32.mrf.mxu0
        %830 = vmatprep.mubr.bf16.mxu0 0
        %831 = vmatmul.mubr.bf16.gmra.mxu0 %v772
        %v832 = vpop.f32.mrf.mxu0
        %v833 = vadd.f32 0.0, %v832
        %v834 = vpop.f32.mrf.mxu0
        %v835 = vpop.f32.mrf.mxu0
        %v836 = vadd.f32 0.0, %v835
        %v837 = vpop.f32.mrf.mxu0
        %838 = vdwg.mxu0
        %v839 = vcombine.low %v809, %v817
        %v840 = vcombine.high %v809, %v817
        %v842 = vunpack.c.l.s4 1983009808
        %v843 = vunpack.c.0.s8 %v842
        %v844 = vlaneseq
        %v845 = vshrl.u32 %v844, 7
        %v846 = vsub.s32 %v843, %v845
        %v847 = vrot.slane %v839, %v846
        %v849 = vunpack.c.l.s4 1983009808
        %v850 = vunpack.c.0.s8 %v849
        %v851 = vlaneseq
        %v852 = vshrl.u32 %v851, 7
        %v853 = vsub.s32 %v850, %v852
        %v854 = vrot.slane %v840, %v853
        %v855 = vcombine.low %v812, %v820
        %v856 = vcombine.high %v812, %v820
        %v858 = vunpack.c.l.s4 1983009808
        %v859 = vunpack.c.0.s8 %v858
        %v860 = vlaneseq
        %v861 = vshrl.u32 %v860, 7
        %v862 = vsub.s32 %v859, %v861
        %v863 = vrot.slane %v855, %v862
        %v865 = vunpack.c.l.s4 1983009808
        %v866 = vunpack.c.0.s8 %v865
        %v867 = vlaneseq
        %v868 = vshrl.u32 %v867, 7
        %v869 = vsub.s32 %v866, %v868
        %v870 = vrot.slane %v856, %v869
        %v871 = vcombine.low %v825, %v833
        %v872 = vcombine.high %v825, %v833
        %v874 = vunpack.c.l.s4 1983009808
        %v875 = vunpack.c.0.s8 %v874
        %v876 = vlaneseq
        %v877 = vshrl.u32 %v876, 7
        %v878 = vsub.s32 %v875, %v877
        %v879 = vrot.slane %v871, %v878
        %v881 = vunpack.c.l.s4 1983009808
        %v882 = vunpack.c.0.s8 %v881
        %v883 = vlaneseq
        %v884 = vshrl.u32 %v883, 7
        %v885 = vsub.s32 %v882, %v884
        %v886 = vrot.slane %v872, %v885
        %v887 = vcombine.low %v828, %v836
        %v888 = vcombine.high %v828, %v836
        %v890 = vunpack.c.l.s4 1983009808
        %v891 = vunpack.c.0.s8 %v890
        %v892 = vlaneseq
        %v893 = vshrl.u32 %v892, 7
        %v894 = vsub.s32 %v891, %v893
        %v895 = vrot.slane %v887, %v894
        %v897 = vunpack.c.l.s4 1983009808
        %v898 = vunpack.c.0.s8 %v897
        %v899 = vlaneseq
        %v900 = vshrl.u32 %v899, 7
        %v901 = vsub.s32 %v898, %v900
        %v902 = vrot.slane %v888, %v901
        %v903 = vcombine.low %v847, %v863
        %v904 = vcombine.high %v847, %v863
        %v906 = vunpack.c.l.s4 1934713408
        %v907 = vunpack.c.0.s8 %v906
        %v908 = vlaneseq
        %v909 = vshrl.u32 %v908, 7
        %v910 = vsub.s32 %v907, %v909
        %v911 = vrot.slane %v903, %v910
        %v913 = vunpack.c.l.s4 1934713408
        %v914 = vunpack.c.0.s8 %v913
        %v915 = vlaneseq
        %v916 = vshrl.u32 %v915, 7
        %v917 = vsub.s32 %v914, %v916
        %v918 = vrot.slane %v904, %v917
        %v919 = vcombine.low %v854, %v870
        %v920 = vcombine.high %v854, %v870
        %v922 = vunpack.c.l.s4 1934713408
        %v923 = vunpack.c.0.s8 %v922
        %v924 = vlaneseq
        %v925 = vshrl.u32 %v924, 7
        %v926 = vsub.s32 %v923, %v925
        %v927 = vrot.slane %v919, %v926
        %v929 = vunpack.c.l.s4 1934713408
        %v930 = vunpack.c.0.s8 %v929
        %v931 = vlaneseq
        %v932 = vshrl.u32 %v931, 7
        %v933 = vsub.s32 %v930, %v932
        %v934 = vrot.slane %v920, %v933
        %v935 = vcombine.low %v879, %v895
        %v936 = vcombine.high %v879, %v895
        %v938 = vunpack.c.l.s4 1934713408
        %v939 = vunpack.c.0.s8 %v938
        %v940 = vlaneseq
        %v941 = vshrl.u32 %v940, 7
        %v942 = vsub.s32 %v939, %v941
        %v943 = vrot.slane %v935, %v942
        %v945 = vunpack.c.l.s4 1934713408
        %v946 = vunpack.c.0.s8 %v945
        %v947 = vlaneseq
        %v948 = vshrl.u32 %v947, 7
        %v949 = vsub.s32 %v946, %v948
        %v950 = vrot.slane %v936, %v949
        %v951 = vcombine.low %v886, %v902
        %v952 = vcombine.high %v886, %v902
        %v954 = vunpack.c.l.s4 1934713408
        %v955 = vunpack.c.0.s8 %v954
        %v956 = vlaneseq
        %v957 = vshrl.u32 %v956, 7
        %v958 = vsub.s32 %v955, %v957
        %v959 = vrot.slane %v951, %v958
        %v961 = vunpack.c.l.s4 1934713408
        %v962 = vunpack.c.0.s8 %v961
        %v963 = vlaneseq
        %v964 = vshrl.u32 %v963, 7
        %v965 = vsub.s32 %v962, %v964
        %v966 = vrot.slane %v952, %v965
        %v967 = vcombine.low %v911, %v943
        %v968 = vcombine.high %v911, %v943
        %v969 = vcombine.low %v918, %v950
        %v970 = vcombine.high %v918, %v950
        %v971 = vcombine.low %v927, %v959
        %v972 = vcombine.high %v927, %v959
        %v973 = vcombine.low %v934, %v966
        %v974 = vcombine.high %v934, %v966
        %983 = vrot.lane.b32.xlu0 %v809, 124
        %v984 = vpop.permute.xlu0 %983
        %985 = vrot.lane.b32.xlu0 %v812, 124
        %v986 = vpop.permute.xlu0 %985
        %987 = vrot.lane.b32.xlu0 %v817, 124
        %v988 = vpop.permute.xlu0 %987
        %989 = vrot.lane.b32.xlu0 %v820, 124
        %v990 = vpop.permute.xlu0 %989
        %991 = vrot.lane.b32.xlu0 %v825, 124
        %v992 = vpop.permute.xlu0 %991
        %993 = vrot.lane.b32.xlu0 %v828, 124
        %v994 = vpop.permute.xlu0 %993
        %995 = vrot.lane.b32.xlu0 %v833, 124
        %v996 = vpop.permute.xlu0 %995
        %997 = vrot.lane.b32.xlu0 %v836, 124
        %v998 = vpop.permute.xlu0 %997
        %v1007 = vcombine.low %v984, %v988
        %v1008 = vcombine.high %v984, %v988
        %v1010 = vunpack.c.l.s4 1983009808
        %v1011 = vunpack.c.0.s8 %v1010
        %v1012 = vlaneseq
        %v1013 = vshrl.u32 %v1012, 7
        %v1014 = vsub.s32 %v1011, %v1013
        %v1015 = vrot.slane %v1007, %v1014
        %v1017 = vunpack.c.l.s4 1983009808
        %v1018 = vunpack.c.0.s8 %v1017
        %v1019 = vlaneseq
        %v1020 = vshrl.u32 %v1019, 7
        %v1021 = vsub.s32 %v1018, %v1020
        %v1022 = vrot.slane %v1008, %v1021
        %v1023 = vcombine.low %v986, %v990
        %v1024 = vcombine.high %v986, %v990
        %v1026 = vunpack.c.l.s4 1983009808
        %v1027 = vunpack.c.0.s8 %v1026
        %v1028 = vlaneseq
        %v1029 = vshrl.u32 %v1028, 7
        %v1030 = vsub.s32 %v1027, %v1029
        %v1031 = vrot.slane %v1023, %v1030
        %v1033 = vunpack.c.l.s4 1983009808
        %v1034 = vunpack.c.0.s8 %v1033
        %v1035 = vlaneseq
        %v1036 = vshrl.u32 %v1035, 7
        %v1037 = vsub.s32 %v1034, %v1036
        %v1038 = vrot.slane %v1024, %v1037
        %v1039 = vcombine.low %v992, %v996
        %v1040 = vcombine.high %v992, %v996
        %v1042 = vunpack.c.l.s4 1983009808
        %v1043 = vunpack.c.0.s8 %v1042
        %v1044 = vlaneseq
        %v1045 = vshrl.u32 %v1044, 7
        %v1046 = vsub.s32 %v1043, %v1045
        %v1047 = vrot.slane %v1039, %v1046
        %v1049 = vunpack.c.l.s4 1983009808
        %v1050 = vunpack.c.0.s8 %v1049
        %v1051 = vlaneseq
        %v1052 = vshrl.u32 %v1051, 7
        %v1053 = vsub.s32 %v1050, %v1052
        %v1054 = vrot.slane %v1040, %v1053
        %v1055 = vcombine.low %v994, %v998
        %v1056 = vcombine.high %v994, %v998
        %v1058 = vunpack.c.l.s4 1983009808
        %v1059 = vunpack.c.0.s8 %v1058
        %v1060 = vlaneseq
        %v1061 = vshrl.u32 %v1060, 7
        %v1062 = vsub.s32 %v1059, %v1061
        %v1063 = vrot.slane %v1055, %v1062
        %v1065 = vunpack.c.l.s4 1983009808
        %v1066 = vunpack.c.0.s8 %v1065
        %v1067 = vlaneseq
        %v1068 = vshrl.u32 %v1067, 7
        %v1069 = vsub.s32 %v1066, %v1068
        %v1070 = vrot.slane %v1056, %v1069
        %v1071 = vcombine.low %v1015, %v1031
        %v1072 = vcombine.high %v1015, %v1031
        %v1074 = vunpack.c.l.s4 1934713408
        %v1075 = vunpack.c.0.s8 %v1074
        %v1076 = vlaneseq
        %v1077 = vshrl.u32 %v1076, 7
        %v1078 = vsub.s32 %v1075, %v1077
        %v1079 = vrot.slane %v1071, %v1078
        %v1081 = vunpack.c.l.s4 1934713408
        %v1082 = vunpack.c.0.s8 %v1081
        %v1083 = vlaneseq
        %v1084 = vshrl.u32 %v1083, 7
        %v1085 = vsub.s32 %v1082, %v1084
        %v1086 = vrot.slane %v1072, %v1085
        %v1087 = vcombine.low %v1022, %v1038
        %v1088 = vcombine.high %v1022, %v1038
        %v1090 = vunpack.c.l.s4 1934713408
        %v1091 = vunpack.c.0.s8 %v1090
        %v1092 = vlaneseq
        %v1093 = vshrl.u32 %v1092, 7
        %v1094 = vsub.s32 %v1091, %v1093
        %v1095 = vrot.slane %v1087, %v1094
        %v1097 = vunpack.c.l.s4 1934713408
        %v1098 = vunpack.c.0.s8 %v1097
        %v1099 = vlaneseq
        %v1100 = vshrl.u32 %v1099, 7
        %v1101 = vsub.s32 %v1098, %v1100
        %v1102 = vrot.slane %v1088, %v1101
        %v1103 = vcombine.low %v1047, %v1063
        %v1104 = vcombine.high %v1047, %v1063
        %v1106 = vunpack.c.l.s4 1934713408
        %v1107 = vunpack.c.0.s8 %v1106
        %v1108 = vlaneseq
        %v1109 = vshrl.u32 %v1108, 7
        %v1110 = vsub.s32 %v1107, %v1109
        %v1111 = vrot.slane %v1103, %v1110
        %v1113 = vunpack.c.l.s4 1934713408
        %v1114 = vunpack.c.0.s8 %v1113
        %v1115 = vlaneseq
        %v1116 = vshrl.u32 %v1115, 7
        %v1117 = vsub.s32 %v1114, %v1116
        %v1118 = vrot.slane %v1104, %v1117
        %v1119 = vcombine.low %v1054, %v1070
        %v1120 = vcombine.high %v1054, %v1070
        %v1122 = vunpack.c.l.s4 1934713408
        %v1123 = vunpack.c.0.s8 %v1122
        %v1124 = vlaneseq
        %v1125 = vshrl.u32 %v1124, 7
        %v1126 = vsub.s32 %v1123, %v1125
        %v1127 = vrot.slane %v1119, %v1126
        %v1129 = vunpack.c.l.s4 1934713408
        %v1130 = vunpack.c.0.s8 %v1129
        %v1131 = vlaneseq
        %v1132 = vshrl.u32 %v1131, 7
        %v1133 = vsub.s32 %v1130, %v1132
        %v1134 = vrot.slane %v1120, %v1133
        %v1135 = vcombine.low %v1079, %v1111
        %v1136 = vcombine.high %v1079, %v1111
        %v1137 = vcombine.low %v1086, %v1118
        %v1138 = vcombine.high %v1086, %v1118
        %v1139 = vcombine.low %v1095, %v1127
        %v1140 = vcombine.high %v1095, %v1127
        %v1141 = vcombine.low %v1102, %v1134
        %v1142 = vcombine.high %v1102, %v1134
        %v1143 = vcombine.high %v967, 0.0
        %v1145 = vunpack.c.l.s4 1983009808
        %v1146 = vunpack.c.0.s8 %v1145
        %v1147 = vlaneseq
        %v1148 = vshrl.u32 %v1147, 7
        %v1149 = vsub.s32 %v1146, %v1148
        %v1150 = vrot.slane %v967, %v1149
        %v1152 = vunpack.c.l.s4 1983009808
        %v1153 = vunpack.c.0.s8 %v1152
        %v1154 = vlaneseq
        %v1155 = vshrl.u32 %v1154, 7
        %v1156 = vsub.s32 %v1153, %v1155
        %v1157 = vrot.slane %v1143, %v1156
        %v1158 = vcombine.high %v1150, 0.0
        %v1160 = vunpack.c.l.s4 1934713408
        %v1161 = vunpack.c.0.s8 %v1160
        %v1162 = vlaneseq
        %v1163 = vshrl.u32 %v1162, 7
        %v1164 = vsub.s32 %v1161, %v1163
        %v1165 = vrot.slane %v1150, %v1164
        %v1167 = vunpack.c.l.s4 1934713408
        %v1168 = vunpack.c.0.s8 %v1167
        %v1169 = vlaneseq
        %v1170 = vshrl.u32 %v1169, 7
        %v1171 = vsub.s32 %v1168, %v1170
        %v1172 = vrot.slane %v1158, %v1171
        %v1173 = vcombine.high %v1157, 0.0
        %v1175 = vunpack.c.l.s4 1934713408
        %v1176 = vunpack.c.0.s8 %v1175
        %v1177 = vlaneseq
        %v1178 = vshrl.u32 %v1177, 7
        %v1179 = vsub.s32 %v1176, %v1178
        %v1180 = vrot.slane %v1157, %v1179
        %v1182 = vunpack.c.l.s4 1934713408
        %v1183 = vunpack.c.0.s8 %v1182
        %v1184 = vlaneseq
        %v1185 = vshrl.u32 %v1184, 7
        %v1186 = vsub.s32 %v1183, %v1185
        %v1187 = vrot.slane %v1173, %v1186
        %v1188 = vcombine.high %v1165, 0.0
        %v1189 = vcombine.high %v1172, 0.0
        %v1190 = vcombine.high %v1180, 0.0
        %v1191 = vcombine.high %v1187, 0.0
        %v1192 = vcombine.high %v968, 0.0
        %v1194 = vunpack.c.l.s4 1983009808
        %v1195 = vunpack.c.0.s8 %v1194
        %v1196 = vlaneseq
        %v1197 = vshrl.u32 %v1196, 7
        %v1198 = vsub.s32 %v1195, %v1197
        %v1199 = vrot.slane %v968, %v1198
        %v1201 = vunpack.c.l.s4 1983009808
        %v1202 = vunpack.c.0.s8 %v1201
        %v1203 = vlaneseq
        %v1204 = vshrl.u32 %v1203, 7
        %v1205 = vsub.s32 %v1202, %v1204
        %v1206 = vrot.slane %v1192, %v1205
        %v1207 = vcombine.high %v1199, 0.0
        %v1209 = vunpack.c.l.s4 1934713408
        %v1210 = vunpack.c.0.s8 %v1209
        %v1211 = vlaneseq
        %v1212 = vshrl.u32 %v1211, 7
        %v1213 = vsub.s32 %v1210, %v1212
        %v1214 = vrot.slane %v1199, %v1213
        %v1216 = vunpack.c.l.s4 1934713408
        %v1217 = vunpack.c.0.s8 %v1216
        %v1218 = vlaneseq
        %v1219 = vshrl.u32 %v1218, 7
        %v1220 = vsub.s32 %v1217, %v1219
        %v1221 = vrot.slane %v1207, %v1220
        %v1222 = vcombine.high %v1206, 0.0
        %v1224 = vunpack.c.l.s4 1934713408
        %v1225 = vunpack.c.0.s8 %v1224
        %v1226 = vlaneseq
        %v1227 = vshrl.u32 %v1226, 7
        %v1228 = vsub.s32 %v1225, %v1227
        %v1229 = vrot.slane %v1206, %v1228
        %v1231 = vunpack.c.l.s4 1934713408
        %v1232 = vunpack.c.0.s8 %v1231
        %v1233 = vlaneseq
        %v1234 = vshrl.u32 %v1233, 7
        %v1235 = vsub.s32 %v1232, %v1234
        %v1236 = vrot.slane %v1222, %v1235
        %v1237 = vcombine.high %v1214, 0.0
        %v1238 = vcombine.high %v1221, 0.0
        %v1239 = vcombine.high %v1229, 0.0
        %v1240 = vcombine.high %v1236, 0.0
        %v1241 = vcombine.high %v969, 0.0
        %v1243 = vunpack.c.l.s4 1983009808
        %v1244 = vunpack.c.0.s8 %v1243
        %v1245 = vlaneseq
        %v1246 = vshrl.u32 %v1245, 7
        %v1247 = vsub.s32 %v1244, %v1246
        %v1248 = vrot.slane %v969, %v1247
        %v1250 = vunpack.c.l.s4 1983009808
        %v1251 = vunpack.c.0.s8 %v1250
        %v1252 = vlaneseq
        %v1253 = vshrl.u32 %v1252, 7
        %v1254 = vsub.s32 %v1251, %v1253
        %v1255 = vrot.slane %v1241, %v1254
        %v1256 = vcombine.high %v1248, 0.0
        %v1258 = vunpack.c.l.s4 1934713408
        %v1259 = vunpack.c.0.s8 %v1258
        %v1260 = vlaneseq
        %v1261 = vshrl.u32 %v1260, 7
        %v1262 = vsub.s32 %v1259, %v1261
        %v1263 = vrot.slane %v1248, %v1262
        %v1265 = vunpack.c.l.s4 1934713408
        %v1266 = vunpack.c.0.s8 %v1265
        %v1267 = vlaneseq
        %v1268 = vshrl.u32 %v1267, 7
        %v1269 = vsub.s32 %v1266, %v1268
        %v1270 = vrot.slane %v1256, %v1269
        %v1271 = vcombine.high %v1255, 0.0
        %v1273 = vunpack.c.l.s4 1934713408
        %v1274 = vunpack.c.0.s8 %v1273
        %v1275 = vlaneseq
        %v1276 = vshrl.u32 %v1275, 7
        %v1277 = vsub.s32 %v1274, %v1276
        %v1278 = vrot.slane %v1255, %v1277
        %v1280 = vunpack.c.l.s4 1934713408
        %v1281 = vunpack.c.0.s8 %v1280
        %v1282 = vlaneseq
        %v1283 = vshrl.u32 %v1282, 7
        %v1284 = vsub.s32 %v1281, %v1283
        %v1285 = vrot.slane %v1271, %v1284
        %v1286 = vcombine.high %v1263, 0.0
        %v1287 = vcombine.high %v1270, 0.0
        %v1288 = vcombine.high %v1278, 0.0
        %v1289 = vcombine.high %v1285, 0.0
        %v1290 = vcombine.high %v970, 0.0
        %v1292 = vunpack.c.l.s4 1983009808
        %v1293 = vunpack.c.0.s8 %v1292
        %v1294 = vlaneseq
        %v1295 = vshrl.u32 %v1294, 7
        %v1296 = vsub.s32 %v1293, %v1295
        %v1297 = vrot.slane %v970, %v1296
        %v1299 = vunpack.c.l.s4 1983009808
        %v1300 = vunpack.c.0.s8 %v1299
        %v1301 = vlaneseq
        %v1302 = vshrl.u32 %v1301, 7
        %v1303 = vsub.s32 %v1300, %v1302
        %v1304 = vrot.slane %v1290, %v1303
        %v1305 = vcombine.high %v1297, 0.0
        %v1307 = vunpack.c.l.s4 1934713408
        %v1308 = vunpack.c.0.s8 %v1307
        %v1309 = vlaneseq
        %v1310 = vshrl.u32 %v1309, 7
        %v1311 = vsub.s32 %v1308, %v1310
        %v1312 = vrot.slane %v1297, %v1311
        %v1314 = vunpack.c.l.s4 1934713408
        %v1315 = vunpack.c.0.s8 %v1314
        %v1316 = vlaneseq
        %v1317 = vshrl.u32 %v1316, 7
        %v1318 = vsub.s32 %v1315, %v1317
        %v1319 = vrot.slane %v1305, %v1318
        %v1320 = vcombine.high %v1304, 0.0
        %v1322 = vunpack.c.l.s4 1934713408
        %v1323 = vunpack.c.0.s8 %v1322
        %v1324 = vlaneseq
        %v1325 = vshrl.u32 %v1324, 7
        %v1326 = vsub.s32 %v1323, %v1325
        %v1327 = vrot.slane %v1304, %v1326
        %v1329 = vunpack.c.l.s4 1934713408
        %v1330 = vunpack.c.0.s8 %v1329
        %v1331 = vlaneseq
        %v1332 = vshrl.u32 %v1331, 7
        %v1333 = vsub.s32 %v1330, %v1332
        %v1334 = vrot.slane %v1320, %v1333
        %v1335 = vcombine.high %v1312, 0.0
        %v1336 = vcombine.high %v1319, 0.0
        %v1337 = vcombine.high %v1327, 0.0
        %v1338 = vcombine.high %v1334, 0.0
        %v1339 = vcombine.high %v971, 0.0
        %v1341 = vunpack.c.l.s4 1983009808
        %v1342 = vunpack.c.0.s8 %v1341
        %v1343 = vlaneseq
        %v1344 = vshrl.u32 %v1343, 7
        %v1345 = vsub.s32 %v1342, %v1344
        %v1346 = vrot.slane %v971, %v1345
        %v1348 = vunpack.c.l.s4 1983009808
        %v1349 = vunpack.c.0.s8 %v1348
        %v1350 = vlaneseq
        %v1351 = vshrl.u32 %v1350, 7
        %v1352 = vsub.s32 %v1349, %v1351
        %v1353 = vrot.slane %v1339, %v1352
        %v1354 = vcombine.high %v1346, 0.0
        %v1356 = vunpack.c.l.s4 1934713408
        %v1357 = vunpack.c.0.s8 %v1356
        %v1358 = vlaneseq
        %v1359 = vshrl.u32 %v1358, 7
        %v1360 = vsub.s32 %v1357, %v1359
        %v1361 = vrot.slane %v1346, %v1360
        %v1363 = vunpack.c.l.s4 1934713408
        %v1364 = vunpack.c.0.s8 %v1363
        %v1365 = vlaneseq
        %v1366 = vshrl.u32 %v1365, 7
        %v1367 = vsub.s32 %v1364, %v1366
        %v1368 = vrot.slane %v1354, %v1367
        %v1369 = vcombine.high %v1353, 0.0
        %v1371 = vunpack.c.l.s4 1934713408
        %v1372 = vunpack.c.0.s8 %v1371
        %v1373 = vlaneseq
        %v1374 = vshrl.u32 %v1373, 7
        %v1375 = vsub.s32 %v1372, %v1374
        %v1376 = vrot.slane %v1353, %v1375
        %v1378 = vunpack.c.l.s4 1934713408
        %v1379 = vunpack.c.0.s8 %v1378
        %v1380 = vlaneseq
        %v1381 = vshrl.u32 %v1380, 7
        %v1382 = vsub.s32 %v1379, %v1381
        %v1383 = vrot.slane %v1369, %v1382
        %v1384 = vcombine.high %v1361, 0.0
        %v1385 = vcombine.high %v1368, 0.0
        %v1386 = vcombine.high %v1376, 0.0
        %v1387 = vcombine.high %v1383, 0.0
        %v1388 = vcombine.high %v972, 0.0
        %v1390 = vunpack.c.l.s4 1983009808
        %v1391 = vunpack.c.0.s8 %v1390
        %v1392 = vlaneseq
        %v1393 = vshrl.u32 %v1392, 7
        %v1394 = vsub.s32 %v1391, %v1393
        %v1395 = vrot.slane %v972, %v1394
        %v1397 = vunpack.c.l.s4 1983009808
        %v1398 = vunpack.c.0.s8 %v1397
        %v1399 = vlaneseq
        %v1400 = vshrl.u32 %v1399, 7
        %v1401 = vsub.s32 %v1398, %v1400
        %v1402 = vrot.slane %v1388, %v1401
        %v1403 = vcombine.high %v1395, 0.0
        %v1405 = vunpack.c.l.s4 1934713408
        %v1406 = vunpack.c.0.s8 %v1405
        %v1407 = vlaneseq
        %v1408 = vshrl.u32 %v1407, 7
        %v1409 = vsub.s32 %v1406, %v1408
        %v1410 = vrot.slane %v1395, %v1409
        %v1412 = vunpack.c.l.s4 1934713408
        %v1413 = vunpack.c.0.s8 %v1412
        %v1414 = vlaneseq
        %v1415 = vshrl.u32 %v1414, 7
        %v1416 = vsub.s32 %v1413, %v1415
        %v1417 = vrot.slane %v1403, %v1416
        %v1418 = vcombine.high %v1402, 0.0
        %v1420 = vunpack.c.l.s4 1934713408
        %v1421 = vunpack.c.0.s8 %v1420
        %v1422 = vlaneseq
        %v1423 = vshrl.u32 %v1422, 7
        %v1424 = vsub.s32 %v1421, %v1423
        %v1425 = vrot.slane %v1402, %v1424
        %v1427 = vunpack.c.l.s4 1934713408
        %v1428 = vunpack.c.0.s8 %v1427
        %v1429 = vlaneseq
        %v1430 = vshrl.u32 %v1429, 7
        %v1431 = vsub.s32 %v1428, %v1430
        %v1432 = vrot.slane %v1418, %v1431
        %v1433 = vcombine.high %v1410, 0.0
        %v1434 = vcombine.high %v1417, 0.0
        %v1435 = vcombine.high %v1425, 0.0
        %v1436 = vcombine.high %v1432, 0.0
        %v1437 = vcombine.high %v973, 0.0
        %v1439 = vunpack.c.l.s4 1983009808
        %v1440 = vunpack.c.0.s8 %v1439
        %v1441 = vlaneseq
        %v1442 = vshrl.u32 %v1441, 7
        %v1443 = vsub.s32 %v1440, %v1442
        %v1444 = vrot.slane %v973, %v1443
        %v1446 = vunpack.c.l.s4 1983009808
        %v1447 = vunpack.c.0.s8 %v1446
        %v1448 = vlaneseq
        %v1449 = vshrl.u32 %v1448, 7
        %v1450 = vsub.s32 %v1447, %v1449
        %v1451 = vrot.slane %v1437, %v1450
        %v1452 = vcombine.high %v1444, 0.0
        %v1454 = vunpack.c.l.s4 1934713408
        %v1455 = vunpack.c.0.s8 %v1454
        %v1456 = vlaneseq
        %v1457 = vshrl.u32 %v1456, 7
        %v1458 = vsub.s32 %v1455, %v1457
        %v1459 = vrot.slane %v1444, %v1458
        %v1461 = vunpack.c.l.s4 1934713408
        %v1462 = vunpack.c.0.s8 %v1461
        %v1463 = vlaneseq
        %v1464 = vshrl.u32 %v1463, 7
        %v1465 = vsub.s32 %v1462, %v1464
        %v1466 = vrot.slane %v1452, %v1465
        %v1467 = vcombine.high %v1451, 0.0
        %v1469 = vunpack.c.l.s4 1934713408
        %v1470 = vunpack.c.0.s8 %v1469
        %v1471 = vlaneseq
        %v1472 = vshrl.u32 %v1471, 7
        %v1473 = vsub.s32 %v1470, %v1472
        %v1474 = vrot.slane %v1451, %v1473
        %v1476 = vunpack.c.l.s4 1934713408
        %v1477 = vunpack.c.0.s8 %v1476
        %v1478 = vlaneseq
        %v1479 = vshrl.u32 %v1478, 7
        %v1480 = vsub.s32 %v1477, %v1479
        %v1481 = vrot.slane %v1467, %v1480
        %v1482 = vcombine.high %v1459, 0.0
        %v1483 = vcombine.high %v1466, 0.0
        %v1484 = vcombine.high %v1474, 0.0
        %v1485 = vcombine.high %v1481, 0.0
        %v1486 = vcombine.high %v974, 0.0
        %v1488 = vunpack.c.l.s4 1983009808
        %v1489 = vunpack.c.0.s8 %v1488
        %v1490 = vlaneseq
        %v1491 = vshrl.u32 %v1490, 7
        %v1492 = vsub.s32 %v1489, %v1491
        %v1493 = vrot.slane %v974, %v1492
        %v1495 = vunpack.c.l.s4 1983009808
        %v1496 = vunpack.c.0.s8 %v1495
        %v1497 = vlaneseq
        %v1498 = vshrl.u32 %v1497, 7
        %v1499 = vsub.s32 %v1496, %v1498
        %v1500 = vrot.slane %v1486, %v1499
        %v1501 = vcombine.high %v1493, 0.0
        %v1503 = vunpack.c.l.s4 1934713408
        %v1504 = vunpack.c.0.s8 %v1503
        %v1505 = vlaneseq
        %v1506 = vshrl.u32 %v1505, 7
        %v1507 = vsub.s32 %v1504, %v1506
        %v1508 = vrot.slane %v1493, %v1507
        %v1510 = vunpack.c.l.s4 1934713408
        %v1511 = vunpack.c.0.s8 %v1510
        %v1512 = vlaneseq
        %v1513 = vshrl.u32 %v1512, 7
        %v1514 = vsub.s32 %v1511, %v1513
        %v1515 = vrot.slane %v1501, %v1514
        %v1516 = vcombine.high %v1500, 0.0
        %v1518 = vunpack.c.l.s4 1934713408
        %v1519 = vunpack.c.0.s8 %v1518
        %v1520 = vlaneseq
        %v1521 = vshrl.u32 %v1520, 7
        %v1522 = vsub.s32 %v1519, %v1521
        %v1523 = vrot.slane %v1500, %v1522
        %v1525 = vunpack.c.l.s4 1934713408
        %v1526 = vunpack.c.0.s8 %v1525
        %v1527 = vlaneseq
        %v1528 = vshrl.u32 %v1527, 7
        %v1529 = vsub.s32 %v1526, %v1528
        %v1530 = vrot.slane %v1516, %v1529
        %v1531 = vcombine.high %v1508, 0.0
        %v1532 = vcombine.high %v1515, 0.0
        %v1533 = vcombine.high %v1523, 0.0
        %v1534 = vcombine.high %v1530, 0.0
        %1543 = vrot.lane.b32.xlu0 %v1188, 4
        %v1544 = vpop.permute.xlu0 %1543
        %1545 = vrot.lane.b32.xlu0 %v1237, 4
        %v1546 = vpop.permute.xlu0 %1545
        %1547 = vrot.lane.b32.xlu0 %v1286, 4
        %v1548 = vpop.permute.xlu0 %1547
        %1549 = vrot.lane.b32.xlu0 %v1335, 4
        %v1550 = vpop.permute.xlu0 %1549
        %1551 = vrot.lane.b32.xlu0 %v1384, 4
        %v1552 = vpop.permute.xlu0 %1551
        %1553 = vrot.lane.b32.xlu0 %v1433, 4
        %v1554 = vpop.permute.xlu0 %1553
        %1555 = vrot.lane.b32.xlu0 %v1482, 4
        %v1556 = vpop.permute.xlu0 %1555
        %1557 = vrot.lane.b32.xlu0 %v1531, 4
        %v1558 = vpop.permute.xlu0 %1557
        %1575 = vrot.lane.b32.xlu0 %v1172, 8
        %v1576 = vpop.permute.xlu0 %1575
        %1577 = vrot.lane.b32.xlu0 %v1221, 8
        %v1578 = vpop.permute.xlu0 %1577
        %1579 = vrot.lane.b32.xlu0 %v1270, 8
        %v1580 = vpop.permute.xlu0 %1579
        %1581 = vrot.lane.b32.xlu0 %v1319, 8
        %v1582 = vpop.permute.xlu0 %1581
        %1583 = vrot.lane.b32.xlu0 %v1368, 8
        %v1584 = vpop.permute.xlu0 %1583
        %1585 = vrot.lane.b32.xlu0 %v1417, 8
        %v1586 = vpop.permute.xlu0 %1585
        %1587 = vrot.lane.b32.xlu0 %v1466, 8
        %v1588 = vpop.permute.xlu0 %1587
        %1589 = vrot.lane.b32.xlu0 %v1515, 8
        %v1590 = vpop.permute.xlu0 %1589
        %1607 = vrot.lane.b32.xlu0 %v1189, 12
        %v1608 = vpop.permute.xlu0 %1607
        %1609 = vrot.lane.b32.xlu0 %v1238, 12
        %v1610 = vpop.permute.xlu0 %1609
        %1611 = vrot.lane.b32.xlu0 %v1287, 12
        %v1612 = vpop.permute.xlu0 %1611
        %1613 = vrot.lane.b32.xlu0 %v1336, 12
        %v1614 = vpop.permute.xlu0 %1613
        %1615 = vrot.lane.b32.xlu0 %v1385, 12
        %v1616 = vpop.permute.xlu0 %1615
        %1617 = vrot.lane.b32.xlu0 %v1434, 12
        %v1618 = vpop.permute.xlu0 %1617
        %1619 = vrot.lane.b32.xlu0 %v1483, 12
        %v1620 = vpop.permute.xlu0 %1619
        %1621 = vrot.lane.b32.xlu0 %v1532, 12
        %v1622 = vpop.permute.xlu0 %1621
        %1639 = vrot.lane.b32.xlu0 %v1180, 16
        %v1640 = vpop.permute.xlu0 %1639
        %1641 = vrot.lane.b32.xlu0 %v1229, 16
        %v1642 = vpop.permute.xlu0 %1641
        %1643 = vrot.lane.b32.xlu0 %v1278, 16
        %v1644 = vpop.permute.xlu0 %1643
        %1645 = vrot.lane.b32.xlu0 %v1327, 16
        %v1646 = vpop.permute.xlu0 %1645
        %1647 = vrot.lane.b32.xlu0 %v1376, 16
        %v1648 = vpop.permute.xlu0 %1647
        %1649 = vrot.lane.b32.xlu0 %v1425, 16
        %v1650 = vpop.permute.xlu0 %1649
        %1651 = vrot.lane.b32.xlu0 %v1474, 16
        %v1652 = vpop.permute.xlu0 %1651
        %1653 = vrot.lane.b32.xlu0 %v1523, 16
        %v1654 = vpop.permute.xlu0 %1653
        %1671 = vrot.lane.b32.xlu0 %v1190, 20
        %v1672 = vpop.permute.xlu0 %1671
        %1673 = vrot.lane.b32.xlu0 %v1239, 20
        %v1674 = vpop.permute.xlu0 %1673
        %1675 = vrot.lane.b32.xlu0 %v1288, 20
        %v1676 = vpop.permute.xlu0 %1675
        %1677 = vrot.lane.b32.xlu0 %v1337, 20
        %v1678 = vpop.permute.xlu0 %1677
        %1679 = vrot.lane.b32.xlu0 %v1386, 20
        %v1680 = vpop.permute.xlu0 %1679
        %1681 = vrot.lane.b32.xlu0 %v1435, 20
        %v1682 = vpop.permute.xlu0 %1681
        %1683 = vrot.lane.b32.xlu0 %v1484, 20
        %v1684 = vpop.permute.xlu0 %1683
        %1685 = vrot.lane.b32.xlu0 %v1533, 20
        %v1686 = vpop.permute.xlu0 %1685
        %1703 = vrot.lane.b32.xlu0 %v1187, 24
        %v1704 = vpop.permute.xlu0 %1703
        %1705 = vrot.lane.b32.xlu0 %v1236, 24
        %v1706 = vpop.permute.xlu0 %1705
        %1707 = vrot.lane.b32.xlu0 %v1285, 24
        %v1708 = vpop.permute.xlu0 %1707
        %1709 = vrot.lane.b32.xlu0 %v1334, 24
        %v1710 = vpop.permute.xlu0 %1709
        %1711 = vrot.lane.b32.xlu0 %v1383, 24
        %v1712 = vpop.permute.xlu0 %1711
        %1713 = vrot.lane.b32.xlu0 %v1432, 24
        %v1714 = vpop.permute.xlu0 %1713
        %1715 = vrot.lane.b32.xlu0 %v1481, 24
        %v1716 = vpop.permute.xlu0 %1715
        %1717 = vrot.lane.b32.xlu0 %v1530, 24
        %v1718 = vpop.permute.xlu0 %1717
        %1735 = vrot.lane.b32.xlu0 %v1191, 28
        %v1736 = vpop.permute.xlu0 %1735
        %1737 = vrot.lane.b32.xlu0 %v1240, 28
        %v1738 = vpop.permute.xlu0 %1737
        %1739 = vrot.lane.b32.xlu0 %v1289, 28
        %v1740 = vpop.permute.xlu0 %1739
        %1741 = vrot.lane.b32.xlu0 %v1338, 28
        %v1742 = vpop.permute.xlu0 %1741
        %1743 = vrot.lane.b32.xlu0 %v1387, 28
        %v1744 = vpop.permute.xlu0 %1743
        %1745 = vrot.lane.b32.xlu0 %v1436, 28
        %v1746 = vpop.permute.xlu0 %1745
        %1747 = vrot.lane.b32.xlu0 %v1485, 28
        %v1748 = vpop.permute.xlu0 %1747
        %1749 = vrot.lane.b32.xlu0 %v1534, 28
        %v1750 = vpop.permute.xlu0 %1749
        %vm1759 = vcmask 31744
        %v1760 = vsel %vm1759, %v1165, %v1544
        %v1761 = vsel %vm1759, %v1214, %v1546
        %v1762 = vsel %vm1759, %v1263, %v1548
        %v1763 = vsel %vm1759, %v1312, %v1550
        %v1764 = vsel %vm1759, %v1361, %v1552
        %v1765 = vsel %vm1759, %v1410, %v1554
        %v1766 = vsel %vm1759, %v1459, %v1556
        %v1767 = vsel %vm1759, %v1508, %v1558
        %vm1768 = vcmask 64512
        %v1769 = vsel %vm1768, %v1760, %v1576
        %v1770 = vsel %vm1768, %v1761, %v1578
        %v1771 = vsel %vm1768, %v1762, %v1580
        %v1772 = vsel %vm1768, %v1763, %v1582
        %v1773 = vsel %vm1768, %v1764, %v1584
        %v1774 = vsel %vm1768, %v1765, %v1586
        %v1775 = vsel %vm1768, %v1766, %v1588
        %v1776 = vsel %vm1768, %v1767, %v1590
        %vm1777 = vcmask 97280
        %v1778 = vsel %vm1777, %v1769, %v1608
        %v1779 = vsel %vm1777, %v1770, %v1610
        %v1780 = vsel %vm1777, %v1771, %v1612
        %v1781 = vsel %vm1777, %v1772, %v1614
        %v1782 = vsel %vm1777, %v1773, %v1616
        %v1783 = vsel %vm1777, %v1774, %v1618
        %v1784 = vsel %vm1777, %v1775, %v1620
        %v1785 = vsel %vm1777, %v1776, %v1622
        %v1786 = vsel %vm761, %v1778, %v1640
        %v1787 = vsel %vm761, %v1779, %v1642
        %v1788 = vsel %vm761, %v1780, %v1644
        %v1789 = vsel %vm761, %v1781, %v1646
        %v1790 = vsel %vm761, %v1782, %v1648
        %v1791 = vsel %vm761, %v1783, %v1650
        %v1792 = vsel %vm761, %v1784, %v1652
        %v1793 = vsel %vm761, %v1785, %v1654
        %vm1794 = vcmask 162816
        %v1795 = vsel %vm1794, %v1786, %v1672
        %v1796 = vsel %vm1794, %v1787, %v1674
        %v1797 = vsel %vm1794, %v1788, %v1676
        %v1798 = vsel %vm1794, %v1789, %v1678
        %v1799 = vsel %vm1794, %v1790, %v1680
        %v1800 = vsel %vm1794, %v1791, %v1682
        %v1801 = vsel %vm1794, %v1792, %v1684
        %v1802 = vsel %vm1794, %v1793, %v1686
        %vm1803 = vcmask 195584
        %v1804 = vsel %vm1803, %v1795, %v1704
        %v1805 = vsel %vm1803, %v1796, %v1706
        %v1806 = vsel %vm1803, %v1797, %v1708
        %v1807 = vsel %vm1803, %v1798, %v1710
        %v1808 = vsel %vm1803, %v1799, %v1712
        %v1809 = vsel %vm1803, %v1800, %v1714
        %v1810 = vsel %vm1803, %v1801, %v1716
        %v1811 = vsel %vm1803, %v1802, %v1718
        %vm1812 = vcmask 228352
        %v1813 = vsel %vm1812, %v1804, %v1736
        %v1814 = vsel %vm1812, %v1805, %v1738
        %v1815 = vsel %vm1812, %v1806, %v1740
        %v1816 = vsel %vm1812, %v1807, %v1742
        %v1817 = vsel %vm1812, %v1808, %v1744
        %v1818 = vsel %vm1812, %v1809, %v1746
        %v1819 = vsel %vm1812, %v1810, %v1748
        %v1820 = vsel %vm1812, %v1811, %v1750
        %v1821 = vcombine.high %v1135, 0.0
        %v1823 = vunpack.c.l.s4 1983009808
        %v1824 = vunpack.c.0.s8 %v1823
        %v1825 = vlaneseq
        %v1826 = vshrl.u32 %v1825, 7
        %v1827 = vsub.s32 %v1824, %v1826
        %v1828 = vrot.slane %v1135, %v1827
        %v1830 = vunpack.c.l.s4 1983009808
        %v1831 = vunpack.c.0.s8 %v1830
        %v1832 = vlaneseq
        %v1833 = vshrl.u32 %v1832, 7
        %v1834 = vsub.s32 %v1831, %v1833
        %v1835 = vrot.slane %v1821, %v1834
        %v1836 = vcombine.high %v1828, 0.0
        %v1838 = vunpack.c.l.s4 1934713408
        %v1839 = vunpack.c.0.s8 %v1838
        %v1840 = vlaneseq
        %v1841 = vshrl.u32 %v1840, 7
        %v1842 = vsub.s32 %v1839, %v1841
        %v1843 = vrot.slane %v1828, %v1842
        %v1845 = vunpack.c.l.s4 1934713408
        %v1846 = vunpack.c.0.s8 %v1845
        %v1847 = vlaneseq
        %v1848 = vshrl.u32 %v1847, 7
        %v1849 = vsub.s32 %v1846, %v1848
        %v1850 = vrot.slane %v1836, %v1849
        %v1851 = vcombine.high %v1835, 0.0
        %v1853 = vunpack.c.l.s4 1934713408
        %v1854 = vunpack.c.0.s8 %v1853
        %v1855 = vlaneseq
        %v1856 = vshrl.u32 %v1855, 7
        %v1857 = vsub.s32 %v1854, %v1856
        %v1858 = vrot.slane %v1835, %v1857
        %v1860 = vunpack.c.l.s4 1934713408
        %v1861 = vunpack.c.0.s8 %v1860
        %v1862 = vlaneseq
        %v1863 = vshrl.u32 %v1862, 7
        %v1864 = vsub.s32 %v1861, %v1863
        %v1865 = vrot.slane %v1851, %v1864
        %v1866 = vcombine.high %v1843, 0.0
        %v1867 = vcombine.high %v1850, 0.0
        %v1868 = vcombine.high %v1858, 0.0
        %v1869 = vcombine.high %v1865, 0.0
        %v1870 = vcombine.high %v1136, 0.0
        %v1872 = vunpack.c.l.s4 1983009808
        %v1873 = vunpack.c.0.s8 %v1872
        %v1874 = vlaneseq
        %v1875 = vshrl.u32 %v1874, 7
        %v1876 = vsub.s32 %v1873, %v1875
        %v1877 = vrot.slane %v1136, %v1876
        %v1879 = vunpack.c.l.s4 1983009808
        %v1880 = vunpack.c.0.s8 %v1879
        %v1881 = vlaneseq
        %v1882 = vshrl.u32 %v1881, 7
        %v1883 = vsub.s32 %v1880, %v1882
        %v1884 = vrot.slane %v1870, %v1883
        %v1885 = vcombine.high %v1877, 0.0
        %v1887 = vunpack.c.l.s4 1934713408
        %v1888 = vunpack.c.0.s8 %v1887
        %v1889 = vlaneseq
        %v1890 = vshrl.u32 %v1889, 7
        %v1891 = vsub.s32 %v1888, %v1890
        %v1892 = vrot.slane %v1877, %v1891
        %v1894 = vunpack.c.l.s4 1934713408
        %v1895 = vunpack.c.0.s8 %v1894
        %v1896 = vlaneseq
        %v1897 = vshrl.u32 %v1896, 7
        %v1898 = vsub.s32 %v1895, %v1897
        %v1899 = vrot.slane %v1885, %v1898
        %v1900 = vcombine.high %v1884, 0.0
        %v1902 = vunpack.c.l.s4 1934713408
        %v1903 = vunpack.c.0.s8 %v1902
        %v1904 = vlaneseq
        %v1905 = vshrl.u32 %v1904, 7
        %v1906 = vsub.s32 %v1903, %v1905
        %v1907 = vrot.slane %v1884, %v1906
        %v1909 = vunpack.c.l.s4 1934713408
        %v1910 = vunpack.c.0.s8 %v1909
        %v1911 = vlaneseq
        %v1912 = vshrl.u32 %v1911, 7
        %v1913 = vsub.s32 %v1910, %v1912
        %v1914 = vrot.slane %v1900, %v1913
        %v1915 = vcombine.high %v1892, 0.0
        %v1916 = vcombine.high %v1899, 0.0
        %v1917 = vcombine.high %v1907, 0.0
        %v1918 = vcombine.high %v1914, 0.0
        %v1919 = vcombine.high %v1137, 0.0
        %v1921 = vunpack.c.l.s4 1983009808
        %v1922 = vunpack.c.0.s8 %v1921
        %v1923 = vlaneseq
        %v1924 = vshrl.u32 %v1923, 7
        %v1925 = vsub.s32 %v1922, %v1924
        %v1926 = vrot.slane %v1137, %v1925
        %v1928 = vunpack.c.l.s4 1983009808
        %v1929 = vunpack.c.0.s8 %v1928
        %v1930 = vlaneseq
        %v1931 = vshrl.u32 %v1930, 7
        %v1932 = vsub.s32 %v1929, %v1931
        %v1933 = vrot.slane %v1919, %v1932
        %v1934 = vcombine.high %v1926, 0.0
        %v1936 = vunpack.c.l.s4 1934713408
        %v1937 = vunpack.c.0.s8 %v1936
        %v1938 = vlaneseq
        %v1939 = vshrl.u32 %v1938, 7
        %v1940 = vsub.s32 %v1937, %v1939
        %v1941 = vrot.slane %v1926, %v1940
        %v1943 = vunpack.c.l.s4 1934713408
        %v1944 = vunpack.c.0.s8 %v1943
        %v1945 = vlaneseq
        %v1946 = vshrl.u32 %v1945, 7
        %v1947 = vsub.s32 %v1944, %v1946
        %v1948 = vrot.slane %v1934, %v1947
        %v1949 = vcombine.high %v1933, 0.0
        %v1951 = vunpack.c.l.s4 1934713408
        %v1952 = vunpack.c.0.s8 %v1951
        %v1953 = vlaneseq
        %v1954 = vshrl.u32 %v1953, 7
        %v1955 = vsub.s32 %v1952, %v1954
        %v1956 = vrot.slane %v1933, %v1955
        %v1958 = vunpack.c.l.s4 1934713408
        %v1959 = vunpack.c.0.s8 %v1958
        %v1960 = vlaneseq
        %v1961 = vshrl.u32 %v1960, 7
        %v1962 = vsub.s32 %v1959, %v1961
        %v1963 = vrot.slane %v1949, %v1962
        %v1964 = vcombine.high %v1941, 0.0
        %v1965 = vcombine.high %v1948, 0.0
        %v1966 = vcombine.high %v1956, 0.0
        %v1967 = vcombine.high %v1963, 0.0
        %v1968 = vcombine.high %v1138, 0.0
        %v1970 = vunpack.c.l.s4 1983009808
        %v1971 = vunpack.c.0.s8 %v1970
        %v1972 = vlaneseq
        %v1973 = vshrl.u32 %v1972, 7
        %v1974 = vsub.s32 %v1971, %v1973
        %v1975 = vrot.slane %v1138, %v1974
        %v1977 = vunpack.c.l.s4 1983009808
        %v1978 = vunpack.c.0.s8 %v1977
        %v1979 = vlaneseq
        %v1980 = vshrl.u32 %v1979, 7
        %v1981 = vsub.s32 %v1978, %v1980
        %v1982 = vrot.slane %v1968, %v1981
        %v1983 = vcombine.high %v1975, 0.0
        %v1985 = vunpack.c.l.s4 1934713408
        %v1986 = vunpack.c.0.s8 %v1985
        %v1987 = vlaneseq
        %v1988 = vshrl.u32 %v1987, 7
        %v1989 = vsub.s32 %v1986, %v1988
        %v1990 = vrot.slane %v1975, %v1989
        %v1992 = vunpack.c.l.s4 1934713408
        %v1993 = vunpack.c.0.s8 %v1992
        %v1994 = vlaneseq
        %v1995 = vshrl.u32 %v1994, 7
        %v1996 = vsub.s32 %v1993, %v1995
        %v1997 = vrot.slane %v1983, %v1996
        %v1998 = vcombine.high %v1982, 0.0
        %v2000 = vunpack.c.l.s4 1934713408
        %v2001 = vunpack.c.0.s8 %v2000
        %v2002 = vlaneseq
        %v2003 = vshrl.u32 %v2002, 7
        %v2004 = vsub.s32 %v2001, %v2003
        %v2005 = vrot.slane %v1982, %v2004
        %v2007 = vunpack.c.l.s4 1934713408
        %v2008 = vunpack.c.0.s8 %v2007
        %v2009 = vlaneseq
        %v2010 = vshrl.u32 %v2009, 7
        %v2011 = vsub.s32 %v2008, %v2010
        %v2012 = vrot.slane %v1998, %v2011
        %v2013 = vcombine.high %v1990, 0.0
        %v2014 = vcombine.high %v1997, 0.0
        %v2015 = vcombine.high %v2005, 0.0
        %v2016 = vcombine.high %v2012, 0.0
        %v2017 = vcombine.high %v1139, 0.0
        %v2019 = vunpack.c.l.s4 1983009808
        %v2020 = vunpack.c.0.s8 %v2019
        %v2021 = vlaneseq
        %v2022 = vshrl.u32 %v2021, 7
        %v2023 = vsub.s32 %v2020, %v2022
        %v2024 = vrot.slane %v1139, %v2023
        %v2026 = vunpack.c.l.s4 1983009808
        %v2027 = vunpack.c.0.s8 %v2026
        %v2028 = vlaneseq
        %v2029 = vshrl.u32 %v2028, 7
        %v2030 = vsub.s32 %v2027, %v2029
        %v2031 = vrot.slane %v2017, %v2030
        %v2032 = vcombine.high %v2024, 0.0
        %v2034 = vunpack.c.l.s4 1934713408
        %v2035 = vunpack.c.0.s8 %v2034
        %v2036 = vlaneseq
        %v2037 = vshrl.u32 %v2036, 7
        %v2038 = vsub.s32 %v2035, %v2037
        %v2039 = vrot.slane %v2024, %v2038
        %v2041 = vunpack.c.l.s4 1934713408
        %v2042 = vunpack.c.0.s8 %v2041
        %v2043 = vlaneseq
        %v2044 = vshrl.u32 %v2043, 7
        %v2045 = vsub.s32 %v2042, %v2044
        %v2046 = vrot.slane %v2032, %v2045
        %v2047 = vcombine.high %v2031, 0.0
        %v2049 = vunpack.c.l.s4 1934713408
        %v2050 = vunpack.c.0.s8 %v2049
        %v2051 = vlaneseq
        %v2052 = vshrl.u32 %v2051, 7
        %v2053 = vsub.s32 %v2050, %v2052
        %v2054 = vrot.slane %v2031, %v2053
        %v2056 = vunpack.c.l.s4 1934713408
        %v2057 = vunpack.c.0.s8 %v2056
        %v2058 = vlaneseq
        %v2059 = vshrl.u32 %v2058, 7
        %v2060 = vsub.s32 %v2057, %v2059
        %v2061 = vrot.slane %v2047, %v2060
        %v2062 = vcombine.high %v2039, 0.0
        %v2063 = vcombine.high %v2046, 0.0
        %v2064 = vcombine.high %v2054, 0.0
        %v2065 = vcombine.high %v2061, 0.0
        %v2066 = vcombine.high %v1140, 0.0
        %v2068 = vunpack.c.l.s4 1983009808
        %v2069 = vunpack.c.0.s8 %v2068
        %v2070 = vlaneseq
        %v2071 = vshrl.u32 %v2070, 7
        %v2072 = vsub.s32 %v2069, %v2071
        %v2073 = vrot.slane %v1140, %v2072
        %v2075 = vunpack.c.l.s4 1983009808
        %v2076 = vunpack.c.0.s8 %v2075
        %v2077 = vlaneseq
        %v2078 = vshrl.u32 %v2077, 7
        %v2079 = vsub.s32 %v2076, %v2078
        %v2080 = vrot.slane %v2066, %v2079
        %v2081 = vcombine.high %v2073, 0.0
        %v2083 = vunpack.c.l.s4 1934713408
        %v2084 = vunpack.c.0.s8 %v2083
        %v2085 = vlaneseq
        %v2086 = vshrl.u32 %v2085, 7
        %v2087 = vsub.s32 %v2084, %v2086
        %v2088 = vrot.slane %v2073, %v2087
        %v2090 = vunpack.c.l.s4 1934713408
        %v2091 = vunpack.c.0.s8 %v2090
        %v2092 = vlaneseq
        %v2093 = vshrl.u32 %v2092, 7
        %v2094 = vsub.s32 %v2091, %v2093
        %v2095 = vrot.slane %v2081, %v2094
        %v2096 = vcombine.high %v2080, 0.0
        %v2098 = vunpack.c.l.s4 1934713408
        %v2099 = vunpack.c.0.s8 %v2098
        %v2100 = vlaneseq
        %v2101 = vshrl.u32 %v2100, 7
        %v2102 = vsub.s32 %v2099, %v2101
        %v2103 = vrot.slane %v2080, %v2102
        %v2105 = vunpack.c.l.s4 1934713408
        %v2106 = vunpack.c.0.s8 %v2105
        %v2107 = vlaneseq
        %v2108 = vshrl.u32 %v2107, 7
        %v2109 = vsub.s32 %v2106, %v2108
        %v2110 = vrot.slane %v2096, %v2109
        %v2111 = vcombine.high %v2088, 0.0
        %v2112 = vcombine.high %v2095, 0.0
        %v2113 = vcombine.high %v2103, 0.0
        %v2114 = vcombine.high %v2110, 0.0
        %v2115 = vcombine.high %v1141, 0.0
        %v2117 = vunpack.c.l.s4 1983009808
        %v2118 = vunpack.c.0.s8 %v2117
        %v2119 = vlaneseq
        %v2120 = vshrl.u32 %v2119, 7
        %v2121 = vsub.s32 %v2118, %v2120
        %v2122 = vrot.slane %v1141, %v2121
        %v2124 = vunpack.c.l.s4 1983009808
        %v2125 = vunpack.c.0.s8 %v2124
        %v2126 = vlaneseq
        %v2127 = vshrl.u32 %v2126, 7
        %v2128 = vsub.s32 %v2125, %v2127
        %v2129 = vrot.slane %v2115, %v2128
        %v2130 = vcombine.high %v2122, 0.0
        %v2132 = vunpack.c.l.s4 1934713408
        %v2133 = vunpack.c.0.s8 %v2132
        %v2134 = vlaneseq
        %v2135 = vshrl.u32 %v2134, 7
        %v2136 = vsub.s32 %v2133, %v2135
        %v2137 = vrot.slane %v2122, %v2136
        %v2139 = vunpack.c.l.s4 1934713408
        %v2140 = vunpack.c.0.s8 %v2139
        %v2141 = vlaneseq
        %v2142 = vshrl.u32 %v2141, 7
        %v2143 = vsub.s32 %v2140, %v2142
        %v2144 = vrot.slane %v2130, %v2143
        %v2145 = vcombine.high %v2129, 0.0
        %v2147 = vunpack.c.l.s4 1934713408
        %v2148 = vunpack.c.0.s8 %v2147
        %v2149 = vlaneseq
        %v2150 = vshrl.u32 %v2149, 7
        %v2151 = vsub.s32 %v2148, %v2150
        %v2152 = vrot.slane %v2129, %v2151
        %v2154 = vunpack.c.l.s4 1934713408
        %v2155 = vunpack.c.0.s8 %v2154
        %v2156 = vlaneseq
        %v2157 = vshrl.u32 %v2156, 7
        %v2158 = vsub.s32 %v2155, %v2157
        %v2159 = vrot.slane %v2145, %v2158
        %v2160 = vcombine.high %v2137, 0.0
        %v2161 = vcombine.high %v2144, 0.0
        %v2162 = vcombine.high %v2152, 0.0
        %v2163 = vcombine.high %v2159, 0.0
        %v2164 = vcombine.high %v1142, 0.0
        %v2166 = vunpack.c.l.s4 1983009808
        %v2167 = vunpack.c.0.s8 %v2166
        %v2168 = vlaneseq
        %v2169 = vshrl.u32 %v2168, 7
        %v2170 = vsub.s32 %v2167, %v2169
        %v2171 = vrot.slane %v1142, %v2170
        %v2173 = vunpack.c.l.s4 1983009808
        %v2174 = vunpack.c.0.s8 %v2173
        %v2175 = vlaneseq
        %v2176 = vshrl.u32 %v2175, 7
        %v2177 = vsub.s32 %v2174, %v2176
        %v2178 = vrot.slane %v2164, %v2177
        %v2179 = vcombine.high %v2171, 0.0
        %v2181 = vunpack.c.l.s4 1934713408
        %v2182 = vunpack.c.0.s8 %v2181
        %v2183 = vlaneseq
        %v2184 = vshrl.u32 %v2183, 7
        %v2185 = vsub.s32 %v2182, %v2184
        %v2186 = vrot.slane %v2171, %v2185
        %v2188 = vunpack.c.l.s4 1934713408
        %v2189 = vunpack.c.0.s8 %v2188
        %v2190 = vlaneseq
        %v2191 = vshrl.u32 %v2190, 7
        %v2192 = vsub.s32 %v2189, %v2191
        %v2193 = vrot.slane %v2179, %v2192
        %v2194 = vcombine.high %v2178, 0.0
        %v2196 = vunpack.c.l.s4 1934713408
        %v2197 = vunpack.c.0.s8 %v2196
        %v2198 = vlaneseq
        %v2199 = vshrl.u32 %v2198, 7
        %v2200 = vsub.s32 %v2197, %v2199
        %v2201 = vrot.slane %v2178, %v2200
        %v2203 = vunpack.c.l.s4 1934713408
        %v2204 = vunpack.c.0.s8 %v2203
        %v2205 = vlaneseq
        %v2206 = vshrl.u32 %v2205, 7
        %v2207 = vsub.s32 %v2204, %v2206
        %v2208 = vrot.slane %v2194, %v2207
        %v2209 = vcombine.high %v2186, 0.0
        %v2210 = vcombine.high %v2193, 0.0
        %v2211 = vcombine.high %v2201, 0.0
        %v2212 = vcombine.high %v2208, 0.0
        %2221 = vrot.lane.b32.xlu0 %v1866, 4
        %v2222 = vpop.permute.xlu0 %2221
        %2223 = vrot.lane.b32.xlu0 %v1915, 4
        %v2224 = vpop.permute.xlu0 %2223
        %2225 = vrot.lane.b32.xlu0 %v1964, 4
        %v2226 = vpop.permute.xlu0 %2225
        %2227 = vrot.lane.b32.xlu0 %v2013, 4
        %v2228 = vpop.permute.xlu0 %2227
        %2229 = vrot.lane.b32.xlu0 %v2062, 4
        %v2230 = vpop.permute.xlu0 %2229
        %2231 = vrot.lane.b32.xlu0 %v2111, 4
        %v2232 = vpop.permute.xlu0 %2231
        %2233 = vrot.lane.b32.xlu0 %v2160, 4
        %v2234 = vpop.permute.xlu0 %2233
        %2235 = vrot.lane.b32.xlu0 %v2209, 4
        %v2236 = vpop.permute.xlu0 %2235
        %2253 = vrot.lane.b32.xlu0 %v1850, 8
        %v2254 = vpop.permute.xlu0 %2253
        %2255 = vrot.lane.b32.xlu0 %v1899, 8
        %v2256 = vpop.permute.xlu0 %2255
        %2257 = vrot.lane.b32.xlu0 %v1948, 8
        %v2258 = vpop.permute.xlu0 %2257
        %2259 = vrot.lane.b32.xlu0 %v1997, 8
        %v2260 = vpop.permute.xlu0 %2259
        %2261 = vrot.lane.b32.xlu0 %v2046, 8
        %v2262 = vpop.permute.xlu0 %2261
        %2263 = vrot.lane.b32.xlu0 %v2095, 8
        %v2264 = vpop.permute.xlu0 %2263
        %2265 = vrot.lane.b32.xlu0 %v2144, 8
        %v2266 = vpop.permute.xlu0 %2265
        %2267 = vrot.lane.b32.xlu0 %v2193, 8
        %v2268 = vpop.permute.xlu0 %2267
        %2285 = vrot.lane.b32.xlu0 %v1867, 12
        %v2286 = vpop.permute.xlu0 %2285
        %2287 = vrot.lane.b32.xlu0 %v1916, 12
        %v2288 = vpop.permute.xlu0 %2287
        %2289 = vrot.lane.b32.xlu0 %v1965, 12
        %v2290 = vpop.permute.xlu0 %2289
        %2291 = vrot.lane.b32.xlu0 %v2014, 12
        %v2292 = vpop.permute.xlu0 %2291
        %2293 = vrot.lane.b32.xlu0 %v2063, 12
        %v2294 = vpop.permute.xlu0 %2293
        %2295 = vrot.lane.b32.xlu0 %v2112, 12
        %v2296 = vpop.permute.xlu0 %2295
        %2297 = vrot.lane.b32.xlu0 %v2161, 12
        %v2298 = vpop.permute.xlu0 %2297
        %2299 = vrot.lane.b32.xlu0 %v2210, 12
        %v2300 = vpop.permute.xlu0 %2299
        %2317 = vrot.lane.b32.xlu0 %v1858, 16
        %v2318 = vpop.permute.xlu0 %2317
        %2319 = vrot.lane.b32.xlu0 %v1907, 16
        %v2320 = vpop.permute.xlu0 %2319
        %2321 = vrot.lane.b32.xlu0 %v1956, 16
        %v2322 = vpop.permute.xlu0 %2321
        %2323 = vrot.lane.b32.xlu0 %v2005, 16
        %v2324 = vpop.permute.xlu0 %2323
        %2325 = vrot.lane.b32.xlu0 %v2054, 16
        %v2326 = vpop.permute.xlu0 %2325
        %2327 = vrot.lane.b32.xlu0 %v2103, 16
        %v2328 = vpop.permute.xlu0 %2327
        %2329 = vrot.lane.b32.xlu0 %v2152, 16
        %v2330 = vpop.permute.xlu0 %2329
        %2331 = vrot.lane.b32.xlu0 %v2201, 16
        %v2332 = vpop.permute.xlu0 %2331
        %2349 = vrot.lane.b32.xlu0 %v1868, 20
        %v2350 = vpop.permute.xlu0 %2349
        %2351 = vrot.lane.b32.xlu0 %v1917, 20
        %v2352 = vpop.permute.xlu0 %2351
        %2353 = vrot.lane.b32.xlu0 %v1966, 20
        %v2354 = vpop.permute.xlu0 %2353
        %2355 = vrot.lane.b32.xlu0 %v2015, 20
        %v2356 = vpop.permute.xlu0 %2355
        %2357 = vrot.lane.b32.xlu0 %v2064, 20
        %v2358 = vpop.permute.xlu0 %2357
        %2359 = vrot.lane.b32.xlu0 %v2113, 20
        %v2360 = vpop.permute.xlu0 %2359
        %2361 = vrot.lane.b32.xlu0 %v2162, 20
        %v2362 = vpop.permute.xlu0 %2361
        %2363 = vrot.lane.b32.xlu0 %v2211, 20
        %v2364 = vpop.permute.xlu0 %2363
        %2381 = vrot.lane.b32.xlu0 %v1865, 24
        %v2382 = vpop.permute.xlu0 %2381
        %2383 = vrot.lane.b32.xlu0 %v1914, 24
        %v2384 = vpop.permute.xlu0 %2383
        %2385 = vrot.lane.b32.xlu0 %v1963, 24
        %v2386 = vpop.permute.xlu0 %2385
        %2387 = vrot.lane.b32.xlu0 %v2012, 24
        %v2388 = vpop.permute.xlu0 %2387
        %2389 = vrot.lane.b32.xlu0 %v2061, 24
        %v2390 = vpop.permute.xlu0 %2389
        %2391 = vrot.lane.b32.xlu0 %v2110, 24
        %v2392 = vpop.permute.xlu0 %2391
        %2393 = vrot.lane.b32.xlu0 %v2159, 24
        %v2394 = vpop.permute.xlu0 %2393
        %2395 = vrot.lane.b32.xlu0 %v2208, 24
        %v2396 = vpop.permute.xlu0 %2395
        %2413 = vrot.lane.b32.xlu0 %v1869, 28
        %v2414 = vpop.permute.xlu0 %2413
        %2415 = vrot.lane.b32.xlu0 %v1918, 28
        %v2416 = vpop.permute.xlu0 %2415
        %2417 = vrot.lane.b32.xlu0 %v1967, 28
        %v2418 = vpop.permute.xlu0 %2417
        %2419 = vrot.lane.b32.xlu0 %v2016, 28
        %v2420 = vpop.permute.xlu0 %2419
        %2421 = vrot.lane.b32.xlu0 %v2065, 28
        %v2422 = vpop.permute.xlu0 %2421
        %2423 = vrot.lane.b32.xlu0 %v2114, 28
        %v2424 = vpop.permute.xlu0 %2423
        %2425 = vrot.lane.b32.xlu0 %v2163, 28
        %v2426 = vpop.permute.xlu0 %2425
        %2427 = vrot.lane.b32.xlu0 %v2212, 28
        %v2428 = vpop.permute.xlu0 %2427
        %v2437 = vsel %vm1759, %v1843, %v2222
        %v2438 = vsel %vm1759, %v1892, %v2224
        %v2439 = vsel %vm1759, %v1941, %v2226
        %v2440 = vsel %vm1759, %v1990, %v2228
        %v2441 = vsel %vm1759, %v2039, %v2230
        %v2442 = vsel %vm1759, %v2088, %v2232
        %v2443 = vsel %vm1759, %v2137, %v2234
        %v2444 = vsel %vm1759, %v2186, %v2236
        %v2445 = vsel %vm1768, %v2437, %v2254
        %v2446 = vsel %vm1768, %v2438, %v2256
        %v2447 = vsel %vm1768, %v2439, %v2258
        %v2448 = vsel %vm1768, %v2440, %v2260
        %v2449 = vsel %vm1768, %v2441, %v2262
        %v2450 = vsel %vm1768, %v2442, %v2264
        %v2451 = vsel %vm1768, %v2443, %v2266
        %v2452 = vsel %vm1768, %v2444, %v2268
        %v2453 = vsel %vm1777, %v2445, %v2286
        %v2454 = vsel %vm1777, %v2446, %v2288
        %v2455 = vsel %vm1777, %v2447, %v2290
        %v2456 = vsel %vm1777, %v2448, %v2292
        %v2457 = vsel %vm1777, %v2449, %v2294
        %v2458 = vsel %vm1777, %v2450, %v2296
        %v2459 = vsel %vm1777, %v2451, %v2298
        %v2460 = vsel %vm1777, %v2452, %v2300
        %v2461 = vsel %vm761, %v2453, %v2318
        %v2462 = vsel %vm761, %v2454, %v2320
        %v2463 = vsel %vm761, %v2455, %v2322
        %v2464 = vsel %vm761, %v2456, %v2324
        %v2465 = vsel %vm761, %v2457, %v2326
        %v2466 = vsel %vm761, %v2458, %v2328
        %v2467 = vsel %vm761, %v2459, %v2330
        %v2468 = vsel %vm761, %v2460, %v2332
        %v2469 = vsel %vm1794, %v2461, %v2350
        %v2470 = vsel %vm1794, %v2462, %v2352
        %v2471 = vsel %vm1794, %v2463, %v2354
        %v2472 = vsel %vm1794, %v2464, %v2356
        %v2473 = vsel %vm1794, %v2465, %v2358
        %v2474 = vsel %vm1794, %v2466, %v2360
        %v2475 = vsel %vm1794, %v2467, %v2362
        %v2476 = vsel %vm1794, %v2468, %v2364
        %v2477 = vsel %vm1803, %v2469, %v2382
        %v2478 = vsel %vm1803, %v2470, %v2384
        %v2479 = vsel %vm1803, %v2471, %v2386
        %v2480 = vsel %vm1803, %v2472, %v2388
        %v2481 = vsel %vm1803, %v2473, %v2390
        %v2482 = vsel %vm1803, %v2474, %v2392
        %v2483 = vsel %vm1803, %v2475, %v2394
        %v2484 = vsel %vm1803, %v2476, %v2396
        %v2485 = vsel %vm1812, %v2477, %v2414
        %v2486 = vsel %vm1812, %v2478, %v2416
        %v2487 = vsel %vm1812, %v2479, %v2418
        %v2488 = vsel %vm1812, %v2480, %v2420
        %v2489 = vsel %vm1812, %v2481, %v2422
        %v2490 = vsel %vm1812, %v2482, %v2424
        %v2491 = vsel %vm1812, %v2483, %v2426
        %v2492 = vsel %vm1812, %v2484, %v2428
        %v2493 = vld [vmem:[#allocation12] sm:$0xf]
        %v2494 = vld [vmem:[#allocation12 + $0x4] sm:$0xf]
        %v2495 = vld [vmem:[#allocation12 + $0x8] sm:$0xf]
        %v2496 = vld [vmem:[#allocation12 + $0xc] sm:$0xf]
        %v2497 = vld [vmem:[#allocation12 + $0x10] sm:$0xf]
        %v2498 = vld [vmem:[#allocation12 + $0x14] sm:$0xf]
        %v2499 = vld [vmem:[#allocation12 + $0x18] sm:$0xf]
        %v2500 = vld [vmem:[#allocation12 + $0x1c] sm:$0xf]
        %v2501 = vunpack.c.l.bf16 %v2493
        %v2502 = vunpack.c.l.bf16 %v2494
        %v2503 = vunpack.c.l.bf16 %v2495
        %v2504 = vunpack.c.l.bf16 %v2496
        %v2505 = vunpack.c.l.bf16 %v2497
        %v2506 = vunpack.c.l.bf16 %v2498
        %v2507 = vunpack.c.l.bf16 %v2499
        %v2508 = vunpack.c.l.bf16 %v2500
        %v2509 = vld [vmem:[#allocation14] sm:$0xf]
        %v2510 = vld [vmem:[#allocation14 + $0x4] sm:$0xf]
        %v2511 = vld [vmem:[#allocation14 + $0x8] sm:$0xf]
        %v2512 = vld [vmem:[#allocation14 + $0xc] sm:$0xf]
        %v2513 = vld [vmem:[#allocation14 + $0x10] sm:$0xf]
        %v2514 = vld [vmem:[#allocation14 + $0x14] sm:$0xf]
        %v2515 = vld [vmem:[#allocation14 + $0x18] sm:$0xf]
        %v2516 = vld [vmem:[#allocation14 + $0x1c] sm:$0xf]
        %v2517 = vunpack.c.l.bf16 %v2509
        %v2518 = vunpack.c.l.bf16 %v2510
        %v2519 = vunpack.c.l.bf16 %v2511
        %v2520 = vunpack.c.l.bf16 %v2512
        %v2521 = vunpack.c.l.bf16 %v2513
        %v2522 = vunpack.c.l.bf16 %v2514
        %v2523 = vunpack.c.l.bf16 %v2515
        %v2524 = vunpack.c.l.bf16 %v2516
        %v2525 = vlaneseq
        %v2526 = vshrl.u32 %v2525, 7
        %v2527 = vsub.s32 0, %v2526
        %v2528 = vrot.slane %v1813, %v2527
        %v2529 = vlaneseq
        %v2530 = vshrl.u32 %v2529, 7
        %v2531 = vsub.s32 0, %v2530
        %v2532 = vrot.slane %v1814, %v2531
        %v2533 = vlaneseq
        %v2534 = vshrl.u32 %v2533, 7
        %v2535 = vsub.s32 0, %v2534
        %v2536 = vrot.slane %v1815, %v2535
        %v2537 = vlaneseq
        %v2538 = vshrl.u32 %v2537, 7
        %v2539 = vsub.s32 0, %v2538
        %v2540 = vrot.slane %v1816, %v2539
        %v2541 = vlaneseq
        %v2542 = vshrl.u32 %v2541, 7
        %v2543 = vsub.s32 0, %v2542
        %v2544 = vrot.slane %v1817, %v2543
        %v2545 = vlaneseq
        %v2546 = vshrl.u32 %v2545, 7
        %v2547 = vsub.s32 0, %v2546
        %v2548 = vrot.slane %v1818, %v2547
        %v2549 = vlaneseq
        %v2550 = vshrl.u32 %v2549, 7
        %v2551 = vsub.s32 0, %v2550
        %v2552 = vrot.slane %v1819, %v2551
        %v2553 = vlaneseq
        %v2554 = vshrl.u32 %v2553, 7
        %v2555 = vsub.s32 0, %v2554
        %v2556 = vrot.slane %v1820, %v2555
        %v2557 = vmul.f32 %v2528, %v2501
        %v2558 = vmul.f32 %v2532, %v2502
        %v2559 = vmul.f32 %v2536, %v2503
        %v2560 = vmul.f32 %v2540, %v2504
        %v2561 = vmul.f32 %v2544, %v2505
        %v2562 = vmul.f32 %v2548, %v2506
        %v2563 = vmul.f32 %v2552, %v2507
        %v2564 = vmul.f32 %v2556, %v2508
        %v2565 = vlaneseq
        %v2566 = vshrl.u32 %v2565, 7
        %v2567 = vsub.s32 0, %v2566
        %v2568 = vrot.slane %v2485, %v2567
        %v2569 = vlaneseq
        %v2570 = vshrl.u32 %v2569, 7
        %v2571 = vsub.s32 0, %v2570
        %v2572 = vrot.slane %v2486, %v2571
        %v2573 = vlaneseq
        %v2574 = vshrl.u32 %v2573, 7
        %v2575 = vsub.s32 0, %v2574
        %v2576 = vrot.slane %v2487, %v2575
        %v2577 = vlaneseq
        %v2578 = vshrl.u32 %v2577, 7
        %v2579 = vsub.s32 0, %v2578
        %v2580 = vrot.slane %v2488, %v2579
        %v2581 = vlaneseq
        %v2582 = vshrl.u32 %v2581, 7
        %v2583 = vsub.s32 0, %v2582
        %v2584 = vrot.slane %v2489, %v2583
        %v2585 = vlaneseq
        %v2586 = vshrl.u32 %v2585, 7
        %v2587 = vsub.s32 0, %v2586
        %v2588 = vrot.slane %v2490, %v2587
        %v2589 = vlaneseq
        %v2590 = vshrl.u32 %v2589, 7
        %v2591 = vsub.s32 0, %v2590
        %v2592 = vrot.slane %v2491, %v2591
        %v2593 = vlaneseq
        %v2594 = vshrl.u32 %v2593, 7
        %v2595 = vsub.s32 0, %v2594
        %v2596 = vrot.slane %v2492, %v2595
        %v2597 = vmul.f32 %v2568, %v2517
        %v2598 = vmul.f32 %v2572, %v2518
        %v2599 = vmul.f32 %v2576, %v2519
        %v2600 = vmul.f32 %v2580, %v2520
        %v2601 = vmul.f32 %v2584, %v2521
        %v2602 = vmul.f32 %v2588, %v2522
        %v2603 = vmul.f32 %v2592, %v2523
        %v2604 = vmul.f32 %v2596, %v2524
        %v2605 = vsub.f32 %v2557, %v2597
        %v2606 = vsub.f32 %v2558, %v2598
        %v2607 = vsub.f32 %v2559, %v2599
        %v2608 = vsub.f32 %v2560, %v2600
        %v2609 = vsub.f32 %v2561, %v2601
        %v2610 = vsub.f32 %v2562, %v2602
        %v2611 = vsub.f32 %v2563, %v2603
        %v2612 = vsub.f32 %v2564, %v2604
        %vm2613 = vcmask 261120
        %v2614 = vsel %vm2613, %v2605, 0.0
        %v2615 = vsel %vm2613, %v2606, 0.0
        %v2616 = vadd.f32 %v2614, %v2615
        %v2617 = vsel %vm2613, %v2607, 0.0
        %v2618 = vadd.f32 %v2616, %v2617
        %v2619 = vsel %vm2613, %v2608, 0.0
        %v2620 = vadd.f32 %v2618, %v2619
        %v2621 = vsel %vm2613, %v2609, 0.0
        %v2622 = vadd.f32 %v2620, %v2621
        %v2623 = vsel %vm2613, %v2610, 0.0
        %v2624 = vadd.f32 %v2622, %v2623
        %v2625 = vsel %vm2613, %v2611, 0.0
        %v2626 = vadd.f32 %v2624, %v2625
        %v2627 = vsel %vm2613, %v2612, 0.0
        %v2628 = vadd.f32 %v2626, %v2627
        %v2629 = vadd.f32 %v2628, 0.0
        %v2630 = vmul.f32 %v2528, %v2517
        %v2631 = vmul.f32 %v2532, %v2518
        %v2632 = vmul.f32 %v2536, %v2519
        %v2633 = vmul.f32 %v2540, %v2520
        %v2634 = vmul.f32 %v2544, %v2521
        %v2635 = vmul.f32 %v2548, %v2522
        %v2636 = vmul.f32 %v2552, %v2523
        %v2637 = vmul.f32 %v2556, %v2524
        %v2638 = vmul.f32 %v2568, %v2501
        %v2639 = vmul.f32 %v2572, %v2502
        %v2640 = vmul.f32 %v2576, %v2503
        %v2641 = vmul.f32 %v2580, %v2504
        %v2642 = vmul.f32 %v2584, %v2505
        %v2643 = vmul.f32 %v2588, %v2506
        %v2644 = vmul.f32 %v2592, %v2507
        %v2645 = vmul.f32 %v2596, %v2508
        %v2646 = vadd.f32 %v2630, %v2638
        %v2647 = vadd.f32 %v2631, %v2639
        %v2648 = vadd.f32 %v2632, %v2640
        %v2649 = vadd.f32 %v2633, %v2641
        %v2650 = vadd.f32 %v2634, %v2642
        %v2651 = vadd.f32 %v2635, %v2643
        %v2652 = vadd.f32 %v2636, %v2644
        %v2653 = vadd.f32 %v2637, %v2645
        %v2654 = vsel %vm2613, %v2646, 0.0
        %v2655 = vsel %vm2613, %v2647, 0.0
        %v2656 = vadd.f32 %v2654, %v2655
        %v2657 = vsel %vm2613, %v2648, 0.0
        %v2658 = vadd.f32 %v2656, %v2657
        %v2659 = vsel %vm2613, %v2649, 0.0
        %v2660 = vadd.f32 %v2658, %v2659
        %v2661 = vsel %vm2613, %v2650, 0.0
        %v2662 = vadd.f32 %v2660, %v2661
        %v2663 = vsel %vm2613, %v2651, 0.0
        %v2664 = vadd.f32 %v2662, %v2663
        %v2665 = vsel %vm2613, %v2652, 0.0
        %v2666 = vadd.f32 %v2664, %v2665
        %v2667 = vsel %vm2613, %v2653, 0.0
        %v2668 = vadd.f32 %v2666, %v2667
        %v2669 = vadd.f32 %v2668, 0.0
        %2671 = vrot.lane.b32.xlu0 %v2629, 124
        %v2672 = vpop.permute.xlu0 %2671
        %2674 = vrot.lane.b32.xlu0 %v2629, 120
        %v2675 = vpop.permute.xlu0 %2674
        %2677 = vrot.lane.b32.xlu0 %v2629, 116
        %v2678 = vpop.permute.xlu0 %2677
        %2680 = vrot.lane.b32.xlu0 %v2629, 112
        %v2681 = vpop.permute.xlu0 %2680
        %2683 = vrot.lane.b32.xlu0 %v2629, 108
        %v2684 = vpop.permute.xlu0 %2683
        %2686 = vrot.lane.b32.xlu0 %v2629, 104
        %v2687 = vpop.permute.xlu0 %2686
        %2689 = vrot.lane.b32.xlu0 %v2629, 100
        %v2690 = vpop.permute.xlu0 %2689
        %v2692 = vcombine.low %v2629, %v2675
        %v2693 = vcombine.high %v2629, %v2675
        %v2695 = vunpack.c.l.s4 1983009808
        %v2696 = vunpack.c.0.s8 %v2695
        %v2697 = vlaneseq
        %v2698 = vshrl.u32 %v2697, 7
        %v2699 = vsub.s32 %v2696, %v2698
        %v2700 = vrot.slane %v2692, %v2699
        %v2702 = vunpack.c.l.s4 1983009808
        %v2703 = vunpack.c.0.s8 %v2702
        %v2704 = vlaneseq
        %v2705 = vshrl.u32 %v2704, 7
        %v2706 = vsub.s32 %v2703, %v2705
        %v2707 = vrot.slane %v2693, %v2706
        %v2708 = vcombine.low %v2672, %v2678
        %v2709 = vcombine.high %v2672, %v2678
        %v2711 = vunpack.c.l.s4 1983009808
        %v2712 = vunpack.c.0.s8 %v2711
        %v2713 = vlaneseq
        %v2714 = vshrl.u32 %v2713, 7
        %v2715 = vsub.s32 %v2712, %v2714
        %v2716 = vrot.slane %v2708, %v2715
        %v2718 = vunpack.c.l.s4 1983009808
        %v2719 = vunpack.c.0.s8 %v2718
        %v2720 = vlaneseq
        %v2721 = vshrl.u32 %v2720, 7
        %v2722 = vsub.s32 %v2719, %v2721
        %v2723 = vrot.slane %v2709, %v2722
        %v2724 = vcombine.low %v2681, %v2687
        %v2725 = vcombine.high %v2681, %v2687
        %v2727 = vunpack.c.l.s4 1983009808
        %v2728 = vunpack.c.0.s8 %v2727
        %v2729 = vlaneseq
        %v2730 = vshrl.u32 %v2729, 7
        %v2731 = vsub.s32 %v2728, %v2730
        %v2732 = vrot.slane %v2724, %v2731
        %v2734 = vunpack.c.l.s4 1983009808
        %v2735 = vunpack.c.0.s8 %v2734
        %v2736 = vlaneseq
        %v2737 = vshrl.u32 %v2736, 7
        %v2738 = vsub.s32 %v2735, %v2737
        %v2739 = vrot.slane %v2725, %v2738
        %v2740 = vcombine.low %v2684, %v2690
        %v2741 = vcombine.high %v2684, %v2690
        %v2743 = vunpack.c.l.s4 1983009808
        %v2744 = vunpack.c.0.s8 %v2743
        %v2745 = vlaneseq
        %v2746 = vshrl.u32 %v2745, 7
        %v2747 = vsub.s32 %v2744, %v2746
        %v2748 = vrot.slane %v2740, %v2747
        %v2750 = vunpack.c.l.s4 1983009808
        %v2751 = vunpack.c.0.s8 %v2750
        %v2752 = vlaneseq
        %v2753 = vshrl.u32 %v2752, 7
        %v2754 = vsub.s32 %v2751, %v2753
        %v2755 = vrot.slane %v2741, %v2754
        %v2756 = vcombine.low %v2700, %v2716
        %v2757 = vcombine.high %v2700, %v2716
        %v2759 = vunpack.c.l.s4 1934713408
        %v2760 = vunpack.c.0.s8 %v2759
        %v2761 = vlaneseq
        %v2762 = vshrl.u32 %v2761, 7
        %v2763 = vsub.s32 %v2760, %v2762
        %v2764 = vrot.slane %v2756, %v2763
        %v2766 = vunpack.c.l.s4 1934713408
        %v2767 = vunpack.c.0.s8 %v2766
        %v2768 = vlaneseq
        %v2769 = vshrl.u32 %v2768, 7
        %v2770 = vsub.s32 %v2767, %v2769
        %v2771 = vrot.slane %v2757, %v2770
        %v2772 = vcombine.low %v2707, %v2723
        %v2773 = vcombine.high %v2707, %v2723
        %v2775 = vunpack.c.l.s4 1934713408
        %v2776 = vunpack.c.0.s8 %v2775
        %v2777 = vlaneseq
        %v2778 = vshrl.u32 %v2777, 7
        %v2779 = vsub.s32 %v2776, %v2778
        %v2780 = vrot.slane %v2772, %v2779
        %v2782 = vunpack.c.l.s4 1934713408
        %v2783 = vunpack.c.0.s8 %v2782
        %v2784 = vlaneseq
        %v2785 = vshrl.u32 %v2784, 7
        %v2786 = vsub.s32 %v2783, %v2785
        %v2787 = vrot.slane %v2773, %v2786
        %v2788 = vcombine.low %v2732, %v2748
        %v2789 = vcombine.high %v2732, %v2748
        %v2791 = vunpack.c.l.s4 1934713408
        %v2792 = vunpack.c.0.s8 %v2791
        %v2793 = vlaneseq
        %v2794 = vshrl.u32 %v2793, 7
        %v2795 = vsub.s32 %v2792, %v2794
        %v2796 = vrot.slane %v2788, %v2795
        %v2798 = vunpack.c.l.s4 1934713408
        %v2799 = vunpack.c.0.s8 %v2798
        %v2800 = vlaneseq
        %v2801 = vshrl.u32 %v2800, 7
        %v2802 = vsub.s32 %v2799, %v2801
        %v2803 = vrot.slane %v2789, %v2802
        %v2804 = vcombine.low %v2739, %v2755
        %v2805 = vcombine.high %v2739, %v2755
        %v2807 = vunpack.c.l.s4 1934713408
        %v2808 = vunpack.c.0.s8 %v2807
        %v2809 = vlaneseq
        %v2810 = vshrl.u32 %v2809, 7
        %v2811 = vsub.s32 %v2808, %v2810
        %v2812 = vrot.slane %v2804, %v2811
        %v2814 = vunpack.c.l.s4 1934713408
        %v2815 = vunpack.c.0.s8 %v2814
        %v2816 = vlaneseq
        %v2817 = vshrl.u32 %v2816, 7
        %v2818 = vsub.s32 %v2815, %v2817
        %v2819 = vrot.slane %v2805, %v2818
        %v2820 = vcombine.low %v2764, %v2796
        %v2821 = vcombine.high %v2764, %v2796
        %v2822 = vcombine.low %v2771, %v2803
        %v2823 = vcombine.high %v2771, %v2803
        %v2824 = vcombine.low %v2780, %v2812
        %v2825 = vcombine.high %v2780, %v2812
        %v2826 = vcombine.low %v2787, %v2819
        %v2827 = vcombine.high %v2787, %v2819
        %v2828 = vcombine.low %v2820, %v2822
        %v2829 = vcombine.high %v2820, %v2822
        %v2831 = vunpack.c.l.s4 1983009808
        %v2832 = vunpack.c.0.s8 %v2831
        %v2833 = vlaneseq
        %v2834 = vshrl.u32 %v2833, 7
        %v2835 = vsub.s32 %v2832, %v2834
        %v2836 = vrot.slane %v2828, %v2835
        %v2838 = vunpack.c.l.s4 1983009808
        %v2839 = vunpack.c.0.s8 %v2838
        %v2840 = vlaneseq
        %v2841 = vshrl.u32 %v2840, 7
        %v2842 = vsub.s32 %v2839, %v2841
        %v2843 = vrot.slane %v2829, %v2842
        %v2844 = vcombine.low %v2821, %v2823
        %v2845 = vcombine.high %v2821, %v2823
        %v2847 = vunpack.c.l.s4 1983009808
        %v2848 = vunpack.c.0.s8 %v2847
        %v2849 = vlaneseq
        %v2850 = vshrl.u32 %v2849, 7
        %v2851 = vsub.s32 %v2848, %v2850
        %v2852 = vrot.slane %v2844, %v2851
        %v2854 = vunpack.c.l.s4 1983009808
        %v2855 = vunpack.c.0.s8 %v2854
        %v2856 = vlaneseq
        %v2857 = vshrl.u32 %v2856, 7
        %v2858 = vsub.s32 %v2855, %v2857
        %v2859 = vrot.slane %v2845, %v2858
        %v2860 = vcombine.low %v2824, %v2826
        %v2861 = vcombine.high %v2824, %v2826
        %v2863 = vunpack.c.l.s4 1983009808
        %v2864 = vunpack.c.0.s8 %v2863
        %v2865 = vlaneseq
        %v2866 = vshrl.u32 %v2865, 7
        %v2867 = vsub.s32 %v2864, %v2866
        %v2868 = vrot.slane %v2860, %v2867
        %v2870 = vunpack.c.l.s4 1983009808
        %v2871 = vunpack.c.0.s8 %v2870
        %v2872 = vlaneseq
        %v2873 = vshrl.u32 %v2872, 7
        %v2874 = vsub.s32 %v2871, %v2873
        %v2875 = vrot.slane %v2861, %v2874
        %v2876 = vcombine.low %v2825, %v2827
        %v2877 = vcombine.high %v2825, %v2827
        %v2879 = vunpack.c.l.s4 1983009808
        %v2880 = vunpack.c.0.s8 %v2879
        %v2881 = vlaneseq
        %v2882 = vshrl.u32 %v2881, 7
        %v2883 = vsub.s32 %v2880, %v2882
        %v2884 = vrot.slane %v2876, %v2883
        %v2886 = vunpack.c.l.s4 1983009808
        %v2887 = vunpack.c.0.s8 %v2886
        %v2888 = vlaneseq
        %v2889 = vshrl.u32 %v2888, 7
        %v2890 = vsub.s32 %v2887, %v2889
        %v2891 = vrot.slane %v2877, %v2890
        %v2892 = vcombine.low %v2836, %v2852
        %v2893 = vcombine.high %v2836, %v2852
        %v2895 = vunpack.c.l.s4 1934713408
        %v2896 = vunpack.c.0.s8 %v2895
        %v2897 = vlaneseq
        %v2898 = vshrl.u32 %v2897, 7
        %v2899 = vsub.s32 %v2896, %v2898
        %v2900 = vrot.slane %v2892, %v2899
        %v2902 = vunpack.c.l.s4 1934713408
        %v2903 = vunpack.c.0.s8 %v2902
        %v2904 = vlaneseq
        %v2905 = vshrl.u32 %v2904, 7
        %v2906 = vsub.s32 %v2903, %v2905
        %v2907 = vrot.slane %v2893, %v2906
        %v2908 = vcombine.low %v2843, %v2859
        %v2909 = vcombine.high %v2843, %v2859
        %v2911 = vunpack.c.l.s4 1934713408
        %v2912 = vunpack.c.0.s8 %v2911
        %v2913 = vlaneseq
        %v2914 = vshrl.u32 %v2913, 7
        %v2915 = vsub.s32 %v2912, %v2914
        %v2916 = vrot.slane %v2908, %v2915
        %v2918 = vunpack.c.l.s4 1934713408
        %v2919 = vunpack.c.0.s8 %v2918
        %v2920 = vlaneseq
        %v2921 = vshrl.u32 %v2920, 7
        %v2922 = vsub.s32 %v2919, %v2921
        %v2923 = vrot.slane %v2909, %v2922
        %v2924 = vcombine.low %v2868, %v2884
        %v2925 = vcombine.high %v2868, %v2884
        %v2927 = vunpack.c.l.s4 1934713408
        %v2928 = vunpack.c.0.s8 %v2927
        %v2929 = vlaneseq
        %v2930 = vshrl.u32 %v2929, 7
        %v2931 = vsub.s32 %v2928, %v2930
        %v2932 = vrot.slane %v2924, %v2931
        %v2934 = vunpack.c.l.s4 1934713408
        %v2935 = vunpack.c.0.s8 %v2934
        %v2936 = vlaneseq
        %v2937 = vshrl.u32 %v2936, 7
        %v2938 = vsub.s32 %v2935, %v2937
        %v2939 = vrot.slane %v2925, %v2938
        %v2940 = vcombine.low %v2875, %v2891
        %v2941 = vcombine.high %v2875, %v2891
        %v2943 = vunpack.c.l.s4 1934713408
        %v2944 = vunpack.c.0.s8 %v2943
        %v2945 = vlaneseq
        %v2946 = vshrl.u32 %v2945, 7
        %v2947 = vsub.s32 %v2944, %v2946
        %v2948 = vrot.slane %v2940, %v2947
        %v2950 = vunpack.c.l.s4 1934713408
        %v2951 = vunpack.c.0.s8 %v2950
        %v2952 = vlaneseq
        %v2953 = vshrl.u32 %v2952, 7
        %v2954 = vsub.s32 %v2951, %v2953
        %v2955 = vrot.slane %v2941, %v2954
        %v2956 = vcombine.low %v2900, %v2932
        %v2957 = vcombine.high %v2900, %v2932
        %v2958 = vcombine.low %v2907, %v2939
        %v2959 = vcombine.high %v2907, %v2939
        %v2960 = vcombine.low %v2916, %v2948
        %v2961 = vcombine.high %v2916, %v2948
        %v2962 = vcombine.low %v2923, %v2955
        %v2963 = vcombine.high %v2923, %v2955
        %2965 = vrot.lane.b32.xlu0 %v2669, 124
        %v2966 = vpop.permute.xlu0 %2965
        %2968 = vrot.lane.b32.xlu0 %v2669, 120
        %v2969 = vpop.permute.xlu0 %2968
        %2971 = vrot.lane.b32.xlu0 %v2669, 116
        %v2972 = vpop.permute.xlu0 %2971
        %2974 = vrot.lane.b32.xlu0 %v2669, 112
        %v2975 = vpop.permute.xlu0 %2974
        %2977 = vrot.lane.b32.xlu0 %v2669, 108
        %v2978 = vpop.permute.xlu0 %2977
        %2980 = vrot.lane.b32.xlu0 %v2669, 104
        %v2981 = vpop.permute.xlu0 %2980
        %2983 = vrot.lane.b32.xlu0 %v2669, 100
        %v2984 = vpop.permute.xlu0 %2983
        %v2986 = vcombine.low %v2669, %v2969
        %v2987 = vcombine.high %v2669, %v2969
        %v2989 = vunpack.c.l.s4 1983009808
        %v2990 = vunpack.c.0.s8 %v2989
        %v2991 = vlaneseq
        %v2992 = vshrl.u32 %v2991, 7
        %v2993 = vsub.s32 %v2990, %v2992
        %v2994 = vrot.slane %v2986, %v2993
        %v2996 = vunpack.c.l.s4 1983009808
        %v2997 = vunpack.c.0.s8 %v2996
        %v2998 = vlaneseq
        %v2999 = vshrl.u32 %v2998, 7
        %v3000 = vsub.s32 %v2997, %v2999
        %v3001 = vrot.slane %v2987, %v3000
        %v3002 = vcombine.low %v2966, %v2972
        %v3003 = vcombine.high %v2966, %v2972
        %v3005 = vunpack.c.l.s4 1983009808
        %v3006 = vunpack.c.0.s8 %v3005
        %v3007 = vlaneseq
        %v3008 = vshrl.u32 %v3007, 7
        %v3009 = vsub.s32 %v3006, %v3008
        %v3010 = vrot.slane %v3002, %v3009
        %v3012 = vunpack.c.l.s4 1983009808
        %v3013 = vunpack.c.0.s8 %v3012
        %v3014 = vlaneseq
        %v3015 = vshrl.u32 %v3014, 7
        %v3016 = vsub.s32 %v3013, %v3015
        %v3017 = vrot.slane %v3003, %v3016
        %v3018 = vcombine.low %v2975, %v2981
        %v3019 = vcombine.high %v2975, %v2981
        %v3021 = vunpack.c.l.s4 1983009808
        %v3022 = vunpack.c.0.s8 %v3021
        %v3023 = vlaneseq
        %v3024 = vshrl.u32 %v3023, 7
        %v3025 = vsub.s32 %v3022, %v3024
        %v3026 = vrot.slane %v3018, %v3025
        %v3028 = vunpack.c.l.s4 1983009808
        %v3029 = vunpack.c.0.s8 %v3028
        %v3030 = vlaneseq
        %v3031 = vshrl.u32 %v3030, 7
        %v3032 = vsub.s32 %v3029, %v3031
        %v3033 = vrot.slane %v3019, %v3032
        %v3034 = vcombine.low %v2978, %v2984
        %v3035 = vcombine.high %v2978, %v2984
        %v3037 = vunpack.c.l.s4 1983009808
        %v3038 = vunpack.c.0.s8 %v3037
        %v3039 = vlaneseq
        %v3040 = vshrl.u32 %v3039, 7
        %v3041 = vsub.s32 %v3038, %v3040
        %v3042 = vrot.slane %v3034, %v3041
        %v3044 = vunpack.c.l.s4 1983009808
        %v3045 = vunpack.c.0.s8 %v3044
        %v3046 = vlaneseq
        %v3047 = vshrl.u32 %v3046, 7
        %v3048 = vsub.s32 %v3045, %v3047
        %v3049 = vrot.slane %v3035, %v3048
        %v3050 = vcombine.low %v2994, %v3010
        %v3051 = vcombine.high %v2994, %v3010
        %v3053 = vunpack.c.l.s4 1934713408
        %v3054 = vunpack.c.0.s8 %v3053
        %v3055 = vlaneseq
        %v3056 = vshrl.u32 %v3055, 7
        %v3057 = vsub.s32 %v3054, %v3056
        %v3058 = vrot.slane %v3050, %v3057
        %v3060 = vunpack.c.l.s4 1934713408
        %v3061 = vunpack.c.0.s8 %v3060
        %v3062 = vlaneseq
        %v3063 = vshrl.u32 %v3062, 7
        %v3064 = vsub.s32 %v3061, %v3063
        %v3065 = vrot.slane %v3051, %v3064
        %v3066 = vcombine.low %v3001, %v3017
        %v3067 = vcombine.high %v3001, %v3017
        %v3069 = vunpack.c.l.s4 1934713408
        %v3070 = vunpack.c.0.s8 %v3069
        %v3071 = vlaneseq
        %v3072 = vshrl.u32 %v3071, 7
        %v3073 = vsub.s32 %v3070, %v3072
        %v3074 = vrot.slane %v3066, %v3073
        %v3076 = vunpack.c.l.s4 1934713408
        %v3077 = vunpack.c.0.s8 %v3076
        %v3078 = vlaneseq
        %v3079 = vshrl.u32 %v3078, 7
        %v3080 = vsub.s32 %v3077, %v3079
        %v3081 = vrot.slane %v3067, %v3080
        %v3082 = vcombine.low %v3026, %v3042
        %v3083 = vcombine.high %v3026, %v3042
        %v3085 = vunpack.c.l.s4 1934713408
        %v3086 = vunpack.c.0.s8 %v3085
        %v3087 = vlaneseq
        %v3088 = vshrl.u32 %v3087, 7
        %v3089 = vsub.s32 %v3086, %v3088
        %v3090 = vrot.slane %v3082, %v3089
        %v3092 = vunpack.c.l.s4 1934713408
        %v3093 = vunpack.c.0.s8 %v3092
        %v3094 = vlaneseq
        %v3095 = vshrl.u32 %v3094, 7
        %v3096 = vsub.s32 %v3093, %v3095
        %v3097 = vrot.slane %v3083, %v3096
        %v3098 = vcombine.low %v3033, %v3049
        %v3099 = vcombine.high %v3033, %v3049
        %v3101 = vunpack.c.l.s4 1934713408
        %v3102 = vunpack.c.0.s8 %v3101
        %v3103 = vlaneseq
        %v3104 = vshrl.u32 %v3103, 7
        %v3105 = vsub.s32 %v3102, %v3104
        %v3106 = vrot.slane %v3098, %v3105
        %v3108 = vunpack.c.l.s4 1934713408
        %v3109 = vunpack.c.0.s8 %v3108
        %v3110 = vlaneseq
        %v3111 = vshrl.u32 %v3110, 7
        %v3112 = vsub.s32 %v3109, %v3111
        %v3113 = vrot.slane %v3099, %v3112
        %v3114 = vcombine.low %v3058, %v3090
        %v3115 = vcombine.high %v3058, %v3090
        %v3116 = vcombine.low %v3065, %v3097
        %v3117 = vcombine.high %v3065, %v3097
        %v3118 = vcombine.low %v3074, %v3106
        %v3119 = vcombine.high %v3074, %v3106
        %v3120 = vcombine.low %v3081, %v3113
        %v3121 = vcombine.high %v3081, %v3113
        %v3122 = vcombine.low %v3114, %v3116
        %v3123 = vcombine.high %v3114, %v3116
        %v3125 = vunpack.c.l.s4 1983009808
        %v3126 = vunpack.c.0.s8 %v3125
        %v3127 = vlaneseq
        %v3128 = vshrl.u32 %v3127, 7
        %v3129 = vsub.s32 %v3126, %v3128
        %v3130 = vrot.slane %v3122, %v3129
        %v3132 = vunpack.c.l.s4 1983009808
        %v3133 = vunpack.c.0.s8 %v3132
        %v3134 = vlaneseq
        %v3135 = vshrl.u32 %v3134, 7
        %v3136 = vsub.s32 %v3133, %v3135
        %v3137 = vrot.slane %v3123, %v3136
        %v3138 = vcombine.low %v3115, %v3117
        %v3139 = vcombine.high %v3115, %v3117
        %v3141 = vunpack.c.l.s4 1983009808
        %v3142 = vunpack.c.0.s8 %v3141
        %v3143 = vlaneseq
        %v3144 = vshrl.u32 %v3143, 7
        %v3145 = vsub.s32 %v3142, %v3144
        %v3146 = vrot.slane %v3138, %v3145
        %v3148 = vunpack.c.l.s4 1983009808
        %v3149 = vunpack.c.0.s8 %v3148
        %v3150 = vlaneseq
        %v3151 = vshrl.u32 %v3150, 7
        %v3152 = vsub.s32 %v3149, %v3151
        %v3153 = vrot.slane %v3139, %v3152
        %v3154 = vcombine.low %v3118, %v3120
        %v3155 = vcombine.high %v3118, %v3120
        %v3157 = vunpack.c.l.s4 1983009808
        %v3158 = vunpack.c.0.s8 %v3157
        %v3159 = vlaneseq
        %v3160 = vshrl.u32 %v3159, 7
        %v3161 = vsub.s32 %v3158, %v3160
        %v3162 = vrot.slane %v3154, %v3161
        %v3164 = vunpack.c.l.s4 1983009808
        %v3165 = vunpack.c.0.s8 %v3164
        %v3166 = vlaneseq
        %v3167 = vshrl.u32 %v3166, 7
        %v3168 = vsub.s32 %v3165, %v3167
        %v3169 = vrot.slane %v3155, %v3168
        %v3170 = vcombine.low %v3119, %v3121
        %v3171 = vcombine.high %v3119, %v3121
        %v3173 = vunpack.c.l.s4 1983009808
        %v3174 = vunpack.c.0.s8 %v3173
        %v3175 = vlaneseq
        %v3176 = vshrl.u32 %v3175, 7
        %v3177 = vsub.s32 %v3174, %v3176
        %v3178 = vrot.slane %v3170, %v3177
        %v3180 = vunpack.c.l.s4 1983009808
        %v3181 = vunpack.c.0.s8 %v3180
        %v3182 = vlaneseq
        %v3183 = vshrl.u32 %v3182, 7
        %v3184 = vsub.s32 %v3181, %v3183
        %v3185 = vrot.slane %v3171, %v3184
        %v3186 = vcombine.low %v3130, %v3146
        %v3187 = vcombine.high %v3130, %v3146
        %v3189 = vunpack.c.l.s4 1934713408
        %v3190 = vunpack.c.0.s8 %v3189
        %v3191 = vlaneseq
        %v3192 = vshrl.u32 %v3191, 7
        %v3193 = vsub.s32 %v3190, %v3192
        %v3194 = vrot.slane %v3186, %v3193
        %v3196 = vunpack.c.l.s4 1934713408
        %v3197 = vunpack.c.0.s8 %v3196
        %v3198 = vlaneseq
        %v3199 = vshrl.u32 %v3198, 7
        %v3200 = vsub.s32 %v3197, %v3199
        %v3201 = vrot.slane %v3187, %v3200
        %v3202 = vcombine.low %v3137, %v3153
        %v3203 = vcombine.high %v3137, %v3153
        %v3205 = vunpack.c.l.s4 1934713408
        %v3206 = vunpack.c.0.s8 %v3205
        %v3207 = vlaneseq
        %v3208 = vshrl.u32 %v3207, 7
        %v3209 = vsub.s32 %v3206, %v3208
        %v3210 = vrot.slane %v3202, %v3209
        %v3212 = vunpack.c.l.s4 1934713408
        %v3213 = vunpack.c.0.s8 %v3212
        %v3214 = vlaneseq
        %v3215 = vshrl.u32 %v3214, 7
        %v3216 = vsub.s32 %v3213, %v3215
        %v3217 = vrot.slane %v3203, %v3216
        %v3218 = vcombine.low %v3162, %v3178
        %v3219 = vcombine.high %v3162, %v3178
        %v3221 = vunpack.c.l.s4 1934713408
        %v3222 = vunpack.c.0.s8 %v3221
        %v3223 = vlaneseq
        %v3224 = vshrl.u32 %v3223, 7
        %v3225 = vsub.s32 %v3222, %v3224
        %v3226 = vrot.slane %v3218, %v3225
        %v3228 = vunpack.c.l.s4 1934713408
        %v3229 = vunpack.c.0.s8 %v3228
        %v3230 = vlaneseq
        %v3231 = vshrl.u32 %v3230, 7
        %v3232 = vsub.s32 %v3229, %v3231
        %v3233 = vrot.slane %v3219, %v3232
        %v3234 = vcombine.low %v3169, %v3185
        %v3235 = vcombine.high %v3169, %v3185
        %v3237 = vunpack.c.l.s4 1934713408
        %v3238 = vunpack.c.0.s8 %v3237
        %v3239 = vlaneseq
        %v3240 = vshrl.u32 %v3239, 7
        %v3241 = vsub.s32 %v3238, %v3240
        %v3242 = vrot.slane %v3234, %v3241
        %v3244 = vunpack.c.l.s4 1934713408
        %v3245 = vunpack.c.0.s8 %v3244
        %v3246 = vlaneseq
        %v3247 = vshrl.u32 %v3246, 7
        %v3248 = vsub.s32 %v3245, %v3247
        %v3249 = vrot.slane %v3235, %v3248
        %v3250 = vcombine.low %v3194, %v3226
        %v3251 = vcombine.high %v3194, %v3226
        %v3252 = vcombine.low %v3201, %v3233
        %v3253 = vcombine.high %v3201, %v3233
        %v3254 = vcombine.low %v3210, %v3242
        %v3255 = vcombine.high %v3210, %v3242
        %v3256 = vcombine.low %v3217, %v3249
        %v3257 = vcombine.high %v3217, %v3249
        %3266 = vrot.lane.b32.xlu0 %v3250, 4
        %v3267 = vpop.permute.xlu0 %3266
        %3268 = vrot.lane.b32.xlu0 %v3251, 4
        %v3269 = vpop.permute.xlu0 %3268
        %3270 = vrot.lane.b32.xlu0 %v3252, 4
        %v3271 = vpop.permute.xlu0 %3270
        %3272 = vrot.lane.b32.xlu0 %v3253, 4
        %v3273 = vpop.permute.xlu0 %3272
        %3274 = vrot.lane.b32.xlu0 %v3254, 4
        %v3275 = vpop.permute.xlu0 %3274
        %3276 = vrot.lane.b32.xlu0 %v3255, 4
        %v3277 = vpop.permute.xlu0 %3276
        %3278 = vrot.lane.b32.xlu0 %v3256, 4
        %v3279 = vpop.permute.xlu0 %3278
        %3280 = vrot.lane.b32.xlu0 %v3257, 4
        %v3281 = vpop.permute.xlu0 %3280
        %v3290 = vsel %vm1759, %v2956, %v3267
        %v3291 = vsel %vm1759, %v2957, %v3269
        %v3292 = vsel %vm1759, %v2958, %v3271
        %v3293 = vsel %vm1759, %v2959, %v3273
        %v3294 = vsel %vm1759, %v2960, %v3275
        %v3295 = vsel %vm1759, %v2961, %v3277
        %v3296 = vsel %vm1759, %v2962, %v3279
        %v3297 = vsel %vm1759, %v2963, %v3281
        %v3298 = vld [vmem:[%s8] sm:$0xf]
        %v3299 = vpack.c.bf16 %v3291, %v3290
        %v3300 = vpack.c.bf16 %v3293, %v3292
        %v3301 = vpack.c.bf16 %v3295, %v3294
        %v3302 = vpack.c.bf16 %v3297, %v3296
        %v3304 = vsel %vm1768, %v3299, 0
        %v3307 = vsel %vm1768, %v3300, 0
        %v3310 = vsel %vm1768, %v3301, 0
        %v3313 = vsel %vm1768, %v3302, 0
        %vm3315 = vcmask 1043456
        %v3317 = vsel %vm3315, %v3298, 0
        %3319 = vmatprep.subr.bf16.mxu0 0
        %3320 = vmatpush1.bf16.msra.mxu0 0
        %3321 = vmatprep.subr.bf16.mxu0 0
        %3322 = vmatpush1.bf16.msra.mxu0 0
        %3323 = vmatprep.subr.bf16.mxu0 0
        %3324 = vmatpush1.bf16.msra.mxu0 0
        %3325 = vmatprep.subr.bf16.mxu0 0
        %3326 = vmatpush1.bf16.msra.mxu0 0
        %3327 = vmatprep.subr.bf16.mxu0 0
        %3328 = vmatpush1.bf16.msra.mxu0 0
        %3329 = vmatprep.subr.bf16.mxu0 0
        %3330 = vmatpush1.bf16.msra.mxu0 0
        %3331 = vmatprep.subr.bf16.mxu0 0
        %3332 = vmatpush1.bf16.msra.mxu0 0
        %3333 = vmatprep.subr.bf16.mxu0 0
        %3334 = vmatpush1.bf16.msra.mxu0 %v3317
        %3335 = vmatprep.subr.bf16.mxu0 0
        %3336 = vmatpush2.bf16.msra.mxu0 0
        %3337 = vmatprep.subr.bf16.mxu0 0
        %3338 = vmatpush2.bf16.msra.mxu0 0
        %3339 = vmatprep.subr.bf16.mxu0 0
        %3340 = vmatpush2.bf16.msra.mxu0 0
        %3341 = vmatprep.subr.bf16.mxu0 0
        %3342 = vmatpush2.bf16.msra.mxu0 0
        %3343 = vmatprep.subr.bf16.mxu0 0
        %3344 = vmatpush2.bf16.msra.mxu0 0
        %3345 = vmatprep.subr.bf16.mxu0 0
        %3346 = vmatpush2.bf16.msra.mxu0 0
        %3347 = vmatprep.subr.bf16.mxu0 0
        %3348 = vmatpush2.bf16.msra.mxu0 0
        %3349 = vmatprep.subr.bf16.mxu0 0
        %3350 = vmatpush2.bf16.msra.mxu0 0
        %3351 = vmatprep.mubr.bf16.mxu0 0
        %3352 = vmatmul.mubr.bf16.gmra.mxu0 %v3304
        %v3353 = vpop.f32.mrf.mxu0
        %v3354 = vadd.f32 0.0, %v3353
        %v3355 = vpop.f32.mrf.mxu0
        %v3356 = vpop.f32.mrf.mxu0
        %v3357 = vadd.f32 0.0, %v3356
        %v3358 = vpop.f32.mrf.mxu0
        %3359 = vmatprep.mubr.bf16.mxu0 0
        %3360 = vmatmul.mubr.bf16.gmra.mxu0 %v3307
        %v3361 = vpop.f32.mrf.mxu0
        %v3362 = vadd.f32 0.0, %v3361
        %v3363 = vpop.f32.mrf.mxu0
        %v3364 = vpop.f32.mrf.mxu0
        %v3365 = vadd.f32 0.0, %v3364
        %v3366 = vpop.f32.mrf.mxu0
        %3367 = vmatprep.mubr.bf16.mxu0 0
        %3368 = vmatmul.mubr.bf16.gmra.mxu0 %v3310
        %v3369 = vpop.f32.mrf.mxu0
        %v3370 = vadd.f32 0.0, %v3369
        %v3371 = vpop.f32.mrf.mxu0
        %v3372 = vpop.f32.mrf.mxu0
        %v3373 = vadd.f32 0.0, %v3372
        %v3374 = vpop.f32.mrf.mxu0
        %3375 = vmatprep.mubr.bf16.mxu0 0
        %3376 = vmatmul.mubr.bf16.gmra.mxu0 %v3313
        %v3377 = vpop.f32.mrf.mxu0
        %v3378 = vadd.f32 0.0, %v3377
        %v3379 = vpop.f32.mrf.mxu0
        %v3380 = vpop.f32.mrf.mxu0
        %v3381 = vadd.f32 0.0, %v3380
        %v3382 = vpop.f32.mrf.mxu0
        %3383 = vdwg.mxu0
        %3384 = vxpose.xlu0.b32.start [1/16] %v3354, 128
        %3385 = vxpose.xlu0.b32.cont [2/16] %v3357, 128
        %3386 = vxpose.xlu0.b32.cont [3/16] %v3362, 128
        %3387 = vxpose.xlu0.b32.cont [4/16] %v3365, 128
        %3388 = vxpose.xlu0.b32.cont [5/16] %v3370, 128
        %3389 = vxpose.xlu0.b32.cont [6/16] %v3373, 128
        %3390 = vxpose.xlu0.b32.cont [7/16] %v3378, 128
        %3391 = vxpose.xlu0.b32.cont [8/16] %v3381, 128
        %3392 = vxpose.xlu0.b32.cont [9/16] 0.0, 128
        %3393 = vxpose.xlu0.b32.cont [10/16] 0.0, 128
        %3394 = vxpose.xlu0.b32.cont [11/16] 0.0, 128
        %3395 = vxpose.xlu0.b32.cont [12/16] 0.0, 128
        %3396 = vxpose.xlu0.b32.cont [13/16] 0.0, 128
        %3397 = vxpose.xlu0.b32.cont [14/16] 0.0, 128
        %3398 = vxpose.xlu0.b32.cont [15/16] 0.0, 128
        %3399 = vxpose.xlu0.b32.end [16/16] 0.0, 128
        %v3400 = vpop.trf.xlu0
        %v3401 = vpop.trf.xlu0
        %v3402 = vpop.trf.xlu0
        %v3403 = vpop.trf.xlu0
        %v3404 = vpop.trf.xlu0
        %v3405 = vpop.trf.xlu0
        %v3406 = vpop.trf.xlu0
        %v3407 = vpop.trf.xlu0
        %v3408 = vpop.trf.xlu0
        %v3409 = vpop.trf.xlu0
        %v3410 = vpop.trf.xlu0
        %v3411 = vpop.trf.xlu0
        %v3412 = vpop.trf.xlu0
        %v3413 = vpop.trf.xlu0
        %v3414 = vpop.trf.xlu0
        %v3415 = vpop.trf.xlu0
        %v3416 = vld [vmem:[%s540] sm:$0xf]
        %v3417 = vld [vmem:[%s540 + $0x4] sm:$0xf]
        %v3418 = vld [vmem:[%s540 + $0x8] sm:$0xf]
        %v3419 = vld [vmem:[%s540 + $0xc] sm:$0xf]
        %v3420 = vld [vmem:[%s540 + $0x10] sm:$0xf]
        %v3421 = vld [vmem:[%s540 + $0x14] sm:$0xf]
        %v3422 = vld [vmem:[%s540 + $0x18] sm:$0xf]
        %v3423 = vld [vmem:[%s540 + $0x1c] sm:$0xf]
        %v3424 = vpack.c.bf16 %v3401, %v3400
        %v3433 = vunpack.c.l.b16 %v3416
        %v3434 = vunpack.c.l.b16 %v3417
        %v3435 = vunpack.c.l.b16 %v3418
        %v3436 = vunpack.c.l.b16 %v3419
        %v3437 = vunpack.c.l.b16 %v3420
        %v3438 = vunpack.c.l.b16 %v3421
        %v3439 = vunpack.c.l.b16 %v3422
        %v3440 = vunpack.c.l.b16 %v3423
        %v3441 = vpack.c.b16 %v3434, %v3433
        %v3442 = vpack.c.b16 %v3436, %v3435
        %v3443 = vpack.c.b16 %v3438, %v3437
        %v3444 = vpack.c.b16 %v3440, %v3439
        %v3450 = vsel %vm672, %v3424, 0
        %3452 = vmatprep.subr.bf16.mxu0 0
        %3453 = vmatpush1.bf16.msra.mxu0 0
        %3454 = vmatprep.subr.bf16.mxu0 0
        %3455 = vmatpush1.bf16.msra.mxu0 0
        %3456 = vmatprep.subr.bf16.mxu0 0
        %3457 = vmatpush1.bf16.msra.mxu0 0
        %3458 = vmatprep.subr.bf16.mxu0 0
        %3459 = vmatpush1.bf16.msra.mxu0 0
        %3460 = vmatprep.subr.bf16.mxu0 0
        %3461 = vmatpush1.bf16.msra.mxu0 %v3444
        %3462 = vmatprep.subr.bf16.mxu0 0
        %3463 = vmatpush1.bf16.msra.mxu0 %v3443
        %3464 = vmatprep.subr.bf16.mxu0 0
        %3465 = vmatpush1.bf16.msra.mxu0 %v3442
        %3466 = vmatprep.subr.bf16.mxu0 0
        %3467 = vmatpush1.bf16.msra.mxu0 %v3441
        %3468 = vmatprep.subr.bf16.mxu0 0
        %3469 = vmatpush2.bf16.msra.mxu0 0
        %3470 = vmatprep.subr.bf16.mxu0 0
        %3471 = vmatpush2.bf16.msra.mxu0 0
        %3472 = vmatprep.subr.bf16.mxu0 0
        %3473 = vmatpush2.bf16.msra.mxu0 0
        %3474 = vmatprep.subr.bf16.mxu0 0
        %3475 = vmatpush2.bf16.msra.mxu0 0
        %3476 = vmatprep.subr.bf16.mxu0 0
        %3477 = vmatpush2.bf16.msra.mxu0 0
        %3478 = vmatprep.subr.bf16.mxu0 0
        %3479 = vmatpush2.bf16.msra.mxu0 0
        %3480 = vmatprep.subr.bf16.mxu0 0
        %3481 = vmatpush2.bf16.msra.mxu0 0
        %3482 = vmatprep.subr.bf16.mxu0 0
        %3483 = vmatpush2.bf16.msra.mxu0 0
        %3484 = vmatprep.mubr.bf16.mxu0 0
        %3485 = vmatmul.mubr.bf16.gmra.mxu0 %v3450
        %v3486 = vpop.f32.mrf.mxu0
        %v3487 = vadd.f32 0.0, %v3486
        %v3488 = vpop.f32.mrf.mxu0
        %v3489 = vpop.f32.mrf.mxu0
        %v3490 = vadd.f32 0.0, %v3489
        %v3491 = vpop.f32.mrf.mxu0
        %3492 = vdwg.mxu0
        %v3493 = vld [vmem:[%s9] sm:$0xf]
        %v3494 = vld [vmem:[%s9 + $0x4] sm:$0xf]
        %v3495 = vadd.f32 %v637, %v3487
        %v3496 = vadd.f32 %v638, %v3490
        %v3497 = vpack.c.bf16 %v3496, %v3495
        %v3500 = vunpack.c.l.b16 %v3493
        %v3501 = vunpack.c.l.b16 %v3494
        %v3502 = vpack.c.b16 %v3501, %v3500
        %v3504 = vsel %vm761, %v3502, 0
        %3506 = vmatprep.subr.bf16.mxu0 0
        %3507 = vmatpush1.bf16.msra.mxu0 0
        %3508 = vmatprep.subr.bf16.mxu0 0
        %3509 = vmatpush1.bf16.msra.mxu0 0
        %3510 = vmatprep.subr.bf16.mxu0 0
        %3511 = vmatpush1.bf16.msra.mxu0 0
        %3512 = vmatprep.subr.bf16.mxu0 0
        %3513 = vmatpush1.bf16.msra.mxu0 0
        %3514 = vmatprep.subr.bf16.mxu0 0
        %3515 = vmatpush1.bf16.msra.mxu0 0
        %3516 = vmatprep.subr.bf16.mxu0 0
        %3517 = vmatpush1.bf16.msra.mxu0 0
        %3518 = vmatprep.subr.bf16.mxu0 0
        %3519 = vmatpush1.bf16.msra.mxu0 0
        %3520 = vmatprep.subr.bf16.mxu0 0
        %3521 = vmatpush1.bf16.msra.mxu0 %v3497
        %3522 = vmatprep.subr.bf16.mxu0 0
        %3523 = vmatpush2.bf16.msra.mxu0 0
        %3524 = vmatprep.subr.bf16.mxu0 0
        %3525 = vmatpush2.bf16.msra.mxu0 0
        %3526 = vmatprep.subr.bf16.mxu0 0
        %3527 = vmatpush2.bf16.msra.mxu0 0
        %3528 = vmatprep.subr.bf16.mxu0 0
        %3529 = vmatpush2.bf16.msra.mxu0 0
        %3530 = vmatprep.subr.bf16.mxu0 0
        %3531 = vmatpush2.bf16.msra.mxu0 0
        %3532 = vmatprep.subr.bf16.mxu0 0
        %3533 = vmatpush2.bf16.msra.mxu0 0
        %3534 = vmatprep.subr.bf16.mxu0 0
        %3535 = vmatpush2.bf16.msra.mxu0 0
        %3536 = vmatprep.subr.bf16.mxu0 0
        %3537 = vmatpush2.bf16.msra.mxu0 0
        %3538 = vmatprep.mubr.bf16.mxu0 0
        %3539 = vmatmul.mubr.bf16.gmra.mxu0 %v3504
        %v3540 = vpop.f32.mrf.mxu0
        %v3541 = vadd.f32 0.0, %v3540
        %v3542 = vpop.f32.mrf.mxu0
        %v3543 = vpop.f32.mrf.mxu0
        %v3544 = vadd.f32 0.0, %v3543
        %v3545 = vpop.f32.mrf.mxu0
        %3546 = vdwg.mxu0
        %v3547 = vsub.f32 %v3495, %v3541
        %v3548 = vsub.f32 %v3496, %v3544
        %v3549 = vld [vmem:[%s549] sm:$0xf]
        %v3550 = vld [vmem:[%s549 + $0x4] sm:$0xf]
        %v3551 = vld [vmem:[%s549 + $0x8] sm:$0xf]
        %v3552 = vld [vmem:[%s549 + $0xc] sm:$0xf]
        %v3553 = vld [vmem:[%s549 + $0x10] sm:$0xf]
        %v3554 = vld [vmem:[%s549 + $0x14] sm:$0xf]
        %v3555 = vld [vmem:[%s549 + $0x18] sm:$0xf]
        %v3556 = vld [vmem:[%s549 + $0x1c] sm:$0xf]
        %v3557 = vpack.c.bf16 %v3548, %v3547
        %v3566 = vunpack.c.l.b16 %v3549
        %v3567 = vunpack.c.l.b16 %v3550
        %v3568 = vunpack.c.l.b16 %v3551
        %v3569 = vunpack.c.l.b16 %v3552
        %v3570 = vunpack.c.l.b16 %v3553
        %v3571 = vunpack.c.l.b16 %v3554
        %v3572 = vunpack.c.l.b16 %v3555
        %v3573 = vunpack.c.l.b16 %v3556
        %v3574 = vpack.c.b16 %v3567, %v3566
        %v3575 = vpack.c.b16 %v3569, %v3568
        %v3576 = vpack.c.b16 %v3571, %v3570
        %v3577 = vpack.c.b16 %v3573, %v3572
        %v3583 = vsel %vm672, %v3557, 0
        %3585 = vmatprep.subr.bf16.mxu0 0
        %3586 = vmatpush1.bf16.msra.mxu0 0
        %3587 = vmatprep.subr.bf16.mxu0 0
        %3588 = vmatpush1.bf16.msra.mxu0 0
        %3589 = vmatprep.subr.bf16.mxu0 0
        %3590 = vmatpush1.bf16.msra.mxu0 0
        %3591 = vmatprep.subr.bf16.mxu0 0
        %3592 = vmatpush1.bf16.msra.mxu0 0
        %3593 = vmatprep.subr.bf16.mxu0 0
        %3594 = vmatpush1.bf16.msra.mxu0 %v3577
        %3595 = vmatprep.subr.bf16.mxu0 0
        %3596 = vmatpush1.bf16.msra.mxu0 %v3576
        %3597 = vmatprep.subr.bf16.mxu0 0
        %3598 = vmatpush1.bf16.msra.mxu0 %v3575
        %3599 = vmatprep.subr.bf16.mxu0 0
        %3600 = vmatpush1.bf16.msra.mxu0 %v3574
        %3601 = vmatprep.subr.bf16.mxu0 0
        %3602 = vmatpush2.bf16.msra.mxu0 0
        %3603 = vmatprep.subr.bf16.mxu0 0
        %3604 = vmatpush2.bf16.msra.mxu0 0
        %3605 = vmatprep.subr.bf16.mxu0 0
        %3606 = vmatpush2.bf16.msra.mxu0 0
        %3607 = vmatprep.subr.bf16.mxu0 0
        %3608 = vmatpush2.bf16.msra.mxu0 0
        %3609 = vmatprep.subr.bf16.mxu0 0
        %3610 = vmatpush2.bf16.msra.mxu0 0
        %3611 = vmatprep.subr.bf16.mxu0 0
        %3612 = vmatpush2.bf16.msra.mxu0 0
        %3613 = vmatprep.subr.bf16.mxu0 0
        %3614 = vmatpush2.bf16.msra.mxu0 0
        %3615 = vmatprep.subr.bf16.mxu0 0
        %3616 = vmatpush2.bf16.msra.mxu0 0
        %3617 = vmatprep.mubr.bf16.mxu0 0
        %3618 = vmatmul.mubr.bf16.gmra.mxu0 %v3583
        %v3619 = vpop.f32.mrf.mxu0
        %v3620 = vadd.f32 0.0, %v3619
        %v3621 = vpop.f32.mrf.mxu0
        %v3622 = vpop.f32.mrf.mxu0
        %v3623 = vadd.f32 0.0, %v3622
        %v3624 = vpop.f32.mrf.mxu0
        %3625 = vdwg.mxu0
        %v3626 = vmax.f32 %v3620, 0.0
        %v3627 = vmax.f32 %v3623, 0.0
        %v3628 = vld [vmem:[%s558] sm:$0xf]
        %v3629 = vld [vmem:[%s558 + $0x4] sm:$0xf]
        %v3630 = vld [vmem:[%s558 + $0x8] sm:$0xf]
        %v3631 = vld [vmem:[%s558 + $0xc] sm:$0xf]
        %v3632 = vld [vmem:[%s558 + $0x10] sm:$0xf]
        %v3633 = vld [vmem:[%s558 + $0x14] sm:$0xf]
        %v3634 = vld [vmem:[%s558 + $0x18] sm:$0xf]
        %v3635 = vld [vmem:[%s558 + $0x1c] sm:$0xf]
        %v3636 = vpack.c.bf16 %v3627, %v3626
        %v3645 = vunpack.c.l.b16 %v3628
        %v3646 = vunpack.c.l.b16 %v3629
        %v3647 = vunpack.c.l.b16 %v3630
        %v3648 = vunpack.c.l.b16 %v3631
        %v3649 = vunpack.c.l.b16 %v3632
        %v3650 = vunpack.c.l.b16 %v3633
        %v3651 = vunpack.c.l.b16 %v3634
        %v3652 = vunpack.c.l.b16 %v3635
        %v3653 = vpack.c.b16 %v3646, %v3645
        %v3654 = vpack.c.b16 %v3648, %v3647
        %v3655 = vpack.c.b16 %v3650, %v3649
        %v3656 = vpack.c.b16 %v3652, %v3651
        %v3662 = vsel %vm672, %v3636, 0
        %3664 = vmatprep.subr.bf16.mxu0 0
        %3665 = vmatpush1.bf16.msra.mxu0 0
        %3666 = vmatprep.subr.bf16.mxu0 0
        %3667 = vmatpush1.bf16.msra.mxu0 0
        %3668 = vmatprep.subr.bf16.mxu0 0
        %3669 = vmatpush1.bf16.msra.mxu0 0
        %3670 = vmatprep.subr.bf16.mxu0 0
        %3671 = vmatpush1.bf16.msra.mxu0 0
        %3672 = vmatprep.subr.bf16.mxu0 0
        %3673 = vmatpush1.bf16.msra.mxu0 %v3656
        %3674 = vmatprep.subr.bf16.mxu0 0
        %3675 = vmatpush1.bf16.msra.mxu0 %v3655
        %3676 = vmatprep.subr.bf16.mxu0 0
        %3677 = vmatpush1.bf16.msra.mxu0 %v3654
        %3678 = vmatprep.subr.bf16.mxu0 0
        %3679 = vmatpush1.bf16.msra.mxu0 %v3653
        %3680 = vmatprep.subr.bf16.mxu0 0
        %3681 = vmatpush2.bf16.msra.mxu0 0
        %3682 = vmatprep.subr.bf16.mxu0 0
        %3683 = vmatpush2.bf16.msra.mxu0 0
        %3684 = vmatprep.subr.bf16.mxu0 0
        %3685 = vmatpush2.bf16.msra.mxu0 0
        %3686 = vmatprep.subr.bf16.mxu0 0
        %3687 = vmatpush2.bf16.msra.mxu0 0
        %3688 = vmatprep.subr.bf16.mxu0 0
        %3689 = vmatpush2.bf16.msra.mxu0 0
        %3690 = vmatprep.subr.bf16.mxu0 0
        %3691 = vmatpush2.bf16.msra.mxu0 0
        %3692 = vmatprep.subr.bf16.mxu0 0
        %3693 = vmatpush2.bf16.msra.mxu0 0
        %3694 = vmatprep.subr.bf16.mxu0 0
        %3695 = vmatpush2.bf16.msra.mxu0 0
        %3696 = vmatprep.mubr.bf16.mxu0 0
        %3697 = vmatmul.mubr.bf16.gmra.mxu0 %v3662
        %v3698 = vpop.f32.mrf.mxu0
        %v3699 = vadd.f32 0.0, %v3698
        %v3700 = vpop.f32.mrf.mxu0
        %v3701 = vpop.f32.mrf.mxu0
        %v3702 = vadd.f32 0.0, %v3701
        %v3703 = vpop.f32.mrf.mxu0
        %3704 = vdwg.mxu0
        %v3705 = vadd.f32 %v3547, %v3699
        %v3706 = vadd.f32 %v3548, %v3702
        %v3707 = vpack.c.bf16 %v3706, %v3705
        %3708 = vmatprep.subr.bf16.mxu0 0
        %3709 = vmatpush1.bf16.msra.mxu0 0
        %3710 = vmatprep.subr.bf16.mxu0 0
        %3711 = vmatpush1.bf16.msra.mxu0 0
        %3712 = vmatprep.subr.bf16.mxu0 0
        %3713 = vmatpush1.bf16.msra.mxu0 0
        %3714 = vmatprep.subr.bf16.mxu0 0
        %3715 = vmatpush1.bf16.msra.mxu0 0
        %3716 = vmatprep.subr.bf16.mxu0 0
        %3717 = vmatpush1.bf16.msra.mxu0 0
        %3718 = vmatprep.subr.bf16.mxu0 0
        %3719 = vmatpush1.bf16.msra.mxu0 0
        %3720 = vmatprep.subr.bf16.mxu0 0
        %3721 = vmatpush1.bf16.msra.mxu0 0
        %3722 = vmatprep.subr.bf16.mxu0 0
        %3723 = vmatpush1.bf16.msra.mxu0 %v3707
        %3724 = vmatprep.subr.bf16.mxu0 0
        %3725 = vmatpush2.bf16.msra.mxu0 0
        %3726 = vmatprep.subr.bf16.mxu0 0
        %3727 = vmatpush2.bf16.msra.mxu0 0
        %3728 = vmatprep.subr.bf16.mxu0 0
        %3729 = vmatpush2.bf16.msra.mxu0 0
        %3730 = vmatprep.subr.bf16.mxu0 0
        %3731 = vmatpush2.bf16.msra.mxu0 0
        %3732 = vmatprep.subr.bf16.mxu0 0
        %3733 = vmatpush2.bf16.msra.mxu0 0
        %3734 = vmatprep.subr.bf16.mxu0 0
        %3735 = vmatpush2.bf16.msra.mxu0 0
        %3736 = vmatprep.subr.bf16.mxu0 0
        %3737 = vmatpush2.bf16.msra.mxu0 0
        %3738 = vmatprep.subr.bf16.mxu0 0
        %3739 = vmatpush2.bf16.msra.mxu0 0
        %3740 = vmatprep.mubr.bf16.mxu0 0
        %3741 = vmatmul.mubr.bf16.gmra.mxu0 %v3504
        %v3742 = vpop.f32.mrf.mxu0
        %v3743 = vadd.f32 0.0, %v3742
        %v3744 = vpop.f32.mrf.mxu0
        %v3745 = vpop.f32.mrf.mxu0
        %v3746 = vadd.f32 0.0, %v3745
        %v3747 = vpop.f32.mrf.mxu0
        %3748 = vdwg.mxu0
        %v3749 = vsub.f32 %v3705, %v3743
        %v3750 = vsub.f32 %v3706, %v3746
        %3751 = vst.msk [vmem:[#allocation2] sm:$0xff] %vm672, %v3749
        %3752 = vst.msk [vmem:[#allocation2 + $0x8] sm:$0xff] %vm672, %v3750
        %p3753 = scmp.eq.s32.totalorder %s41, 1
        // Predicated region
        $region101: #{tpu_custom_call.1} parent=67 // pred_check
          %p3754 = pneg %p3753
        $region102: #{tpu_custom_call.1} parent=67 // pred_check_branch
          %3756 = sbr.rel (%p3754) target = $region104
        $region103: #{tpu_custom_call.1} parent=67 // pred_region
          %v3757 = vld [vmem:[#allocation2] sm:$0xff]
          %v3758 = vld [vmem:[#allocation2 + $0x8] sm:$0xff]
          %v3759 = vsel %vm672, %v3757, 0.0
          %3760 = vadd.xlane.f32.xlu0 %v3759
          %v3761 = vpop.xlane.xlu0 %3760
          %v3762 = vsel %vm672, %v3758, 0.0
          %3763 = vadd.xlane.f32.xlu0 %v3762
          %v3764 = vpop.xlane.xlu0 %3763
          %v3765 = vrcp.pop 64.0
          %v3766 = vmul.f32 %v3761, %v3765
          %v3767 = vmul.f32 %v3764, %v3765
          %v3768 = vsub.f32 %v3757, %v3766
          %v3769 = vsub.f32 %v3758, %v3767
          %v3770 = vmul.f32 %v3768, %v3768
          %v3771 = vmul.f32 %v3769, %v3769
          %v3772 = vsel %vm672, %v3770, 0.0
          %3773 = vadd.xlane.f32.xlu0 %v3772
          %v3774 = vpop.xlane.xlu0 %3773
          %v3775 = vsel %vm672, %v3771, 0.0
          %3776 = vadd.xlane.f32.xlu0 %v3775
          %v3777 = vpop.xlane.xlu0 %3776
          %v3778 = vmul.f32 %v3774, %v3765
          %v3779 = vmul.f32 %v3777, %v3765
          %v3780 = vadd.f32 %v3778, 1e-05
          %v3781 = vadd.f32 %v3779, 1e-05
          %v3782 = vrsqrt.pop %v3780
          %v3783 = vrsqrt.pop %v3781
          %v3784 = vmul.f32 %v3768, %v3782
          %v3785 = vmul.f32 %v3769, %v3783
          %v3786 = vld [vmem:[%s10] sm:$0x1]
          %v3788 = vlaneseq
          %v3789 = vshrl.u32 %v3788, 7
          %v3790 = vsub.s32 0, %v3789
          %v3791 = vrot.slane %v3786, %v3790
          %v3793 = vmul.f32 %v3784, %v3791
          %v3794 = vmul.f32 %v3785, %v3791
          %v3795 = vld [vmem:[%s11] sm:$0x1]
          %v3797 = vlaneseq
          %v3798 = vshrl.u32 %v3797, 7
          %v3799 = vsub.s32 0, %v3798
          %v3800 = vrot.slane %v3795, %v3799
          %v3802 = vadd.f32 %v3793, %v3800
          %v3803 = vadd.f32 %v3794, %v3800
          %v3804 = vsel %vm672, %v3802, 0.0
          %v3805 = vsel %vm672, %v3803, 0.0
          %v3806 = vadd.f32 %v3804, %v3805
          %v3807 = vrot.slane %v3806, 4
          %v3808 = vadd.f32 %v3806, %v3807
          %v3809 = vrot.slane %v3808, 2
          %v3810 = vadd.f32 %v3808, %v3809
          %v3811 = vrot.slane %v3810, 1
          %v3812 = vadd.f32 %v3810, %v3811
          %v3813 = vrcp.pop 16.0
          %v3814 = vmul.f32 %v3812, %v3813
          %v3815 = vsub.f32 %v3802, %v3814
          %v3816 = vsub.f32 %v3803, %v3814
          %3817 = vst.msk [vmem:[%s626] sm:$0xff] %vm672, %v3815
          %3818 = vst.msk [vmem:[%s626 + $0x8] sm:$0xff] %vm672, %v3816
        $region104: #{tpu_custom_call.1} parent=67 // pred_fallthru
          _
        %s3819 = sand.u32 %s333, 1
        %s3820 = scalar_lea.sflag [#allocation5], %s3819
        %s3821 = sand.u32 %s333, 1
        %s3822 = smul.addr %s3821, 16
        %s3823 = scalar_lea.vmem [#allocation15], %s3822
        // Predicated region
        $region105: #{tpu_custom_call.1} parent=67 // pred_check
          %p3824 = pneg %p343
        $region106: #{tpu_custom_call.1} parent=67 // pred_check_branch
          %3826 = sbr.rel (%p3824) target = $region108
        $region107: #{tpu_custom_call.1} parent=67 // pred_region
          %s3828 = ssub.s32 256, 256
          %3829 = vsyncadd %s3820, %s3828
          %s3830 = smul.addr %s40, 2
          %s3831 = smul.addr %s3830, 128
          %s3832 = scalar_lea.hbm %s12, %s3831
          %s3833 = sshll.u32 %s3823, 4
          %s3834 = int_to_ptr.vmem [resolvable:$true] %s3833
          %3839 = dma.vmem_to_hbm [thread:$0]  %s3834, 256, %s3832, %s3820, 128, 128, 8
        $region108: #{tpu_custom_call.1} parent=67 // pred_fallthru
          _
      $region68: #{tpu_custom_call.1} parent=5 // pred_fallthru
        _
      %p3840 = scmp.le.s32.totalorder 2, %s31
      // Predicated region
      $region109: #{tpu_custom_call.1} parent=5 // pred_check
        %p3841 = pneg %p3840
      $region110: #{tpu_custom_call.1} parent=5 // pred_check_branch
        %3843 = sbr.rel (%p3841) target = $region112
      $region111: #{tpu_custom_call.1} parent=5 // pred_region
        %s3844 = ssub.s32 %s31, 2
        // Predicated region
        $region113: #{tpu_custom_call.1} parent=111 // pred_check
          %p3845 = pneg %p349
        $region114: #{tpu_custom_call.1} parent=111 // pred_check_branch
          %3847 = sbr.rel (%p3845) target = $region116
        $region115: #{tpu_custom_call.1} parent=111 // pred_region
          %s3848 = sand.u32 %s334, 1
          %s3849 = scalar_lea.sflag [#allocation5], %s3848
          %s3850 = sand.u32 %s334, 1
          %s3851 = smul.addr %s3850, 16
          %s3852 = scalar_lea.vmem [#allocation15], %s3851
          %3853 = dma.done %s3849, 256
        $region116: #{tpu_custom_call.1} parent=111 // pred_fallthru
          _
      $region112: #{tpu_custom_call.1} parent=5 // pred_fallthru
        _
    $region6: #{tpu_custom_call.1} parent=1 // loop_footer
      %s35 = sadd.s32 1, %s31
    $region7: #{tpu_custom_call.1} parent=1 // loop_footer_branch
      %30 = sbr.rel target = $region3
    $region8: #{tpu_custom_call.1} parent=1 // loop_exit
      _
    %3854 = vsyncpa [#allocation4], 1
    %s3855 = scalar_lea.sflag [#allocation4], 1
    %3856 = vsyncpa %s3855, 1
    %3857 = vsyncpa [#allocation7], 1
    %s3858 = scalar_lea.sflag [#allocation7], 1
    %3859 = vsyncpa %s3858, 1
    %3860 = vsyncpa [#allocation10], 1
    %s3861 = scalar_lea.sflag [#allocation10], 1
    %3862 = vsyncpa %s3861, 1
    %3863 = vsyncpa [#allocation13], 1
    %3864 = vsyncpa [#allocation5], 1
    %s3865 = scalar_lea.sflag [#allocation5], 1
    %3866 = vsyncpa %s3865, 1

// kernel: tpu_custom_call.1
$region0: #{tpu_custom_call.1}
  #allocation0 [shape = 'u32[]', space=smem, size = 0x4, offset = 0x4, fixed_abs, tag = 'smem constant byte address 0x4 - core index']
  #allocation1 [shape = 'u32[144,128]{1,0:T(1,128)}', space=vmem, size = 0x12000, scoped, tag = 'internal scratch']
  #allocation2 [shape = 'f32[16,64]{1,0:T(8,128)}', space=vmem, size = 0x2000, scoped, tag = 'scratch operand']
  %s0 = inlined_call_operand.vmem [shape: f32[2,16,64], index: 0, kind: input, shape index: {}]
  %s1 = inlined_call_operand.vmem [shape: bf16[2,64,64], index: 1, kind: input, shape index: {}]
  %s2 = inlined_call_operand.vmem [shape: bf16[2,64,64], index: 2, kind: input, shape index: {}]
  %s3 = inlined_call_operand.vmem [shape: bf16[2,64,64], index: 3, kind: input, shape index: {}]
  %s4 = inlined_call_operand.vmem [shape: bf16[2,64,64], index: 4, kind: input, shape index: {}]
  %s5 = inlined_call_operand.vmem [shape: bf16[8,8,8,4], index: 5, kind: input, shape index: {}]
  %s6 = inlined_call_operand.vmem [shape: bf16[8,8,8,4], index: 6, kind: input, shape index: {}]
  %s7 = inlined_call_operand.vmem [shape: bf16[16,8], index: 7, kind: input, shape index: {}]
  %s8 = inlined_call_operand.vmem [shape: bf16[8,16], index: 8, kind: input, shape index: {}]
  %s9 = inlined_call_operand.vmem [shape: bf16[16,16], index: 9, kind: input, shape index: {}]
  %s10 = inlined_call_operand.vmem [shape: f32[1,64], index: 10, kind: input, shape index: {}]
  %s11 = inlined_call_operand.vmem [shape: f32[1,64], index: 11, kind: input, shape index: {}]
  %s12 = inlined_call_operand.hbm [shape: f32[2,16,64], index: 12, kind: output, shape index: {}]
  %s13 = sld [smem:[#allocation0]]
  $region89: #{tpu_custom_call.1} parent=0
    _
  %s15 = ssub.s32 1, %s13
  %s16 = scalar_select 0, %s15, %s13
  $region1: #{tpu_custom_call.1} parent=0
    #allocation3 [shape = 'u8[16384]{0}', space=vmem, size = 0x4000, scoped, tag = 'output window, operand 0']
    #allocation4 [shape = 's32[2]{0}', space=sflag, size = 0x8, scoped, tag = 'scoped memory for tpu_custom_call.1']
    %17 = vsyncpa [#allocation4], 0
    %s18 = scalar_lea.sflag [#allocation4], 1
    %19 = vsyncpa %s18, 0
    loop: start=0, step=1, limit=6
    $region2: #{tpu_custom_call.1} parent=1 // loop_pre_header
      _
    $region3: #{tpu_custom_call.1} parent=1 // loop_header
      %s21 = sphi 0, %s25
      %p22 = scmp.ge.s32.totalorder %s21, 6
      %s28 = sphi 0, %s40
      %s29 = sphi 0, %s36
      %s30 = sphi 0, %s28
      %s31 = sphi 0, %s29
      %s32 = sphi 0, %s30
      %s33 = sphi 0, %s31
      %s43 = sphi 0, %s45
      %s46 = sphi 0, %s43
      %s47 = sphi 0, %s46
      %s63 = sphi 0, %s47
      %s69 = sphi 0, %s71
      %s72 = sphi 0, %s69
      %s73 = sphi 0, %s72
      %s89 = sphi 0, %s73
      %s95 = sphi 0, %s97
      %s98 = sphi 0, %s95
      %s99 = sphi 0, %s98
      %s115 = sphi 0, %s99
      %s121 = sphi 0, %s123
      %s124 = sphi 0, %s121
      %s125 = sphi 0, %s124
      %s141 = sphi 0, %s125
      %s147 = sphi 0, %s149
      %s150 = sphi 0, %s147
      %s151 = sphi 0, %s150
      %s167 = sphi 0, %s151
      %s171 = sphi 0, %s171
      %s173 = sphi 0, %s171
      %s174 = sphi 0, %s173
      %s188 = sphi 0, %s174
      %s192 = sphi 0, %s192
      %s194 = sphi 0, %s192
      %s195 = sphi 0, %s194
      %s209 = sphi 0, %s195
      %s213 = sphi 0, %s213
      %s215 = sphi 0, %s213
      %s216 = sphi 0, %s215
      %s230 = sphi 0, %s216
      %s234 = sphi 0, %s234
      %s236 = sphi 0, %s234
      %s237 = sphi 0, %s236
      %s251 = sphi 0, %s237
      %s255 = sphi 0, %s255
      %s257 = sphi 0, %s255
      %s258 = sphi 0, %s257
      %s272 = sphi 0, %s258
      %s276 = sphi 0, %s276
      %s278 = sphi 0, %s276
      %s279 = sphi 0, %s278
      %s293 = sphi 0, %s279
      %s297 = sphi 0, %s297
      %s299 = sphi 0, %s297
      %s300 = sphi 0, %s299
      %s314 = sphi 0, %s300
      %s320 = sphi 0, %s322
      %s323 = sphi 0, %s320
      %s324 = sphi 0, %s323
      %s340 = sphi 0, %s324
    $region4: #{tpu_custom_call.1} parent=1 // loop_header_branch
      %24 = sbr.rel (%p22) target = $region8
    $region5: #{tpu_custom_call.1} parent=1 // loop_body
      %s26 = ssub.s32 %s21, 1
      %s27 = ssub.s32 %s21, 2
      %s34 = sadd.s32 1, %s29
      %p35 = scmp.ge.s32.totalorder %s34, 2
      %s36 = scalar_select %p35, 0, %s34
      %s37 = sadd.s32 1, %s28
      %s38 = scalar_select %p35, %s37, %s28
      %p39 = scmp.ge.s32.totalorder %s38, 2
      %s40 = scalar_select %p39, 0, %s38
      %s41 = ssub.s32 %s28, %s40
      %p42 = scmp.eq.s32.totalorder %s41, 0
      %s44 = sadd.s32 %s43, 1
      %s45 = scalar_select %p42, %s43, %s44
      %p48 = pneg %p42
      %p49 = scmp.eq.s32.totalorder %s21, 3
      %p50 = por %p48, %p49
      %p51 = scmp.ne.s32.totalorder %s43, %s46
      %p52 = scmp.eq.s32.totalorder %s21, 0
      %p53 = por %p51, %p52
      %p54 = scmp.ne.s32.totalorder %s43, %s46
      %p55 = scmp.eq.s32.totalorder %s26, 3
      %p56 = por %p54, %p55
      %p57 = scmp.ne.s32.totalorder %s46, %s47
      %p58 = scmp.eq.s32.totalorder %s26, 0
      %p59 = por %p57, %p58
      %p60 = scmp.ne.s32.totalorder %s46, %s47
      %p61 = scmp.eq.s32.totalorder %s27, 3
      %p62 = por %p60, %p61
      %p64 = scmp.ne.s32.totalorder %s47, %s63
      %p65 = scmp.eq.s32.totalorder %s27, 0
      %p66 = por %p64, %p65
      %s67 = ssub.s32 %s29, %s36
      %p68 = scmp.eq.s32.totalorder %s67, 0
      %s70 = sadd.s32 %s69, 1
      %s71 = scalar_select %p68, %s69, %s70
      %p74 = pneg %p68
      %p75 = scmp.eq.s32.totalorder %s21, 3
      %p76 = por %p74, %p75
      %p77 = scmp.ne.s32.totalorder %s69, %s72
      %p78 = scmp.eq.s32.totalorder %s21, 0
      %p79 = por %p77, %p78
      %p80 = scmp.ne.s32.totalorder %s69, %s72
      %p81 = scmp.eq.s32.totalorder %s26, 3
      %p82 = por %p80, %p81
      %p83 = scmp.ne.s32.totalorder %s72, %s73
      %p84 = scmp.eq.s32.totalorder %s26, 0
      %p85 = por %p83, %p84
      %p86 = scmp.ne.s32.totalorder %s72, %s73
      %p87 = scmp.eq.s32.totalorder %s27, 3
      %p88 = por %p86, %p87
      %p90 = scmp.ne.s32.totalorder %s73, %s89
      %p91 = scmp.eq.s32.totalorder %s27, 0
      %p92 = por %p90, %p91
      %s93 = ssub.s32 %s29, %s36
      %p94 = scmp.eq.s32.totalorder %s93, 0
      %s96 = sadd.s32 %s95, 1
      %s97 = scalar_select %p94, %s95, %s96
      %p100 = pneg %p94
      %p101 = scmp.eq.s32.totalorder %s21, 3
      %p102 = por %p100, %p101
      %p103 = scmp.ne.s32.totalorder %s95, %s98
      %p104 = scmp.eq.s32.totalorder %s21, 0
      %p105 = por %p103, %p104
      %p106 = scmp.ne.s32.totalorder %s95, %s98
      %p107 = scmp.eq.s32.totalorder %s26, 3
      %p108 = por %p106, %p107
      %p109 = scmp.ne.s32.totalorder %s98, %s99
      %p110 = scmp.eq.s32.totalorder %s26, 0
      %p111 = por %p109, %p110
      %p112 = scmp.ne.s32.totalorder %s98, %s99
      %p113 = scmp.eq.s32.totalorder %s27, 3
      %p114 = por %p112, %p113
      %p116 = scmp.ne.s32.totalorder %s99, %s115
      %p117 = scmp.eq.s32.totalorder %s27, 0
      %p118 = por %p116, %p117
      %s119 = ssub.s32 %s29, %s36
      %p120 = scmp.eq.s32.totalorder %s119, 0
      %s122 = sadd.s32 %s121, 1
      %s123 = scalar_select %p120, %s121, %s122
      %p126 = pneg %p120
      %p127 = scmp.eq.s32.totalorder %s21, 3
      %p128 = por %p126, %p127
      %p129 = scmp.ne.s32.totalorder %s121, %s124
      %p130 = scmp.eq.s32.totalorder %s21, 0
      %p131 = por %p129, %p130
      %p132 = scmp.ne.s32.totalorder %s121, %s124
      %p133 = scmp.eq.s32.totalorder %s26, 3
      %p134 = por %p132, %p133
      %p135 = scmp.ne.s32.totalorder %s124, %s125
      %p136 = scmp.eq.s32.totalorder %s26, 0
      %p137 = por %p135, %p136
      %p138 = scmp.ne.s32.totalorder %s124, %s125
      %p139 = scmp.eq.s32.totalorder %s27, 3
      %p140 = por %p138, %p139
      %p142 = scmp.ne.s32.totalorder %s125, %s141
      %p143 = scmp.eq.s32.totalorder %s27, 0
      %p144 = por %p142, %p143
      %s145 = ssub.s32 %s29, %s36
      %p146 = scmp.eq.s32.totalorder %s145, 0
      %s148 = sadd.s32 %s147, 1
      %s149 = scalar_select %p146, %s147, %s148
      %p152 = pneg %p146
      %p153 = scmp.eq.s32.totalorder %s21, 3
      %p154 = por %p152, %p153
      %p155 = scmp.ne.s32.totalorder %s147, %s150
      %p156 = scmp.eq.s32.totalorder %s21, 0
      %p157 = por %p155, %p156
      %p158 = scmp.ne.s32.totalorder %s147, %s150
      %p159 = scmp.eq.s32.totalorder %s26, 3
      %p160 = por %p158, %p159
      %p161 = scmp.ne.s32.totalorder %s150, %s151
      %p162 = scmp.eq.s32.totalorder %s26, 0
      %p163 = por %p161, %p162
      %p164 = scmp.ne.s32.totalorder %s150, %s151
      %p165 = scmp.eq.s32.totalorder %s27, 3
      %p166 = por %p164, %p165
      %p168 = scmp.ne.s32.totalorder %s151, %s167
      %p169 = scmp.eq.s32.totalorder %s27, 0
      %p170 = por %p168, %p169
      %s172 = sadd.s32 %s171, 1
      %p175 = scmp.eq.s32.totalorder %s21, 3
      %p176 = scmp.ne.s32.totalorder %s171, %s173
      %p177 = scmp.eq.s32.totalorder %s21, 0
      %p178 = por %p176, %p177
      %p179 = scmp.ne.s32.totalorder %s171, %s173
      %p180 = scmp.eq.s32.totalorder %s26, 3
      %p181 = por %p179, %p180
      %p182 = scmp.ne.s32.totalorder %s173, %s174
      %p183 = scmp.eq.s32.totalorder %s26, 0
      %p184 = por %p182, %p183
      %p185 = scmp.ne.s32.totalorder %s173, %s174
      %p186 = scmp.eq.s32.totalorder %s27, 3
      %p187 = por %p185, %p186
      %p189 = scmp.ne.s32.totalorder %s174, %s188
      %p190 = scmp.eq.s32.totalorder %s27, 0
      %p191 = por %p189, %p190
      %s193 = sadd.s32 %s192, 1
      %p196 = scmp.eq.s32.totalorder %s21, 3
      %p197 = scmp.ne.s32.totalorder %s192, %s194
      %p198 = scmp.eq.s32.totalorder %s21, 0
      %p199 = por %p197, %p198
      %p200 = scmp.ne.s32.totalorder %s192, %s194
      %p201 = scmp.eq.s32.totalorder %s26, 3
      %p202 = por %p200, %p201
      %p203 = scmp.ne.s32.totalorder %s194, %s195
      %p204 = scmp.eq.s32.totalorder %s26, 0
      %p205 = por %p203, %p204
      %p206 = scmp.ne.s32.totalorder %s194, %s195
      %p207 = scmp.eq.s32.totalorder %s27, 3
      %p208 = por %p206, %p207
      %p210 = scmp.ne.s32.totalorder %s195, %s209
      %p211 = scmp.eq.s32.totalorder %s27, 0
      %p212 = por %p210, %p211
      %s214 = sadd.s32 %s213, 1
      %p217 = scmp.eq.s32.totalorder %s21, 3
      %p218 = scmp.ne.s32.totalorder %s213, %s215
      %p219 = scmp.eq.s32.totalorder %s21, 0
      %p220 = por %p218, %p219
      %p221 = scmp.ne.s32.totalorder %s213, %s215
      %p222 = scmp.eq.s32.totalorder %s26, 3
      %p223 = por %p221, %p222
      %p224 = scmp.ne.s32.totalorder %s215, %s216
      %p225 = scmp.eq.s32.totalorder %s26, 0
      %p226 = por %p224, %p225
      %p227 = scmp.ne.s32.totalorder %s215, %s216
      %p228 = scmp.eq.s32.totalorder %s27, 3
      %p229 = por %p227, %p228
      %p231 = scmp.ne.s32.totalorder %s216, %s230
      %p232 = scmp.eq.s32.totalorder %s27, 0
      %p233 = por %p231, %p232
      %s235 = sadd.s32 %s234, 1
      %p238 = scmp.eq.s32.totalorder %s21, 3
      %p239 = scmp.ne.s32.totalorder %s234, %s236
      %p240 = scmp.eq.s32.totalorder %s21, 0
      %p241 = por %p239, %p240
      %p242 = scmp.ne.s32.totalorder %s234, %s236
      %p243 = scmp.eq.s32.totalorder %s26, 3
      %p244 = por %p242, %p243
      %p245 = scmp.ne.s32.totalorder %s236, %s237
      %p246 = scmp.eq.s32.totalorder %s26, 0
      %p247 = por %p245, %p246
      %p248 = scmp.ne.s32.totalorder %s236, %s237
      %p249 = scmp.eq.s32.totalorder %s27, 3
      %p250 = por %p248, %p249
      %p252 = scmp.ne.s32.totalorder %s237, %s251
      %p253 = scmp.eq.s32.totalorder %s27, 0
      %p254 = por %p252, %p253
      %s256 = sadd.s32 %s255, 1
      %p259 = scmp.eq.s32.totalorder %s21, 3
      %p260 = scmp.ne.s32.totalorder %s255, %s257
      %p261 = scmp.eq.s32.totalorder %s21, 0
      %p262 = por %p260, %p261
      %p263 = scmp.ne.s32.totalorder %s255, %s257
      %p264 = scmp.eq.s32.totalorder %s26, 3
      %p265 = por %p263, %p264
      %p266 = scmp.ne.s32.totalorder %s257, %s258
      %p267 = scmp.eq.s32.totalorder %s26, 0
      %p268 = por %p266, %p267
      %p269 = scmp.ne.s32.totalorder %s257, %s258
      %p270 = scmp.eq.s32.totalorder %s27, 3
      %p271 = por %p269, %p270
      %p273 = scmp.ne.s32.totalorder %s258, %s272
      %p274 = scmp.eq.s32.totalorder %s27, 0
      %p275 = por %p273, %p274
      %s277 = sadd.s32 %s276, 1
      %p280 = scmp.eq.s32.totalorder %s21, 3
      %p281 = scmp.ne.s32.totalorder %s276, %s278
      %p282 = scmp.eq.s32.totalorder %s21, 0
      %p283 = por %p281, %p282
      %p284 = scmp.ne.s32.totalorder %s276, %s278
      %p285 = scmp.eq.s32.totalorder %s26, 3
      %p286 = por %p284, %p285
      %p287 = scmp.ne.s32.totalorder %s278, %s279
      %p288 = scmp.eq.s32.totalorder %s26, 0
      %p289 = por %p287, %p288
      %p290 = scmp.ne.s32.totalorder %s278, %s279
      %p291 = scmp.eq.s32.totalorder %s27, 3
      %p292 = por %p290, %p291
      %p294 = scmp.ne.s32.totalorder %s279, %s293
      %p295 = scmp.eq.s32.totalorder %s27, 0
      %p296 = por %p294, %p295
      %s298 = sadd.s32 %s297, 1
      %p301 = scmp.eq.s32.totalorder %s21, 3
      %p302 = scmp.ne.s32.totalorder %s297, %s299
      %p303 = scmp.eq.s32.totalorder %s21, 0
      %p304 = por %p302, %p303
      %p305 = scmp.ne.s32.totalorder %s297, %s299
      %p306 = scmp.eq.s32.totalorder %s26, 3
      %p307 = por %p305, %p306
      %p308 = scmp.ne.s32.totalorder %s299, %s300
      %p309 = scmp.eq.s32.totalorder %s26, 0
      %p310 = por %p308, %p309
      %p311 = scmp.ne.s32.totalorder %s299, %s300
      %p312 = scmp.eq.s32.totalorder %s27, 3
      %p313 = por %p311, %p312
      %p315 = scmp.ne.s32.totalorder %s300, %s314
      %p316 = scmp.eq.s32.totalorder %s27, 0
      %p317 = por %p315, %p316
      %s318 = ssub.s32 %s28, %s40
      %p319 = scmp.eq.s32.totalorder %s318, 0
      %s321 = sadd.s32 %s320, 1
      %s322 = scalar_select %p319, %s320, %s321
      %p325 = pneg %p319
      %p326 = scmp.eq.s32.totalorder %s21, 3
      %p327 = por %p325, %p326
      %p328 = scmp.ne.s32.totalorder %s320, %s323
      %p329 = scmp.eq.s32.totalorder %s21, 0
      %p330 = por %p328, %p329
      %p331 = scmp.ne.s32.totalorder %s320, %s323
      %p332 = scmp.eq.s32.totalorder %s26, 3
      %p333 = por %p331, %p332
      %p334 = scmp.ne.s32.totalorder %s323, %s324
      %p335 = scmp.eq.s32.totalorder %s26, 0
      %p336 = por %p334, %p335
      %p337 = scmp.ne.s32.totalorder %s323, %s324
      %p338 = scmp.eq.s32.totalorder %s27, 3
      %p339 = por %p337, %p338
      %p341 = scmp.ne.s32.totalorder %s324, %s340
      %p342 = scmp.eq.s32.totalorder %s27, 0
      %p343 = por %p341, %p342
      %p344 = scmp.le.s32.totalorder 1, %s21
      %p345 = scmp.lt.s32.totalorder %s21, 5
      %p346 = pnand %p344, %p345
      %p347 = pneg %p346
      // Predicated region
      $region9: #{tpu_custom_call.1} parent=5 // pred_check
        _
      $region10: #{tpu_custom_call.1} parent=5 // pred_check_branch
        %349 = sbr.rel (%p346) target = $region12
      $region11: #{tpu_custom_call.1} parent=5 // pred_region
        %s350 = ssub.s32 %s21, 1
        // Predicated region
        $region13: #{tpu_custom_call.1} parent=11 // pred_check
          %p351 = pneg %p184
        $region14: #{tpu_custom_call.1} parent=11 // pred_check_branch
          %353 = sbr.rel (%p351) target = $region16
        $region15: #{tpu_custom_call.1} parent=11 // pred_region
          _
        $region16: #{tpu_custom_call.1} parent=11 // pred_fallthru
          _
        // Predicated region
        $region17: #{tpu_custom_call.1} parent=11 // pred_check
          %p354 = pneg %p205
        $region18: #{tpu_custom_call.1} parent=11 // pred_check_branch
          %356 = sbr.rel (%p354) target = $region20
        $region19: #{tpu_custom_call.1} parent=11 // pred_region
          _
        $region20: #{tpu_custom_call.1} parent=11 // pred_fallthru
          _
        // Predicated region
        $region21: #{tpu_custom_call.1} parent=11 // pred_check
          %p357 = pneg %p226
        $region22: #{tpu_custom_call.1} parent=11 // pred_check_branch
          %359 = sbr.rel (%p357) target = $region24
        $region23: #{tpu_custom_call.1} parent=11 // pred_region
          _
        $region24: #{tpu_custom_call.1} parent=11 // pred_fallthru
          _
        // Predicated region
        $region25: #{tpu_custom_call.1} parent=11 // pred_check
          %p360 = pneg %p247
        $region26: #{tpu_custom_call.1} parent=11 // pred_check_branch
          %362 = sbr.rel (%p360) target = $region28
        $region27: #{tpu_custom_call.1} parent=11 // pred_region
          _
        $region28: #{tpu_custom_call.1} parent=11 // pred_fallthru
          _
        // Predicated region
        $region29: #{tpu_custom_call.1} parent=11 // pred_check
          %p363 = pneg %p268
        $region30: #{tpu_custom_call.1} parent=11 // pred_check_branch
          %365 = sbr.rel (%p363) target = $region32
        $region31: #{tpu_custom_call.1} parent=11 // pred_region
          _
        $region32: #{tpu_custom_call.1} parent=11 // pred_fallthru
          _
        // Predicated region
        $region33: #{tpu_custom_call.1} parent=11 // pred_check
          %p366 = pneg %p289
        $region34: #{tpu_custom_call.1} parent=11 // pred_check_branch
          %368 = sbr.rel (%p366) target = $region36
        $region35: #{tpu_custom_call.1} parent=11 // pred_region
          _
        $region36: #{tpu_custom_call.1} parent=11 // pred_fallthru
          _
        // Predicated region
        $region37: #{tpu_custom_call.1} parent=11 // pred_check
          %p369 = pneg %p310
        $region38: #{tpu_custom_call.1} parent=11 // pred_check_branch
          %371 = sbr.rel (%p369) target = $region40
        $region39: #{tpu_custom_call.1} parent=11 // pred_region
          _
        $region40: #{tpu_custom_call.1} parent=11 // pred_fallthru
          _
      $region12: #{tpu_custom_call.1} parent=5 // pred_fallthru
        _
      %p372 = scmp.lt.s32.totalorder %s21, 4
      // Predicated region
      $region41: #{tpu_custom_call.1} parent=5 // pred_check
        %p373 = pneg %p372
      $region42: #{tpu_custom_call.1} parent=5 // pred_check_branch
        %375 = sbr.rel (%p373) target = $region44
      $region43: #{tpu_custom_call.1} parent=5 // pred_region
        // Predicated region
        $region45: #{tpu_custom_call.1} parent=43 // pred_check
          %p376 = pneg %p53
        $region46: #{tpu_custom_call.1} parent=43 // pred_check_branch
          %378 = sbr.rel (%p376) target = $region48
        $region47: #{tpu_custom_call.1} parent=43 // pred_region
          %p379 = scmp.lt.s32.totalorder %s28, 1
          %s380 = scalar_select %p379, %s28, 1
          %s381 = smul.addr %s380, 2
          %s382 = smul.addr %s381, 8
          %s383 = scalar_lea.vmem %s0, %s382
        $region48: #{tpu_custom_call.1} parent=43 // pred_fallthru
          _
        // Predicated region
        $region49: #{tpu_custom_call.1} parent=43 // pred_check
          %p384 = pneg %p79
        $region50: #{tpu_custom_call.1} parent=43 // pred_check_branch
          %386 = sbr.rel (%p384) target = $region52
        $region51: #{tpu_custom_call.1} parent=43 // pred_region
          %p387 = scmp.lt.s32.totalorder %s29, 1
          %s388 = scalar_select %p387, %s29, 1
          %s389 = smul.addr %s388, 8
          %s390 = smul.addr %s389, 4
          %s391 = scalar_lea.vmem %s1, %s390
        $region52: #{tpu_custom_call.1} parent=43 // pred_fallthru
          _
        // Predicated region
        $region53: #{tpu_custom_call.1} parent=43 // pred_check
          %p392 = pneg %p105
        $region54: #{tpu_custom_call.1} parent=43 // pred_check_branch
          %394 = sbr.rel (%p392) target = $region56
        $region55: #{tpu_custom_call.1} parent=43 // pred_region
          %p395 = scmp.lt.s32.totalorder %s29, 1
          %s396 = scalar_select %p395, %s29, 1
          %s397 = smul.addr %s396, 8
          %s398 = smul.addr %s397, 4
          %s399 = scalar_lea.vmem %s2, %s398
        $region56: #{tpu_custom_call.1} parent=43 // pred_fallthru
          _
        // Predicated region
        $region57: #{tpu_custom_call.1} parent=43 // pred_check
          %p400 = pneg %p131
        $region58: #{tpu_custom_call.1} parent=43 // pred_check_branch
          %402 = sbr.rel (%p400) target = $region60
        $region59: #{tpu_custom_call.1} parent=43 // pred_region
          %p403 = scmp.lt.s32.totalorder %s29, 1
          %s404 = scalar_select %p403, %s29, 1
          %s405 = smul.addr %s404, 8
          %s406 = smul.addr %s405, 4
          %s407 = scalar_lea.vmem %s3, %s406
        $region60: #{tpu_custom_call.1} parent=43 // pred_fallthru
          _
        // Predicated region
        $region61: #{tpu_custom_call.1} parent=43 // pred_check
          %p408 = pneg %p157
        $region62: #{tpu_custom_call.1} parent=43 // pred_check_branch
          %410 = sbr.rel (%p408) target = $region64
        $region63: #{tpu_custom_call.1} parent=43 // pred_region
          %p411 = scmp.lt.s32.totalorder %s29, 1
          %s412 = scalar_select %p411, %s29, 1
          %s413 = smul.addr %s412, 8
          %s414 = smul.addr %s413, 4
          %s415 = scalar_lea.vmem %s4, %s414
        $region64: #{tpu_custom_call.1} parent=43 // pred_fallthru
          _
      $region44: #{tpu_custom_call.1} parent=5 // pred_fallthru
        _
      %p416 = scmp.le.s32.totalorder 1, %s21
      %p417 = scmp.lt.s32.totalorder %s21, 5
      %p418 = pnand %p416, %p417
      %p419 = pneg %p418
      // Predicated region
      $region65: #{tpu_custom_call.1} parent=5 // pred_check
        _
      $region66: #{tpu_custom_call.1} parent=5 // pred_check_branch
        %421 = sbr.rel (%p418) target = $region68
      $region67: #{tpu_custom_call.1} parent=5 // pred_region
        %s422 = ssub.s32 %s21, 1
        %p423 = scmp.lt.s32.totalorder %s30, 1
        %s424 = scalar_select %p423, %s30, 1
        %s425 = smul.addr %s424, 2
        %s426 = smul.addr %s425, 8
        %s427 = scalar_lea.vmem %s0, %s426
        %p428 = pneg %p59
        %p429 = pneg %p56
        %p430 = scmp.lt.s32.totalorder %s31, 1
        %s431 = scalar_select %p430, %s31, 1
        %s432 = smul.addr %s431, 8
        %s433 = smul.addr %s432, 4
        %s434 = scalar_lea.vmem %s1, %s433
        %p435 = pneg %p85
        %p436 = pneg %p82
        %p437 = scmp.lt.s32.totalorder %s31, 1
        %s438 = scalar_select %p437, %s31, 1
        %s439 = smul.addr %s438, 8
        %s440 = smul.addr %s439, 4
        %s441 = scalar_lea.vmem %s2, %s440
        %p442 = pneg %p111
        %p443 = pneg %p108
        %p444 = scmp.lt.s32.totalorder %s31, 1
        %s445 = scalar_select %p444, %s31, 1
        %s446 = smul.addr %s445, 8
        %s447 = smul.addr %s446, 4
        %s448 = scalar_lea.vmem %s3, %s447
        %p449 = pneg %p137
        %p450 = pneg %p134
        %p451 = scmp.lt.s32.totalorder %s31, 1
        %s452 = scalar_select %p451, %s31, 1
        %s453 = smul.addr %s452, 8
        %s454 = smul.addr %s453, 4
        %s455 = scalar_lea.vmem %s4, %s454
        %p456 = pneg %p163
        %p457 = pneg %p160
        %p458 = pneg %p184
        %p459 = pneg %p181
        %p460 = pneg %p205
        %p461 = pneg %p202
        %p462 = pneg %p226
        %p463 = pneg %p223
        %p464 = pneg %p247
        %p465 = pneg %p244
        %p466 = pneg %p268
        %p467 = pneg %p265
        %p468 = pneg %p289
        %p469 = pneg %p286
        %p470 = pneg %p310
        %p471 = pneg %p307
        %p472 = pneg %p336
        %p473 = pneg %p333
        %s474 = sand.u32 %s323, 1
        %s475 = scalar_lea.sflag [#allocation4], %s474
        %s476 = sand.u32 %s323, 1
        %s477 = smul.addr %s476, 16
        %s478 = scalar_lea.vmem [#allocation3], %s477
        %p479 = scmp.lt.s32.totalorder %s30, 1
        %s480 = scalar_select %p479, %s30, 1
        %s481 = smul.addr %s480, 2
        %s482 = smul.addr %s481, 8
        %s483 = scalar_lea.vmem %s0, %s482
        %p484 = scmp.lt.s32.totalorder %s31, 1
        %s485 = scalar_select %p484, %s31, 1
        %s486 = smul.addr %s485, 8
        %s487 = smul.addr %s486, 4
        %s488 = scalar_lea.vmem %s1, %s487
        %p489 = scmp.lt.s32.totalorder %s31, 1
        %s490 = scalar_select %p489, %s31, 1
        %s491 = smul.addr %s490, 8
        %s492 = smul.addr %s491, 4
        %s493 = scalar_lea.vmem %s2, %s492
        %p494 = scmp.lt.s32.totalorder %s31, 1
        %s495 = scalar_select %p494, %s31, 1
        %s496 = smul.addr %s495, 8
        %s497 = smul.addr %s496, 4
        %s498 = scalar_lea.vmem %s3, %s497
        %p499 = scmp.lt.s32.totalorder %s31, 1
        %s500 = scalar_select %p499, %s31, 1
        %s501 = smul.addr %s500, 8
        %s502 = smul.addr %s501, 4
        %s503 = scalar_lea.vmem %s4, %s502
        %p505 = scmp.eq.s32.totalorder %s31, 0
        // Predicated region
        $region69: #{tpu_custom_call.1} parent=67 // pred_check
          %p506 = pneg %p505
        $region70: #{tpu_custom_call.1} parent=67 // pred_check_branch
          %508 = sbr.rel (%p506) target = $region72
        $region71: #{tpu_custom_call.1} parent=67 // pred_region
          %v509 = vld [vmem:[%s483] sm:$0xff]
          %v510 = vld [vmem:[%s483 + $0x8] sm:$0xff]
          %vm511 = vcmask 523264
          %512 = vst.msk [vmem:[#allocation2] sm:$0xff] %vm511, %v509
          %513 = vst.msk [vmem:[#allocation2 + $0x8] sm:$0xff] %vm511, %v510
        $region72: #{tpu_custom_call.1} parent=67 // pred_fallthru
          _
        %v514 = vld [vmem:[#allocation2] sm:$0xff]
        %v515 = vld [vmem:[#allocation2 + $0x8] sm:$0xff]
        %v516 = vld [vmem:[%s488] sm:$0xf]
        %v517 = vld [vmem:[%s488 + $0x4] sm:$0xf]
        %v518 = vld [vmem:[%s488 + $0x8] sm:$0xf]
        %v519 = vld [vmem:[%s488 + $0xc] sm:$0xf]
        %v520 = vld [vmem:[%s488 + $0x10] sm:$0xf]
        %v521 = vld [vmem:[%s488 + $0x14] sm:$0xf]
        %v522 = vld [vmem:[%s488 + $0x18] sm:$0xf]
        %v523 = vld [vmem:[%s488 + $0x1c] sm:$0xf]
        %v524 = vpack.c.bf16 %v515, %v514
        %v533 = vunpack.c.l.b16 %v516
        %v534 = vunpack.c.l.b16 %v517
        %v535 = vunpack.c.l.b16 %v518
        %v536 = vunpack.c.l.b16 %v519
        %v537 = vunpack.c.l.b16 %v520
        %v538 = vunpack.c.l.b16 %v521
        %v539 = vunpack.c.l.b16 %v522
        %v540 = vunpack.c.l.b16 %v523
        %v541 = vpack.c.b16 %v534, %v533
        %v542 = vpack.c.b16 %v536, %v535
        %v543 = vpack.c.b16 %v538, %v537
        %v544 = vpack.c.b16 %v540, %v539
        %vm549 = vcmask 523264
        %v551 = vsel %vm549, %v524, 0
        %553 = vmatprep.subr.bf16.mxu0 0
        %554 = vmatpush1.bf16.msra.mxu0 0
        %555 = vmatprep.subr.bf16.mxu0 0
        %556 = vmatpush1.bf16.msra.mxu0 0
        %557 = vmatprep.subr.bf16.mxu0 0
        %558 = vmatpush1.bf16.msra.mxu0 0
        %559 = vmatprep.subr.bf16.mxu0 0
        %560 = vmatpush1.bf16.msra.mxu0 0
        %561 = vmatprep.subr.bf16.mxu0 0
        %562 = vmatpush1.bf16.msra.mxu0 %v544
        %563 = vmatprep.subr.bf16.mxu0 0
        %564 = vmatpush1.bf16.msra.mxu0 %v543
        %565 = vmatprep.subr.bf16.mxu0 0
        %566 = vmatpush1.bf16.msra.mxu0 %v542
        %567 = vmatprep.subr.bf16.mxu0 0
        %568 = vmatpush1.bf16.msra.mxu0 %v541
        %569 = vmatprep.subr.bf16.mxu0 0
        %570 = vmatpush2.bf16.msra.mxu0 0
        %571 = vmatprep.subr.bf16.mxu0 0
        %572 = vmatpush2.bf16.msra.mxu0 0
        %573 = vmatprep.subr.bf16.mxu0 0
        %574 = vmatpush2.bf16.msra.mxu0 0
        %575 = vmatprep.subr.bf16.mxu0 0
        %576 = vmatpush2.bf16.msra.mxu0 0
        %577 = vmatprep.subr.bf16.mxu0 0
        %578 = vmatpush2.bf16.msra.mxu0 0
        %579 = vmatprep.subr.bf16.mxu0 0
        %580 = vmatpush2.bf16.msra.mxu0 0
        %581 = vmatprep.subr.bf16.mxu0 0
        %582 = vmatpush2.bf16.msra.mxu0 0
        %583 = vmatprep.subr.bf16.mxu0 0
        %584 = vmatpush2.bf16.msra.mxu0 0
        %585 = vmatprep.mubr.bf16.mxu0 0
        %586 = vmatmul.mubr.bf16.gmra.mxu0 %v551
        %v587 = vpop.f32.mrf.mxu0
        %v588 = vadd.f32 0.0, %v587
        %v589 = vpop.f32.mrf.mxu0
        %v590 = vpop.f32.mrf.mxu0
        %v591 = vadd.f32 0.0, %v590
        %v592 = vpop.f32.mrf.mxu0
        %593 = vdwg.mxu0
        %594 = vxpose.xlu0.b32.start [1/16] %v588, 128
        %595 = vxpose.xlu0.b32.cont [2/16] %v591, 128
        %596 = vxpose.xlu0.b32.cont [3/16] 0.0, 128
        %597 = vxpose.xlu0.b32.cont [4/16] 0.0, 128
        %598 = vxpose.xlu0.b32.cont [5/16] 0.0, 128
        %599 = vxpose.xlu0.b32.cont [6/16] 0.0, 128
        %600 = vxpose.xlu0.b32.cont [7/16] 0.0, 128
        %601 = vxpose.xlu0.b32.cont [8/16] 0.0, 128
        %602 = vxpose.xlu0.b32.cont [9/16] 0.0, 128
        %603 = vxpose.xlu0.b32.cont [10/16] 0.0, 128
        %604 = vxpose.xlu0.b32.cont [11/16] 0.0, 128
        %605 = vxpose.xlu0.b32.cont [12/16] 0.0, 128
        %606 = vxpose.xlu0.b32.cont [13/16] 0.0, 128
        %607 = vxpose.xlu0.b32.cont [14/16] 0.0, 128
        %608 = vxpose.xlu0.b32.cont [15/16] 0.0, 128
        %609 = vxpose.xlu0.b32.end [16/16] 0.0, 128
        %v610 = vpop.trf.xlu0
        %v611 = vpop.trf.xlu0
        %v612 = vpop.trf.xlu0
        %v613 = vpop.trf.xlu0
        %v614 = vpop.trf.xlu0
        %v615 = vpop.trf.xlu0
        %v616 = vpop.trf.xlu0
        %v617 = vpop.trf.xlu0
        %v618 = vpop.trf.xlu0
        %v619 = vpop.trf.xlu0
        %v620 = vpop.trf.xlu0
        %v621 = vpop.trf.xlu0
        %v622 = vpop.trf.xlu0
        %v623 = vpop.trf.xlu0
        %v624 = vpop.trf.xlu0
        %v625 = vpop.trf.xlu0
        %v626 = vld [vmem:[%s7] sm:$0xf]
        %v627 = vld [vmem:[%s7 + $0x4] sm:$0xf]
        %v628 = vpack.c.bf16 %v611, %v610
        %v629 = vpack.c.bf16 %v613, %v612
        %v630 = vpack.c.bf16 %v615, %v614
        %v631 = vpack.c.bf16 %v617, %v616
        %v634 = vunpack.c.l.b16 %v626
        %v635 = vunpack.c.l.b16 %v627
        %v636 = vpack.c.b16 %v635, %v634
        %vm638 = vcmask 130048
        %v640 = vsel %vm638, %v628, 0
        %v643 = vsel %vm638, %v629, 0
        %v646 = vsel %vm638, %v630, 0
        %v649 = vsel %vm638, %v631, 0
        %651 = vmatprep.subr.bf16.mxu0 0
        %652 = vmatpush1.bf16.msra.mxu0 0
        %653 = vmatprep.subr.bf16.mxu0 0
        %654 = vmatpush1.bf16.msra.mxu0 0
        %655 = vmatprep.subr.bf16.mxu0 0
        %656 = vmatpush1.bf16.msra.mxu0 0
        %657 = vmatprep.subr.bf16.mxu0 0
        %658 = vmatpush1.bf16.msra.mxu0 0
        %659 = vmatprep.subr.bf16.mxu0 0
        %660 = vmatpush1.bf16.msra.mxu0 0
        %661 = vmatprep.subr.bf16.mxu0 0
        %662 = vmatpush1.bf16.msra.mxu0 0
        %663 = vmatprep.subr.bf16.mxu0 0
        %664 = vmatpush1.bf16.msra.mxu0 0
        %665 = vmatprep.subr.bf16.mxu0 0
        %666 = vmatpush1.bf16.msra.mxu0 %v636
        %667 = vmatprep.subr.bf16.mxu0 0
        %668 = vmatpush2.bf16.msra.mxu0 0
        %669 = vmatprep.subr.bf16.mxu0 0
        %670 = vmatpush2.bf16.msra.mxu0 0
        %671 = vmatprep.subr.bf16.mxu0 0
        %672 = vmatpush2.bf16.msra.mxu0 0
        %673 = vmatprep.subr.bf16.mxu0 0
        %674 = vmatpush2.bf16.msra.mxu0 0
        %675 = vmatprep.subr.bf16.mxu0 0
        %676 = vmatpush2.bf16.msra.mxu0 0
        %677 = vmatprep.subr.bf16.mxu0 0
        %678 = vmatpush2.bf16.msra.mxu0 0
        %679 = vmatprep.subr.bf16.mxu0 0
        %680 = vmatpush2.bf16.msra.mxu0 0
        %681 = vmatprep.subr.bf16.mxu0 0
        %682 = vmatpush2.bf16.msra.mxu0 0
        %683 = vmatprep.mubr.bf16.mxu0 0
        %684 = vmatmul.mubr.bf16.gmra.mxu0 %v640
        %v685 = vpop.f32.mrf.mxu0
        %v686 = vadd.f32 0.0, %v685
        %v687 = vpop.f32.mrf.mxu0
        %v688 = vpop.f32.mrf.mxu0
        %v689 = vadd.f32 0.0, %v688
        %v690 = vpop.f32.mrf.mxu0
        %691 = vmatprep.mubr.bf16.mxu0 0
        %692 = vmatmul.mubr.bf16.gmra.mxu0 %v643
        %v693 = vpop.f32.mrf.mxu0
        %v694 = vadd.f32 0.0, %v693
        %v695 = vpop.f32.mrf.mxu0
        %v696 = vpop.f32.mrf.mxu0
        %v697 = vadd.f32 0.0, %v696
        %v698 = vpop.f32.mrf.mxu0
        %699 = vmatprep.mubr.bf16.mxu0 0
        %700 = vmatmul.mubr.bf16.gmra.mxu0 %v646
        %v701 = vpop.f32.mrf.mxu0
        %v702 = vadd.f32 0.0, %v701
        %v703 = vpop.f32.mrf.mxu0
        %v704 = vpop.f32.mrf.mxu0
        %v705 = vadd.f32 0.0, %v704
        %v706 = vpop.f32.mrf.mxu0
        %707 = vmatprep.mubr.bf16.mxu0 0
        %708 = vmatmul.mubr.bf16.gmra.mxu0 %v649
        %v709 = vpop.f32.mrf.mxu0
        %v710 = vadd.f32 0.0, %v709
        %v711 = vpop.f32.mrf.mxu0
        %v712 = vpop.f32.mrf.mxu0
        %v713 = vadd.f32 0.0, %v712
        %v714 = vpop.f32.mrf.mxu0
        %715 = vdwg.mxu0
        %v716 = vcombine.low %v686, %v694
        %v717 = vcombine.high %v686, %v694
        %v719 = vunpack.c.l.s4 1983009808
        %v720 = vunpack.c.0.s8 %v719
        %v721 = vlaneseq
        %v722 = vshrl.u32 %v721, 7
        %v723 = vsub.s32 %v720, %v722
        %v724 = vrot.slane %v716, %v723
        %v726 = vunpack.c.l.s4 1983009808
        %v727 = vunpack.c.0.s8 %v726
        %v728 = vlaneseq
        %v729 = vshrl.u32 %v728, 7
        %v730 = vsub.s32 %v727, %v729
        %v731 = vrot.slane %v717, %v730
        %v732 = vcombine.low %v689, %v697
        %v733 = vcombine.high %v689, %v697
        %v735 = vunpack.c.l.s4 1983009808
        %v736 = vunpack.c.0.s8 %v735
        %v737 = vlaneseq
        %v738 = vshrl.u32 %v737, 7
        %v739 = vsub.s32 %v736, %v738
        %v740 = vrot.slane %v732, %v739
        %v742 = vunpack.c.l.s4 1983009808
        %v743 = vunpack.c.0.s8 %v742
        %v744 = vlaneseq
        %v745 = vshrl.u32 %v744, 7
        %v746 = vsub.s32 %v743, %v745
        %v747 = vrot.slane %v733, %v746
        %v748 = vcombine.low %v702, %v710
        %v749 = vcombine.high %v702, %v710
        %v751 = vunpack.c.l.s4 1983009808
        %v752 = vunpack.c.0.s8 %v751
        %v753 = vlaneseq
        %v754 = vshrl.u32 %v753, 7
        %v755 = vsub.s32 %v752, %v754
        %v756 = vrot.slane %v748, %v755
        %v758 = vunpack.c.l.s4 1983009808
        %v759 = vunpack.c.0.s8 %v758
        %v760 = vlaneseq
        %v761 = vshrl.u32 %v760, 7
        %v762 = vsub.s32 %v759, %v761
        %v763 = vrot.slane %v749, %v762
        %v764 = vcombine.low %v705, %v713
        %v765 = vcombine.high %v705, %v713
        %v767 = vunpack.c.l.s4 1983009808
        %v768 = vunpack.c.0.s8 %v767
        %v769 = vlaneseq
        %v770 = vshrl.u32 %v769, 7
        %v771 = vsub.s32 %v768, %v770
        %v772 = vrot.slane %v764, %v771
        %v774 = vunpack.c.l.s4 1983009808
        %v775 = vunpack.c.0.s8 %v774
        %v776 = vlaneseq
        %v777 = vshrl.u32 %v776, 7
        %v778 = vsub.s32 %v775, %v777
        %v779 = vrot.slane %v765, %v778
        %v780 = vcombine.low %v724, %v740
        %v781 = vcombine.high %v724, %v740
        %v783 = vunpack.c.l.s4 1934713408
        %v784 = vunpack.c.0.s8 %v783
        %v785 = vlaneseq
        %v786 = vshrl.u32 %v785, 7
        %v787 = vsub.s32 %v784, %v786
        %v788 = vrot.slane %v780, %v787
        %v790 = vunpack.c.l.s4 1934713408
        %v791 = vunpack.c.0.s8 %v790
        %v792 = vlaneseq
        %v793 = vshrl.u32 %v792, 7
        %v794 = vsub.s32 %v791, %v793
        %v795 = vrot.slane %v781, %v794
        %v796 = vcombine.low %v731, %v747
        %v797 = vcombine.high %v731, %v747
        %v799 = vunpack.c.l.s4 1934713408
        %v800 = vunpack.c.0.s8 %v799
        %v801 = vlaneseq
        %v802 = vshrl.u32 %v801, 7
        %v803 = vsub.s32 %v800, %v802
        %v804 = vrot.slane %v796, %v803
        %v806 = vunpack.c.l.s4 1934713408
        %v807 = vunpack.c.0.s8 %v806
        %v808 = vlaneseq
        %v809 = vshrl.u32 %v808, 7
        %v810 = vsub.s32 %v807, %v809
        %v811 = vrot.slane %v797, %v810
        %v812 = vcombine.low %v756, %v772
        %v813 = vcombine.high %v756, %v772
        %v815 = vunpack.c.l.s4 1934713408
        %v816 = vunpack.c.0.s8 %v815
        %v817 = vlaneseq
        %v818 = vshrl.u32 %v817, 7
        %v819 = vsub.s32 %v816, %v818
        %v820 = vrot.slane %v812, %v819
        %v822 = vunpack.c.l.s4 1934713408
        %v823 = vunpack.c.0.s8 %v822
        %v824 = vlaneseq
        %v825 = vshrl.u32 %v824, 7
        %v826 = vsub.s32 %v823, %v825
        %v827 = vrot.slane %v813, %v826
        %v828 = vcombine.low %v763, %v779
        %v829 = vcombine.high %v763, %v779
        %v831 = vunpack.c.l.s4 1934713408
        %v832 = vunpack.c.0.s8 %v831
        %v833 = vlaneseq
        %v834 = vshrl.u32 %v833, 7
        %v835 = vsub.s32 %v832, %v834
        %v836 = vrot.slane %v828, %v835
        %v838 = vunpack.c.l.s4 1934713408
        %v839 = vunpack.c.0.s8 %v838
        %v840 = vlaneseq
        %v841 = vshrl.u32 %v840, 7
        %v842 = vsub.s32 %v839, %v841
        %v843 = vrot.slane %v829, %v842
        %v844 = vcombine.low %v788, %v820
        %v845 = vcombine.high %v788, %v820
        %v846 = vcombine.low %v795, %v827
        %v847 = vcombine.high %v795, %v827
        %v848 = vcombine.low %v804, %v836
        %v849 = vcombine.high %v804, %v836
        %v850 = vcombine.low %v811, %v843
        %v851 = vcombine.high %v811, %v843
        %860 = vrot.lane.b32.xlu0 %v686, 124
        %v861 = vpop.permute.xlu0 %860
        %862 = vrot.lane.b32.xlu0 %v689, 124
        %v863 = vpop.permute.xlu0 %862
        %864 = vrot.lane.b32.xlu0 %v694, 124
        %v865 = vpop.permute.xlu0 %864
        %866 = vrot.lane.b32.xlu0 %v697, 124
        %v867 = vpop.permute.xlu0 %866
        %868 = vrot.lane.b32.xlu0 %v702, 124
        %v869 = vpop.permute.xlu0 %868
        %870 = vrot.lane.b32.xlu0 %v705, 124
        %v871 = vpop.permute.xlu0 %870
        %872 = vrot.lane.b32.xlu0 %v710, 124
        %v873 = vpop.permute.xlu0 %872
        %874 = vrot.lane.b32.xlu0 %v713, 124
        %v875 = vpop.permute.xlu0 %874
        %v884 = vcombine.low %v861, %v865
        %v885 = vcombine.high %v861, %v865
        %v887 = vunpack.c.l.s4 1983009808
        %v888 = vunpack.c.0.s8 %v887
        %v889 = vlaneseq
        %v890 = vshrl.u32 %v889, 7
        %v891 = vsub.s32 %v888, %v890
        %v892 = vrot.slane %v884, %v891
        %v894 = vunpack.c.l.s4 1983009808
        %v895 = vunpack.c.0.s8 %v894
        %v896 = vlaneseq
        %v897 = vshrl.u32 %v896, 7
        %v898 = vsub.s32 %v895, %v897
        %v899 = vrot.slane %v885, %v898
        %v900 = vcombine.low %v863, %v867
        %v901 = vcombine.high %v863, %v867
        %v903 = vunpack.c.l.s4 1983009808
        %v904 = vunpack.c.0.s8 %v903
        %v905 = vlaneseq
        %v906 = vshrl.u32 %v905, 7
        %v907 = vsub.s32 %v904, %v906
        %v908 = vrot.slane %v900, %v907
        %v910 = vunpack.c.l.s4 1983009808
        %v911 = vunpack.c.0.s8 %v910
        %v912 = vlaneseq
        %v913 = vshrl.u32 %v912, 7
        %v914 = vsub.s32 %v911, %v913
        %v915 = vrot.slane %v901, %v914
        %v916 = vcombine.low %v869, %v873
        %v917 = vcombine.high %v869, %v873
        %v919 = vunpack.c.l.s4 1983009808
        %v920 = vunpack.c.0.s8 %v919
        %v921 = vlaneseq
        %v922 = vshrl.u32 %v921, 7
        %v923 = vsub.s32 %v920, %v922
        %v924 = vrot.slane %v916, %v923
        %v926 = vunpack.c.l.s4 1983009808
        %v927 = vunpack.c.0.s8 %v926
        %v928 = vlaneseq
        %v929 = vshrl.u32 %v928, 7
        %v930 = vsub.s32 %v927, %v929
        %v931 = vrot.slane %v917, %v930
        %v932 = vcombine.low %v871, %v875
        %v933 = vcombine.high %v871, %v875
        %v935 = vunpack.c.l.s4 1983009808
        %v936 = vunpack.c.0.s8 %v935
        %v937 = vlaneseq
        %v938 = vshrl.u32 %v937, 7
        %v939 = vsub.s32 %v936, %v938
        %v940 = vrot.slane %v932, %v939
        %v942 = vunpack.c.l.s4 1983009808
        %v943 = vunpack.c.0.s8 %v942
        %v944 = vlaneseq
        %v945 = vshrl.u32 %v944, 7
        %v946 = vsub.s32 %v943, %v945
        %v947 = vrot.slane %v933, %v946
        %v948 = vcombine.low %v892, %v908
        %v949 = vcombine.high %v892, %v908
        %v951 = vunpack.c.l.s4 1934713408
        %v952 = vunpack.c.0.s8 %v951
        %v953 = vlaneseq
        %v954 = vshrl.u32 %v953, 7
        %v955 = vsub.s32 %v952, %v954
        %v956 = vrot.slane %v948, %v955
        %v958 = vunpack.c.l.s4 1934713408
        %v959 = vunpack.c.0.s8 %v958
        %v960 = vlaneseq
        %v961 = vshrl.u32 %v960, 7
        %v962 = vsub.s32 %v959, %v961
        %v963 = vrot.slane %v949, %v962
        %v964 = vcombine.low %v899, %v915
        %v965 = vcombine.high %v899, %v915
        %v967 = vunpack.c.l.s4 1934713408
        %v968 = vunpack.c.0.s8 %v967
        %v969 = vlaneseq
        %v970 = vshrl.u32 %v969, 7
        %v971 = vsub.s32 %v968, %v970
        %v972 = vrot.slane %v964, %v971
        %v974 = vunpack.c.l.s4 1934713408
        %v975 = vunpack.c.0.s8 %v974
        %v976 = vlaneseq
        %v977 = vshrl.u32 %v976, 7
        %v978 = vsub.s32 %v975, %v977
        %v979 = vrot.slane %v965, %v978
        %v980 = vcombine.low %v924, %v940
        %v981 = vcombine.high %v924, %v940
        %v983 = vunpack.c.l.s4 1934713408
        %v984 = vunpack.c.0.s8 %v983
        %v985 = vlaneseq
        %v986 = vshrl.u32 %v985, 7
        %v987 = vsub.s32 %v984, %v986
        %v988 = vrot.slane %v980, %v987
        %v990 = vunpack.c.l.s4 1934713408
        %v991 = vunpack.c.0.s8 %v990
        %v992 = vlaneseq
        %v993 = vshrl.u32 %v992, 7
        %v994 = vsub.s32 %v991, %v993
        %v995 = vrot.slane %v981, %v994
        %v996 = vcombine.low %v931, %v947
        %v997 = vcombine.high %v931, %v947
        %v999 = vunpack.c.l.s4 1934713408
        %v1000 = vunpack.c.0.s8 %v999
        %v1001 = vlaneseq
        %v1002 = vshrl.u32 %v1001, 7
        %v1003 = vsub.s32 %v1000, %v1002
        %v1004 = vrot.slane %v996, %v1003
        %v1006 = vunpack.c.l.s4 1934713408
        %v1007 = vunpack.c.0.s8 %v1006
        %v1008 = vlaneseq
        %v1009 = vshrl.u32 %v1008, 7
        %v1010 = vsub.s32 %v1007, %v1009
        %v1011 = vrot.slane %v997, %v1010
        %v1012 = vcombine.low %v956, %v988
        %v1013 = vcombine.high %v956, %v988
        %v1014 = vcombine.low %v963, %v995
        %v1015 = vcombine.high %v963, %v995
        %v1016 = vcombine.low %v972, %v1004
        %v1017 = vcombine.high %v972, %v1004
        %v1018 = vcombine.low %v979, %v1011
        %v1019 = vcombine.high %v979, %v1011
        %v1020 = vld [vmem:[%s5] sm:$0xf]
        %v1021 = vld [vmem:[%s5 + $0x4] sm:$0xf]
        %v1022 = vld [vmem:[%s5 + $0x8] sm:$0xf]
        %v1023 = vld [vmem:[%s5 + $0xc] sm:$0xf]
        %v1024 = vld [vmem:[%s5 + $0x10] sm:$0xf]
        %v1025 = vld [vmem:[%s5 + $0x14] sm:$0xf]
        %v1026 = vld [vmem:[%s5 + $0x18] sm:$0xf]
        %v1027 = vld [vmem:[%s5 + $0x1c] sm:$0xf]
        %v1028 = vld [vmem:[%s5 + $0x20] sm:$0xf]
        %v1029 = vld [vmem:[%s5 + $0x24] sm:$0xf]
        %v1030 = vld [vmem:[%s5 + $0x28] sm:$0xf]
        %v1031 = vld [vmem:[%s5 + $0x2c] sm:$0xf]
        %v1032 = vld [vmem:[%s5 + $0x30] sm:$0xf]
        %v1033 = vld [vmem:[%s5 + $0x34] sm:$0xf]
        %v1034 = vld [vmem:[%s5 + $0x38] sm:$0xf]
        %v1035 = vld [vmem:[%s5 + $0x3c] sm:$0xf]
        %v1036 = vld [vmem:[%s5 + $0x40] sm:$0xf]
        %v1037 = vld [vmem:[%s5 + $0x44] sm:$0xf]
        %v1038 = vld [vmem:[%s5 + $0x48] sm:$0xf]
        %v1039 = vld [vmem:[%s5 + $0x4c] sm:$0xf]
        %v1040 = vld [vmem:[%s5 + $0x50] sm:$0xf]
        %v1041 = vld [vmem:[%s5 + $0x54] sm:$0xf]
        %v1042 = vld [vmem:[%s5 + $0x58] sm:$0xf]
        %v1043 = vld [vmem:[%s5 + $0x5c] sm:$0xf]
        %v1044 = vld [vmem:[%s5 + $0x60] sm:$0xf]
        %v1045 = vld [vmem:[%s5 + $0x64] sm:$0xf]
        %v1046 = vld [vmem:[%s5 + $0x68] sm:$0xf]
        %v1047 = vld [vmem:[%s5 + $0x6c] sm:$0xf]
        %v1048 = vld [vmem:[%s5 + $0x70] sm:$0xf]
        %v1049 = vld [vmem:[%s5 + $0x74] sm:$0xf]
        %v1050 = vld [vmem:[%s5 + $0x78] sm:$0xf]
        %v1051 = vld [vmem:[%s5 + $0x7c] sm:$0xf]
        %v1052 = vld [vmem:[%s5 + $0x80] sm:$0xf]
        %v1053 = vld [vmem:[%s5 + $0x84] sm:$0xf]
        %v1054 = vld [vmem:[%s5 + $0x88] sm:$0xf]
        %v1055 = vld [vmem:[%s5 + $0x8c] sm:$0xf]
        %v1056 = vld [vmem:[%s5 + $0x90] sm:$0xf]
        %v1057 = vld [vmem:[%s5 + $0x94] sm:$0xf]
        %v1058 = vld [vmem:[%s5 + $0x98] sm:$0xf]
        %v1059 = vld [vmem:[%s5 + $0x9c] sm:$0xf]
        %v1060 = vld [vmem:[%s5 + $0xa0] sm:$0xf]
        %v1061 = vld [vmem:[%s5 + $0xa4] sm:$0xf]
        %v1062 = vld [vmem:[%s5 + $0xa8] sm:$0xf]
        %v1063 = vld [vmem:[%s5 + $0xac] sm:$0xf]
        %v1064 = vld [vmem:[%s5 + $0xb0] sm:$0xf]
        %v1065 = vld [vmem:[%s5 + $0xb4] sm:$0xf]
        %v1066 = vld [vmem:[%s5 + $0xb8] sm:$0xf]
        %v1067 = vld [vmem:[%s5 + $0xbc] sm:$0xf]
        %v1068 = vld [vmem:[%s5 + $0xc0] sm:$0xf]
        %v1069 = vld [vmem:[%s5 + $0xc4] sm:$0xf]
        %v1070 = vld [vmem:[%s5 + $0xc8] sm:$0xf]
        %v1071 = vld [vmem:[%s5 + $0xcc] sm:$0xf]
        %v1072 = vld [vmem:[%s5 + $0xd0] sm:$0xf]
        %v1073 = vld [vmem:[%s5 + $0xd4] sm:$0xf]
        %v1074 = vld [vmem:[%s5 + $0xd8] sm:$0xf]
        %v1075 = vld [vmem:[%s5 + $0xdc] sm:$0xf]
        %v1076 = vld [vmem:[%s5 + $0xe0] sm:$0xf]
        %v1077 = vld [vmem:[%s5 + $0xe4] sm:$0xf]
        %v1078 = vld [vmem:[%s5 + $0xe8] sm:$0xf]
        %v1079 = vld [vmem:[%s5 + $0xec] sm:$0xf]
        %v1080 = vld [vmem:[%s5 + $0xf0] sm:$0xf]
        %v1081 = vld [vmem:[%s5 + $0xf4] sm:$0xf]
        %v1082 = vld [vmem:[%s5 + $0xf8] sm:$0xf]
        %v1083 = vld [vmem:[%s5 + $0xfc] sm:$0xf]
        %v1084 = vunpack.c.l.bf16 %v1020
        %v1085 = vunpack.c.l.bf16 %v1021
        %v1086 = vunpack.c.l.bf16 %v1022
        %v1087 = vunpack.c.l.bf16 %v1023
        %v1088 = vunpack.c.l.bf16 %v1024
        %v1089 = vunpack.c.l.bf16 %v1025
        %v1090 = vunpack.c.l.bf16 %v1026
        %v1091 = vunpack.c.l.bf16 %v1027
        %v1092 = vunpack.c.l.bf16 %v1028
        %v1093 = vunpack.c.l.bf16 %v1029
        %v1094 = vunpack.c.l.bf16 %v1030
        %v1095 = vunpack.c.l.bf16 %v1031
        %v1096 = vunpack.c.l.bf16 %v1032
        %v1097 = vunpack.c.l.bf16 %v1033
        %v1098 = vunpack.c.l.bf16 %v1034
        %v1099 = vunpack.c.l.bf16 %v1035
        %v1100 = vunpack.c.l.bf16 %v1036
        %v1101 = vunpack.c.l.bf16 %v1037
        %v1102 = vunpack.c.l.bf16 %v1038
        %v1103 = vunpack.c.l.bf16 %v1039
        %v1104 = vunpack.c.l.bf16 %v1040
        %v1105 = vunpack.c.l.bf16 %v1041
        %v1106 = vunpack.c.l.bf16 %v1042
        %v1107 = vunpack.c.l.bf16 %v1043
        %v1108 = vunpack.c.l.bf16 %v1044
        %v1109 = vunpack.c.l.bf16 %v1045
        %v1110 = vunpack.c.l.bf16 %v1046
        %v1111 = vunpack.c.l.bf16 %v1047
        %v1112 = vunpack.c.l.bf16 %v1048
        %v1113 = vunpack.c.l.bf16 %v1049
        %v1114 = vunpack.c.l.bf16 %v1050
        %v1115 = vunpack.c.l.bf16 %v1051
        %v1116 = vunpack.c.l.bf16 %v1052
        %v1117 = vunpack.c.l.bf16 %v1053
        %v1118 = vunpack.c.l.bf16 %v1054
        %v1119 = vunpack.c.l.bf16 %v1055
        %v1120 = vunpack.c.l.bf16 %v1056
        %v1121 = vunpack.c.l.bf16 %v1057
        %v1122 = vunpack.c.l.bf16 %v1058
        %v1123 = vunpack.c.l.bf16 %v1059
        %v1124 = vunpack.c.l.bf16 %v1060
        %v1125 = vunpack.c.l.bf16 %v1061
        %v1126 = vunpack.c.l.bf16 %v1062
        %v1127 = vunpack.c.l.bf16 %v1063
        %v1128 = vunpack.c.l.bf16 %v1064
        %v1129 = vunpack.c.l.bf16 %v1065
        %v1130 = vunpack.c.l.bf16 %v1066
        %v1131 = vunpack.c.l.bf16 %v1067
        %v1132 = vunpack.c.l.bf16 %v1068
        %v1133 = vunpack.c.l.bf16 %v1069
        %v1134 = vunpack.c.l.bf16 %v1070
        %v1135 = vunpack.c.l.bf16 %v1071
        %v1136 = vunpack.c.l.bf16 %v1072
        %v1137 = vunpack.c.l.bf16 %v1073
        %v1138 = vunpack.c.l.bf16 %v1074
        %v1139 = vunpack.c.l.bf16 %v1075
        %v1140 = vunpack.c.l.bf16 %v1076
        %v1141 = vunpack.c.l.bf16 %v1077
        %v1142 = vunpack.c.l.bf16 %v1078
        %v1143 = vunpack.c.l.bf16 %v1079
        %v1144 = vunpack.c.l.bf16 %v1080
        %v1145 = vunpack.c.l.bf16 %v1081
        %v1146 = vunpack.c.l.bf16 %v1082
        %v1147 = vunpack.c.l.bf16 %v1083
        %v1148 = vld [vmem:[%s6] sm:$0xf]
        %v1149 = vld [vmem:[%s6 + $0x4] sm:$0xf]
        %v1150 = vld [vmem:[%s6 + $0x8] sm:$0xf]
        %v1151 = vld [vmem:[%s6 + $0xc] sm:$0xf]
        %v1152 = vld [vmem:[%s6 + $0x10] sm:$0xf]
        %v1153 = vld [vmem:[%s6 + $0x14] sm:$0xf]
        %v1154 = vld [vmem:[%s6 + $0x18] sm:$0xf]
        %v1155 = vld [vmem:[%s6 + $0x1c] sm:$0xf]
        %v1156 = vld [vmem:[%s6 + $0x20] sm:$0xf]
        %v1157 = vld [vmem:[%s6 + $0x24] sm:$0xf]
        %v1158 = vld [vmem:[%s6 + $0x28] sm:$0xf]
        %v1159 = vld [vmem:[%s6 + $0x2c] sm:$0xf]
        %v1160 = vld [vmem:[%s6 + $0x30] sm:$0xf]
        %v1161 = vld [vmem:[%s6 + $0x34] sm:$0xf]
        %v1162 = vld [vmem:[%s6 + $0x38] sm:$0xf]
        %v1163 = vld [vmem:[%s6 + $0x3c] sm:$0xf]
        %v1164 = vld [vmem:[%s6 + $0x40] sm:$0xf]
        %v1165 = vld [vmem:[%s6 + $0x44] sm:$0xf]
        %v1166 = vld [vmem:[%s6 + $0x48] sm:$0xf]
        %v1167 = vld [vmem:[%s6 + $0x4c] sm:$0xf]
        %v1168 = vld [vmem:[%s6 + $0x50] sm:$0xf]
        %v1169 = vld [vmem:[%s6 + $0x54] sm:$0xf]
        %v1170 = vld [vmem:[%s6 + $0x58] sm:$0xf]
        %v1171 = vld [vmem:[%s6 + $0x5c] sm:$0xf]
        %v1172 = vld [vmem:[%s6 + $0x60] sm:$0xf]
        %v1173 = vld [vmem:[%s6 + $0x64] sm:$0xf]
        %v1174 = vld [vmem:[%s6 + $0x68] sm:$0xf]
        %v1175 = vld [vmem:[%s6 + $0x6c] sm:$0xf]
        %v1176 = vld [vmem:[%s6 + $0x70] sm:$0xf]
        %v1177 = vld [vmem:[%s6 + $0x74] sm:$0xf]
        %v1178 = vld [vmem:[%s6 + $0x78] sm:$0xf]
        %v1179 = vld [vmem:[%s6 + $0x7c] sm:$0xf]
        %v1180 = vld [vmem:[%s6 + $0x80] sm:$0xf]
        %v1181 = vld [vmem:[%s6 + $0x84] sm:$0xf]
        %v1182 = vld [vmem:[%s6 + $0x88] sm:$0xf]
        %v1183 = vld [vmem:[%s6 + $0x8c] sm:$0xf]
        %v1184 = vld [vmem:[%s6 + $0x90] sm:$0xf]
        %v1185 = vld [vmem:[%s6 + $0x94] sm:$0xf]
        %v1186 = vld [vmem:[%s6 + $0x98] sm:$0xf]
        %v1187 = vld [vmem:[%s6 + $0x9c] sm:$0xf]
        %v1188 = vld [vmem:[%s6 + $0xa0] sm:$0xf]
        %v1189 = vld [vmem:[%s6 + $0xa4] sm:$0xf]
        %v1190 = vld [vmem:[%s6 + $0xa8] sm:$0xf]
        %v1191 = vld [vmem:[%s6 + $0xac] sm:$0xf]
        %v1192 = vld [vmem:[%s6 + $0xb0] sm:$0xf]
        %v1193 = vld [vmem:[%s6 + $0xb4] sm:$0xf]
        %v1194 = vld [vmem:[%s6 + $0xb8] sm:$0xf]
        %v1195 = vld [vmem:[%s6 + $0xbc] sm:$0xf]
        %v1196 = vld [vmem:[%s6 + $0xc0] sm:$0xf]
        %v1197 = vld [vmem:[%s6 + $0xc4] sm:$0xf]
        %v1198 = vld [vmem:[%s6 + $0xc8] sm:$0xf]
        %v1199 = vld [vmem:[%s6 + $0xcc] sm:$0xf]
        %v1200 = vld [vmem:[%s6 + $0xd0] sm:$0xf]
        %v1201 = vld [vmem:[%s6 + $0xd4] sm:$0xf]
        %v1202 = vld [vmem:[%s6 + $0xd8] sm:$0xf]
        %v1203 = vld [vmem:[%s6 + $0xdc] sm:$0xf]
        %v1204 = vld [vmem:[%s6 + $0xe0] sm:$0xf]
        %v1205 = vld [vmem:[%s6 + $0xe4] sm:$0xf]
        %v1206 = vld [vmem:[%s6 + $0xe8] sm:$0xf]
        %v1207 = vld [vmem:[%s6 + $0xec] sm:$0xf]
        %v1208 = vld [vmem:[%s6 + $0xf0] sm:$0xf]
        %v1209 = vld [vmem:[%s6 + $0xf4] sm:$0xf]
        %v1210 = vld [vmem:[%s6 + $0xf8] sm:$0xf]
        %v1211 = vld [vmem:[%s6 + $0xfc] sm:$0xf]
        %v1212 = vunpack.c.l.bf16 %v1148
        %v1213 = vunpack.c.l.bf16 %v1149
        %v1214 = vunpack.c.l.bf16 %v1150
        %v1215 = vunpack.c.l.bf16 %v1151
        %v1216 = vunpack.c.l.bf16 %v1152
        %v1217 = vunpack.c.l.bf16 %v1153
        %v1218 = vunpack.c.l.bf16 %v1154
        %v1219 = vunpack.c.l.bf16 %v1155
        %v1220 = vunpack.c.l.bf16 %v1156
        %v1221 = vunpack.c.l.bf16 %v1157
        %v1222 = vunpack.c.l.bf16 %v1158
        %v1223 = vunpack.c.l.bf16 %v1159
        %v1224 = vunpack.c.l.bf16 %v1160
        %v1225 = vunpack.c.l.bf16 %v1161
        %v1226 = vunpack.c.l.bf16 %v1162
        %v1227 = vunpack.c.l.bf16 %v1163
        %v1228 = vunpack.c.l.bf16 %v1164
        %v1229 = vunpack.c.l.bf16 %v1165
        %v1230 = vunpack.c.l.bf16 %v1166
        %v1231 = vunpack.c.l.bf16 %v1167
        %v1232 = vunpack.c.l.bf16 %v1168
        %v1233 = vunpack.c.l.bf16 %v1169
        %v1234 = vunpack.c.l.bf16 %v1170
        %v1235 = vunpack.c.l.bf16 %v1171
        %v1236 = vunpack.c.l.bf16 %v1172
        %v1237 = vunpack.c.l.bf16 %v1173
        %v1238 = vunpack.c.l.bf16 %v1174
        %v1239 = vunpack.c.l.bf16 %v1175
        %v1240 = vunpack.c.l.bf16 %v1176
        %v1241 = vunpack.c.l.bf16 %v1177
        %v1242 = vunpack.c.l.bf16 %v1178
        %v1243 = vunpack.c.l.bf16 %v1179
        %v1244 = vunpack.c.l.bf16 %v1180
        %v1245 = vunpack.c.l.bf16 %v1181
        %v1246 = vunpack.c.l.bf16 %v1182
        %v1247 = vunpack.c.l.bf16 %v1183
        %v1248 = vunpack.c.l.bf16 %v1184
        %v1249 = vunpack.c.l.bf16 %v1185
        %v1250 = vunpack.c.l.bf16 %v1186
        %v1251 = vunpack.c.l.bf16 %v1187
        %v1252 = vunpack.c.l.bf16 %v1188
        %v1253 = vunpack.c.l.bf16 %v1189
        %v1254 = vunpack.c.l.bf16 %v1190
        %v1255 = vunpack.c.l.bf16 %v1191
        %v1256 = vunpack.c.l.bf16 %v1192
        %v1257 = vunpack.c.l.bf16 %v1193
        %v1258 = vunpack.c.l.bf16 %v1194
        %v1259 = vunpack.c.l.bf16 %v1195
        %v1260 = vunpack.c.l.bf16 %v1196
        %v1261 = vunpack.c.l.bf16 %v1197
        %v1262 = vunpack.c.l.bf16 %v1198
        %v1263 = vunpack.c.l.bf16 %v1199
        %v1264 = vunpack.c.l.bf16 %v1200
        %v1265 = vunpack.c.l.bf16 %v1201
        %v1266 = vunpack.c.l.bf16 %v1202
        %v1267 = vunpack.c.l.bf16 %v1203
        %v1268 = vunpack.c.l.bf16 %v1204
        %v1269 = vunpack.c.l.bf16 %v1205
        %v1270 = vunpack.c.l.bf16 %v1206
        %v1271 = vunpack.c.l.bf16 %v1207
        %v1272 = vunpack.c.l.bf16 %v1208
        %v1273 = vunpack.c.l.bf16 %v1209
        %v1274 = vunpack.c.l.bf16 %v1210
        %v1275 = vunpack.c.l.bf16 %v1211
        %v1276 = vmul.f32 %v844, %v1084
        %v1277 = vmul.f32 %v844, %v1085
        %v1278 = vmul.f32 %v844, %v1086
        %v1279 = vmul.f32 %v844, %v1087
        %v1280 = vmul.f32 %v844, %v1088
        %v1281 = vmul.f32 %v844, %v1089
        %v1282 = vmul.f32 %v844, %v1090
        %v1283 = vmul.f32 %v844, %v1091
        %v1284 = vmul.f32 %v845, %v1092
        %v1285 = vmul.f32 %v845, %v1093
        %v1286 = vmul.f32 %v845, %v1094
        %v1287 = vmul.f32 %v845, %v1095
        %v1288 = vmul.f32 %v845, %v1096
        %v1289 = vmul.f32 %v845, %v1097
        %v1290 = vmul.f32 %v845, %v1098
        %v1291 = vmul.f32 %v845, %v1099
        %v1292 = vmul.f32 %v846, %v1100
        %v1293 = vmul.f32 %v846, %v1101
        %v1294 = vmul.f32 %v846, %v1102
        %v1295 = vmul.f32 %v846, %v1103
        %v1296 = vmul.f32 %v846, %v1104
        %v1297 = vmul.f32 %v846, %v1105
        %v1298 = vmul.f32 %v846, %v1106
        %v1299 = vmul.f32 %v846, %v1107
        %v1300 = vmul.f32 %v847, %v1108
        %v1301 = vmul.f32 %v847, %v1109
        %v1302 = vmul.f32 %v847, %v1110
        %v1303 = vmul.f32 %v847, %v1111
        %v1304 = vmul.f32 %v847, %v1112
        %v1305 = vmul.f32 %v847, %v1113
        %v1306 = vmul.f32 %v847, %v1114
        %v1307 = vmul.f32 %v847, %v1115
        %v1308 = vmul.f32 %v848, %v1116
        %v1309 = vmul.f32 %v848, %v1117
        %v1310 = vmul.f32 %v848, %v1118
        %v1311 = vmul.f32 %v848, %v1119
        %v1312 = vmul.f32 %v848, %v1120
        %v1313 = vmul.f32 %v848, %v1121
        %v1314 = vmul.f32 %v848, %v1122
        %v1315 = vmul.f32 %v848, %v1123
        %v1316 = vmul.f32 %v849, %v1124
        %v1317 = vmul.f32 %v849, %v1125
        %v1318 = vmul.f32 %v849, %v1126
        %v1319 = vmul.f32 %v849, %v1127
        %v1320 = vmul.f32 %v849, %v1128
        %v1321 = vmul.f32 %v849, %v1129
        %v1322 = vmul.f32 %v849, %v1130
        %v1323 = vmul.f32 %v849, %v1131
        %v1324 = vmul.f32 %v850, %v1132
        %v1325 = vmul.f32 %v850, %v1133
        %v1326 = vmul.f32 %v850, %v1134
        %v1327 = vmul.f32 %v850, %v1135
        %v1328 = vmul.f32 %v850, %v1136
        %v1329 = vmul.f32 %v850, %v1137
        %v1330 = vmul.f32 %v850, %v1138
        %v1331 = vmul.f32 %v850, %v1139
        %v1332 = vmul.f32 %v851, %v1140
        %v1333 = vmul.f32 %v851, %v1141
        %v1334 = vmul.f32 %v851, %v1142
        %v1335 = vmul.f32 %v851, %v1143
        %v1336 = vmul.f32 %v851, %v1144
        %v1337 = vmul.f32 %v851, %v1145
        %v1338 = vmul.f32 %v851, %v1146
        %v1339 = vmul.f32 %v851, %v1147
        %v1340 = vmul.f32 %v1012, %v1212
        %v1341 = vmul.f32 %v1012, %v1213
        %v1342 = vmul.f32 %v1012, %v1214
        %v1343 = vmul.f32 %v1012, %v1215
        %v1344 = vmul.f32 %v1012, %v1216
        %v1345 = vmul.f32 %v1012, %v1217
        %v1346 = vmul.f32 %v1012, %v1218
        %v1347 = vmul.f32 %v1012, %v1219
        %v1348 = vmul.f32 %v1013, %v1220
        %v1349 = vmul.f32 %v1013, %v1221
        %v1350 = vmul.f32 %v1013, %v1222
        %v1351 = vmul.f32 %v1013, %v1223
        %v1352 = vmul.f32 %v1013, %v1224
        %v1353 = vmul.f32 %v1013, %v1225
        %v1354 = vmul.f32 %v1013, %v1226
        %v1355 = vmul.f32 %v1013, %v1227
        %v1356 = vmul.f32 %v1014, %v1228
        %v1357 = vmul.f32 %v1014, %v1229
        %v1358 = vmul.f32 %v1014, %v1230
        %v1359 = vmul.f32 %v1014, %v1231
        %v1360 = vmul.f32 %v1014, %v1232
        %v1361 = vmul.f32 %v1014, %v1233
        %v1362 = vmul.f32 %v1014, %v1234
        %v1363 = vmul.f32 %v1014, %v1235
        %v1364 = vmul.f32 %v1015, %v1236
        %v1365 = vmul.f32 %v1015, %v1237
        %v1366 = vmul.f32 %v1015, %v1238
        %v1367 = vmul.f32 %v1015, %v1239
        %v1368 = vmul.f32 %v1015, %v1240
        %v1369 = vmul.f32 %v1015, %v1241
        %v1370 = vmul.f32 %v1015, %v1242
        %v1371 = vmul.f32 %v1015, %v1243
        %v1372 = vmul.f32 %v1016, %v1244
        %v1373 = vmul.f32 %v1016, %v1245
        %v1374 = vmul.f32 %v1016, %v1246
        %v1375 = vmul.f32 %v1016, %v1247
        %v1376 = vmul.f32 %v1016, %v1248
        %v1377 = vmul.f32 %v1016, %v1249
        %v1378 = vmul.f32 %v1016, %v1250
        %v1379 = vmul.f32 %v1016, %v1251
        %v1380 = vmul.f32 %v1017, %v1252
        %v1381 = vmul.f32 %v1017, %v1253
        %v1382 = vmul.f32 %v1017, %v1254
        %v1383 = vmul.f32 %v1017, %v1255
        %v1384 = vmul.f32 %v1017, %v1256
        %v1385 = vmul.f32 %v1017, %v1257
        %v1386 = vmul.f32 %v1017, %v1258
        %v1387 = vmul.f32 %v1017, %v1259
        %v1388 = vmul.f32 %v1018, %v1260
        %v1389 = vmul.f32 %v1018, %v1261
        %v1390 = vmul.f32 %v1018, %v1262
        %v1391 = vmul.f32 %v1018, %v1263
        %v1392 = vmul.f32 %v1018, %v1264
        %v1393 = vmul.f32 %v1018, %v1265
        %v1394 = vmul.f32 %v1018, %v1266
        %v1395 = vmul.f32 %v1018, %v1267
        %v1396 = vmul.f32 %v1019, %v1268
        %v1397 = vmul.f32 %v1019, %v1269
        %v1398 = vmul.f32 %v1019, %v1270
        %v1399 = vmul.f32 %v1019, %v1271
        %v1400 = vmul.f32 %v1019, %v1272
        %v1401 = vmul.f32 %v1019, %v1273
        %v1402 = vmul.f32 %v1019, %v1274
        %v1403 = vmul.f32 %v1019, %v1275
        %v1404 = vsub.f32 %v1276, %v1340
        %v1405 = vsub.f32 %v1277, %v1341
        %v1406 = vsub.f32 %v1278, %v1342
        %v1407 = vsub.f32 %v1279, %v1343
        %v1408 = vsub.f32 %v1280, %v1344
        %v1409 = vsub.f32 %v1281, %v1345
        %v1410 = vsub.f32 %v1282, %v1346
        %v1411 = vsub.f32 %v1283, %v1347
        %v1412 = vsub.f32 %v1284, %v1348
        %v1413 = vsub.f32 %v1285, %v1349
        %v1414 = vsub.f32 %v1286, %v1350
        %v1415 = vsub.f32 %v1287, %v1351
        %v1416 = vsub.f32 %v1288, %v1352
        %v1417 = vsub.f32 %v1289, %v1353
        %v1418 = vsub.f32 %v1290, %v1354
        %v1419 = vsub.f32 %v1291, %v1355
        %v1420 = vsub.f32 %v1292, %v1356
        %v1421 = vsub.f32 %v1293, %v1357
        %v1422 = vsub.f32 %v1294, %v1358
        %v1423 = vsub.f32 %v1295, %v1359
        %v1424 = vsub.f32 %v1296, %v1360
        %v1425 = vsub.f32 %v1297, %v1361
        %v1426 = vsub.f32 %v1298, %v1362
        %v1427 = vsub.f32 %v1299, %v1363
        %v1428 = vsub.f32 %v1300, %v1364
        %v1429 = vsub.f32 %v1301, %v1365
        %v1430 = vsub.f32 %v1302, %v1366
        %v1431 = vsub.f32 %v1303, %v1367
        %v1432 = vsub.f32 %v1304, %v1368
        %v1433 = vsub.f32 %v1305, %v1369
        %v1434 = vsub.f32 %v1306, %v1370
        %v1435 = vsub.f32 %v1307, %v1371
        %v1436 = vsub.f32 %v1308, %v1372
        %v1437 = vsub.f32 %v1309, %v1373
        %v1438 = vsub.f32 %v1310, %v1374
        %v1439 = vsub.f32 %v1311, %v1375
        %v1440 = vsub.f32 %v1312, %v1376
        %v1441 = vsub.f32 %v1313, %v1377
        %v1442 = vsub.f32 %v1314, %v1378
        %v1443 = vsub.f32 %v1315, %v1379
        %v1444 = vsub.f32 %v1316, %v1380
        %v1445 = vsub.f32 %v1317, %v1381
        %v1446 = vsub.f32 %v1318, %v1382
        %v1447 = vsub.f32 %v1319, %v1383
        %v1448 = vsub.f32 %v1320, %v1384
        %v1449 = vsub.f32 %v1321, %v1385
        %v1450 = vsub.f32 %v1322, %v1386
        %v1451 = vsub.f32 %v1323, %v1387
        %v1452 = vsub.f32 %v1324, %v1388
        %v1453 = vsub.f32 %v1325, %v1389
        %v1454 = vsub.f32 %v1326, %v1390
        %v1455 = vsub.f32 %v1327, %v1391
        %v1456 = vsub.f32 %v1328, %v1392
        %v1457 = vsub.f32 %v1329, %v1393
        %v1458 = vsub.f32 %v1330, %v1394
        %v1459 = vsub.f32 %v1331, %v1395
        %v1460 = vsub.f32 %v1332, %v1396
        %v1461 = vsub.f32 %v1333, %v1397
        %v1462 = vsub.f32 %v1334, %v1398
        %v1463 = vsub.f32 %v1335, %v1399
        %v1464 = vsub.f32 %v1336, %v1400
        %v1465 = vsub.f32 %v1337, %v1401
        %v1466 = vsub.f32 %v1338, %v1402
        %v1467 = vsub.f32 %v1339, %v1403
        %vm1468 = vcmask 31744
        %v1469 = vsel %vm1468, %v1404, 0.0
        %v1470 = vsel %vm1468, %v1412, 0.0
        %v1471 = vadd.f32 %v1469, %v1470
        %v1472 = vsel %vm1468, %v1420, 0.0
        %v1473 = vadd.f32 %v1471, %v1472
        %v1474 = vsel %vm1468, %v1428, 0.0
        %v1475 = vadd.f32 %v1473, %v1474
        %v1476 = vsel %vm1468, %v1436, 0.0
        %v1477 = vadd.f32 %v1475, %v1476
        %v1478 = vsel %vm1468, %v1444, 0.0
        %v1479 = vadd.f32 %v1477, %v1478
        %v1480 = vsel %vm1468, %v1452, 0.0
        %v1481 = vadd.f32 %v1479, %v1480
        %v1482 = vsel %vm1468, %v1460, 0.0
        %v1483 = vadd.f32 %v1481, %v1482
        %v1484 = vsel %vm1468, %v1405, 0.0
        %v1485 = vsel %vm1468, %v1413, 0.0
        %v1486 = vadd.f32 %v1484, %v1485
        %v1487 = vsel %vm1468, %v1421, 0.0
        %v1488 = vadd.f32 %v1486, %v1487
        %v1489 = vsel %vm1468, %v1429, 0.0
        %v1490 = vadd.f32 %v1488, %v1489
        %v1491 = vsel %vm1468, %v1437, 0.0
        %v1492 = vadd.f32 %v1490, %v1491
        %v1493 = vsel %vm1468, %v1445, 0.0
        %v1494 = vadd.f32 %v1492, %v1493
        %v1495 = vsel %vm1468, %v1453, 0.0
        %v1496 = vadd.f32 %v1494, %v1495
        %v1497 = vsel %vm1468, %v1461, 0.0
        %v1498 = vadd.f32 %v1496, %v1497
        %v1499 = vsel %vm1468, %v1406, 0.0
        %v1500 = vsel %vm1468, %v1414, 0.0
        %v1501 = vadd.f32 %v1499, %v1500
        %v1502 = vsel %vm1468, %v1422, 0.0
        %v1503 = vadd.f32 %v1501, %v1502
        %v1504 = vsel %vm1468, %v1430, 0.0
        %v1505 = vadd.f32 %v1503, %v1504
        %v1506 = vsel %vm1468, %v1438, 0.0
        %v1507 = vadd.f32 %v1505, %v1506
        %v1508 = vsel %vm1468, %v1446, 0.0
        %v1509 = vadd.f32 %v1507, %v1508
        %v1510 = vsel %vm1468, %v1454, 0.0
        %v1511 = vadd.f32 %v1509, %v1510
        %v1512 = vsel %vm1468, %v1462, 0.0
        %v1513 = vadd.f32 %v1511, %v1512
        %v1514 = vsel %vm1468, %v1407, 0.0
        %v1515 = vsel %vm1468, %v1415, 0.0
        %v1516 = vadd.f32 %v1514, %v1515
        %v1517 = vsel %vm1468, %v1423, 0.0
        %v1518 = vadd.f32 %v1516, %v1517
        %v1519 = vsel %vm1468, %v1431, 0.0
        %v1520 = vadd.f32 %v1518, %v1519
        %v1521 = vsel %vm1468, %v1439, 0.0
        %v1522 = vadd.f32 %v1520, %v1521
        %v1523 = vsel %vm1468, %v1447, 0.0
        %v1524 = vadd.f32 %v1522, %v1523
        %v1525 = vsel %vm1468, %v1455, 0.0
        %v1526 = vadd.f32 %v1524, %v1525
        %v1527 = vsel %vm1468, %v1463, 0.0
        %v1528 = vadd.f32 %v1526, %v1527
        %v1529 = vsel %vm1468, %v1408, 0.0
        %v1530 = vsel %vm1468, %v1416, 0.0
        %v1531 = vadd.f32 %v1529, %v1530
        %v1532 = vsel %vm1468, %v1424, 0.0
        %v1533 = vadd.f32 %v1531, %v1532
        %v1534 = vsel %vm1468, %v1432, 0.0
        %v1535 = vadd.f32 %v1533, %v1534
        %v1536 = vsel %vm1468, %v1440, 0.0
        %v1537 = vadd.f32 %v1535, %v1536
        %v1538 = vsel %vm1468, %v1448, 0.0
        %v1539 = vadd.f32 %v1537, %v1538
        %v1540 = vsel %vm1468, %v1456, 0.0
        %v1541 = vadd.f32 %v1539, %v1540
        %v1542 = vsel %vm1468, %v1464, 0.0
        %v1543 = vadd.f32 %v1541, %v1542
        %v1544 = vsel %vm1468, %v1409, 0.0
        %v1545 = vsel %vm1468, %v1417, 0.0
        %v1546 = vadd.f32 %v1544, %v1545
        %v1547 = vsel %vm1468, %v1425, 0.0
        %v1548 = vadd.f32 %v1546, %v1547
        %v1549 = vsel %vm1468, %v1433, 0.0
        %v1550 = vadd.f32 %v1548, %v1549
        %v1551 = vsel %vm1468, %v1441, 0.0
        %v1552 = vadd.f32 %v1550, %v1551
        %v1553 = vsel %vm1468, %v1449, 0.0
        %v1554 = vadd.f32 %v1552, %v1553
        %v1555 = vsel %vm1468, %v1457, 0.0
        %v1556 = vadd.f32 %v1554, %v1555
        %v1557 = vsel %vm1468, %v1465, 0.0
        %v1558 = vadd.f32 %v1556, %v1557
        %v1559 = vsel %vm1468, %v1410, 0.0
        %v1560 = vsel %vm1468, %v1418, 0.0
        %v1561 = vadd.f32 %v1559, %v1560
        %v1562 = vsel %vm1468, %v1426, 0.0
        %v1563 = vadd.f32 %v1561, %v1562
        %v1564 = vsel %vm1468, %v1434, 0.0
        %v1565 = vadd.f32 %v1563, %v1564
        %v1566 = vsel %vm1468, %v1442, 0.0
        %v1567 = vadd.f32 %v1565, %v1566
        %v1568 = vsel %vm1468, %v1450, 0.0
        %v1569 = vadd.f32 %v1567, %v1568
        %v1570 = vsel %vm1468, %v1458, 0.0
        %v1571 = vadd.f32 %v1569, %v1570
        %v1572 = vsel %vm1468, %v1466, 0.0
        %v1573 = vadd.f32 %v1571, %v1572
        %v1574 = vsel %vm1468, %v1411, 0.0
        %v1575 = vsel %vm1468, %v1419, 0.0
        %v1576 = vadd.f32 %v1574, %v1575
        %v1577 = vsel %vm1468, %v1427, 0.0
        %v1578 = vadd.f32 %v1576, %v1577
        %v1579 = vsel %vm1468, %v1435, 0.0
        %v1580 = vadd.f32 %v1578, %v1579
        %v1581 = vsel %vm1468, %v1443, 0.0
        %v1582 = vadd.f32 %v1580, %v1581
        %v1583 = vsel %vm1468, %v1451, 0.0
        %v1584 = vadd.f32 %v1582, %v1583
        %v1585 = vsel %vm1468, %v1459, 0.0
        %v1586 = vadd.f32 %v1584, %v1585
        %v1587 = vsel %vm1468, %v1467, 0.0
        %v1588 = vadd.f32 %v1586, %v1587
        %v1589 = vadd.f32 %v1483, 0.0
        %v1590 = vadd.f32 %v1498, 0.0
        %v1591 = vadd.f32 %v1513, 0.0
        %v1592 = vadd.f32 %v1528, 0.0
        %v1593 = vadd.f32 %v1543, 0.0
        %v1594 = vadd.f32 %v1558, 0.0
        %v1595 = vadd.f32 %v1573, 0.0
        %v1596 = vadd.f32 %v1588, 0.0
        %v1597 = vmul.f32 %v844, %v1212
        %v1598 = vmul.f32 %v844, %v1213
        %v1599 = vmul.f32 %v844, %v1214
        %v1600 = vmul.f32 %v844, %v1215
        %v1601 = vmul.f32 %v844, %v1216
        %v1602 = vmul.f32 %v844, %v1217
        %v1603 = vmul.f32 %v844, %v1218
        %v1604 = vmul.f32 %v844, %v1219
        %v1605 = vmul.f32 %v845, %v1220
        %v1606 = vmul.f32 %v845, %v1221
        %v1607 = vmul.f32 %v845, %v1222
        %v1608 = vmul.f32 %v845, %v1223
        %v1609 = vmul.f32 %v845, %v1224
        %v1610 = vmul.f32 %v845, %v1225
        %v1611 = vmul.f32 %v845, %v1226
        %v1612 = vmul.f32 %v845, %v1227
        %v1613 = vmul.f32 %v846, %v1228
        %v1614 = vmul.f32 %v846, %v1229
        %v1615 = vmul.f32 %v846, %v1230
        %v1616 = vmul.f32 %v846, %v1231
        %v1617 = vmul.f32 %v846, %v1232
        %v1618 = vmul.f32 %v846, %v1233
        %v1619 = vmul.f32 %v846, %v1234
        %v1620 = vmul.f32 %v846, %v1235
        %v1621 = vmul.f32 %v847, %v1236
        %v1622 = vmul.f32 %v847, %v1237
        %v1623 = vmul.f32 %v847, %v1238
        %v1624 = vmul.f32 %v847, %v1239
        %v1625 = vmul.f32 %v847, %v1240
        %v1626 = vmul.f32 %v847, %v1241
        %v1627 = vmul.f32 %v847, %v1242
        %v1628 = vmul.f32 %v847, %v1243
        %v1629 = vmul.f32 %v848, %v1244
        %v1630 = vmul.f32 %v848, %v1245
        %v1631 = vmul.f32 %v848, %v1246
        %v1632 = vmul.f32 %v848, %v1247
        %v1633 = vmul.f32 %v848, %v1248
        %v1634 = vmul.f32 %v848, %v1249
        %v1635 = vmul.f32 %v848, %v1250
        %v1636 = vmul.f32 %v848, %v1251
        %v1637 = vmul.f32 %v849, %v1252
        %v1638 = vmul.f32 %v849, %v1253
        %v1639 = vmul.f32 %v849, %v1254
        %v1640 = vmul.f32 %v849, %v1255
        %v1641 = vmul.f32 %v849, %v1256
        %v1642 = vmul.f32 %v849, %v1257
        %v1643 = vmul.f32 %v849, %v1258
        %v1644 = vmul.f32 %v849, %v1259
        %v1645 = vmul.f32 %v850, %v1260
        %v1646 = vmul.f32 %v850, %v1261
        %v1647 = vmul.f32 %v850, %v1262
        %v1648 = vmul.f32 %v850, %v1263
        %v1649 = vmul.f32 %v850, %v1264
        %v1650 = vmul.f32 %v850, %v1265
        %v1651 = vmul.f32 %v850, %v1266
        %v1652 = vmul.f32 %v850, %v1267
        %v1653 = vmul.f32 %v851, %v1268
        %v1654 = vmul.f32 %v851, %v1269
        %v1655 = vmul.f32 %v851, %v1270
        %v1656 = vmul.f32 %v851, %v1271
        %v1657 = vmul.f32 %v851, %v1272
        %v1658 = vmul.f32 %v851, %v1273
        %v1659 = vmul.f32 %v851, %v1274
        %v1660 = vmul.f32 %v851, %v1275
        %v1661 = vmul.f32 %v1012, %v1084
        %v1662 = vmul.f32 %v1012, %v1085
        %v1663 = vmul.f32 %v1012, %v1086
        %v1664 = vmul.f32 %v1012, %v1087
        %v1665 = vmul.f32 %v1012, %v1088
        %v1666 = vmul.f32 %v1012, %v1089
        %v1667 = vmul.f32 %v1012, %v1090
        %v1668 = vmul.f32 %v1012, %v1091
        %v1669 = vmul.f32 %v1013, %v1092
        %v1670 = vmul.f32 %v1013, %v1093
        %v1671 = vmul.f32 %v1013, %v1094
        %v1672 = vmul.f32 %v1013, %v1095
        %v1673 = vmul.f32 %v1013, %v1096
        %v1674 = vmul.f32 %v1013, %v1097
        %v1675 = vmul.f32 %v1013, %v1098
        %v1676 = vmul.f32 %v1013, %v1099
        %v1677 = vmul.f32 %v1014, %v1100
        %v1678 = vmul.f32 %v1014, %v1101
        %v1679 = vmul.f32 %v1014, %v1102
        %v1680 = vmul.f32 %v1014, %v1103
        %v1681 = vmul.f32 %v1014, %v1104
        %v1682 = vmul.f32 %v1014, %v1105
        %v1683 = vmul.f32 %v1014, %v1106
        %v1684 = vmul.f32 %v1014, %v1107
        %v1685 = vmul.f32 %v1015, %v1108
        %v1686 = vmul.f32 %v1015, %v1109
        %v1687 = vmul.f32 %v1015, %v1110
        %v1688 = vmul.f32 %v1015, %v1111
        %v1689 = vmul.f32 %v1015, %v1112
        %v1690 = vmul.f32 %v1015, %v1113
        %v1691 = vmul.f32 %v1015, %v1114
        %v1692 = vmul.f32 %v1015, %v1115
        %v1693 = vmul.f32 %v1016, %v1116
        %v1694 = vmul.f32 %v1016, %v1117
        %v1695 = vmul.f32 %v1016, %v1118
        %v1696 = vmul.f32 %v1016, %v1119
        %v1697 = vmul.f32 %v1016, %v1120
        %v1698 = vmul.f32 %v1016, %v1121
        %v1699 = vmul.f32 %v1016, %v1122
        %v1700 = vmul.f32 %v1016, %v1123
        %v1701 = vmul.f32 %v1017, %v1124
        %v1702 = vmul.f32 %v1017, %v1125
        %v1703 = vmul.f32 %v1017, %v1126
        %v1704 = vmul.f32 %v1017, %v1127
        %v1705 = vmul.f32 %v1017, %v1128
        %v1706 = vmul.f32 %v1017, %v1129
        %v1707 = vmul.f32 %v1017, %v1130
        %v1708 = vmul.f32 %v1017, %v1131
        %v1709 = vmul.f32 %v1018, %v1132
        %v1710 = vmul.f32 %v1018, %v1133
        %v1711 = vmul.f32 %v1018, %v1134
        %v1712 = vmul.f32 %v1018, %v1135
        %v1713 = vmul.f32 %v1018, %v1136
        %v1714 = vmul.f32 %v1018, %v1137
        %v1715 = vmul.f32 %v1018, %v1138
        %v1716 = vmul.f32 %v1018, %v1139
        %v1717 = vmul.f32 %v1019, %v1140
        %v1718 = vmul.f32 %v1019, %v1141
        %v1719 = vmul.f32 %v1019, %v1142
        %v1720 = vmul.f32 %v1019, %v1143
        %v1721 = vmul.f32 %v1019, %v1144
        %v1722 = vmul.f32 %v1019, %v1145
        %v1723 = vmul.f32 %v1019, %v1146
        %v1724 = vmul.f32 %v1019, %v1147
        %v1725 = vadd.f32 %v1597, %v1661
        %v1726 = vadd.f32 %v1598, %v1662
        %v1727 = vadd.f32 %v1599, %v1663
        %v1728 = vadd.f32 %v1600, %v1664
        %v1729 = vadd.f32 %v1601, %v1665
        %v1730 = vadd.f32 %v1602, %v1666
        %v1731 = vadd.f32 %v1603, %v1667
        %v1732 = vadd.f32 %v1604, %v1668
        %v1733 = vadd.f32 %v1605, %v1669
        %v1734 = vadd.f32 %v1606, %v1670
        %v1735 = vadd.f32 %v1607, %v1671
        %v1736 = vadd.f32 %v1608, %v1672
        %v1737 = vadd.f32 %v1609, %v1673
        %v1738 = vadd.f32 %v1610, %v1674
        %v1739 = vadd.f32 %v1611, %v1675
        %v1740 = vadd.f32 %v1612, %v1676
        %v1741 = vadd.f32 %v1613, %v1677
        %v1742 = vadd.f32 %v1614, %v1678
        %v1743 = vadd.f32 %v1615, %v1679
        %v1744 = vadd.f32 %v1616, %v1680
        %v1745 = vadd.f32 %v1617, %v1681
        %v1746 = vadd.f32 %v1618, %v1682
        %v1747 = vadd.f32 %v1619, %v1683
        %v1748 = vadd.f32 %v1620, %v1684
        %v1749 = vadd.f32 %v1621, %v1685
        %v1750 = vadd.f32 %v1622, %v1686
        %v1751 = vadd.f32 %v1623, %v1687
        %v1752 = vadd.f32 %v1624, %v1688
        %v1753 = vadd.f32 %v1625, %v1689
        %v1754 = vadd.f32 %v1626, %v1690
        %v1755 = vadd.f32 %v1627, %v1691
        %v1756 = vadd.f32 %v1628, %v1692
        %v1757 = vadd.f32 %v1629, %v1693
        %v1758 = vadd.f32 %v1630, %v1694
        %v1759 = vadd.f32 %v1631, %v1695
        %v1760 = vadd.f32 %v1632, %v1696
        %v1761 = vadd.f32 %v1633, %v1697
        %v1762 = vadd.f32 %v1634, %v1698
        %v1763 = vadd.f32 %v1635, %v1699
        %v1764 = vadd.f32 %v1636, %v1700
        %v1765 = vadd.f32 %v1637, %v1701
        %v1766 = vadd.f32 %v1638, %v1702
        %v1767 = vadd.f32 %v1639, %v1703
        %v1768 = vadd.f32 %v1640, %v1704
        %v1769 = vadd.f32 %v1641, %v1705
        %v1770 = vadd.f32 %v1642, %v1706
        %v1771 = vadd.f32 %v1643, %v1707
        %v1772 = vadd.f32 %v1644, %v1708
        %v1773 = vadd.f32 %v1645, %v1709
        %v1774 = vadd.f32 %v1646, %v1710
        %v1775 = vadd.f32 %v1647, %v1711
        %v1776 = vadd.f32 %v1648, %v1712
        %v1777 = vadd.f32 %v1649, %v1713
        %v1778 = vadd.f32 %v1650, %v1714
        %v1779 = vadd.f32 %v1651, %v1715
        %v1780 = vadd.f32 %v1652, %v1716
        %v1781 = vadd.f32 %v1653, %v1717
        %v1782 = vadd.f32 %v1654, %v1718
        %v1783 = vadd.f32 %v1655, %v1719
        %v1784 = vadd.f32 %v1656, %v1720
        %v1785 = vadd.f32 %v1657, %v1721
        %v1786 = vadd.f32 %v1658, %v1722
        %v1787 = vadd.f32 %v1659, %v1723
        %v1788 = vadd.f32 %v1660, %v1724
        %v1789 = vsel %vm1468, %v1725, 0.0
        %v1790 = vsel %vm1468, %v1733, 0.0
        %v1791 = vadd.f32 %v1789, %v1790
        %v1792 = vsel %vm1468, %v1741, 0.0
        %v1793 = vadd.f32 %v1791, %v1792
        %v1794 = vsel %vm1468, %v1749, 0.0
        %v1795 = vadd.f32 %v1793, %v1794
        %v1796 = vsel %vm1468, %v1757, 0.0
        %v1797 = vadd.f32 %v1795, %v1796
        %v1798 = vsel %vm1468, %v1765, 0.0
        %v1799 = vadd.f32 %v1797, %v1798
        %v1800 = vsel %vm1468, %v1773, 0.0
        %v1801 = vadd.f32 %v1799, %v1800
        %v1802 = vsel %vm1468, %v1781, 0.0
        %v1803 = vadd.f32 %v1801, %v1802
        %v1804 = vsel %vm1468, %v1726, 0.0
        %v1805 = vsel %vm1468, %v1734, 0.0
        %v1806 = vadd.f32 %v1804, %v1805
        %v1807 = vsel %vm1468, %v1742, 0.0
        %v1808 = vadd.f32 %v1806, %v1807
        %v1809 = vsel %vm1468, %v1750, 0.0
        %v1810 = vadd.f32 %v1808, %v1809
        %v1811 = vsel %vm1468, %v1758, 0.0
        %v1812 = vadd.f32 %v1810, %v1811
        %v1813 = vsel %vm1468, %v1766, 0.0
        %v1814 = vadd.f32 %v1812, %v1813
        %v1815 = vsel %vm1468, %v1774, 0.0
        %v1816 = vadd.f32 %v1814, %v1815
        %v1817 = vsel %vm1468, %v1782, 0.0
        %v1818 = vadd.f32 %v1816, %v1817
        %v1819 = vsel %vm1468, %v1727, 0.0
        %v1820 = vsel %vm1468, %v1735, 0.0
        %v1821 = vadd.f32 %v1819, %v1820
        %v1822 = vsel %vm1468, %v1743, 0.0
        %v1823 = vadd.f32 %v1821, %v1822
        %v1824 = vsel %vm1468, %v1751, 0.0
        %v1825 = vadd.f32 %v1823, %v1824
        %v1826 = vsel %vm1468, %v1759, 0.0
        %v1827 = vadd.f32 %v1825, %v1826
        %v1828 = vsel %vm1468, %v1767, 0.0
        %v1829 = vadd.f32 %v1827, %v1828
        %v1830 = vsel %vm1468, %v1775, 0.0
        %v1831 = vadd.f32 %v1829, %v1830
        %v1832 = vsel %vm1468, %v1783, 0.0
        %v1833 = vadd.f32 %v1831, %v1832
        %v1834 = vsel %vm1468, %v1728, 0.0
        %v1835 = vsel %vm1468, %v1736, 0.0
        %v1836 = vadd.f32 %v1834, %v1835
        %v1837 = vsel %vm1468, %v1744, 0.0
        %v1838 = vadd.f32 %v1836, %v1837
        %v1839 = vsel %vm1468, %v1752, 0.0
        %v1840 = vadd.f32 %v1838, %v1839
        %v1841 = vsel %vm1468, %v1760, 0.0
        %v1842 = vadd.f32 %v1840, %v1841
        %v1843 = vsel %vm1468, %v1768, 0.0
        %v1844 = vadd.f32 %v1842, %v1843
        %v1845 = vsel %vm1468, %v1776, 0.0
        %v1846 = vadd.f32 %v1844, %v1845
        %v1847 = vsel %vm1468, %v1784, 0.0
        %v1848 = vadd.f32 %v1846, %v1847
        %v1849 = vsel %vm1468, %v1729, 0.0
        %v1850 = vsel %vm1468, %v1737, 0.0
        %v1851 = vadd.f32 %v1849, %v1850
        %v1852 = vsel %vm1468, %v1745, 0.0
        %v1853 = vadd.f32 %v1851, %v1852
        %v1854 = vsel %vm1468, %v1753, 0.0
        %v1855 = vadd.f32 %v1853, %v1854
        %v1856 = vsel %vm1468, %v1761, 0.0
        %v1857 = vadd.f32 %v1855, %v1856
        %v1858 = vsel %vm1468, %v1769, 0.0
        %v1859 = vadd.f32 %v1857, %v1858
        %v1860 = vsel %vm1468, %v1777, 0.0
        %v1861 = vadd.f32 %v1859, %v1860
        %v1862 = vsel %vm1468, %v1785, 0.0
        %v1863 = vadd.f32 %v1861, %v1862
        %v1864 = vsel %vm1468, %v1730, 0.0
        %v1865 = vsel %vm1468, %v1738, 0.0
        %v1866 = vadd.f32 %v1864, %v1865
        %v1867 = vsel %vm1468, %v1746, 0.0
        %v1868 = vadd.f32 %v1866, %v1867
        %v1869 = vsel %vm1468, %v1754, 0.0
        %v1870 = vadd.f32 %v1868, %v1869
        %v1871 = vsel %vm1468, %v1762, 0.0
        %v1872 = vadd.f32 %v1870, %v1871
        %v1873 = vsel %vm1468, %v1770, 0.0
        %v1874 = vadd.f32 %v1872, %v1873
        %v1875 = vsel %vm1468, %v1778, 0.0
        %v1876 = vadd.f32 %v1874, %v1875
        %v1877 = vsel %vm1468, %v1786, 0.0
        %v1878 = vadd.f32 %v1876, %v1877
        %v1879 = vsel %vm1468, %v1731, 0.0
        %v1880 = vsel %vm1468, %v1739, 0.0
        %v1881 = vadd.f32 %v1879, %v1880
        %v1882 = vsel %vm1468, %v1747, 0.0
        %v1883 = vadd.f32 %v1881, %v1882
        %v1884 = vsel %vm1468, %v1755, 0.0
        %v1885 = vadd.f32 %v1883, %v1884
        %v1886 = vsel %vm1468, %v1763, 0.0
        %v1887 = vadd.f32 %v1885, %v1886
        %v1888 = vsel %vm1468, %v1771, 0.0
        %v1889 = vadd.f32 %v1887, %v1888
        %v1890 = vsel %vm1468, %v1779, 0.0
        %v1891 = vadd.f32 %v1889, %v1890
        %v1892 = vsel %vm1468, %v1787, 0.0
        %v1893 = vadd.f32 %v1891, %v1892
        %v1894 = vsel %vm1468, %v1732, 0.0
        %v1895 = vsel %vm1468, %v1740, 0.0
        %v1896 = vadd.f32 %v1894, %v1895
        %v1897 = vsel %vm1468, %v1748, 0.0
        %v1898 = vadd.f32 %v1896, %v1897
        %v1899 = vsel %vm1468, %v1756, 0.0
        %v1900 = vadd.f32 %v1898, %v1899
        %v1901 = vsel %vm1468, %v1764, 0.0
        %v1902 = vadd.f32 %v1900, %v1901
        %v1903 = vsel %vm1468, %v1772, 0.0
        %v1904 = vadd.f32 %v1902, %v1903
        %v1905 = vsel %vm1468, %v1780, 0.0
        %v1906 = vadd.f32 %v1904, %v1905
        %v1907 = vsel %vm1468, %v1788, 0.0
        %v1908 = vadd.f32 %v1906, %v1907
        %v1909 = vadd.f32 %v1803, 0.0
        %v1910 = vadd.f32 %v1818, 0.0
        %v1911 = vadd.f32 %v1833, 0.0
        %v1912 = vadd.f32 %v1848, 0.0
        %v1913 = vadd.f32 %v1863, 0.0
        %v1914 = vadd.f32 %v1878, 0.0
        %v1915 = vadd.f32 %v1893, 0.0
        %v1916 = vadd.f32 %v1908, 0.0
        %v1917 = vcombine.low %v1589, %v1591
        %v1918 = vcombine.high %v1589, %v1591
        %v1920 = vunpack.c.l.s4 1983009808
        %v1921 = vunpack.c.0.s8 %v1920
        %v1922 = vlaneseq
        %v1923 = vshrl.u32 %v1922, 7
        %v1924 = vsub.s32 %v1921, %v1923
        %v1925 = vrot.slane %v1917, %v1924
        %v1927 = vunpack.c.l.s4 1983009808
        %v1928 = vunpack.c.0.s8 %v1927
        %v1929 = vlaneseq
        %v1930 = vshrl.u32 %v1929, 7
        %v1931 = vsub.s32 %v1928, %v1930
        %v1932 = vrot.slane %v1918, %v1931
        %v1933 = vcombine.low %v1590, %v1592
        %v1934 = vcombine.high %v1590, %v1592
        %v1936 = vunpack.c.l.s4 1983009808
        %v1937 = vunpack.c.0.s8 %v1936
        %v1938 = vlaneseq
        %v1939 = vshrl.u32 %v1938, 7
        %v1940 = vsub.s32 %v1937, %v1939
        %v1941 = vrot.slane %v1933, %v1940
        %v1943 = vunpack.c.l.s4 1983009808
        %v1944 = vunpack.c.0.s8 %v1943
        %v1945 = vlaneseq
        %v1946 = vshrl.u32 %v1945, 7
        %v1947 = vsub.s32 %v1944, %v1946
        %v1948 = vrot.slane %v1934, %v1947
        %v1949 = vcombine.low %v1593, %v1595
        %v1950 = vcombine.high %v1593, %v1595
        %v1952 = vunpack.c.l.s4 1983009808
        %v1953 = vunpack.c.0.s8 %v1952
        %v1954 = vlaneseq
        %v1955 = vshrl.u32 %v1954, 7
        %v1956 = vsub.s32 %v1953, %v1955
        %v1957 = vrot.slane %v1949, %v1956
        %v1959 = vunpack.c.l.s4 1983009808
        %v1960 = vunpack.c.0.s8 %v1959
        %v1961 = vlaneseq
        %v1962 = vshrl.u32 %v1961, 7
        %v1963 = vsub.s32 %v1960, %v1962
        %v1964 = vrot.slane %v1950, %v1963
        %v1965 = vcombine.low %v1594, %v1596
        %v1966 = vcombine.high %v1594, %v1596
        %v1968 = vunpack.c.l.s4 1983009808
        %v1969 = vunpack.c.0.s8 %v1968
        %v1970 = vlaneseq
        %v1971 = vshrl.u32 %v1970, 7
        %v1972 = vsub.s32 %v1969, %v1971
        %v1973 = vrot.slane %v1965, %v1972
        %v1975 = vunpack.c.l.s4 1983009808
        %v1976 = vunpack.c.0.s8 %v1975
        %v1977 = vlaneseq
        %v1978 = vshrl.u32 %v1977, 7
        %v1979 = vsub.s32 %v1976, %v1978
        %v1980 = vrot.slane %v1966, %v1979
        %v1981 = vcombine.low %v1925, %v1941
        %v1982 = vcombine.high %v1925, %v1941
        %v1984 = vunpack.c.l.s4 1934713408
        %v1985 = vunpack.c.0.s8 %v1984
        %v1986 = vlaneseq
        %v1987 = vshrl.u32 %v1986, 7
        %v1988 = vsub.s32 %v1985, %v1987
        %v1989 = vrot.slane %v1981, %v1988
        %v1991 = vunpack.c.l.s4 1934713408
        %v1992 = vunpack.c.0.s8 %v1991
        %v1993 = vlaneseq
        %v1994 = vshrl.u32 %v1993, 7
        %v1995 = vsub.s32 %v1992, %v1994
        %v1996 = vrot.slane %v1982, %v1995
        %v1997 = vcombine.low %v1932, %v1948
        %v1998 = vcombine.high %v1932, %v1948
        %v2000 = vunpack.c.l.s4 1934713408
        %v2001 = vunpack.c.0.s8 %v2000
        %v2002 = vlaneseq
        %v2003 = vshrl.u32 %v2002, 7
        %v2004 = vsub.s32 %v2001, %v2003
        %v2005 = vrot.slane %v1997, %v2004
        %v2007 = vunpack.c.l.s4 1934713408
        %v2008 = vunpack.c.0.s8 %v2007
        %v2009 = vlaneseq
        %v2010 = vshrl.u32 %v2009, 7
        %v2011 = vsub.s32 %v2008, %v2010
        %v2012 = vrot.slane %v1998, %v2011
        %v2013 = vcombine.low %v1957, %v1973
        %v2014 = vcombine.high %v1957, %v1973
        %v2016 = vunpack.c.l.s4 1934713408
        %v2017 = vunpack.c.0.s8 %v2016
        %v2018 = vlaneseq
        %v2019 = vshrl.u32 %v2018, 7
        %v2020 = vsub.s32 %v2017, %v2019
        %v2021 = vrot.slane %v2013, %v2020
        %v2023 = vunpack.c.l.s4 1934713408
        %v2024 = vunpack.c.0.s8 %v2023
        %v2025 = vlaneseq
        %v2026 = vshrl.u32 %v2025, 7
        %v2027 = vsub.s32 %v2024, %v2026
        %v2028 = vrot.slane %v2014, %v2027
        %v2029 = vcombine.low %v1964, %v1980
        %v2030 = vcombine.high %v1964, %v1980
        %v2032 = vunpack.c.l.s4 1934713408
        %v2033 = vunpack.c.0.s8 %v2032
        %v2034 = vlaneseq
        %v2035 = vshrl.u32 %v2034, 7
        %v2036 = vsub.s32 %v2033, %v2035
        %v2037 = vrot.slane %v2029, %v2036
        %v2039 = vunpack.c.l.s4 1934713408
        %v2040 = vunpack.c.0.s8 %v2039
        %v2041 = vlaneseq
        %v2042 = vshrl.u32 %v2041, 7
        %v2043 = vsub.s32 %v2040, %v2042
        %v2044 = vrot.slane %v2030, %v2043
        %v2045 = vcombine.low %v1989, %v2021
        %v2046 = vcombine.high %v1989, %v2021
        %v2047 = vcombine.low %v1996, %v2028
        %v2048 = vcombine.high %v1996, %v2028
        %v2049 = vcombine.low %v2005, %v2037
        %v2050 = vcombine.high %v2005, %v2037
        %v2051 = vcombine.low %v2012, %v2044
        %v2052 = vcombine.high %v2012, %v2044
        %v2053 = vcombine.low %v1909, %v1911
        %v2054 = vcombine.high %v1909, %v1911
        %v2056 = vunpack.c.l.s4 1983009808
        %v2057 = vunpack.c.0.s8 %v2056
        %v2058 = vlaneseq
        %v2059 = vshrl.u32 %v2058, 7
        %v2060 = vsub.s32 %v2057, %v2059
        %v2061 = vrot.slane %v2053, %v2060
        %v2063 = vunpack.c.l.s4 1983009808
        %v2064 = vunpack.c.0.s8 %v2063
        %v2065 = vlaneseq
        %v2066 = vshrl.u32 %v2065, 7
        %v2067 = vsub.s32 %v2064, %v2066
        %v2068 = vrot.slane %v2054, %v2067
        %v2069 = vcombine.low %v1910, %v1912
        %v2070 = vcombine.high %v1910, %v1912
        %v2072 = vunpack.c.l.s4 1983009808
        %v2073 = vunpack.c.0.s8 %v2072
        %v2074 = vlaneseq
        %v2075 = vshrl.u32 %v2074, 7
        %v2076 = vsub.s32 %v2073, %v2075
        %v2077 = vrot.slane %v2069, %v2076
        %v2079 = vunpack.c.l.s4 1983009808
        %v2080 = vunpack.c.0.s8 %v2079
        %v2081 = vlaneseq
        %v2082 = vshrl.u32 %v2081, 7
        %v2083 = vsub.s32 %v2080, %v2082
        %v2084 = vrot.slane %v2070, %v2083
        %v2085 = vcombine.low %v1913, %v1915
        %v2086 = vcombine.high %v1913, %v1915
        %v2088 = vunpack.c.l.s4 1983009808
        %v2089 = vunpack.c.0.s8 %v2088
        %v2090 = vlaneseq
        %v2091 = vshrl.u32 %v2090, 7
        %v2092 = vsub.s32 %v2089, %v2091
        %v2093 = vrot.slane %v2085, %v2092
        %v2095 = vunpack.c.l.s4 1983009808
        %v2096 = vunpack.c.0.s8 %v2095
        %v2097 = vlaneseq
        %v2098 = vshrl.u32 %v2097, 7
        %v2099 = vsub.s32 %v2096, %v2098
        %v2100 = vrot.slane %v2086, %v2099
        %v2101 = vcombine.low %v1914, %v1916
        %v2102 = vcombine.high %v1914, %v1916
        %v2104 = vunpack.c.l.s4 1983009808
        %v2105 = vunpack.c.0.s8 %v2104
        %v2106 = vlaneseq
        %v2107 = vshrl.u32 %v2106, 7
        %v2108 = vsub.s32 %v2105, %v2107
        %v2109 = vrot.slane %v2101, %v2108
        %v2111 = vunpack.c.l.s4 1983009808
        %v2112 = vunpack.c.0.s8 %v2111
        %v2113 = vlaneseq
        %v2114 = vshrl.u32 %v2113, 7
        %v2115 = vsub.s32 %v2112, %v2114
        %v2116 = vrot.slane %v2102, %v2115
        %v2117 = vcombine.low %v2061, %v2077
        %v2118 = vcombine.high %v2061, %v2077
        %v2120 = vunpack.c.l.s4 1934713408
        %v2121 = vunpack.c.0.s8 %v2120
        %v2122 = vlaneseq
        %v2123 = vshrl.u32 %v2122, 7
        %v2124 = vsub.s32 %v2121, %v2123
        %v2125 = vrot.slane %v2117, %v2124
        %v2127 = vunpack.c.l.s4 1934713408
        %v2128 = vunpack.c.0.s8 %v2127
        %v2129 = vlaneseq
        %v2130 = vshrl.u32 %v2129, 7
        %v2131 = vsub.s32 %v2128, %v2130
        %v2132 = vrot.slane %v2118, %v2131
        %v2133 = vcombine.low %v2068, %v2084
        %v2134 = vcombine.high %v2068, %v2084
        %v2136 = vunpack.c.l.s4 1934713408
        %v2137 = vunpack.c.0.s8 %v2136
        %v2138 = vlaneseq
        %v2139 = vshrl.u32 %v2138, 7
        %v2140 = vsub.s32 %v2137, %v2139
        %v2141 = vrot.slane %v2133, %v2140
        %v2143 = vunpack.c.l.s4 1934713408
        %v2144 = vunpack.c.0.s8 %v2143
        %v2145 = vlaneseq
        %v2146 = vshrl.u32 %v2145, 7
        %v2147 = vsub.s32 %v2144, %v2146
        %v2148 = vrot.slane %v2134, %v2147
        %v2149 = vcombine.low %v2093, %v2109
        %v2150 = vcombine.high %v2093, %v2109
        %v2152 = vunpack.c.l.s4 1934713408
        %v2153 = vunpack.c.0.s8 %v2152
        %v2154 = vlaneseq
        %v2155 = vshrl.u32 %v2154, 7
        %v2156 = vsub.s32 %v2153, %v2155
        %v2157 = vrot.slane %v2149, %v2156
        %v2159 = vunpack.c.l.s4 1934713408
        %v2160 = vunpack.c.0.s8 %v2159
        %v2161 = vlaneseq
        %v2162 = vshrl.u32 %v2161, 7
        %v2163 = vsub.s32 %v2160, %v2162
        %v2164 = vrot.slane %v2150, %v2163
        %v2165 = vcombine.low %v2100, %v2116
        %v2166 = vcombine.high %v2100, %v2116
        %v2168 = vunpack.c.l.s4 1934713408
        %v2169 = vunpack.c.0.s8 %v2168
        %v2170 = vlaneseq
        %v2171 = vshrl.u32 %v2170, 7
        %v2172 = vsub.s32 %v2169, %v2171
        %v2173 = vrot.slane %v2165, %v2172
        %v2175 = vunpack.c.l.s4 1934713408
        %v2176 = vunpack.c.0.s8 %v2175
        %v2177 = vlaneseq
        %v2178 = vshrl.u32 %v2177, 7
        %v2179 = vsub.s32 %v2176, %v2178
        %v2180 = vrot.slane %v2166, %v2179
        %v2181 = vcombine.low %v2125, %v2157
        %v2182 = vcombine.high %v2125, %v2157
        %v2183 = vcombine.low %v2132, %v2164
        %v2184 = vcombine.high %v2132, %v2164
        %v2185 = vcombine.low %v2141, %v2173
        %v2186 = vcombine.high %v2141, %v2173
        %v2187 = vcombine.low %v2148, %v2180
        %v2188 = vcombine.high %v2148, %v2180
        %2197 = vrot.lane.b32.xlu0 %v2181, 4
        %v2198 = vpop.permute.xlu0 %2197
        %2199 = vrot.lane.b32.xlu0 %v2182, 4
        %v2200 = vpop.permute.xlu0 %2199
        %2201 = vrot.lane.b32.xlu0 %v2183, 4
        %v2202 = vpop.permute.xlu0 %2201
        %2203 = vrot.lane.b32.xlu0 %v2184, 4
        %v2204 = vpop.permute.xlu0 %2203
        %2205 = vrot.lane.b32.xlu0 %v2185, 4
        %v2206 = vpop.permute.xlu0 %2205
        %2207 = vrot.lane.b32.xlu0 %v2186, 4
        %v2208 = vpop.permute.xlu0 %2207
        %2209 = vrot.lane.b32.xlu0 %v2187, 4
        %v2210 = vpop.permute.xlu0 %2209
        %2211 = vrot.lane.b32.xlu0 %v2188, 4
        %v2212 = vpop.permute.xlu0 %2211
        %v2221 = vsel %vm1468, %v2045, %v2198
        %v2222 = vsel %vm1468, %v2046, %v2200
        %v2223 = vsel %vm1468, %v2047, %v2202
        %v2224 = vsel %vm1468, %v2048, %v2204
        %v2225 = vsel %vm1468, %v2049, %v2206
        %v2226 = vsel %vm1468, %v2050, %v2208
        %v2227 = vsel %vm1468, %v2051, %v2210
        %v2228 = vsel %vm1468, %v2052, %v2212
        %v2229 = vld [vmem:[%s8] sm:$0xf]
        %v2230 = vpack.c.bf16 %v2222, %v2221
        %v2231 = vpack.c.bf16 %v2224, %v2223
        %v2232 = vpack.c.bf16 %v2226, %v2225
        %v2233 = vpack.c.bf16 %v2228, %v2227
        %vm2234 = vcmask 64512
        %v2236 = vsel %vm2234, %v2230, 0
        %v2239 = vsel %vm2234, %v2231, 0
        %v2242 = vsel %vm2234, %v2232, 0
        %v2245 = vsel %vm2234, %v2233, 0
        %vm2247 = vcmask 1043456
        %v2249 = vsel %vm2247, %v2229, 0
        %2251 = vmatprep.subr.bf16.mxu0 0
        %2252 = vmatpush1.bf16.msra.mxu0 0
        %2253 = vmatprep.subr.bf16.mxu0 0
        %2254 = vmatpush1.bf16.msra.mxu0 0
        %2255 = vmatprep.subr.bf16.mxu0 0
        %2256 = vmatpush1.bf16.msra.mxu0 0
        %2257 = vmatprep.subr.bf16.mxu0 0
        %2258 = vmatpush1.bf16.msra.mxu0 0
        %2259 = vmatprep.subr.bf16.mxu0 0
        %2260 = vmatpush1.bf16.msra.mxu0 0
        %2261 = vmatprep.subr.bf16.mxu0 0
        %2262 = vmatpush1.bf16.msra.mxu0 0
        %2263 = vmatprep.subr.bf16.mxu0 0
        %2264 = vmatpush1.bf16.msra.mxu0 0
        %2265 = vmatprep.subr.bf16.mxu0 0
        %2266 = vmatpush1.bf16.msra.mxu0 %v2249
        %2267 = vmatprep.subr.bf16.mxu0 0
        %2268 = vmatpush2.bf16.msra.mxu0 0
        %2269 = vmatprep.subr.bf16.mxu0 0
        %2270 = vmatpush2.bf16.msra.mxu0 0
        %2271 = vmatprep.subr.bf16.mxu0 0
        %2272 = vmatpush2.bf16.msra.mxu0 0
        %2273 = vmatprep.subr.bf16.mxu0 0
        %2274 = vmatpush2.bf16.msra.mxu0 0
        %2275 = vmatprep.subr.bf16.mxu0 0
        %2276 = vmatpush2.bf16.msra.mxu0 0
        %2277 = vmatprep.subr.bf16.mxu0 0
        %2278 = vmatpush2.bf16.msra.mxu0 0
        %2279 = vmatprep.subr.bf16.mxu0 0
        %2280 = vmatpush2.bf16.msra.mxu0 0
        %2281 = vmatprep.subr.bf16.mxu0 0
        %2282 = vmatpush2.bf16.msra.mxu0 0
        %2283 = vmatprep.mubr.bf16.mxu0 0
        %2284 = vmatmul.mubr.bf16.gmra.mxu0 %v2236
        %v2285 = vpop.f32.mrf.mxu0
        %v2286 = vadd.f32 0.0, %v2285
        %v2287 = vpop.f32.mrf.mxu0
        %v2288 = vpop.f32.mrf.mxu0
        %v2289 = vadd.f32 0.0, %v2288
        %v2290 = vpop.f32.mrf.mxu0
        %2291 = vmatprep.mubr.bf16.mxu0 0
        %2292 = vmatmul.mubr.bf16.gmra.mxu0 %v2239
        %v2293 = vpop.f32.mrf.mxu0
        %v2294 = vadd.f32 0.0, %v2293
        %v2295 = vpop.f32.mrf.mxu0
        %v2296 = vpop.f32.mrf.mxu0
        %v2297 = vadd.f32 0.0, %v2296
        %v2298 = vpop.f32.mrf.mxu0
        %2299 = vmatprep.mubr.bf16.mxu0 0
        %2300 = vmatmul.mubr.bf16.gmra.mxu0 %v2242
        %v2301 = vpop.f32.mrf.mxu0
        %v2302 = vadd.f32 0.0, %v2301
        %v2303 = vpop.f32.mrf.mxu0
        %v2304 = vpop.f32.mrf.mxu0
        %v2305 = vadd.f32 0.0, %v2304
        %v2306 = vpop.f32.mrf.mxu0
        %2307 = vmatprep.mubr.bf16.mxu0 0
        %2308 = vmatmul.mubr.bf16.gmra.mxu0 %v2245
        %v2309 = vpop.f32.mrf.mxu0
        %v2310 = vadd.f32 0.0, %v2309
        %v2311 = vpop.f32.mrf.mxu0
        %v2312 = vpop.f32.mrf.mxu0
        %v2313 = vadd.f32 0.0, %v2312
        %v2314 = vpop.f32.mrf.mxu0
        %2315 = vdwg.mxu0
        %2316 = vxpose.xlu0.b32.start [1/16] %v2286, 128
        %2317 = vxpose.xlu0.b32.cont [2/16] %v2289, 128
        %2318 = vxpose.xlu0.b32.cont [3/16] %v2294, 128
        %2319 = vxpose.xlu0.b32.cont [4/16] %v2297, 128
        %2320 = vxpose.xlu0.b32.cont [5/16] %v2302, 128
        %2321 = vxpose.xlu0.b32.cont [6/16] %v2305, 128
        %2322 = vxpose.xlu0.b32.cont [7/16] %v2310, 128
        %2323 = vxpose.xlu0.b32.cont [8/16] %v2313, 128
        %2324 = vxpose.xlu0.b32.cont [9/16] 0.0, 128
        %2325 = vxpose.xlu0.b32.cont [10/16] 0.0, 128
        %2326 = vxpose.xlu0.b32.cont [11/16] 0.0, 128
        %2327 = vxpose.xlu0.b32.cont [12/16] 0.0, 128
        %2328 = vxpose.xlu0.b32.cont [13/16] 0.0, 128
        %2329 = vxpose.xlu0.b32.cont [14/16] 0.0, 128
        %2330 = vxpose.xlu0.b32.cont [15/16] 0.0, 128
        %2331 = vxpose.xlu0.b32.end [16/16] 0.0, 128
        %v2332 = vpop.trf.xlu0
        %v2333 = vpop.trf.xlu0
        %v2334 = vpop.trf.xlu0
        %v2335 = vpop.trf.xlu0
        %v2336 = vpop.trf.xlu0
        %v2337 = vpop.trf.xlu0
        %v2338 = vpop.trf.xlu0
        %v2339 = vpop.trf.xlu0
        %v2340 = vpop.trf.xlu0
        %v2341 = vpop.trf.xlu0
        %v2342 = vpop.trf.xlu0
        %v2343 = vpop.trf.xlu0
        %v2344 = vpop.trf.xlu0
        %v2345 = vpop.trf.xlu0
        %v2346 = vpop.trf.xlu0
        %v2347 = vpop.trf.xlu0
        %v2348 = vld [vmem:[%s493] sm:$0xf]
        %v2349 = vld [vmem:[%s493 + $0x4] sm:$0xf]
        %v2350 = vld [vmem:[%s493 + $0x8] sm:$0xf]
        %v2351 = vld [vmem:[%s493 + $0xc] sm:$0xf]
        %v2352 = vld [vmem:[%s493 + $0x10] sm:$0xf]
        %v2353 = vld [vmem:[%s493 + $0x14] sm:$0xf]
        %v2354 = vld [vmem:[%s493 + $0x18] sm:$0xf]
        %v2355 = vld [vmem:[%s493 + $0x1c] sm:$0xf]
        %v2356 = vpack.c.bf16 %v2333, %v2332
        %v2365 = vunpack.c.l.b16 %v2348
        %v2366 = vunpack.c.l.b16 %v2349
        %v2367 = vunpack.c.l.b16 %v2350
        %v2368 = vunpack.c.l.b16 %v2351
        %v2369 = vunpack.c.l.b16 %v2352
        %v2370 = vunpack.c.l.b16 %v2353
        %v2371 = vunpack.c.l.b16 %v2354
        %v2372 = vunpack.c.l.b16 %v2355
        %v2373 = vpack.c.b16 %v2366, %v2365
        %v2374 = vpack.c.b16 %v2368, %v2367
        %v2375 = vpack.c.b16 %v2370, %v2369
        %v2376 = vpack.c.b16 %v2372, %v2371
        %v2382 = vsel %vm549, %v2356, 0
        %2384 = vmatprep.subr.bf16.mxu0 0
        %2385 = vmatpush1.bf16.msra.mxu0 0
        %2386 = vmatprep.subr.bf16.mxu0 0
        %2387 = vmatpush1.bf16.msra.mxu0 0
        %2388 = vmatprep.subr.bf16.mxu0 0
        %2389 = vmatpush1.bf16.msra.mxu0 0
        %2390 = vmatprep.subr.bf16.mxu0 0
        %2391 = vmatpush1.bf16.msra.mxu0 0
        %2392 = vmatprep.subr.bf16.mxu0 0
        %2393 = vmatpush1.bf16.msra.mxu0 %v2376
        %2394 = vmatprep.subr.bf16.mxu0 0
        %2395 = vmatpush1.bf16.msra.mxu0 %v2375
        %2396 = vmatprep.subr.bf16.mxu0 0
        %2397 = vmatpush1.bf16.msra.mxu0 %v2374
        %2398 = vmatprep.subr.bf16.mxu0 0
        %2399 = vmatpush1.bf16.msra.mxu0 %v2373
        %2400 = vmatprep.subr.bf16.mxu0 0
        %2401 = vmatpush2.bf16.msra.mxu0 0
        %2402 = vmatprep.subr.bf16.mxu0 0
        %2403 = vmatpush2.bf16.msra.mxu0 0
        %2404 = vmatprep.subr.bf16.mxu0 0
        %2405 = vmatpush2.bf16.msra.mxu0 0
        %2406 = vmatprep.subr.bf16.mxu0 0
        %2407 = vmatpush2.bf16.msra.mxu0 0
        %2408 = vmatprep.subr.bf16.mxu0 0
        %2409 = vmatpush2.bf16.msra.mxu0 0
        %2410 = vmatprep.subr.bf16.mxu0 0
        %2411 = vmatpush2.bf16.msra.mxu0 0
        %2412 = vmatprep.subr.bf16.mxu0 0
        %2413 = vmatpush2.bf16.msra.mxu0 0
        %2414 = vmatprep.subr.bf16.mxu0 0
        %2415 = vmatpush2.bf16.msra.mxu0 0
        %2416 = vmatprep.mubr.bf16.mxu0 0
        %2417 = vmatmul.mubr.bf16.gmra.mxu0 %v2382
        %v2418 = vpop.f32.mrf.mxu0
        %v2419 = vadd.f32 0.0, %v2418
        %v2420 = vpop.f32.mrf.mxu0
        %v2421 = vpop.f32.mrf.mxu0
        %v2422 = vadd.f32 0.0, %v2421
        %v2423 = vpop.f32.mrf.mxu0
        %2424 = vdwg.mxu0
        %v2425 = vld [vmem:[%s9] sm:$0xf]
        %v2426 = vld [vmem:[%s9 + $0x4] sm:$0xf]
        %v2427 = vadd.f32 %v514, %v2419
        %v2428 = vadd.f32 %v515, %v2422
        %v2429 = vpack.c.bf16 %v2428, %v2427
        %v2432 = vunpack.c.l.b16 %v2425
        %v2433 = vunpack.c.l.b16 %v2426
        %v2434 = vpack.c.b16 %v2433, %v2432
        %v2436 = vsel %vm638, %v2434, 0
        %2438 = vmatprep.subr.bf16.mxu0 0
        %2439 = vmatpush1.bf16.msra.mxu0 0
        %2440 = vmatprep.subr.bf16.mxu0 0
        %2441 = vmatpush1.bf16.msra.mxu0 0
        %2442 = vmatprep.subr.bf16.mxu0 0
        %2443 = vmatpush1.bf16.msra.mxu0 0
        %2444 = vmatprep.subr.bf16.mxu0 0
        %2445 = vmatpush1.bf16.msra.mxu0 0
        %2446 = vmatprep.subr.bf16.mxu0 0
        %2447 = vmatpush1.bf16.msra.mxu0 0
        %2448 = vmatprep.subr.bf16.mxu0 0
        %2449 = vmatpush1.bf16.msra.mxu0 0
        %2450 = vmatprep.subr.bf16.mxu0 0
        %2451 = vmatpush1.bf16.msra.mxu0 0
        %2452 = vmatprep.subr.bf16.mxu0 0
        %2453 = vmatpush1.bf16.msra.mxu0 %v2429
        %2454 = vmatprep.subr.bf16.mxu0 0
        %2455 = vmatpush2.bf16.msra.mxu0 0
        %2456 = vmatprep.subr.bf16.mxu0 0
        %2457 = vmatpush2.bf16.msra.mxu0 0
        %2458 = vmatprep.subr.bf16.mxu0 0
        %2459 = vmatpush2.bf16.msra.mxu0 0
        %2460 = vmatprep.subr.bf16.mxu0 0
        %2461 = vmatpush2.bf16.msra.mxu0 0
        %2462 = vmatprep.subr.bf16.mxu0 0
        %2463 = vmatpush2.bf16.msra.mxu0 0
        %2464 = vmatprep.subr.bf16.mxu0 0
        %2465 = vmatpush2.bf16.msra.mxu0 0
        %2466 = vmatprep.subr.bf16.mxu0 0
        %2467 = vmatpush2.bf16.msra.mxu0 0
        %2468 = vmatprep.subr.bf16.mxu0 0
        %2469 = vmatpush2.bf16.msra.mxu0 0
        %2470 = vmatprep.mubr.bf16.mxu0 0
        %2471 = vmatmul.mubr.bf16.gmra.mxu0 %v2436
        %v2472 = vpop.f32.mrf.mxu0
        %v2473 = vadd.f32 0.0, %v2472
        %v2474 = vpop.f32.mrf.mxu0
        %v2475 = vpop.f32.mrf.mxu0
        %v2476 = vadd.f32 0.0, %v2475
        %v2477 = vpop.f32.mrf.mxu0
        %2478 = vdwg.mxu0
        %v2479 = vsub.f32 %v2427, %v2473
        %v2480 = vsub.f32 %v2428, %v2476
        %v2481 = vld [vmem:[%s498] sm:$0xf]
        %v2482 = vld [vmem:[%s498 + $0x4] sm:$0xf]
        %v2483 = vld [vmem:[%s498 + $0x8] sm:$0xf]
        %v2484 = vld [vmem:[%s498 + $0xc] sm:$0xf]
        %v2485 = vld [vmem:[%s498 + $0x10] sm:$0xf]
        %v2486 = vld [vmem:[%s498 + $0x14] sm:$0xf]
        %v2487 = vld [vmem:[%s498 + $0x18] sm:$0xf]
        %v2488 = vld [vmem:[%s498 + $0x1c] sm:$0xf]
        %v2489 = vpack.c.bf16 %v2480, %v2479
        %v2498 = vunpack.c.l.b16 %v2481
        %v2499 = vunpack.c.l.b16 %v2482
        %v2500 = vunpack.c.l.b16 %v2483
        %v2501 = vunpack.c.l.b16 %v2484
        %v2502 = vunpack.c.l.b16 %v2485
        %v2503 = vunpack.c.l.b16 %v2486
        %v2504 = vunpack.c.l.b16 %v2487
        %v2505 = vunpack.c.l.b16 %v2488
        %v2506 = vpack.c.b16 %v2499, %v2498
        %v2507 = vpack.c.b16 %v2501, %v2500
        %v2508 = vpack.c.b16 %v2503, %v2502
        %v2509 = vpack.c.b16 %v2505, %v2504
        %v2515 = vsel %vm549, %v2489, 0
        %2517 = vmatprep.subr.bf16.mxu0 0
        %2518 = vmatpush1.bf16.msra.mxu0 0
        %2519 = vmatprep.subr.bf16.mxu0 0
        %2520 = vmatpush1.bf16.msra.mxu0 0
        %2521 = vmatprep.subr.bf16.mxu0 0
        %2522 = vmatpush1.bf16.msra.mxu0 0
        %2523 = vmatprep.subr.bf16.mxu0 0
        %2524 = vmatpush1.bf16.msra.mxu0 0
        %2525 = vmatprep.subr.bf16.mxu0 0
        %2526 = vmatpush1.bf16.msra.mxu0 %v2509
        %2527 = vmatprep.subr.bf16.mxu0 0
        %2528 = vmatpush1.bf16.msra.mxu0 %v2508
        %2529 = vmatprep.subr.bf16.mxu0 0
        %2530 = vmatpush1.bf16.msra.mxu0 %v2507
        %2531 = vmatprep.subr.bf16.mxu0 0
        %2532 = vmatpush1.bf16.msra.mxu0 %v2506
        %2533 = vmatprep.subr.bf16.mxu0 0
        %2534 = vmatpush2.bf16.msra.mxu0 0
        %2535 = vmatprep.subr.bf16.mxu0 0
        %2536 = vmatpush2.bf16.msra.mxu0 0
        %2537 = vmatprep.subr.bf16.mxu0 0
        %2538 = vmatpush2.bf16.msra.mxu0 0
        %2539 = vmatprep.subr.bf16.mxu0 0
        %2540 = vmatpush2.bf16.msra.mxu0 0
        %2541 = vmatprep.subr.bf16.mxu0 0
        %2542 = vmatpush2.bf16.msra.mxu0 0
        %2543 = vmatprep.subr.bf16.mxu0 0
        %2544 = vmatpush2.bf16.msra.mxu0 0
        %2545 = vmatprep.subr.bf16.mxu0 0
        %2546 = vmatpush2.bf16.msra.mxu0 0
        %2547 = vmatprep.subr.bf16.mxu0 0
        %2548 = vmatpush2.bf16.msra.mxu0 0
        %2549 = vmatprep.mubr.bf16.mxu0 0
        %2550 = vmatmul.mubr.bf16.gmra.mxu0 %v2515
        %v2551 = vpop.f32.mrf.mxu0
        %v2552 = vadd.f32 0.0, %v2551
        %v2553 = vpop.f32.mrf.mxu0
        %v2554 = vpop.f32.mrf.mxu0
        %v2555 = vadd.f32 0.0, %v2554
        %v2556 = vpop.f32.mrf.mxu0
        %2557 = vdwg.mxu0
        %v2558 = vmax.f32 %v2552, 0.0
        %v2559 = vmax.f32 %v2555, 0.0
        %v2560 = vld [vmem:[%s503] sm:$0xf]
        %v2561 = vld [vmem:[%s503 + $0x4] sm:$0xf]
        %v2562 = vld [vmem:[%s503 + $0x8] sm:$0xf]
        %v2563 = vld [vmem:[%s503 + $0xc] sm:$0xf]
        %v2564 = vld [vmem:[%s503 + $0x10] sm:$0xf]
        %v2565 = vld [vmem:[%s503 + $0x14] sm:$0xf]
        %v2566 = vld [vmem:[%s503 + $0x18] sm:$0xf]
        %v2567 = vld [vmem:[%s503 + $0x1c] sm:$0xf]
        %v2568 = vpack.c.bf16 %v2559, %v2558
        %v2577 = vunpack.c.l.b16 %v2560
        %v2578 = vunpack.c.l.b16 %v2561
        %v2579 = vunpack.c.l.b16 %v2562
        %v2580 = vunpack.c.l.b16 %v2563
        %v2581 = vunpack.c.l.b16 %v2564
        %v2582 = vunpack.c.l.b16 %v2565
        %v2583 = vunpack.c.l.b16 %v2566
        %v2584 = vunpack.c.l.b16 %v2567
        %v2585 = vpack.c.b16 %v2578, %v2577
        %v2586 = vpack.c.b16 %v2580, %v2579
        %v2587 = vpack.c.b16 %v2582, %v2581
        %v2588 = vpack.c.b16 %v2584, %v2583
        %v2594 = vsel %vm549, %v2568, 0
        %2596 = vmatprep.subr.bf16.mxu0 0
        %2597 = vmatpush1.bf16.msra.mxu0 0
        %2598 = vmatprep.subr.bf16.mxu0 0
        %2599 = vmatpush1.bf16.msra.mxu0 0
        %2600 = vmatprep.subr.bf16.mxu0 0
        %2601 = vmatpush1.bf16.msra.mxu0 0
        %2602 = vmatprep.subr.bf16.mxu0 0
        %2603 = vmatpush1.bf16.msra.mxu0 0
        %2604 = vmatprep.subr.bf16.mxu0 0
        %2605 = vmatpush1.bf16.msra.mxu0 %v2588
        %2606 = vmatprep.subr.bf16.mxu0 0
        %2607 = vmatpush1.bf16.msra.mxu0 %v2587
        %2608 = vmatprep.subr.bf16.mxu0 0
        %2609 = vmatpush1.bf16.msra.mxu0 %v2586
        %2610 = vmatprep.subr.bf16.mxu0 0
        %2611 = vmatpush1.bf16.msra.mxu0 %v2585
        %2612 = vmatprep.subr.bf16.mxu0 0
        %2613 = vmatpush2.bf16.msra.mxu0 0
        %2614 = vmatprep.subr.bf16.mxu0 0
        %2615 = vmatpush2.bf16.msra.mxu0 0
        %2616 = vmatprep.subr.bf16.mxu0 0
        %2617 = vmatpush2.bf16.msra.mxu0 0
        %2618 = vmatprep.subr.bf16.mxu0 0
        %2619 = vmatpush2.bf16.msra.mxu0 0
        %2620 = vmatprep.subr.bf16.mxu0 0
        %2621 = vmatpush2.bf16.msra.mxu0 0
        %2622 = vmatprep.subr.bf16.mxu0 0
        %2623 = vmatpush2.bf16.msra.mxu0 0
        %2624 = vmatprep.subr.bf16.mxu0 0
        %2625 = vmatpush2.bf16.msra.mxu0 0
        %2626 = vmatprep.subr.bf16.mxu0 0
        %2627 = vmatpush2.bf16.msra.mxu0 0
        %2628 = vmatprep.mubr.bf16.mxu0 0
        %2629 = vmatmul.mubr.bf16.gmra.mxu0 %v2594
        %v2630 = vpop.f32.mrf.mxu0
        %v2631 = vadd.f32 0.0, %v2630
        %v2632 = vpop.f32.mrf.mxu0
        %v2633 = vpop.f32.mrf.mxu0
        %v2634 = vadd.f32 0.0, %v2633
        %v2635 = vpop.f32.mrf.mxu0
        %2636 = vdwg.mxu0
        %v2637 = vadd.f32 %v2479, %v2631
        %v2638 = vadd.f32 %v2480, %v2634
        %v2639 = vpack.c.bf16 %v2638, %v2637
        %2640 = vmatprep.subr.bf16.mxu0 0
        %2641 = vmatpush1.bf16.msra.mxu0 0
        %2642 = vmatprep.subr.bf16.mxu0 0
        %2643 = vmatpush1.bf16.msra.mxu0 0
        %2644 = vmatprep.subr.bf16.mxu0 0
        %2645 = vmatpush1.bf16.msra.mxu0 0
        %2646 = vmatprep.subr.bf16.mxu0 0
        %2647 = vmatpush1.bf16.msra.mxu0 0
        %2648 = vmatprep.subr.bf16.mxu0 0
        %2649 = vmatpush1.bf16.msra.mxu0 0
        %2650 = vmatprep.subr.bf16.mxu0 0
        %2651 = vmatpush1.bf16.msra.mxu0 0
        %2652 = vmatprep.subr.bf16.mxu0 0
        %2653 = vmatpush1.bf16.msra.mxu0 0
        %2654 = vmatprep.subr.bf16.mxu0 0
        %2655 = vmatpush1.bf16.msra.mxu0 %v2639
        %2656 = vmatprep.subr.bf16.mxu0 0
        %2657 = vmatpush2.bf16.msra.mxu0 0
        %2658 = vmatprep.subr.bf16.mxu0 0
        %2659 = vmatpush2.bf16.msra.mxu0 0
        %2660 = vmatprep.subr.bf16.mxu0 0
        %2661 = vmatpush2.bf16.msra.mxu0 0
        %2662 = vmatprep.subr.bf16.mxu0 0
        %2663 = vmatpush2.bf16.msra.mxu0 0
        %2664 = vmatprep.subr.bf16.mxu0 0
        %2665 = vmatpush2.bf16.msra.mxu0 0
        %2666 = vmatprep.subr.bf16.mxu0 0
        %2667 = vmatpush2.bf16.msra.mxu0 0
        %2668 = vmatprep.subr.bf16.mxu0 0
        %2669 = vmatpush2.bf16.msra.mxu0 0
        %2670 = vmatprep.subr.bf16.mxu0 0
        %2671 = vmatpush2.bf16.msra.mxu0 0
        %2672 = vmatprep.mubr.bf16.mxu0 0
        %2673 = vmatmul.mubr.bf16.gmra.mxu0 %v2436
        %v2674 = vpop.f32.mrf.mxu0
        %v2675 = vadd.f32 0.0, %v2674
        %v2676 = vpop.f32.mrf.mxu0
        %v2677 = vpop.f32.mrf.mxu0
        %v2678 = vadd.f32 0.0, %v2677
        %v2679 = vpop.f32.mrf.mxu0
        %2680 = vdwg.mxu0
        %v2681 = vsub.f32 %v2637, %v2675
        %v2682 = vsub.f32 %v2638, %v2678
        %2683 = vst.msk [vmem:[#allocation2] sm:$0xff] %vm549, %v2681
        %2684 = vst.msk [vmem:[#allocation2 + $0x8] sm:$0xff] %vm549, %v2682
        %p2685 = scmp.eq.s32.totalorder %s31, 1
        // Predicated region
        $region73: #{tpu_custom_call.1} parent=67 // pred_check
          %p2686 = pneg %p2685
        $region74: #{tpu_custom_call.1} parent=67 // pred_check_branch
          %2688 = sbr.rel (%p2686) target = $region76
        $region75: #{tpu_custom_call.1} parent=67 // pred_region
          %v2689 = vld [vmem:[#allocation2] sm:$0xff]
          %v2690 = vld [vmem:[#allocation2 + $0x8] sm:$0xff]
          %v2691 = vsel %vm549, %v2689, 0.0
          %2692 = vadd.xlane.f32.xlu0 %v2691
          %v2693 = vpop.xlane.xlu0 %2692
          %v2694 = vsel %vm549, %v2690, 0.0
          %2695 = vadd.xlane.f32.xlu0 %v2694
          %v2696 = vpop.xlane.xlu0 %2695
          %v2697 = vrcp.pop 64.0
          %v2698 = vmul.f32 %v2693, %v2697
          %v2699 = vmul.f32 %v2696, %v2697
          %v2700 = vsub.f32 %v2689, %v2698
          %v2701 = vsub.f32 %v2690, %v2699
          %v2702 = vmul.f32 %v2700, %v2700
          %v2703 = vmul.f32 %v2701, %v2701
          %v2704 = vsel %vm549, %v2702, 0.0
          %2705 = vadd.xlane.f32.xlu0 %v2704
          %v2706 = vpop.xlane.xlu0 %2705
          %v2707 = vsel %vm549, %v2703, 0.0
          %2708 = vadd.xlane.f32.xlu0 %v2707
          %v2709 = vpop.xlane.xlu0 %2708
          %v2710 = vmul.f32 %v2706, %v2697
          %v2711 = vmul.f32 %v2709, %v2697
          %v2712 = vadd.f32 %v2710, 1e-05
          %v2713 = vadd.f32 %v2711, 1e-05
          %v2714 = vrsqrt.pop %v2712
          %v2715 = vrsqrt.pop %v2713
          %v2716 = vmul.f32 %v2700, %v2714
          %v2717 = vmul.f32 %v2701, %v2715
          %v2718 = vld [vmem:[%s10] sm:$0x1]
          %v2720 = vlaneseq
          %v2721 = vshrl.u32 %v2720, 7
          %v2722 = vsub.s32 0, %v2721
          %v2723 = vrot.slane %v2718, %v2722
          %v2725 = vmul.f32 %v2716, %v2723
          %v2726 = vmul.f32 %v2717, %v2723
          %v2727 = vld [vmem:[%s11] sm:$0x1]
          %v2729 = vlaneseq
          %v2730 = vshrl.u32 %v2729, 7
          %v2731 = vsub.s32 0, %v2730
          %v2732 = vrot.slane %v2727, %v2731
          %v2734 = vadd.f32 %v2725, %v2732
          %v2735 = vadd.f32 %v2726, %v2732
          %v2736 = vsel %vm549, %v2734, 0.0
          %v2737 = vsel %vm549, %v2735, 0.0
          %v2738 = vadd.f32 %v2736, %v2737
          %v2739 = vrot.slane %v2738, 4
          %v2740 = vadd.f32 %v2738, %v2739
          %v2741 = vrot.slane %v2740, 2
          %v2742 = vadd.f32 %v2740, %v2741
          %v2743 = vrot.slane %v2742, 1
          %v2744 = vadd.f32 %v2742, %v2743
          %v2745 = vrcp.pop 16.0
          %v2746 = vmul.f32 %v2744, %v2745
          %v2747 = vsub.f32 %v2734, %v2746
          %v2748 = vsub.f32 %v2735, %v2746
          %2749 = vst.msk [vmem:[%s478] sm:$0xff] %vm549, %v2747
          %2750 = vst.msk [vmem:[%s478 + $0x8] sm:$0xff] %vm549, %v2748
        $region76: #{tpu_custom_call.1} parent=67 // pred_fallthru
          _
        %s2751 = sand.u32 %s323, 1
        %s2752 = scalar_lea.sflag [#allocation4], %s2751
        %s2753 = sand.u32 %s323, 1
        %s2754 = smul.addr %s2753, 16
        %s2755 = scalar_lea.vmem [#allocation3], %s2754
        // Predicated region
        $region77: #{tpu_custom_call.1} parent=67 // pred_check
          %p2756 = pneg %p333
        $region78: #{tpu_custom_call.1} parent=67 // pred_check_branch
          %2758 = sbr.rel (%p2756) target = $region80
        $region79: #{tpu_custom_call.1} parent=67 // pred_region
          %s2760 = ssub.s32 256, 256
          %2761 = vsyncadd %s2752, %s2760
          %s2762 = smul.addr %s30, 2
          %s2763 = smul.addr %s2762, 128
          %s2764 = scalar_lea.hbm %s12, %s2763
          %s2765 = sshll.u32 %s2755, 4
          %s2766 = int_to_ptr.vmem [resolvable:$true] %s2765
          %2771 = dma.vmem_to_hbm [thread:$0]  %s2766, 256, %s2764, %s2752, 128, 128, 8
        $region80: #{tpu_custom_call.1} parent=67 // pred_fallthru
          _
      $region68: #{tpu_custom_call.1} parent=5 // pred_fallthru
        _
      %p2772 = scmp.le.s32.totalorder 2, %s21
      // Predicated region
      $region81: #{tpu_custom_call.1} parent=5 // pred_check
        %p2773 = pneg %p2772
      $region82: #{tpu_custom_call.1} parent=5 // pred_check_branch
        %2775 = sbr.rel (%p2773) target = $region84
      $region83: #{tpu_custom_call.1} parent=5 // pred_region
        %s2776 = ssub.s32 %s21, 2
        // Predicated region
        $region85: #{tpu_custom_call.1} parent=83 // pred_check
          %p2777 = pneg %p339
        $region86: #{tpu_custom_call.1} parent=83 // pred_check_branch
          %2779 = sbr.rel (%p2777) target = $region88
        $region87: #{tpu_custom_call.1} parent=83 // pred_region
          %s2780 = sand.u32 %s324, 1
          %s2781 = scalar_lea.sflag [#allocation4], %s2780
          %s2782 = sand.u32 %s324, 1
          %s2783 = smul.addr %s2782, 16
          %s2784 = scalar_lea.vmem [#allocation3], %s2783
          %2785 = dma.done %s2781, 256
        $region88: #{tpu_custom_call.1} parent=83 // pred_fallthru
          _
      $region84: #{tpu_custom_call.1} parent=5 // pred_fallthru
        _
    $region6: #{tpu_custom_call.1} parent=1 // loop_footer
      %s25 = sadd.s32 1, %s21
    $region7: #{tpu_custom_call.1} parent=1 // loop_footer_branch
      %20 = sbr.rel target = $region3
    $region8: #{tpu_custom_call.1} parent=1 // loop_exit
      _
    %2786 = vsyncpa [#allocation4], 1
    %s2787 = scalar_lea.sflag [#allocation4], 1
    %2788 = vsyncpa %s2787, 1

</llo_original>
